<compile_context>
chip_gen: v7x
topology: tpu7x:2x2x1
jax: 0.10.0
libtpu: 0.0.40
codegen_flags: <defaults>
</compile_context>

<pallas_src>
import functools

import jax
import jax.numpy as jnp
from jax.experimental import pallas as pl
from jax.experimental.pallas import tpu as pltpu


def _round_up(n, m):
    return ((n + m - 1) // m) * m


# ------------------------------ fused model kernel ------------------------------ #
def _lstm_fused_kernel(x_ref, *refs, num_layers, hidden_pad, t_blk, b_blk,
                       t_total, needs_mask):
    # x_ref:          (T_BLK, B_BLK, D_pad)  bf16  time-major input chunk
    # per layer l:    w_ih (Din_pad, 4*Hp) bf16, w_hh (Hp, 4*Hp) bf16, b (1, 4*Hp) f32
    # w_fc:           (Hp, 128) bf16,  b_fc: (1, 128) f32
    # out_ref:        (B_BLK, 128) f32     FC result (column 0 is the answer)
    # h_scr:          (num_layers, B_BLK, Hp) bf16   recurrent state (persists over grid)
    # c_scr:          (num_layers, B_BLK, Hp) f32
    # gates_a/gates_b:(T_BLK*B_BLK, 4*Hp) f32        ping-pong per-layer gate buffers
    n_w = 3 * num_layers
    layer_refs = refs[:n_w]
    w_fc_ref = refs[n_w]
    b_fc_ref = refs[n_w + 1]
    out_ref = refs[n_w + 2]
    h_scr = refs[n_w + 3]
    c_scr = refs[n_w + 4]
    gates_a = refs[n_w + 5]
    gates_b = refs[n_w + 6]
    gates_bufs = (gates_a, gates_b)

    Hp = hidden_pad
    cdt = layer_refs[0].dtype  # bf16
    kt = pl.program_id(1)

    # ---- init recurrent state at the first time chunk (per batch block) ----
    @pl.when(kt == 0)
    def _():
        h_scr[...] = jnp.zeros_like(h_scr)
        c_scr[...] = jnp.zeros_like(c_scr)

    # Hoisted layer-0 input projection + bias for the WHOLE chunk: one big GEMM.
    x2d = x_ref[...].reshape(t_blk * b_blk, x_ref.shape[-1])
    gates_a[...] = (
        jnp.dot(x2d, layer_refs[0][...], preferred_element_type=jnp.float32)
        + layer_refs[2][...]
    )

    # Unroll capped by live-vreg budget (big Hp / big B_BLK tiles spill if over-unrolled).
    if Hp <= 128 and b_blk <= 16:
        cap = 8
    elif Hp <= 256:
        cap = 4
    else:
        cap = 2
    unroll = max(u for u in (8, 4, 2, 1) if u <= cap and t_blk % u == 0)

    for l in range(num_layers):
        w_hh_ref = layer_refs[3 * l + 1]
        cur = gates_bufs[l % 2]
        is_last_layer = (l == num_layers - 1)
        if not is_last_layer:
            nxt = gates_bufs[(l + 1) % 2]
            w_ih_next = layer_refs[3 * (l + 1)]
            b_next = layer_refs[3 * (l + 1) + 2]

        def step(t, carry):
            row = pl.multiple_of(t * b_blk, b_blk)
            h_prev = h_scr[l]                       # (B_BLK, Hp) bf16
            c_prev = c_scr[l]                       # (B_BLK, Hp) f32
            # Serial path: only the recurrent matmul + nonlinearities.
            gates = cur[pl.ds(row, b_blk), :] + jnp.dot(
                h_prev, w_hh_ref[...], preferred_element_type=jnp.float32)
            i = jax.nn.sigmoid(gates[:, 0 * Hp:1 * Hp])
            f = jax.nn.sigmoid(gates[:, 1 * Hp:2 * Hp])
            g = jnp.tanh(gates[:, 2 * Hp:3 * Hp])
            o = jax.nn.sigmoid(gates[:, 3 * Hp:4 * Hp])
            c_new = f * c_prev + i * g
            h_new = o * jnp.tanh(c_new)
            if needs_mask:
                # Padded tail steps (t_pad > T): freeze the state.
                valid = (kt * t_blk + t) < t_total
                c_new = jnp.where(valid, c_new, c_prev)
                h_new = jnp.where(valid, h_new, h_prev.astype(jnp.float32))
            h_new_c = h_new.astype(cdt)
            h_scr[l] = h_new_c
            c_scr[l] = c_new
            if not is_last_layer:
                # Fold the NEXT layer's input projection into this (MXU-idle)
                # serial loop: gates for layer l+1 at this timestep.
                nxt[pl.ds(row, b_blk), :] = (
                    jnp.dot(h_new_c, w_ih_next[...],
                            preferred_element_type=jnp.float32)
                    + b_next[...]
                )
            return carry

        jax.lax.fori_loop(0, t_blk, step, 0, unroll=unroll)

    # ---- fused FC head: only at the last time chunk, on the final hidden state ----
    @pl.when(kt == pl.num_programs(1) - 1)
    def _():
        h_last = h_scr[num_layers - 1]              # bf16
        out_ref[...] = (
            jnp.dot(h_last, w_fc_ref[...], preferred_element_type=jnp.float32)
            + b_fc_ref[...]
        )


# ------------------------------- parameter init ------------------------------- #
def init_params(key, input_size, hidden_size, num_layers, *, param_dtype=jnp.bfloat16):
    """PyTorch-style U(-1/sqrt(H), 1/sqrt(H)) init, stored padded/transposed/bf16.

    Per layer (gate order [i,f,g,o], padded per-gate to Hp lanes, zeros in padding):
      w_ih_t: (Din_pad, 4*Hp)   w_hh_t: (Hp, 4*Hp)   b = b_ih+b_hh: (1, 4*Hp) f32
    FC head: w_fc_t: (Hp, 128) (real weights in column 0), b_fc: (1, 128) f32.
    """
    H = hidden_size
    Hp = _round_up(H, 128)
    k = 1.0 / (H ** 0.5)
    layers = []
    for layer in range(num_layers):
        in_dim = input_size if layer == 0 else H
        in_pad = _round_up(in_dim, 128)
        key, k1, k2, k3, k4 = jax.random.split(key, 5)
        w_ih = jax.random.uniform(k1, (4 * H, in_dim), jnp.float32, -k, k)
        w_hh = jax.random.uniform(k2, (4 * H, H), jnp.float32, -k, k)
        b_ih = jax.random.uniform(k3, (4 * H,), jnp.float32, -k, k)
        b_hh = jax.random.uniform(k4, (4 * H,), jnp.float32, -k, k)

        w_ih_t = w_ih.T.reshape(in_dim, 4, H)
        w_ih_t = jnp.pad(w_ih_t, ((0, in_pad - in_dim), (0, 0), (0, Hp - H)))
        w_hh_t = w_hh.T.reshape(H, 4, H)
        w_hh_t = jnp.pad(w_hh_t, ((0, Hp - H), (0, 0), (0, Hp - H)))
        b = jnp.pad((b_ih + b_hh).reshape(4, H), ((0, 0), (0, Hp - H)))
        layers.append({
            "w_ih_t": w_ih_t.reshape(in_pad, 4 * Hp).astype(param_dtype),
            "w_hh_t": w_hh_t.reshape(Hp, 4 * Hp).astype(param_dtype),
            "b": b.reshape(1, 4 * Hp).astype(jnp.float32),
        })

    key, k5, k6 = jax.random.split(key, 3)
    w_fc = jax.random.uniform(k5, (1, H), jnp.float32, -k, k)
    b_fc = jax.random.uniform(k6, (1,), jnp.float32, -k, k)
    FC_PAD = 128
    w_fc_t = jnp.zeros((Hp, FC_PAD), jnp.float32).at[:H, 0].set(w_fc[0])
    b_fc_row = jnp.zeros((1, FC_PAD), jnp.float32).at[0, 0].set(b_fc[0])
    return {
        "layers": layers,
        "w_fc_t": w_fc_t.astype(param_dtype),
        "b_fc": b_fc_row,
    }


# --------------------------------- forward pass -------------------------------- #
def _nbytes(a):
    return a.size * a.dtype.itemsize


@functools.partial(jax.jit, static_argnames=("t_blk", "single_buffer_weights"))
def lstm_model_forward(params, x, t_blk=None, single_buffer_weights=True):
    """x: (B, T, input_size) batch-first, like the PyTorch module. Returns (B, 1)."""
    B, T, D = x.shape
    layers = params["layers"]
    num_layers = len(layers)
    d_pad = layers[0]["w_ih_t"].shape[0]
    hp = layers[0]["w_hh_t"].shape[0]
    fc_pad = params["w_fc_t"].shape[1]
    compute_dtype = params["w_fc_t"].dtype

    # ---------------- tile sizing (VMEM aware) ----------------
    try:
        vmem_cap = int(pltpu.get_tpu_info().vmem_capacity_bytes)
    except Exception:
        vmem_cap = 64 * 1024 * 1024          # safe for v5e/v6e/v7x
    scratch_budget = min(24 * 1024 * 1024, vmem_cap // 3)

    b_pad8 = _round_up(B, 8)
    B_BLK = min(128, b_pad8)                 # fill the MXU LHS; multiple of 8

    def scratch_bytes(tb, bb):
        n_gates = 2 if num_layers > 1 else 1
        gates = n_gates * tb * bb * 4 * hp * 4       # f32 ping-pong gate buffers
        state = num_layers * bb * hp * (2 + 4)       # bf16 h + f32 c
        xchunk = 2 * tb * bb * d_pad * 2             # double-buffered bf16 input
        return gates + state + xchunk

    if t_blk is None:
        t_blk = min(32, _round_up(T, 8))
        while t_blk > 8 and scratch_bytes(t_blk, B_BLK) > scratch_budget:
            t_blk //= 2
    while B_BLK > 8 and scratch_bytes(t_blk, B_BLK) > scratch_budget:
        B_BLK = max(8, _round_up(B_BLK // 2, 8))

    b_pad = _round_up(B, B_BLK)
    T_pad = _round_up(T, t_blk)
    needs_mask = (T_pad != T)

    # batch-first -> time-major; cast to bf16 FIRST (halves the HBM pass), then
    # zero-pad time, batch (sublanes) and features (lanes).
    x_tm = jnp.transpose(x.astype(compute_dtype), (1, 0, 2))
    x_tm = jnp.pad(x_tm, ((0, T_pad - T), (0, b_pad - B), (0, d_pad - D)))

    grid = (b_pad // B_BLK, T_pad // t_blk)

    # Constant-index weights/biases: single-buffered (they never change).
    weight_kwargs = {}
    if single_buffer_weights:
        weight_kwargs = dict(pipeline_mode=pl.Buffered(1))

    def const_spec(shape):
        return pl.BlockSpec(shape, lambda nb, kt: (0, 0), **weight_kwargs)

    in_specs = [pl.BlockSpec((t_blk, B_BLK, d_pad), lambda nb, kt: (kt, nb, 0))]
    inputs = [x_tm]
    for layer in layers:
        in_specs += [const_spec(layer["w_ih_t"].shape),
                     const_spec(layer["w_hh_t"].shape),
                     const_spec(layer["b"].shape)]
        inputs += [layer["w_ih_t"], layer["w_hh_t"], layer["b"]]
    in_specs += [const_spec(params["w_fc_t"].shape),
                 const_spec(params["b_fc"].shape)]
    inputs += [params["w_fc_t"], params["b_fc"]]

    # ---------------- derived VMEM limit ----------------
    weight_bytes = sum(_nbytes(layer[k]) for layer in layers
                       for k in ("w_ih_t", "w_hh_t", "b"))
    weight_bytes += _nbytes(params["w_fc_t"]) + _nbytes(params["b_fc"])
    wbuf = 1 if single_buffer_weights else 2
    io_bytes = 2 * t_blk * B_BLK * d_pad * 2 + 2 * B_BLK * fc_pad * 4
    total_bytes = wbuf * weight_bytes + io_bytes + scratch_bytes(t_blk, B_BLK)
    vmem_limit = int(min(max(total_bytes * 5 // 4 + (4 << 20), 32 << 20),
                         vmem_cap * 7 // 8))

    gates_rows = t_blk * B_BLK
    scratch_shapes = [
        pltpu.VMEM((num_layers, B_BLK, hp), compute_dtype),   # h state (bf16)
        pltpu.VMEM((num_layers, B_BLK, hp), jnp.float32),     # c state (f32)
        pltpu.VMEM((gates_rows, 4 * hp), jnp.float32),        # gates ping
        (pltpu.VMEM((gates_rows, 4 * hp), jnp.float32)        # gates pong
         if num_layers > 1 else pltpu.VMEM((8, 128), jnp.float32)),
    ]

    kernel = functools.partial(
        _lstm_fused_kernel,
        num_layers=num_layers,
        hidden_pad=hp,
        t_blk=t_blk,
        b_blk=B_BLK,
        t_total=T,
        needs_mask=needs_mask,
    )

    out = pl.pallas_call(
        kernel,
        out_shape=jax.ShapeDtypeStruct((b_pad, fc_pad), jnp.float32),
        grid=grid,
        in_specs=in_specs,
        out_specs=pl.BlockSpec((B_BLK, fc_pad), lambda nb, kt: (nb, 0)),
        scratch_shapes=scratch_shapes,
        compiler_params=pltpu.CompilerParams(
            dimension_semantics=("parallel", "arbitrary"),
            vmem_limit_bytes=vmem_limit,
        ),
    )(*inputs)

    return out[:B, 0:1]


# ------------------------- pure-JAX reference (same precision) ------------------------ #
def reference_forward(params, x):
    B, T, D = x.shape
    layers = params["layers"]
    d_pad = layers[0]["w_ih_t"].shape[0]
    hp = layers[0]["w_hh_t"].shape[0]
    cdtype = params["w_fc_t"].dtype

    seq = jnp.pad(x.astype(jnp.float32), ((0, 0), (0, 0), (0, d_pad - D)))
    for layer in layers:
        w_ih, w_hh, b = layer["w_ih_t"], layer["w_hh_t"], layer["b"]

        def step(carry, x_t):
            h, c = carry
            gates = (
                jnp.dot(x_t.astype(cdtype), w_ih, preferred_element_type=jnp.float32)
                + jnp.dot(h.astype(cdtype), w_hh, preferred_element_type=jnp.float32)
                + b
            )
            i, f, g, o = jnp.split(gates, 4, axis=-1)
            c = jax.nn.sigmoid(f) * c + jax.nn.sigmoid(i) * jnp.tanh(g)
            h = jax.nn.sigmoid(o) * jnp.tanh(c)
            return (h, c), h

        init = (jnp.zeros((B, hp), jnp.float32), jnp.zeros((B, hp), jnp.float32))
        (_, _), hs = jax.lax.scan(step, init, jnp.transpose(seq, (1, 0, 2)))
        seq = jnp.transpose(hs, (1, 0, 2))
    h_last = seq[:, -1, :]
    out = (
        jnp.dot(h_last.astype(cdtype), params["w_fc_t"], preferred_element_type=jnp.float32)
        + params["b_fc"]
    )
    return out[:, 0:1]


if __name__ == "__main__":
    input_size = 4
    hidden_size = 32
    num_layers = 2
    batch = 2
    seq = 8

    key = jax.random.PRNGKey(0)
    key, pkey, xkey = jax.random.split(key, 3)
    params = init_params(pkey, input_size, hidden_size, num_layers)
    x = jax.random.normal(xkey, (batch, seq, input_size), jnp.float32)

    def run(inp, t_blk):
        try:
            return jax.block_until_ready(lstm_model_forward(params, inp, t_blk=t_blk))
        except Exception:
            # Fallback if single-buffered weight specs (pl.Buffered(1)) are rejected.
            return jax.block_until_ready(
                lstm_model_forward(params, inp, t_blk=t_blk, single_buffer_weights=False))

    # t_blk=4 -> grid=(1, 2): exercises the chunked time grid with scratch-carried h/c.
    out = run(x, 4)
    assert out.shape == (batch, 1), out.shape
    ref = reference_forward(params, x)
    err = float(jnp.max(jnp.abs(out - ref)))
    assert err < 1e-3, f"mismatch vs reference: max abs err {err}"
    assert bool(jnp.all(jnp.isfinite(out))), "non-finite output"

    # Ragged sequence length: T=7 padded to 8, exercises the masked-tail path.
    x7 = x[:, :7, :]
    out7 = run(x7, 4)
    ref7 = reference_forward(params, x7)
    err7 = float(jnp.max(jnp.abs(out7 - ref7)))
    assert err7 < 1e-3, f"mismatch vs reference (masked tail): max abs err {err7}"

    print("KERNEL_OK")
</pallas_src>

<mosaic_0001>
module attributes {stable_mosaic.version = 11 : i64} {
  func.func @_lstm_fused_kernel(%arg0: i32, %arg1: i32, %arg2: memref<4x8x128xbf16, #tpu.memory_space<vmem>>, %arg3: memref<128x512xbf16, #tpu.memory_space<vmem>>, %arg4: memref<128x512xbf16, #tpu.memory_space<vmem>>, %arg5: memref<1x512xf32, #tpu.memory_space<vmem>>, %arg6: memref<128x512xbf16, #tpu.memory_space<vmem>>, %arg7: memref<128x512xbf16, #tpu.memory_space<vmem>>, %arg8: memref<1x512xf32, #tpu.memory_space<vmem>>, %arg9: memref<128x128xbf16, #tpu.memory_space<vmem>>, %arg10: memref<1x128xf32, #tpu.memory_space<vmem>>, %arg11: memref<8x128xf32, #tpu.memory_space<vmem>>, %arg12: memref<2x8x128xbf16, #tpu.memory_space<vmem>>, %arg13: memref<2x8x128xf32, #tpu.memory_space<vmem>>, %arg14: memref<32x512xf32, #tpu.memory_space<vmem>>, %arg15: memref<32x512xf32, #tpu.memory_space<vmem>>) attributes {dimension_semantics = [#tpu.dimension_semantics<parallel>, #tpu.dimension_semantics<arbitrary>], iteration_bounds = array<i64: 1, 2>, scalar_prefetch = 0 : i64, scratch_operands = 4 : i64, tpu.core_type = #tpu.core_type<tc>, window_params = [{transform_indices = @transform_0, window_bounds = array<i64: 4, 8, 128>}, {pipeline_mode = #tpu.pipeline_mode<synchronous>, transform_indices = @transform_1, window_bounds = array<i64: 128, 512>}, {pipeline_mode = #tpu.pipeline_mode<synchronous>, transform_indices = @transform_2, window_bounds = array<i64: 128, 512>}, {pipeline_mode = #tpu.pipeline_mode<synchronous>, transform_indices = @transform_3, window_bounds = array<i64: 1, 512>}, {pipeline_mode = #tpu.pipeline_mode<synchronous>, transform_indices = @transform_4, window_bounds = array<i64: 128, 512>}, {pipeline_mode = #tpu.pipeline_mode<synchronous>, transform_indices = @transform_5, window_bounds = array<i64: 128, 512>}, {pipeline_mode = #tpu.pipeline_mode<synchronous>, transform_indices = @transform_6, window_bounds = array<i64: 1, 512>}, {pipeline_mode = #tpu.pipeline_mode<synchronous>, transform_indices = @transform_7, window_bounds = array<i64: 128, 128>}, {pipeline_mode = #tpu.pipeline_mode<synchronous>, transform_indices = @transform_8, window_bounds = array<i64: 1, 128>}, {transform_indices = @transform_9, window_bounds = array<i64: 8, 128>}]} {
    %c0_i32 = arith.constant 0 : i32
    %0 = arith.cmpi eq, %arg1, %c0_i32 : i32
    %1 = arith.extui %0 : i1 to i32
    %c0_i32_0 = arith.constant 0 : i32
    %2 = arith.cmpi ne, %1, %c0_i32_0 : i32
    scf.if %2 {
      %cst_199 = arith.constant 0.000000e+00 : bf16
      %386 = vector.broadcast %cst_199 : bf16 to vector<2x8x128xbf16>
      %c0_200 = arith.constant 0 : index
      %c0_201 = arith.constant 0 : index
      %c0_202 = arith.constant 0 : index
      %387 = vector.load %arg12[%c0_200, %c0_201, %c0_202] : memref<2x8x128xbf16, #tpu.memory_space<vmem>>, vector<2x8x128xbf16>
      tpu.vector_store %arg12[%c0_200, %c0_201, %c0_202], %386 {strides = array<i32>} : memref<2x8x128xbf16, #tpu.memory_space<vmem>>, vector<2x8x128xbf16>,
      %cst_203 = arith.constant 0.000000e+00 : f32
      %388 = vector.broadcast %cst_203 : f32 to vector<2x8x128xf32>
      %c0_204 = arith.constant 0 : index
      %c0_205 = arith.constant 0 : index
      %c0_206 = arith.constant 0 : index
      %389 = vector.load %arg13[%c0_204, %c0_205, %c0_206] : memref<2x8x128xf32, #tpu.memory_space<vmem>>, vector<2x8x128xf32>
      tpu.vector_store %arg13[%c0_204, %c0_205, %c0_206], %388 {strides = array<i32>} : memref<2x8x128xf32, #tpu.memory_space<vmem>>, vector<2x8x128xf32>,
    } else {
    }
    %c0 = arith.constant 0 : index
    %c0_1 = arith.constant 0 : index
    %c0_2 = arith.constant 0 : index
    %3 = vector.load %arg2[%c0, %c0_1, %c0_2] : memref<4x8x128xbf16, #tpu.memory_space<vmem>>, vector<4x8x128xbf16>
    %4 = vector.shape_cast %3 : vector<4x8x128xbf16> to vector<32x128xbf16>
    %c0_3 = arith.constant 0 : index
    %c0_4 = arith.constant 0 : index
    %5 = vector.load %arg3[%c0_3, %c0_4] : memref<128x512xbf16, #tpu.memory_space<vmem>>, vector<128x512xbf16>
    %cst = arith.constant dense<0.000000e+00> : vector<32x512xf32>
    %6 = tpu.matmul %4, %5, %cst {dimension_numbers = #tpu.dot_dimension_numbers<[1], [0], [0], [1], [0, 0, 1, 1], [], []>} : vector<32x128xbf16>, vector<128x512xbf16>, vector<32x512xf32> -> vector<32x512xf32>
    %c0_5 = arith.constant 0 : index
    %c0_6 = arith.constant 0 : index
    %7 = vector.load %arg5[%c0_5, %c0_6] : memref<1x512xf32, #tpu.memory_space<vmem>>, vector<1x512xf32>
    %8 = vector.broadcast %7 : vector<1x512xf32> to vector<32x512xf32>
    %9 = arith.addf %6, %8 : vector<32x512xf32>
    %c0_7 = arith.constant 0 : index
    %c0_8 = arith.constant 0 : index
    %10 = vector.load %arg14[%c0_7, %c0_8] : memref<32x512xf32, #tpu.memory_space<vmem>>, vector<32x512xf32>
    tpu.vector_store %arg14[%c0_7, %c0_8], %9 {strides = array<i32>} : memref<32x512xf32, #tpu.memory_space<vmem>>, vector<32x512xf32>,
    %c0_i32_9 = arith.constant 0 : i32
    %c8_i32 = arith.constant 8 : i32
    %11 = arith.muli %c0_i32_9, %c8_i32 : i32
    %12 = tpu.assume_multiple %11, 8 : i32
    %c0_10 = arith.constant 0 : index
    %c0_11 = arith.constant 0 : index
    %c0_12 = arith.constant 0 : index
    %13 = vector.load %arg12[%c0_10, %c0_11, %c0_12] : memref<2x8x128xbf16, #tpu.memory_space<vmem>>, vector<1x8x128xbf16>
    %14 = vector.shape_cast %13 : vector<1x8x128xbf16> to vector<8x128xbf16>
    %c0_13 = arith.constant 0 : index
    %c0_14 = arith.constant 0 : index
    %c0_15 = arith.constant 0 : index
    %15 = vector.load %arg13[%c0_13, %c0_14, %c0_15] : memref<2x8x128xf32, #tpu.memory_space<vmem>>, vector<1x8x128xf32>
    %16 = vector.shape_cast %15 : vector<1x8x128xf32> to vector<8x128xf32>
    %17 = arith.index_cast %12 : i32 to index
    %c0_16 = arith.constant 0 : index
    %18 = vector.load %arg14[%17, %c0_16] : memref<32x512xf32, #tpu.memory_space<vmem>>, vector<8x512xf32>
    %c0_17 = arith.constant 0 : index
    %c0_18 = arith.constant 0 : index
    %19 = vector.load %arg4[%c0_17, %c0_18] : memref<128x512xbf16, #tpu.memory_space<vmem>>, vector<128x512xbf16>
    %cst_19 = arith.constant dense<0.000000e+00> : vector<8x512xf32>
    %20 = tpu.matmul %14, %19, %cst_19 {dimension_numbers = #tpu.dot_dimension_numbers<[1], [0], [0], [1], [0, 0, 1, 1], [], []>} : vector<8x128xbf16>, vector<128x512xbf16>, vector<8x512xf32> -> vector<8x512xf32>
    %21 = arith.addf %18, %20 : vector<8x512xf32>
    %22 = vector.extract_strided_slice %21 {offsets = [0, 0], sizes = [8, 128], strides = [1, 1]} : vector<8x512xf32> to vector<8x128xf32>
    %23 = arith.negf %22 : vector<8x128xf32>
    %24 = math.exp %23 : vector<8x128xf32>
    %cst_20 = arith.constant 1.000000e+00 : f32
    %25 = vector.broadcast %cst_20 : f32 to vector<8x128xf32>
    %26 = arith.addf %25, %24 : vector<8x128xf32>
    %27 = arith.divf %25, %26 : vector<8x128xf32>
    %28 = vector.extract_strided_slice %21 {offsets = [0, 128], sizes = [8, 128], strides = [1, 1]} : vector<8x512xf32> to vector<8x128xf32>
    %29 = arith.negf %28 : vector<8x128xf32>
    %30 = math.exp %29 : vector<8x128xf32>
    %cst_21 = arith.constant 1.000000e+00 : f32
    %31 = vector.broadcast %cst_21 : f32 to vector<8x128xf32>
    %32 = arith.addf %31, %30 : vector<8x128xf32>
    %33 = arith.divf %31, %32 : vector<8x128xf32>
    %34 = vector.extract_strided_slice %21 {offsets = [0, 256], sizes = [8, 128], strides = [1, 1]} : vector<8x512xf32> to vector<8x128xf32>
    %35 = math.tanh %34 : vector<8x128xf32>
    %36 = vector.extract_strided_slice %21 {offsets = [0, 384], sizes = [8, 128], strides = [1, 1]} : vector<8x512xf32> to vector<8x128xf32>
    %37 = arith.negf %36 : vector<8x128xf32>
    %38 = math.exp %37 : vector<8x128xf32>
    %cst_22 = arith.constant 1.000000e+00 : f32
    %39 = vector.broadcast %cst_22 : f32 to vector<8x128xf32>
    %40 = arith.addf %39, %38 : vector<8x128xf32>
    %41 = arith.divf %39, %40 : vector<8x128xf32>
    %42 = arith.mulf %33, %16 : vector<8x128xf32>
    %43 = arith.mulf %27, %35 : vector<8x128xf32>
    %44 = arith.addf %42, %43 : vector<8x128xf32>
    %45 = math.tanh %44 : vector<8x128xf32>
    %46 = arith.mulf %41, %45 : vector<8x128xf32>
    %47 = arith.truncf %46 : vector<8x128xf32> to vector<8x128xbf16>
    %c0_23 = arith.constant 0 : index
    %c0_24 = arith.constant 0 : index
    %c0_25 = arith.constant 0 : index
    %48 = vector.load %arg12[%c0_23, %c0_24, %c0_25] : memref<2x8x128xbf16, #tpu.memory_space<vmem>>, vector<1x8x128xbf16>
    %49 = vector.shape_cast %48 : vector<1x8x128xbf16> to vector<8x128xbf16>
    %50 = vector.shape_cast %47 : vector<8x128xbf16> to vector<1x8x128xbf16>
    tpu.vector_store %arg12[%c0_23, %c0_24, %c0_25], %50 {strides = array<i32>} : memref<2x8x128xbf16, #tpu.memory_space<vmem>>, vector<1x8x128xbf16>,
    %c0_26 = arith.constant 0 : index
    %c0_27 = arith.constant 0 : index
    %c0_28 = arith.constant 0 : index
    %51 = vector.load %arg13[%c0_26, %c0_27, %c0_28] : memref<2x8x128xf32, #tpu.memory_space<vmem>>, vector<1x8x128xf32>
    %52 = vector.shape_cast %51 : vector<1x8x128xf32> to vector<8x128xf32>
    %53 = vector.shape_cast %44 : vector<8x128xf32> to vector<1x8x128xf32>
    tpu.vector_store %arg13[%c0_26, %c0_27, %c0_28], %53 {strides = array<i32>} : memref<2x8x128xf32, #tpu.memory_space<vmem>>, vector<1x8x128xf32>,
    %c0_29 = arith.constant 0 : index
    %c0_30 = arith.constant 0 : index
    %54 = vector.load %arg6[%c0_29, %c0_30] : memref<128x512xbf16, #tpu.memory_space<vmem>>, vector<128x512xbf16>
    %cst_31 = arith.constant dense<0.000000e+00> : vector<8x512xf32>
    %55 = tpu.matmul %47, %54, %cst_31 {dimension_numbers = #tpu.dot_dimension_numbers<[1], [0], [0], [1], [0, 0, 1, 1], [], []>} : vector<8x128xbf16>, vector<128x512xbf16>, vector<8x512xf32> -> vector<8x512xf32>
    %c0_32 = arith.constant 0 : index
    %c0_33 = arith.constant 0 : index
    %56 = vector.load %arg8[%c0_32, %c0_33] : memref<1x512xf32, #tpu.memory_space<vmem>>, vector<1x512xf32>
    %57 = vector.broadcast %56 : vector<1x512xf32> to vector<8x512xf32>
    %58 = arith.addf %55, %57 : vector<8x512xf32>
    %59 = arith.index_cast %12 : i32 to index
    %c0_34 = arith.constant 0 : index
    %60 = vector.load %arg15[%59, %c0_34] : memref<32x512xf32, #tpu.memory_space<vmem>>, vector<8x512xf32>
    tpu.vector_store %arg15[%59, %c0_34], %58 {strides = array<i32>} : memref<32x512xf32, #tpu.memory_space<vmem>>, vector<8x512xf32>,
    %c1_i32 = arith.constant 1 : i32
    %c8_i32_35 = arith.constant 8 : i32
    %61 = arith.muli %c1_i32, %c8_i32_35 : i32
    %62 = tpu.assume_multiple %61, 8 : i32
    %c0_36 = arith.constant 0 : index
    %c0_37 = arith.constant 0 : index
    %c0_38 = arith.constant 0 : index
    %63 = vector.load %arg12[%c0_36, %c0_37, %c0_38] : memref<2x8x128xbf16, #tpu.memory_space<vmem>>, vector<1x8x128xbf16>
    %64 = vector.shape_cast %63 : vector<1x8x128xbf16> to vector<8x128xbf16>
    %c0_39 = arith.constant 0 : index
    %c0_40 = arith.constant 0 : index
    %c0_41 = arith.constant 0 : index
    %65 = vector.load %arg13[%c0_39, %c0_40, %c0_41] : memref<2x8x128xf32, #tpu.memory_space<vmem>>, vector<1x8x128xf32>
    %66 = vector.shape_cast %65 : vector<1x8x128xf32> to vector<8x128xf32>
    %67 = arith.index_cast %62 : i32 to index
    %c0_42 = arith.constant 0 : index
    %68 = vector.load %arg14[%67, %c0_42] : memref<32x512xf32, #tpu.memory_space<vmem>>, vector<8x512xf32>
    %c0_43 = arith.constant 0 : index
    %c0_44 = arith.constant 0 : index
    %69 = vector.load %arg4[%c0_43, %c0_44] : memref<128x512xbf16, #tpu.memory_space<vmem>>, vector<128x512xbf16>
    %cst_45 = arith.constant dense<0.000000e+00> : vector<8x512xf32>
    %70 = tpu.matmul %64, %69, %cst_45 {dimension_numbers = #tpu.dot_dimension_numbers<[1], [0], [0], [1], [0, 0, 1, 1], [], []>} : vector<8x128xbf16>, vector<128x512xbf16>, vector<8x512xf32> -> vector<8x512xf32>
    %71 = arith.addf %68, %70 : vector<8x512xf32>
    %72 = vector.extract_strided_slice %71 {offsets = [0, 0], sizes = [8, 128], strides = [1, 1]} : vector<8x512xf32> to vector<8x128xf32>
    %73 = arith.negf %72 : vector<8x128xf32>
    %74 = math.exp %73 : vector<8x128xf32>
    %cst_46 = arith.constant 1.000000e+00 : f32
    %75 = vector.broadcast %cst_46 : f32 to vector<8x128xf32>
    %76 = arith.addf %75, %74 : vector<8x128xf32>
    %77 = arith.divf %75, %76 : vector<8x128xf32>
    %78 = vector.extract_strided_slice %71 {offsets = [0, 128], sizes = [8, 128], strides = [1, 1]} : vector<8x512xf32> to vector<8x128xf32>
    %79 = arith.negf %78 : vector<8x128xf32>
    %80 = math.exp %79 : vector<8x128xf32>
    %cst_47 = arith.constant 1.000000e+00 : f32
    %81 = vector.broadcast %cst_47 : f32 to vector<8x128xf32>
    %82 = arith.addf %81, %80 : vector<8x128xf32>
    %83 = arith.divf %81, %82 : vector<8x128xf32>
    %84 = vector.extract_strided_slice %71 {offsets = [0, 256], sizes = [8, 128], strides = [1, 1]} : vector<8x512xf32> to vector<8x128xf32>
    %85 = math.tanh %84 : vector<8x128xf32>
    %86 = vector.extract_strided_slice %71 {offsets = [0, 384], sizes = [8, 128], strides = [1, 1]} : vector<8x512xf32> to vector<8x128xf32>
    %87 = arith.negf %86 : vector<8x128xf32>
    %88 = math.exp %87 : vector<8x128xf32>
    %cst_48 = arith.constant 1.000000e+00 : f32
    %89 = vector.broadcast %cst_48 : f32 to vector<8x128xf32>
    %90 = arith.addf %89, %88 : vector<8x128xf32>
    %91 = arith.divf %89, %90 : vector<8x128xf32>
    %92 = arith.mulf %83, %66 : vector<8x128xf32>
    %93 = arith.mulf %77, %85 : vector<8x128xf32>
    %94 = arith.addf %92, %93 : vector<8x128xf32>
    %95 = math.tanh %94 : vector<8x128xf32>
    %96 = arith.mulf %91, %95 : vector<8x128xf32>
    %97 = arith.truncf %96 : vector<8x128xf32> to vector<8x128xbf16>
    %c0_49 = arith.constant 0 : index
    %c0_50 = arith.constant 0 : index
    %c0_51 = arith.constant 0 : index
    %98 = vector.load %arg12[%c0_49, %c0_50, %c0_51] : memref<2x8x128xbf16, #tpu.memory_space<vmem>>, vector<1x8x128xbf16>
    %99 = vector.shape_cast %98 : vector<1x8x128xbf16> to vector<8x128xbf16>
    %100 = vector.shape_cast %97 : vector<8x128xbf16> to vector<1x8x128xbf16>
    tpu.vector_store %arg12[%c0_49, %c0_50, %c0_51], %100 {strides = array<i32>} : memref<2x8x128xbf16, #tpu.memory_space<vmem>>, vector<1x8x128xbf16>,
    %c0_52 = arith.constant 0 : index
    %c0_53 = arith.constant 0 : index
    %c0_54 = arith.constant 0 : index
    %101 = vector.load %arg13[%c0_52, %c0_53, %c0_54] : memref<2x8x128xf32, #tpu.memory_space<vmem>>, vector<1x8x128xf32>
    %102 = vector.shape_cast %101 : vector<1x8x128xf32> to vector<8x128xf32>
    %103 = vector.shape_cast %94 : vector<8x128xf32> to vector<1x8x128xf32>
    tpu.vector_store %arg13[%c0_52, %c0_53, %c0_54], %103 {strides = array<i32>} : memref<2x8x128xf32, #tpu.memory_space<vmem>>, vector<1x8x128xf32>,
    %c0_55 = arith.constant 0 : index
    %c0_56 = arith.constant 0 : index
    %104 = vector.load %arg6[%c0_55, %c0_56] : memref<128x512xbf16, #tpu.memory_space<vmem>>, vector<128x512xbf16>
    %cst_57 = arith.constant dense<0.000000e+00> : vector<8x512xf32>
    %105 = tpu.matmul %97, %104, %cst_57 {dimension_numbers = #tpu.dot_dimension_numbers<[1], [0], [0], [1], [0, 0, 1, 1], [], []>} : vector<8x128xbf16>, vector<128x512xbf16>, vector<8x512xf32> -> vector<8x512xf32>
    %c0_58 = arith.constant 0 : index
    %c0_59 = arith.constant 0 : index
    %106 = vector.load %arg8[%c0_58, %c0_59] : memref<1x512xf32, #tpu.memory_space<vmem>>, vector<1x512xf32>
    %107 = vector.broadcast %106 : vector<1x512xf32> to vector<8x512xf32>
    %108 = arith.addf %105, %107 : vector<8x512xf32>
    %109 = arith.index_cast %62 : i32 to index
    %c0_60 = arith.constant 0 : index
    %110 = vector.load %arg15[%109, %c0_60] : memref<32x512xf32, #tpu.memory_space<vmem>>, vector<8x512xf32>
    tpu.vector_store %arg15[%109, %c0_60], %108 {strides = array<i32>} : memref<32x512xf32, #tpu.memory_space<vmem>>, vector<8x512xf32>,
    %c2_i32 = arith.constant 2 : i32
    %c8_i32_61 = arith.constant 8 : i32
    %111 = arith.muli %c2_i32, %c8_i32_61 : i32
    %112 = tpu.assume_multiple %111, 8 : i32
    %c0_62 = arith.constant 0 : index
    %c0_63 = arith.constant 0 : index
    %c0_64 = arith.constant 0 : index
    %113 = vector.load %arg12[%c0_62, %c0_63, %c0_64] : memref<2x8x128xbf16, #tpu.memory_space<vmem>>, vector<1x8x128xbf16>
    %114 = vector.shape_cast %113 : vector<1x8x128xbf16> to vector<8x128xbf16>
    %c0_65 = arith.constant 0 : index
    %c0_66 = arith.constant 0 : index
    %c0_67 = arith.constant 0 : index
    %115 = vector.load %arg13[%c0_65, %c0_66, %c0_67] : memref<2x8x128xf32, #tpu.memory_space<vmem>>, vector<1x8x128xf32>
    %116 = vector.shape_cast %115 : vector<1x8x128xf32> to vector<8x128xf32>
    %117 = arith.index_cast %112 : i32 to index
    %c0_68 = arith.constant 0 : index
    %118 = vector.load %arg14[%117, %c0_68] : memref<32x512xf32, #tpu.memory_space<vmem>>, vector<8x512xf32>
    %c0_69 = arith.constant 0 : index
    %c0_70 = arith.constant 0 : index
    %119 = vector.load %arg4[%c0_69, %c0_70] : memref<128x512xbf16, #tpu.memory_space<vmem>>, vector<128x512xbf16>
    %cst_71 = arith.constant dense<0.000000e+00> : vector<8x512xf32>
    %120 = tpu.matmul %114, %119, %cst_71 {dimension_numbers = #tpu.dot_dimension_numbers<[1], [0], [0], [1], [0, 0, 1, 1], [], []>} : vector<8x128xbf16>, vector<128x512xbf16>, vector<8x512xf32> -> vector<8x512xf32>
    %121 = arith.addf %118, %120 : vector<8x512xf32>
    %122 = vector.extract_strided_slice %121 {offsets = [0, 0], sizes = [8, 128], strides = [1, 1]} : vector<8x512xf32> to vector<8x128xf32>
    %123 = arith.negf %122 : vector<8x128xf32>
    %124 = math.exp %123 : vector<8x128xf32>
    %cst_72 = arith.constant 1.000000e+00 : f32
    %125 = vector.broadcast %cst_72 : f32 to vector<8x128xf32>
    %126 = arith.addf %125, %124 : vector<8x128xf32>
    %127 = arith.divf %125, %126 : vector<8x128xf32>
    %128 = vector.extract_strided_slice %121 {offsets = [0, 128], sizes = [8, 128], strides = [1, 1]} : vector<8x512xf32> to vector<8x128xf32>
    %129 = arith.negf %128 : vector<8x128xf32>
    %130 = math.exp %129 : vector<8x128xf32>
    %cst_73 = arith.constant 1.000000e+00 : f32
    %131 = vector.broadcast %cst_73 : f32 to vector<8x128xf32>
    %132 = arith.addf %131, %130 : vector<8x128xf32>
    %133 = arith.divf %131, %132 : vector<8x128xf32>
    %134 = vector.extract_strided_slice %121 {offsets = [0, 256], sizes = [8, 128], strides = [1, 1]} : vector<8x512xf32> to vector<8x128xf32>
    %135 = math.tanh %134 : vector<8x128xf32>
    %136 = vector.extract_strided_slice %121 {offsets = [0, 384], sizes = [8, 128], strides = [1, 1]} : vector<8x512xf32> to vector<8x128xf32>
    %137 = arith.negf %136 : vector<8x128xf32>
    %138 = math.exp %137 : vector<8x128xf32>
    %cst_74 = arith.constant 1.000000e+00 : f32
    %139 = vector.broadcast %cst_74 : f32 to vector<8x128xf32>
    %140 = arith.addf %139, %138 : vector<8x128xf32>
    %141 = arith.divf %139, %140 : vector<8x128xf32>
    %142 = arith.mulf %133, %116 : vector<8x128xf32>
    %143 = arith.mulf %127, %135 : vector<8x128xf32>
    %144 = arith.addf %142, %143 : vector<8x128xf32>
    %145 = math.tanh %144 : vector<8x128xf32>
    %146 = arith.mulf %141, %145 : vector<8x128xf32>
    %147 = arith.truncf %146 : vector<8x128xf32> to vector<8x128xbf16>
    %c0_75 = arith.constant 0 : index
    %c0_76 = arith.constant 0 : index
    %c0_77 = arith.constant 0 : index
    %148 = vector.load %arg12[%c0_75, %c0_76, %c0_77] : memref<2x8x128xbf16, #tpu.memory_space<vmem>>, vector<1x8x128xbf16>
    %149 = vector.shape_cast %148 : vector<1x8x128xbf16> to vector<8x128xbf16>
    %150 = vector.shape_cast %147 : vector<8x128xbf16> to vector<1x8x128xbf16>
    tpu.vector_store %arg12[%c0_75, %c0_76, %c0_77], %150 {strides = array<i32>} : memref<2x8x128xbf16, #tpu.memory_space<vmem>>, vector<1x8x128xbf16>,
    %c0_78 = arith.constant 0 : index
    %c0_79 = arith.constant 0 : index
    %c0_80 = arith.constant 0 : index
    %151 = vector.load %arg13[%c0_78, %c0_79, %c0_80] : memref<2x8x128xf32, #tpu.memory_space<vmem>>, vector<1x8x128xf32>
    %152 = vector.shape_cast %151 : vector<1x8x128xf32> to vector<8x128xf32>
    %153 = vector.shape_cast %144 : vector<8x128xf32> to vector<1x8x128xf32>
    tpu.vector_store %arg13[%c0_78, %c0_79, %c0_80], %153 {strides = array<i32>} : memref<2x8x128xf32, #tpu.memory_space<vmem>>, vector<1x8x128xf32>,
    %c0_81 = arith.constant 0 : index
    %c0_82 = arith.constant 0 : index
    %154 = vector.load %arg6[%c0_81, %c0_82] : memref<128x512xbf16, #tpu.memory_space<vmem>>, vector<128x512xbf16>
    %cst_83 = arith.constant dense<0.000000e+00> : vector<8x512xf32>
    %155 = tpu.matmul %147, %154, %cst_83 {dimension_numbers = #tpu.dot_dimension_numbers<[1], [0], [0], [1], [0, 0, 1, 1], [], []>} : vector<8x128xbf16>, vector<128x512xbf16>, vector<8x512xf32> -> vector<8x512xf32>
    %c0_84 = arith.constant 0 : index
    %c0_85 = arith.constant 0 : index
    %156 = vector.load %arg8[%c0_84, %c0_85] : memref<1x512xf32, #tpu.memory_space<vmem>>, vector<1x512xf32>
    %157 = vector.broadcast %156 : vector<1x512xf32> to vector<8x512xf32>
    %158 = arith.addf %155, %157 : vector<8x512xf32>
    %159 = arith.index_cast %112 : i32 to index
    %c0_86 = arith.constant 0 : index
    %160 = vector.load %arg15[%159, %c0_86] : memref<32x512xf32, #tpu.memory_space<vmem>>, vector<8x512xf32>
    tpu.vector_store %arg15[%159, %c0_86], %158 {strides = array<i32>} : memref<32x512xf32, #tpu.memory_space<vmem>>, vector<8x512xf32>,
    %c3_i32 = arith.constant 3 : i32
    %c8_i32_87 = arith.constant 8 : i32
    %161 = arith.muli %c3_i32, %c8_i32_87 : i32
    %162 = tpu.assume_multiple %161, 8 : i32
    %c0_88 = arith.constant 0 : index
    %c0_89 = arith.constant 0 : index
    %c0_90 = arith.constant 0 : index
    %163 = vector.load %arg12[%c0_88, %c0_89, %c0_90] : memref<2x8x128xbf16, #tpu.memory_space<vmem>>, vector<1x8x128xbf16>
    %164 = vector.shape_cast %163 : vector<1x8x128xbf16> to vector<8x128xbf16>
    %c0_91 = arith.constant 0 : index
    %c0_92 = arith.constant 0 : index
    %c0_93 = arith.constant 0 : index
    %165 = vector.load %arg13[%c0_91, %c0_92, %c0_93] : memref<2x8x128xf32, #tpu.memory_space<vmem>>, vector<1x8x128xf32>
    %166 = vector.shape_cast %165 : vector<1x8x128xf32> to vector<8x128xf32>
    %167 = arith.index_cast %162 : i32 to index
    %c0_94 = arith.constant 0 : index
    %168 = vector.load %arg14[%167, %c0_94] : memref<32x512xf32, #tpu.memory_space<vmem>>, vector<8x512xf32>
    %c0_95 = arith.constant 0 : index
    %c0_96 = arith.constant 0 : index
    %169 = vector.load %arg4[%c0_95, %c0_96] : memref<128x512xbf16, #tpu.memory_space<vmem>>, vector<128x512xbf16>
    %cst_97 = arith.constant dense<0.000000e+00> : vector<8x512xf32>
    %170 = tpu.matmul %164, %169, %cst_97 {dimension_numbers = #tpu.dot_dimension_numbers<[1], [0], [0], [1], [0, 0, 1, 1], [], []>} : vector<8x128xbf16>, vector<128x512xbf16>, vector<8x512xf32> -> vector<8x512xf32>
    %171 = arith.addf %168, %170 : vector<8x512xf32>
    %172 = vector.extract_strided_slice %171 {offsets = [0, 0], sizes = [8, 128], strides = [1, 1]} : vector<8x512xf32> to vector<8x128xf32>
    %173 = arith.negf %172 : vector<8x128xf32>
    %174 = math.exp %173 : vector<8x128xf32>
    %cst_98 = arith.constant 1.000000e+00 : f32
    %175 = vector.broadcast %cst_98 : f32 to vector<8x128xf32>
    %176 = arith.addf %175, %174 : vector<8x128xf32>
    %177 = arith.divf %175, %176 : vector<8x128xf32>
    %178 = vector.extract_strided_slice %171 {offsets = [0, 128], sizes = [8, 128], strides = [1, 1]} : vector<8x512xf32> to vector<8x128xf32>
    %179 = arith.negf %178 : vector<8x128xf32>
    %180 = math.exp %179 : vector<8x128xf32>
    %cst_99 = arith.constant 1.000000e+00 : f32
    %181 = vector.broadcast %cst_99 : f32 to vector<8x128xf32>
    %182 = arith.addf %181, %180 : vector<8x128xf32>
    %183 = arith.divf %181, %182 : vector<8x128xf32>
    %184 = vector.extract_strided_slice %171 {offsets = [0, 256], sizes = [8, 128], strides = [1, 1]} : vector<8x512xf32> to vector<8x128xf32>
    %185 = math.tanh %184 : vector<8x128xf32>
    %186 = vector.extract_strided_slice %171 {offsets = [0, 384], sizes = [8, 128], strides = [1, 1]} : vector<8x512xf32> to vector<8x128xf32>
    %187 = arith.negf %186 : vector<8x128xf32>
    %188 = math.exp %187 : vector<8x128xf32>
    %cst_100 = arith.constant 1.000000e+00 : f32
    %189 = vector.broadcast %cst_100 : f32 to vector<8x128xf32>
    %190 = arith.addf %189, %188 : vector<8x128xf32>
    %191 = arith.divf %189, %190 : vector<8x128xf32>
    %192 = arith.mulf %183, %166 : vector<8x128xf32>
    %193 = arith.mulf %177, %185 : vector<8x128xf32>
    %194 = arith.addf %192, %193 : vector<8x128xf32>
    %195 = math.tanh %194 : vector<8x128xf32>
    %196 = arith.mulf %191, %195 : vector<8x128xf32>
    %197 = arith.truncf %196 : vector<8x128xf32> to vector<8x128xbf16>
    %c0_101 = arith.constant 0 : index
    %c0_102 = arith.constant 0 : index
    %c0_103 = arith.constant 0 : index
    %198 = vector.load %arg12[%c0_101, %c0_102, %c0_103] : memref<2x8x128xbf16, #tpu.memory_space<vmem>>, vector<1x8x128xbf16>
    %199 = vector.shape_cast %198 : vector<1x8x128xbf16> to vector<8x128xbf16>
    %200 = vector.shape_cast %197 : vector<8x128xbf16> to vector<1x8x128xbf16>
    tpu.vector_store %arg12[%c0_101, %c0_102, %c0_103], %200 {strides = array<i32>} : memref<2x8x128xbf16, #tpu.memory_space<vmem>>, vector<1x8x128xbf16>,
    %c0_104 = arith.constant 0 : index
    %c0_105 = arith.constant 0 : index
    %c0_106 = arith.constant 0 : index
    %201 = vector.load %arg13[%c0_104, %c0_105, %c0_106] : memref<2x8x128xf32, #tpu.memory_space<vmem>>, vector<1x8x128xf32>
    %202 = vector.shape_cast %201 : vector<1x8x128xf32> to vector<8x128xf32>
    %203 = vector.shape_cast %194 : vector<8x128xf32> to vector<1x8x128xf32>
    tpu.vector_store %arg13[%c0_104, %c0_105, %c0_106], %203 {strides = array<i32>} : memref<2x8x128xf32, #tpu.memory_space<vmem>>, vector<1x8x128xf32>,
    %c0_107 = arith.constant 0 : index
    %c0_108 = arith.constant 0 : index
    %204 = vector.load %arg6[%c0_107, %c0_108] : memref<128x512xbf16, #tpu.memory_space<vmem>>, vector<128x512xbf16>
    %cst_109 = arith.constant dense<0.000000e+00> : vector<8x512xf32>
    %205 = tpu.matmul %197, %204, %cst_109 {dimension_numbers = #tpu.dot_dimension_numbers<[1], [0], [0], [1], [0, 0, 1, 1], [], []>} : vector<8x128xbf16>, vector<128x512xbf16>, vector<8x512xf32> -> vector<8x512xf32>
    %c0_110 = arith.constant 0 : index
    %c0_111 = arith.constant 0 : index
    %206 = vector.load %arg8[%c0_110, %c0_111] : memref<1x512xf32, #tpu.memory_space<vmem>>, vector<1x512xf32>
    %207 = vector.broadcast %206 : vector<1x512xf32> to vector<8x512xf32>
    %208 = arith.addf %205, %207 : vector<8x512xf32>
    %209 = arith.index_cast %162 : i32 to index
    %c0_112 = arith.constant 0 : index
    %210 = vector.load %arg15[%209, %c0_112] : memref<32x512xf32, #tpu.memory_space<vmem>>, vector<8x512xf32>
    tpu.vector_store %arg15[%209, %c0_112], %208 {strides = array<i32>} : memref<32x512xf32, #tpu.memory_space<vmem>>, vector<8x512xf32>,
    %c4_i32 = arith.constant 4 : i32
    %c0_i32_113 = arith.constant 0 : i32
    %c8_i32_114 = arith.constant 8 : i32
    %211 = arith.muli %c0_i32_113, %c8_i32_114 : i32
    %212 = tpu.assume_multiple %211, 8 : i32
    %c1 = arith.constant 1 : index
    %c0_115 = arith.constant 0 : index
    %c0_116 = arith.constant 0 : index
    %213 = vector.load %arg12[%c1, %c0_115, %c0_116] : memref<2x8x128xbf16, #tpu.memory_space<vmem>>, vector<1x8x128xbf16>
    %214 = vector.shape_cast %213 : vector<1x8x128xbf16> to vector<8x128xbf16>
    %c1_117 = arith.constant 1 : index
    %c0_118 = arith.constant 0 : index
    %c0_119 = arith.constant 0 : index
    %215 = vector.load %arg13[%c1_117, %c0_118, %c0_119] : memref<2x8x128xf32, #tpu.memory_space<vmem>>, vector<1x8x128xf32>
    %216 = vector.shape_cast %215 : vector<1x8x128xf32> to vector<8x128xf32>
    %217 = arith.index_cast %212 : i32 to index
    %c0_120 = arith.constant 0 : index
    %218 = vector.load %arg15[%217, %c0_120] : memref<32x512xf32, #tpu.memory_space<vmem>>, vector<8x512xf32>
    %c0_121 = arith.constant 0 : index
    %c0_122 = arith.constant 0 : index
    %219 = vector.load %arg7[%c0_121, %c0_122] : memref<128x512xbf16, #tpu.memory_space<vmem>>, vector<128x512xbf16>
    %cst_123 = arith.constant dense<0.000000e+00> : vector<8x512xf32>
    %220 = tpu.matmul %214, %219, %cst_123 {dimension_numbers = #tpu.dot_dimension_numbers<[1], [0], [0], [1], [0, 0, 1, 1], [], []>} : vector<8x128xbf16>, vector<128x512xbf16>, vector<8x512xf32> -> vector<8x512xf32>
    %221 = arith.addf %218, %220 : vector<8x512xf32>
    %222 = vector.extract_strided_slice %221 {offsets = [0, 0], sizes = [8, 128], strides = [1, 1]} : vector<8x512xf32> to vector<8x128xf32>
    %223 = arith.negf %222 : vector<8x128xf32>
    %224 = math.exp %223 : vector<8x128xf32>
    %cst_124 = arith.constant 1.000000e+00 : f32
    %225 = vector.broadcast %cst_124 : f32 to vector<8x128xf32>
    %226 = arith.addf %225, %224 : vector<8x128xf32>
    %227 = arith.divf %225, %226 : vector<8x128xf32>
    %228 = vector.extract_strided_slice %221 {offsets = [0, 128], sizes = [8, 128], strides = [1, 1]} : vector<8x512xf32> to vector<8x128xf32>
    %229 = arith.negf %228 : vector<8x128xf32>
    %230 = math.exp %229 : vector<8x128xf32>
    %cst_125 = arith.constant 1.000000e+00 : f32
    %231 = vector.broadcast %cst_125 : f32 to vector<8x128xf32>
    %232 = arith.addf %231, %230 : vector<8x128xf32>
    %233 = arith.divf %231, %232 : vector<8x128xf32>
    %234 = vector.extract_strided_slice %221 {offsets = [0, 256], sizes = [8, 128], strides = [1, 1]} : vector<8x512xf32> to vector<8x128xf32>
    %235 = math.tanh %234 : vector<8x128xf32>
    %236 = vector.extract_strided_slice %221 {offsets = [0, 384], sizes = [8, 128], strides = [1, 1]} : vector<8x512xf32> to vector<8x128xf32>
    %237 = arith.negf %236 : vector<8x128xf32>
    %238 = math.exp %237 : vector<8x128xf32>
    %cst_126 = arith.constant 1.000000e+00 : f32
    %239 = vector.broadcast %cst_126 : f32 to vector<8x128xf32>
    %240 = arith.addf %239, %238 : vector<8x128xf32>
    %241 = arith.divf %239, %240 : vector<8x128xf32>
    %242 = arith.mulf %233, %216 : vector<8x128xf32>
    %243 = arith.mulf %227, %235 : vector<8x128xf32>
    %244 = arith.addf %242, %243 : vector<8x128xf32>
    %245 = math.tanh %244 : vector<8x128xf32>
    %246 = arith.mulf %241, %245 : vector<8x128xf32>
    %247 = arith.truncf %246 : vector<8x128xf32> to vector<8x128xbf16>
    %c1_127 = arith.constant 1 : index
    %c0_128 = arith.constant 0 : index
    %c0_129 = arith.constant 0 : index
    %248 = vector.load %arg12[%c1_127, %c0_128, %c0_129] : memref<2x8x128xbf16, #tpu.memory_space<vmem>>, vector<1x8x128xbf16>
    %249 = vector.shape_cast %248 : vector<1x8x128xbf16> to vector<8x128xbf16>
    %250 = vector.shape_cast %247 : vector<8x128xbf16> to vector<1x8x128xbf16>
    tpu.vector_store %arg12[%c1_127, %c0_128, %c0_129], %250 {strides = array<i32>} : memref<2x8x128xbf16, #tpu.memory_space<vmem>>, vector<1x8x128xbf16>,
    %c1_130 = arith.constant 1 : index
    %c0_131 = arith.constant 0 : index
    %c0_132 = arith.constant 0 : index
    %251 = vector.load %arg13[%c1_130, %c0_131, %c0_132] : memref<2x8x128xf32, #tpu.memory_space<vmem>>, vector<1x8x128xf32>
    %252 = vector.shape_cast %251 : vector<1x8x128xf32> to vector<8x128xf32>
    %253 = vector.shape_cast %244 : vector<8x128xf32> to vector<1x8x128xf32>
    tpu.vector_store %arg13[%c1_130, %c0_131, %c0_132], %253 {strides = array<i32>} : memref<2x8x128xf32, #tpu.memory_space<vmem>>, vector<1x8x128xf32>,
    %c1_i32_133 = arith.constant 1 : i32
    %c8_i32_134 = arith.constant 8 : i32
    %254 = arith.muli %c1_i32_133, %c8_i32_134 : i32
    %255 = tpu.assume_multiple %254, 8 : i32
    %c1_135 = arith.constant 1 : index
    %c0_136 = arith.constant 0 : index
    %c0_137 = arith.constant 0 : index
    %256 = vector.load %arg12[%c1_135, %c0_136, %c0_137] : memref<2x8x128xbf16, #tpu.memory_space<vmem>>, vector<1x8x128xbf16>
    %257 = vector.shape_cast %256 : vector<1x8x128xbf16> to vector<8x128xbf16>
    %c1_138 = arith.constant 1 : index
    %c0_139 = arith.constant 0 : index
    %c0_140 = arith.constant 0 : index
    %258 = vector.load %arg13[%c1_138, %c0_139, %c0_140] : memref<2x8x128xf32, #tpu.memory_space<vmem>>, vector<1x8x128xf32>
    %259 = vector.shape_cast %258 : vector<1x8x128xf32> to vector<8x128xf32>
    %260 = arith.index_cast %255 : i32 to index
    %c0_141 = arith.constant 0 : index
    %261 = vector.load %arg15[%260, %c0_141] : memref<32x512xf32, #tpu.memory_space<vmem>>, vector<8x512xf32>
    %c0_142 = arith.constant 0 : index
    %c0_143 = arith.constant 0 : index
    %262 = vector.load %arg7[%c0_142, %c0_143] : memref<128x512xbf16, #tpu.memory_space<vmem>>, vector<128x512xbf16>
    %cst_144 = arith.constant dense<0.000000e+00> : vector<8x512xf32>
    %263 = tpu.matmul %257, %262, %cst_144 {dimension_numbers = #tpu.dot_dimension_numbers<[1], [0], [0], [1], [0, 0, 1, 1], [], []>} : vector<8x128xbf16>, vector<128x512xbf16>, vector<8x512xf32> -> vector<8x512xf32>
    %264 = arith.addf %261, %263 : vector<8x512xf32>
    %265 = vector.extract_strided_slice %264 {offsets = [0, 0], sizes = [8, 128], strides = [1, 1]} : vector<8x512xf32> to vector<8x128xf32>
    %266 = arith.negf %265 : vector<8x128xf32>
    %267 = math.exp %266 : vector<8x128xf32>
    %cst_145 = arith.constant 1.000000e+00 : f32
    %268 = vector.broadcast %cst_145 : f32 to vector<8x128xf32>
    %269 = arith.addf %268, %267 : vector<8x128xf32>
    %270 = arith.divf %268, %269 : vector<8x128xf32>
    %271 = vector.extract_strided_slice %264 {offsets = [0, 128], sizes = [8, 128], strides = [1, 1]} : vector<8x512xf32> to vector<8x128xf32>
    %272 = arith.negf %271 : vector<8x128xf32>
    %273 = math.exp %272 : vector<8x128xf32>
    %cst_146 = arith.constant 1.000000e+00 : f32
    %274 = vector.broadcast %cst_146 : f32 to vector<8x128xf32>
    %275 = arith.addf %274, %273 : vector<8x128xf32>
    %276 = arith.divf %274, %275 : vector<8x128xf32>
    %277 = vector.extract_strided_slice %264 {offsets = [0, 256], sizes = [8, 128], strides = [1, 1]} : vector<8x512xf32> to vector<8x128xf32>
    %278 = math.tanh %277 : vector<8x128xf32>
    %279 = vector.extract_strided_slice %264 {offsets = [0, 384], sizes = [8, 128], strides = [1, 1]} : vector<8x512xf32> to vector<8x128xf32>
    %280 = arith.negf %279 : vector<8x128xf32>
    %281 = math.exp %280 : vector<8x128xf32>
    %cst_147 = arith.constant 1.000000e+00 : f32
    %282 = vector.broadcast %cst_147 : f32 to vector<8x128xf32>
    %283 = arith.addf %282, %281 : vector<8x128xf32>
    %284 = arith.divf %282, %283 : vector<8x128xf32>
    %285 = arith.mulf %276, %259 : vector<8x128xf32>
    %286 = arith.mulf %270, %278 : vector<8x128xf32>
    %287 = arith.addf %285, %286 : vector<8x128xf32>
    %288 = math.tanh %287 : vector<8x128xf32>
    %289 = arith.mulf %284, %288 : vector<8x128xf32>
    %290 = arith.truncf %289 : vector<8x128xf32> to vector<8x128xbf16>
    %c1_148 = arith.constant 1 : index
    %c0_149 = arith.constant 0 : index
    %c0_150 = arith.constant 0 : index
    %291 = vector.load %arg12[%c1_148, %c0_149, %c0_150] : memref<2x8x128xbf16, #tpu.memory_space<vmem>>, vector<1x8x128xbf16>
    %292 = vector.shape_cast %291 : vector<1x8x128xbf16> to vector<8x128xbf16>
    %293 = vector.shape_cast %290 : vector<8x128xbf16> to vector<1x8x128xbf16>
    tpu.vector_store %arg12[%c1_148, %c0_149, %c0_150], %293 {strides = array<i32>} : memref<2x8x128xbf16, #tpu.memory_space<vmem>>, vector<1x8x128xbf16>,
    %c1_151 = arith.constant 1 : index
    %c0_152 = arith.constant 0 : index
    %c0_153 = arith.constant 0 : index
    %294 = vector.load %arg13[%c1_151, %c0_152, %c0_153] : memref<2x8x128xf32, #tpu.memory_space<vmem>>, vector<1x8x128xf32>
    %295 = vector.shape_cast %294 : vector<1x8x128xf32> to vector<8x128xf32>
    %296 = vector.shape_cast %287 : vector<8x128xf32> to vector<1x8x128xf32>
    tpu.vector_store %arg13[%c1_151, %c0_152, %c0_153], %296 {strides = array<i32>} : memref<2x8x128xf32, #tpu.memory_space<vmem>>, vector<1x8x128xf32>,
    %c2_i32_154 = arith.constant 2 : i32
    %c8_i32_155 = arith.constant 8 : i32
    %297 = arith.muli %c2_i32_154, %c8_i32_155 : i32
    %298 = tpu.assume_multiple %297, 8 : i32
    %c1_156 = arith.constant 1 : index
    %c0_157 = arith.constant 0 : index
    %c0_158 = arith.constant 0 : index
    %299 = vector.load %arg12[%c1_156, %c0_157, %c0_158] : memref<2x8x128xbf16, #tpu.memory_space<vmem>>, vector<1x8x128xbf16>
    %300 = vector.shape_cast %299 : vector<1x8x128xbf16> to vector<8x128xbf16>
    %c1_159 = arith.constant 1 : index
    %c0_160 = arith.constant 0 : index
    %c0_161 = arith.constant 0 : index
    %301 = vector.load %arg13[%c1_159, %c0_160, %c0_161] : memref<2x8x128xf32, #tpu.memory_space<vmem>>, vector<1x8x128xf32>
    %302 = vector.shape_cast %301 : vector<1x8x128xf32> to vector<8x128xf32>
    %303 = arith.index_cast %298 : i32 to index
    %c0_162 = arith.constant 0 : index
    %304 = vector.load %arg15[%303, %c0_162] : memref<32x512xf32, #tpu.memory_space<vmem>>, vector<8x512xf32>
    %c0_163 = arith.constant 0 : index
    %c0_164 = arith.constant 0 : index
    %305 = vector.load %arg7[%c0_163, %c0_164] : memref<128x512xbf16, #tpu.memory_space<vmem>>, vector<128x512xbf16>
    %cst_165 = arith.constant dense<0.000000e+00> : vector<8x512xf32>
    %306 = tpu.matmul %300, %305, %cst_165 {dimension_numbers = #tpu.dot_dimension_numbers<[1], [0], [0], [1], [0, 0, 1, 1], [], []>} : vector<8x128xbf16>, vector<128x512xbf16>, vector<8x512xf32> -> vector<8x512xf32>
    %307 = arith.addf %304, %306 : vector<8x512xf32>
    %308 = vector.extract_strided_slice %307 {offsets = [0, 0], sizes = [8, 128], strides = [1, 1]} : vector<8x512xf32> to vector<8x128xf32>
    %309 = arith.negf %308 : vector<8x128xf32>
    %310 = math.exp %309 : vector<8x128xf32>
    %cst_166 = arith.constant 1.000000e+00 : f32
    %311 = vector.broadcast %cst_166 : f32 to vector<8x128xf32>
    %312 = arith.addf %311, %310 : vector<8x128xf32>
    %313 = arith.divf %311, %312 : vector<8x128xf32>
    %314 = vector.extract_strided_slice %307 {offsets = [0, 128], sizes = [8, 128], strides = [1, 1]} : vector<8x512xf32> to vector<8x128xf32>
    %315 = arith.negf %314 : vector<8x128xf32>
    %316 = math.exp %315 : vector<8x128xf32>
    %cst_167 = arith.constant 1.000000e+00 : f32
    %317 = vector.broadcast %cst_167 : f32 to vector<8x128xf32>
    %318 = arith.addf %317, %316 : vector<8x128xf32>
    %319 = arith.divf %317, %318 : vector<8x128xf32>
    %320 = vector.extract_strided_slice %307 {offsets = [0, 256], sizes = [8, 128], strides = [1, 1]} : vector<8x512xf32> to vector<8x128xf32>
    %321 = math.tanh %320 : vector<8x128xf32>
    %322 = vector.extract_strided_slice %307 {offsets = [0, 384], sizes = [8, 128], strides = [1, 1]} : vector<8x512xf32> to vector<8x128xf32>
    %323 = arith.negf %322 : vector<8x128xf32>
    %324 = math.exp %323 : vector<8x128xf32>
    %cst_168 = arith.constant 1.000000e+00 : f32
    %325 = vector.broadcast %cst_168 : f32 to vector<8x128xf32>
    %326 = arith.addf %325, %324 : vector<8x128xf32>
    %327 = arith.divf %325, %326 : vector<8x128xf32>
    %328 = arith.mulf %319, %302 : vector<8x128xf32>
    %329 = arith.mulf %313, %321 : vector<8x128xf32>
    %330 = arith.addf %328, %329 : vector<8x128xf32>
    %331 = math.tanh %330 : vector<8x128xf32>
    %332 = arith.mulf %327, %331 : vector<8x128xf32>
    %333 = arith.truncf %332 : vector<8x128xf32> to vector<8x128xbf16>
    %c1_169 = arith.constant 1 : index
    %c0_170 = arith.constant 0 : index
    %c0_171 = arith.constant 0 : index
    %334 = vector.load %arg12[%c1_169, %c0_170, %c0_171] : memref<2x8x128xbf16, #tpu.memory_space<vmem>>, vector<1x8x128xbf16>
    %335 = vector.shape_cast %334 : vector<1x8x128xbf16> to vector<8x128xbf16>
    %336 = vector.shape_cast %333 : vector<8x128xbf16> to vector<1x8x128xbf16>
    tpu.vector_store %arg12[%c1_169, %c0_170, %c0_171], %336 {strides = array<i32>} : memref<2x8x128xbf16, #tpu.memory_space<vmem>>, vector<1x8x128xbf16>,
    %c1_172 = arith.constant 1 : index
    %c0_173 = arith.constant 0 : index
    %c0_174 = arith.constant 0 : index
    %337 = vector.load %arg13[%c1_172, %c0_173, %c0_174] : memref<2x8x128xf32, #tpu.memory_space<vmem>>, vector<1x8x128xf32>
    %338 = vector.shape_cast %337 : vector<1x8x128xf32> to vector<8x128xf32>
    %339 = vector.shape_cast %330 : vector<8x128xf32> to vector<1x8x128xf32>
    tpu.vector_store %arg13[%c1_172, %c0_173, %c0_174], %339 {strides = array<i32>} : memref<2x8x128xf32, #tpu.memory_space<vmem>>, vector<1x8x128xf32>,
    %c3_i32_175 = arith.constant 3 : i32
    %c8_i32_176 = arith.constant 8 : i32
    %340 = arith.muli %c3_i32_175, %c8_i32_176 : i32
    %341 = tpu.assume_multiple %340, 8 : i32
    %c1_177 = arith.constant 1 : index
    %c0_178 = arith.constant 0 : index
    %c0_179 = arith.constant 0 : index
    %342 = vector.load %arg12[%c1_177, %c0_178, %c0_179] : memref<2x8x128xbf16, #tpu.memory_space<vmem>>, vector<1x8x128xbf16>
    %343 = vector.shape_cast %342 : vector<1x8x128xbf16> to vector<8x128xbf16>
    %c1_180 = arith.constant 1 : index
    %c0_181 = arith.constant 0 : index
    %c0_182 = arith.constant 0 : index
    %344 = vector.load %arg13[%c1_180, %c0_181, %c0_182] : memref<2x8x128xf32, #tpu.memory_space<vmem>>, vector<1x8x128xf32>
    %345 = vector.shape_cast %344 : vector<1x8x128xf32> to vector<8x128xf32>
    %346 = arith.index_cast %341 : i32 to index
    %c0_183 = arith.constant 0 : index
    %347 = vector.load %arg15[%346, %c0_183] : memref<32x512xf32, #tpu.memory_space<vmem>>, vector<8x512xf32>
    %c0_184 = arith.constant 0 : index
    %c0_185 = arith.constant 0 : index
    %348 = vector.load %arg7[%c0_184, %c0_185] : memref<128x512xbf16, #tpu.memory_space<vmem>>, vector<128x512xbf16>
    %cst_186 = arith.constant dense<0.000000e+00> : vector<8x512xf32>
    %349 = tpu.matmul %343, %348, %cst_186 {dimension_numbers = #tpu.dot_dimension_numbers<[1], [0], [0], [1], [0, 0, 1, 1], [], []>} : vector<8x128xbf16>, vector<128x512xbf16>, vector<8x512xf32> -> vector<8x512xf32>
    %350 = arith.addf %347, %349 : vector<8x512xf32>
    %351 = vector.extract_strided_slice %350 {offsets = [0, 0], sizes = [8, 128], strides = [1, 1]} : vector<8x512xf32> to vector<8x128xf32>
    %352 = arith.negf %351 : vector<8x128xf32>
    %353 = math.exp %352 : vector<8x128xf32>
    %cst_187 = arith.constant 1.000000e+00 : f32
    %354 = vector.broadcast %cst_187 : f32 to vector<8x128xf32>
    %355 = arith.addf %354, %353 : vector<8x128xf32>
    %356 = arith.divf %354, %355 : vector<8x128xf32>
    %357 = vector.extract_strided_slice %350 {offsets = [0, 128], sizes = [8, 128], strides = [1, 1]} : vector<8x512xf32> to vector<8x128xf32>
    %358 = arith.negf %357 : vector<8x128xf32>
    %359 = math.exp %358 : vector<8x128xf32>
    %cst_188 = arith.constant 1.000000e+00 : f32
    %360 = vector.broadcast %cst_188 : f32 to vector<8x128xf32>
    %361 = arith.addf %360, %359 : vector<8x128xf32>
    %362 = arith.divf %360, %361 : vector<8x128xf32>
    %363 = vector.extract_strided_slice %350 {offsets = [0, 256], sizes = [8, 128], strides = [1, 1]} : vector<8x512xf32> to vector<8x128xf32>
    %364 = math.tanh %363 : vector<8x128xf32>
    %365 = vector.extract_strided_slice %350 {offsets = [0, 384], sizes = [8, 128], strides = [1, 1]} : vector<8x512xf32> to vector<8x128xf32>
    %366 = arith.negf %365 : vector<8x128xf32>
    %367 = math.exp %366 : vector<8x128xf32>
    %cst_189 = arith.constant 1.000000e+00 : f32
    %368 = vector.broadcast %cst_189 : f32 to vector<8x128xf32>
    %369 = arith.addf %368, %367 : vector<8x128xf32>
    %370 = arith.divf %368, %369 : vector<8x128xf32>
    %371 = arith.mulf %362, %345 : vector<8x128xf32>
    %372 = arith.mulf %356, %364 : vector<8x128xf32>
    %373 = arith.addf %371, %372 : vector<8x128xf32>
    %374 = math.tanh %373 : vector<8x128xf32>
    %375 = arith.mulf %370, %374 : vector<8x128xf32>
    %376 = arith.truncf %375 : vector<8x128xf32> to vector<8x128xbf16>
    %c1_190 = arith.constant 1 : index
    %c0_191 = arith.constant 0 : index
    %c0_192 = arith.constant 0 : index
    %377 = vector.load %arg12[%c1_190, %c0_191, %c0_192] : memref<2x8x128xbf16, #tpu.memory_space<vmem>>, vector<1x8x128xbf16>
    %378 = vector.shape_cast %377 : vector<1x8x128xbf16> to vector<8x128xbf16>
    %379 = vector.shape_cast %376 : vector<8x128xbf16> to vector<1x8x128xbf16>
    tpu.vector_store %arg12[%c1_190, %c0_191, %c0_192], %379 {strides = array<i32>} : memref<2x8x128xbf16, #tpu.memory_space<vmem>>, vector<1x8x128xbf16>,
    %c1_193 = arith.constant 1 : index
    %c0_194 = arith.constant 0 : index
    %c0_195 = arith.constant 0 : index
    %380 = vector.load %arg13[%c1_193, %c0_194, %c0_195] : memref<2x8x128xf32, #tpu.memory_space<vmem>>, vector<1x8x128xf32>
    %381 = vector.shape_cast %380 : vector<1x8x128xf32> to vector<8x128xf32>
    %382 = vector.shape_cast %373 : vector<8x128xf32> to vector<1x8x128xf32>
    tpu.vector_store %arg13[%c1_193, %c0_194, %c0_195], %382 {strides = array<i32>} : memref<2x8x128xf32, #tpu.memory_space<vmem>>, vector<1x8x128xf32>,
    %c4_i32_196 = arith.constant 4 : i32
    %c1_i32_197 = arith.constant 1 : i32
    %383 = arith.cmpi eq, %arg1, %c1_i32_197 : i32
    %384 = arith.extui %383 : i1 to i32
    %c0_i32_198 = arith.constant 0 : i32
    %385 = arith.cmpi ne, %384, %c0_i32_198 : i32
    scf.if %385 {
      %c1_199 = arith.constant 1 : index
      %c0_200 = arith.constant 0 : index
      %c0_201 = arith.constant 0 : index
      %386 = vector.load %arg12[%c1_199, %c0_200, %c0_201] : memref<2x8x128xbf16, #tpu.memory_space<vmem>>, vector<1x8x128xbf16>
      %387 = vector.shape_cast %386 : vector<1x8x128xbf16> to vector<8x128xbf16>
      %c0_202 = arith.constant 0 : index
      %c0_203 = arith.constant 0 : index
      %388 = vector.load %arg9[%c0_202, %c0_203] : memref<128x128xbf16, #tpu.memory_space<vmem>>, vector<128x128xbf16>
      %cst_204 = arith.constant dense<0.000000e+00> : vector<8x128xf32>
      %389 = tpu.matmul %387, %388, %cst_204 {dimension_numbers = #tpu.dot_dimension_numbers<[1], [0], [0], [1], [0, 0, 1, 1], [], []>} : vector<8x128xbf16>, vector<128x128xbf16>, vector<8x128xf32> -> vector<8x128xf32>
      %c0_205 = arith.constant 0 : index
      %c0_206 = arith.constant 0 : index
      %390 = vector.load %arg10[%c0_205, %c0_206] : memref<1x128xf32, #tpu.memory_space<vmem>>, vector<1x128xf32>
      %391 = vector.broadcast %390 : vector<1x128xf32> to vector<8x128xf32>
      %392 = arith.addf %389, %391 : vector<8x128xf32>
      %c0_207 = arith.constant 0 : index
      %c0_208 = arith.constant 0 : index
      %393 = vector.load %arg11[%c0_207, %c0_208] : memref<8x128xf32, #tpu.memory_space<vmem>>, vector<8x128xf32>
      tpu.vector_store %arg11[%c0_207, %c0_208], %392 {strides = array<i32>} : memref<8x128xf32, #tpu.memory_space<vmem>>, vector<8x128xf32>,
    } else {
    }
    return
  }
  func.func @transform_0(%arg0: i32, %arg1: i32) -> (i32, i32, i32) {
    %c0_i32 = arith.constant 0 : i32
    %c0_i32_0 = arith.constant 0 : i32
    return %arg1, %arg0, %c0_i32 : i32, i32, i32
  }
  func.func @transform_1(%arg0: i32, %arg1: i32) -> (i32, i32) {
    %c0_i32 = arith.constant 0 : i32
    %c0_i32_0 = arith.constant 0 : i32
    %c0_i32_1 = arith.constant 0 : i32
    return %c0_i32, %c0_i32_0 : i32, i32
  }
  func.func @transform_2(%arg0: i32, %arg1: i32) -> (i32, i32) {
    %c0_i32 = arith.constant 0 : i32
    %c0_i32_0 = arith.constant 0 : i32
    %c0_i32_1 = arith.constant 0 : i32
    return %c0_i32, %c0_i32_0 : i32, i32
  }
  func.func @transform_3(%arg0: i32, %arg1: i32) -> (i32, i32) {
    %c0_i32 = arith.constant 0 : i32
    %c0_i32_0 = arith.constant 0 : i32
    %c0_i32_1 = arith.constant 0 : i32
    return %c0_i32, %c0_i32_0 : i32, i32
  }
  func.func @transform_4(%arg0: i32, %arg1: i32) -> (i32, i32) {
    %c0_i32 = arith.constant 0 : i32
    %c0_i32_0 = arith.constant 0 : i32
    %c0_i32_1 = arith.constant 0 : i32
    return %c0_i32, %c0_i32_0 : i32, i32
  }
  func.func @transform_5(%arg0: i32, %arg1: i32) -> (i32, i32) {
    %c0_i32 = arith.constant 0 : i32
    %c0_i32_0 = arith.constant 0 : i32
    %c0_i32_1 = arith.constant 0 : i32
    return %c0_i32, %c0_i32_0 : i32, i32
  }
  func.func @transform_6(%arg0: i32, %arg1: i32) -> (i32, i32) {
    %c0_i32 = arith.constant 0 : i32
    %c0_i32_0 = arith.constant 0 : i32
    %c0_i32_1 = arith.constant 0 : i32
    return %c0_i32, %c0_i32_0 : i32, i32
  }
  func.func @transform_7(%arg0: i32, %arg1: i32) -> (i32, i32) {
    %c0_i32 = arith.constant 0 : i32
    %c0_i32_0 = arith.constant 0 : i32
    %c0_i32_1 = arith.constant 0 : i32
    return %c0_i32, %c0_i32_0 : i32, i32
  }
  func.func @transform_8(%arg0: i32, %arg1: i32) -> (i32, i32) {
    %c0_i32 = arith.constant 0 : i32
    %c0_i32_0 = arith.constant 0 : i32
    %c0_i32_1 = arith.constant 0 : i32
    return %c0_i32, %c0_i32_0 : i32, i32
  }
  func.func @transform_9(%arg0: i32, %arg1: i32) -> (i32, i32) {
    %c0_i32 = arith.constant 0 : i32
    %c0_i32_0 = arith.constant 0 : i32
    return %arg0, %c0_i32 : i32, i32
  }
}

module attributes {stable_mosaic.version = 11 : i64} {
  func.func @_lstm_fused_kernel(%arg0: i32, %arg1: i32, %arg2: memref<4x8x128xbf16, #tpu.memory_space<vmem>>, %arg3: memref<128x512xbf16, #tpu.memory_space<vmem>>, %arg4: memref<128x512xbf16, #tpu.memory_space<vmem>>, %arg5: memref<1x512xf32, #tpu.memory_space<vmem>>, %arg6: memref<128x512xbf16, #tpu.memory_space<vmem>>, %arg7: memref<128x512xbf16, #tpu.memory_space<vmem>>, %arg8: memref<1x512xf32, #tpu.memory_space<vmem>>, %arg9: memref<128x128xbf16, #tpu.memory_space<vmem>>, %arg10: memref<1x128xf32, #tpu.memory_space<vmem>>, %arg11: memref<8x128xf32, #tpu.memory_space<vmem>>, %arg12: memref<2x8x128xbf16, #tpu.memory_space<vmem>>, %arg13: memref<2x8x128xf32, #tpu.memory_space<vmem>>, %arg14: memref<32x512xf32, #tpu.memory_space<vmem>>, %arg15: memref<32x512xf32, #tpu.memory_space<vmem>>) attributes {dimension_semantics = [#tpu.dimension_semantics<parallel>, #tpu.dimension_semantics<arbitrary>], iteration_bounds = array<i64: 1, 2>, scalar_prefetch = 0 : i64, scratch_operands = 4 : i64, tpu.core_type = #tpu.core_type<tc>, window_params = [{transform_indices = @transform_0, window_bounds = array<i64: 4, 8, 128>}, {pipeline_mode = #tpu.pipeline_mode<synchronous>, transform_indices = @transform_1, window_bounds = array<i64: 128, 512>}, {pipeline_mode = #tpu.pipeline_mode<synchronous>, transform_indices = @transform_2, window_bounds = array<i64: 128, 512>}, {pipeline_mode = #tpu.pipeline_mode<synchronous>, transform_indices = @transform_3, window_bounds = array<i64: 1, 512>}, {pipeline_mode = #tpu.pipeline_mode<synchronous>, transform_indices = @transform_4, window_bounds = array<i64: 128, 512>}, {pipeline_mode = #tpu.pipeline_mode<synchronous>, transform_indices = @transform_5, window_bounds = array<i64: 128, 512>}, {pipeline_mode = #tpu.pipeline_mode<synchronous>, transform_indices = @transform_6, window_bounds = array<i64: 1, 512>}, {pipeline_mode = #tpu.pipeline_mode<synchronous>, transform_indices = @transform_7, window_bounds = array<i64: 128, 128>}, {pipeline_mode = #tpu.pipeline_mode<synchronous>, transform_indices = @transform_8, window_bounds = array<i64: 1, 128>}, {transform_indices = @transform_9, window_bounds = array<i64: 8, 128>}]} {
    %c0_i32 = arith.constant 0 : i32
    %0 = arith.cmpi eq, %arg1, %c0_i32 : i32
    %1 = arith.extui %0 : i1 to i32
    %c0_i32_0 = arith.constant 0 : i32
    %2 = arith.cmpi ne, %1, %c0_i32_0 : i32
    scf.if %2 {
      %cst_199 = arith.constant 0.000000e+00 : bf16
      %386 = vector.broadcast %cst_199 : bf16 to vector<2x8x128xbf16>
      %c0_200 = arith.constant 0 : index
      %c0_201 = arith.constant 0 : index
      %c0_202 = arith.constant 0 : index
      %387 = vector.load %arg12[%c0_200, %c0_201, %c0_202] : memref<2x8x128xbf16, #tpu.memory_space<vmem>>, vector<2x8x128xbf16>
      tpu.vector_store %arg12[%c0_200, %c0_201, %c0_202], %386 {strides = array<i32>} : memref<2x8x128xbf16, #tpu.memory_space<vmem>>, vector<2x8x128xbf16>,
      %cst_203 = arith.constant 0.000000e+00 : f32
      %388 = vector.broadcast %cst_203 : f32 to vector<2x8x128xf32>
      %c0_204 = arith.constant 0 : index
      %c0_205 = arith.constant 0 : index
      %c0_206 = arith.constant 0 : index
      %389 = vector.load %arg13[%c0_204, %c0_205, %c0_206] : memref<2x8x128xf32, #tpu.memory_space<vmem>>, vector<2x8x128xf32>
      tpu.vector_store %arg13[%c0_204, %c0_205, %c0_206], %388 {strides = array<i32>} : memref<2x8x128xf32, #tpu.memory_space<vmem>>, vector<2x8x128xf32>,
    } else {
    }
    %c0 = arith.constant 0 : index
    %c0_1 = arith.constant 0 : index
    %c0_2 = arith.constant 0 : index
    %3 = vector.load %arg2[%c0, %c0_1, %c0_2] : memref<4x8x128xbf16, #tpu.memory_space<vmem>>, vector<4x8x128xbf16>
    %4 = vector.shape_cast %3 : vector<4x8x128xbf16> to vector<32x128xbf16>
    %c0_3 = arith.constant 0 : index
    %c0_4 = arith.constant 0 : index
    %5 = vector.load %arg3[%c0_3, %c0_4] : memref<128x512xbf16, #tpu.memory_space<vmem>>, vector<128x512xbf16>
    %cst = arith.constant dense<0.000000e+00> : vector<32x512xf32>
    %6 = tpu.matmul %4, %5, %cst {dimension_numbers = #tpu.dot_dimension_numbers<[1], [0], [0], [1], [0, 0, 1, 1], [], []>} : vector<32x128xbf16>, vector<128x512xbf16>, vector<32x512xf32> -> vector<32x512xf32>
    %c0_5 = arith.constant 0 : index
    %c0_6 = arith.constant 0 : index
    %7 = vector.load %arg5[%c0_5, %c0_6] : memref<1x512xf32, #tpu.memory_space<vmem>>, vector<1x512xf32>
    %8 = vector.broadcast %7 : vector<1x512xf32> to vector<32x512xf32>
    %9 = arith.addf %6, %8 : vector<32x512xf32>
    %c0_7 = arith.constant 0 : index
    %c0_8 = arith.constant 0 : index
    %10 = vector.load %arg14[%c0_7, %c0_8] : memref<32x512xf32, #tpu.memory_space<vmem>>, vector<32x512xf32>
    tpu.vector_store %arg14[%c0_7, %c0_8], %9 {strides = array<i32>} : memref<32x512xf32, #tpu.memory_space<vmem>>, vector<32x512xf32>,
    %c0_i32_9 = arith.constant 0 : i32
    %c8_i32 = arith.constant 8 : i32
    %11 = arith.muli %c0_i32_9, %c8_i32 : i32
    %12 = tpu.assume_multiple %11, 8 : i32
    %c0_10 = arith.constant 0 : index
    %c0_11 = arith.constant 0 : index
    %c0_12 = arith.constant 0 : index
    %13 = vector.load %arg12[%c0_10, %c0_11, %c0_12] : memref<2x8x128xbf16, #tpu.memory_space<vmem>>, vector<1x8x128xbf16>
    %14 = vector.shape_cast %13 : vector<1x8x128xbf16> to vector<8x128xbf16>
    %c0_13 = arith.constant 0 : index
    %c0_14 = arith.constant 0 : index
    %c0_15 = arith.constant 0 : index
    %15 = vector.load %arg13[%c0_13, %c0_14, %c0_15] : memref<2x8x128xf32, #tpu.memory_space<vmem>>, vector<1x8x128xf32>
    %16 = vector.shape_cast %15 : vector<1x8x128xf32> to vector<8x128xf32>
    %17 = arith.index_cast %12 : i32 to index
    %c0_16 = arith.constant 0 : index
    %18 = vector.load %arg14[%17, %c0_16] : memref<32x512xf32, #tpu.memory_space<vmem>>, vector<8x512xf32>
    %c0_17 = arith.constant 0 : index
    %c0_18 = arith.constant 0 : index
    %19 = vector.load %arg4[%c0_17, %c0_18] : memref<128x512xbf16, #tpu.memory_space<vmem>>, vector<128x512xbf16>
    %cst_19 = arith.constant dense<0.000000e+00> : vector<8x512xf32>
    %20 = tpu.matmul %14, %19, %cst_19 {dimension_numbers = #tpu.dot_dimension_numbers<[1], [0], [0], [1], [0, 0, 1, 1], [], []>} : vector<8x128xbf16>, vector<128x512xbf16>, vector<8x512xf32> -> vector<8x512xf32>
    %21 = arith.addf %18, %20 : vector<8x512xf32>
    %22 = vector.extract_strided_slice %21 {offsets = [0, 0], sizes = [8, 128], strides = [1, 1]} : vector<8x512xf32> to vector<8x128xf32>
    %23 = arith.negf %22 : vector<8x128xf32>
    %24 = math.exp %23 : vector<8x128xf32>
    %cst_20 = arith.constant 1.000000e+00 : f32
    %25 = vector.broadcast %cst_20 : f32 to vector<8x128xf32>
    %26 = arith.addf %25, %24 : vector<8x128xf32>
    %27 = arith.divf %25, %26 : vector<8x128xf32>
    %28 = vector.extract_strided_slice %21 {offsets = [0, 128], sizes = [8, 128], strides = [1, 1]} : vector<8x512xf32> to vector<8x128xf32>
    %29 = arith.negf %28 : vector<8x128xf32>
    %30 = math.exp %29 : vector<8x128xf32>
    %cst_21 = arith.constant 1.000000e+00 : f32
    %31 = vector.broadcast %cst_21 : f32 to vector<8x128xf32>
    %32 = arith.addf %31, %30 : vector<8x128xf32>
    %33 = arith.divf %31, %32 : vector<8x128xf32>
    %34 = vector.extract_strided_slice %21 {offsets = [0, 256], sizes = [8, 128], strides = [1, 1]} : vector<8x512xf32> to vector<8x128xf32>
    %35 = math.tanh %34 : vector<8x128xf32>
    %36 = vector.extract_strided_slice %21 {offsets = [0, 384], sizes = [8, 128], strides = [1, 1]} : vector<8x512xf32> to vector<8x128xf32>
    %37 = arith.negf %36 : vector<8x128xf32>
    %38 = math.exp %37 : vector<8x128xf32>
    %cst_22 = arith.constant 1.000000e+00 : f32
    %39 = vector.broadcast %cst_22 : f32 to vector<8x128xf32>
    %40 = arith.addf %39, %38 : vector<8x128xf32>
    %41 = arith.divf %39, %40 : vector<8x128xf32>
    %42 = arith.mulf %33, %16 : vector<8x128xf32>
    %43 = arith.mulf %27, %35 : vector<8x128xf32>
    %44 = arith.addf %42, %43 : vector<8x128xf32>
    %45 = math.tanh %44 : vector<8x128xf32>
    %46 = arith.mulf %41, %45 : vector<8x128xf32>
    %47 = arith.truncf %46 : vector<8x128xf32> to vector<8x128xbf16>
    %c0_23 = arith.constant 0 : index
    %c0_24 = arith.constant 0 : index
    %c0_25 = arith.constant 0 : index
    %48 = vector.load %arg12[%c0_23, %c0_24, %c0_25] : memref<2x8x128xbf16, #tpu.memory_space<vmem>>, vector<1x8x128xbf16>
    %49 = vector.shape_cast %48 : vector<1x8x128xbf16> to vector<8x128xbf16>
    %50 = vector.shape_cast %47 : vector<8x128xbf16> to vector<1x8x128xbf16>
    tpu.vector_store %arg12[%c0_23, %c0_24, %c0_25], %50 {strides = array<i32>} : memref<2x8x128xbf16, #tpu.memory_space<vmem>>, vector<1x8x128xbf16>,
    %c0_26 = arith.constant 0 : index
    %c0_27 = arith.constant 0 : index
    %c0_28 = arith.constant 0 : index
    %51 = vector.load %arg13[%c0_26, %c0_27, %c0_28] : memref<2x8x128xf32, #tpu.memory_space<vmem>>, vector<1x8x128xf32>
    %52 = vector.shape_cast %51 : vector<1x8x128xf32> to vector<8x128xf32>
    %53 = vector.shape_cast %44 : vector<8x128xf32> to vector<1x8x128xf32>
    tpu.vector_store %arg13[%c0_26, %c0_27, %c0_28], %53 {strides = array<i32>} : memref<2x8x128xf32, #tpu.memory_space<vmem>>, vector<1x8x128xf32>,
    %c0_29 = arith.constant 0 : index
    %c0_30 = arith.constant 0 : index
    %54 = vector.load %arg6[%c0_29, %c0_30] : memref<128x512xbf16, #tpu.memory_space<vmem>>, vector<128x512xbf16>
    %cst_31 = arith.constant dense<0.000000e+00> : vector<8x512xf32>
    %55 = tpu.matmul %47, %54, %cst_31 {dimension_numbers = #tpu.dot_dimension_numbers<[1], [0], [0], [1], [0, 0, 1, 1], [], []>} : vector<8x128xbf16>, vector<128x512xbf16>, vector<8x512xf32> -> vector<8x512xf32>
    %c0_32 = arith.constant 0 : index
    %c0_33 = arith.constant 0 : index
    %56 = vector.load %arg8[%c0_32, %c0_33] : memref<1x512xf32, #tpu.memory_space<vmem>>, vector<1x512xf32>
    %57 = vector.broadcast %56 : vector<1x512xf32> to vector<8x512xf32>
    %58 = arith.addf %55, %57 : vector<8x512xf32>
    %59 = arith.index_cast %12 : i32 to index
    %c0_34 = arith.constant 0 : index
    %60 = vector.load %arg15[%59, %c0_34] : memref<32x512xf32, #tpu.memory_space<vmem>>, vector<8x512xf32>
    tpu.vector_store %arg15[%59, %c0_34], %58 {strides = array<i32>} : memref<32x512xf32, #tpu.memory_space<vmem>>, vector<8x512xf32>,
    %c1_i32 = arith.constant 1 : i32
    %c8_i32_35 = arith.constant 8 : i32
    %61 = arith.muli %c1_i32, %c8_i32_35 : i32
    %62 = tpu.assume_multiple %61, 8 : i32
    %c0_36 = arith.constant 0 : index
    %c0_37 = arith.constant 0 : index
    %c0_38 = arith.constant 0 : index
    %63 = vector.load %arg12[%c0_36, %c0_37, %c0_38] : memref<2x8x128xbf16, #tpu.memory_space<vmem>>, vector<1x8x128xbf16>
    %64 = vector.shape_cast %63 : vector<1x8x128xbf16> to vector<8x128xbf16>
    %c0_39 = arith.constant 0 : index
    %c0_40 = arith.constant 0 : index
    %c0_41 = arith.constant 0 : index
    %65 = vector.load %arg13[%c0_39, %c0_40, %c0_41] : memref<2x8x128xf32, #tpu.memory_space<vmem>>, vector<1x8x128xf32>
    %66 = vector.shape_cast %65 : vector<1x8x128xf32> to vector<8x128xf32>
    %67 = arith.index_cast %62 : i32 to index
    %c0_42 = arith.constant 0 : index
    %68 = vector.load %arg14[%67, %c0_42] : memref<32x512xf32, #tpu.memory_space<vmem>>, vector<8x512xf32>
    %c0_43 = arith.constant 0 : index
    %c0_44 = arith.constant 0 : index
    %69 = vector.load %arg4[%c0_43, %c0_44] : memref<128x512xbf16, #tpu.memory_space<vmem>>, vector<128x512xbf16>
    %cst_45 = arith.constant dense<0.000000e+00> : vector<8x512xf32>
    %70 = tpu.matmul %64, %69, %cst_45 {dimension_numbers = #tpu.dot_dimension_numbers<[1], [0], [0], [1], [0, 0, 1, 1], [], []>} : vector<8x128xbf16>, vector<128x512xbf16>, vector<8x512xf32> -> vector<8x512xf32>
    %71 = arith.addf %68, %70 : vector<8x512xf32>
    %72 = vector.extract_strided_slice %71 {offsets = [0, 0], sizes = [8, 128], strides = [1, 1]} : vector<8x512xf32> to vector<8x128xf32>
    %73 = arith.negf %72 : vector<8x128xf32>
    %74 = math.exp %73 : vector<8x128xf32>
    %cst_46 = arith.constant 1.000000e+00 : f32
    %75 = vector.broadcast %cst_46 : f32 to vector<8x128xf32>
    %76 = arith.addf %75, %74 : vector<8x128xf32>
    %77 = arith.divf %75, %76 : vector<8x128xf32>
    %78 = vector.extract_strided_slice %71 {offsets = [0, 128], sizes = [8, 128], strides = [1, 1]} : vector<8x512xf32> to vector<8x128xf32>
    %79 = arith.negf %78 : vector<8x128xf32>
    %80 = math.exp %79 : vector<8x128xf32>
    %cst_47 = arith.constant 1.000000e+00 : f32
    %81 = vector.broadcast %cst_47 : f32 to vector<8x128xf32>
    %82 = arith.addf %81, %80 : vector<8x128xf32>
    %83 = arith.divf %81, %82 : vector<8x128xf32>
    %84 = vector.extract_strided_slice %71 {offsets = [0, 256], sizes = [8, 128], strides = [1, 1]} : vector<8x512xf32> to vector<8x128xf32>
    %85 = math.tanh %84 : vector<8x128xf32>
    %86 = vector.extract_strided_slice %71 {offsets = [0, 384], sizes = [8, 128], strides = [1, 1]} : vector<8x512xf32> to vector<8x128xf32>
    %87 = arith.negf %86 : vector<8x128xf32>
    %88 = math.exp %87 : vector<8x128xf32>
    %cst_48 = arith.constant 1.000000e+00 : f32
    %89 = vector.broadcast %cst_48 : f32 to vector<8x128xf32>
    %90 = arith.addf %89, %88 : vector<8x128xf32>
    %91 = arith.divf %89, %90 : vector<8x128xf32>
    %92 = arith.mulf %83, %66 : vector<8x128xf32>
    %93 = arith.mulf %77, %85 : vector<8x128xf32>
    %94 = arith.addf %92, %93 : vector<8x128xf32>
    %95 = math.tanh %94 : vector<8x128xf32>
    %96 = arith.mulf %91, %95 : vector<8x128xf32>
    %97 = arith.truncf %96 : vector<8x128xf32> to vector<8x128xbf16>
    %c0_49 = arith.constant 0 : index
    %c0_50 = arith.constant 0 : index
    %c0_51 = arith.constant 0 : index
    %98 = vector.load %arg12[%c0_49, %c0_50, %c0_51] : memref<2x8x128xbf16, #tpu.memory_space<vmem>>, vector<1x8x128xbf16>
    %99 = vector.shape_cast %98 : vector<1x8x128xbf16> to vector<8x128xbf16>
    %100 = vector.shape_cast %97 : vector<8x128xbf16> to vector<1x8x128xbf16>
    tpu.vector_store %arg12[%c0_49, %c0_50, %c0_51], %100 {strides = array<i32>} : memref<2x8x128xbf16, #tpu.memory_space<vmem>>, vector<1x8x128xbf16>,
    %c0_52 = arith.constant 0 : index
    %c0_53 = arith.constant 0 : index
    %c0_54 = arith.constant 0 : index
    %101 = vector.load %arg13[%c0_52, %c0_53, %c0_54] : memref<2x8x128xf32, #tpu.memory_space<vmem>>, vector<1x8x128xf32>
    %102 = vector.shape_cast %101 : vector<1x8x128xf32> to vector<8x128xf32>
    %103 = vector.shape_cast %94 : vector<8x128xf32> to vector<1x8x128xf32>
    tpu.vector_store %arg13[%c0_52, %c0_53, %c0_54], %103 {strides = array<i32>} : memref<2x8x128xf32, #tpu.memory_space<vmem>>, vector<1x8x128xf32>,
    %c0_55 = arith.constant 0 : index
    %c0_56 = arith.constant 0 : index
    %104 = vector.load %arg6[%c0_55, %c0_56] : memref<128x512xbf16, #tpu.memory_space<vmem>>, vector<128x512xbf16>
    %cst_57 = arith.constant dense<0.000000e+00> : vector<8x512xf32>
    %105 = tpu.matmul %97, %104, %cst_57 {dimension_numbers = #tpu.dot_dimension_numbers<[1], [0], [0], [1], [0, 0, 1, 1], [], []>} : vector<8x128xbf16>, vector<128x512xbf16>, vector<8x512xf32> -> vector<8x512xf32>
    %c0_58 = arith.constant 0 : index
    %c0_59 = arith.constant 0 : index
    %106 = vector.load %arg8[%c0_58, %c0_59] : memref<1x512xf32, #tpu.memory_space<vmem>>, vector<1x512xf32>
    %107 = vector.broadcast %106 : vector<1x512xf32> to vector<8x512xf32>
    %108 = arith.addf %105, %107 : vector<8x512xf32>
    %109 = arith.index_cast %62 : i32 to index
    %c0_60 = arith.constant 0 : index
    %110 = vector.load %arg15[%109, %c0_60] : memref<32x512xf32, #tpu.memory_space<vmem>>, vector<8x512xf32>
    tpu.vector_store %arg15[%109, %c0_60], %108 {strides = array<i32>} : memref<32x512xf32, #tpu.memory_space<vmem>>, vector<8x512xf32>,
    %c2_i32 = arith.constant 2 : i32
    %c8_i32_61 = arith.constant 8 : i32
    %111 = arith.muli %c2_i32, %c8_i32_61 : i32
    %112 = tpu.assume_multiple %111, 8 : i32
    %c0_62 = arith.constant 0 : index
    %c0_63 = arith.constant 0 : index
    %c0_64 = arith.constant 0 : index
    %113 = vector.load %arg12[%c0_62, %c0_63, %c0_64] : memref<2x8x128xbf16, #tpu.memory_space<vmem>>, vector<1x8x128xbf16>
    %114 = vector.shape_cast %113 : vector<1x8x128xbf16> to vector<8x128xbf16>
    %c0_65 = arith.constant 0 : index
    %c0_66 = arith.constant 0 : index
    %c0_67 = arith.constant 0 : index
    %115 = vector.load %arg13[%c0_65, %c0_66, %c0_67] : memref<2x8x128xf32, #tpu.memory_space<vmem>>, vector<1x8x128xf32>
    %116 = vector.shape_cast %115 : vector<1x8x128xf32> to vector<8x128xf32>
    %117 = arith.index_cast %112 : i32 to index
    %c0_68 = arith.constant 0 : index
    %118 = vector.load %arg14[%117, %c0_68] : memref<32x512xf32, #tpu.memory_space<vmem>>, vector<8x512xf32>
    %c0_69 = arith.constant 0 : index
    %c0_70 = arith.constant 0 : index
    %119 = vector.load %arg4[%c0_69, %c0_70] : memref<128x512xbf16, #tpu.memory_space<vmem>>, vector<128x512xbf16>
    %cst_71 = arith.constant dense<0.000000e+00> : vector<8x512xf32>
    %120 = tpu.matmul %114, %119, %cst_71 {dimension_numbers = #tpu.dot_dimension_numbers<[1], [0], [0], [1], [0, 0, 1, 1], [], []>} : vector<8x128xbf16>, vector<128x512xbf16>, vector<8x512xf32> -> vector<8x512xf32>
    %121 = arith.addf %118, %120 : vector<8x512xf32>
    %122 = vector.extract_strided_slice %121 {offsets = [0, 0], sizes = [8, 128], strides = [1, 1]} : vector<8x512xf32> to vector<8x128xf32>
    %123 = arith.negf %122 : vector<8x128xf32>
    %124 = math.exp %123 : vector<8x128xf32>
    %cst_72 = arith.constant 1.000000e+00 : f32
    %125 = vector.broadcast %cst_72 : f32 to vector<8x128xf32>
    %126 = arith.addf %125, %124 : vector<8x128xf32>
    %127 = arith.divf %125, %126 : vector<8x128xf32>
    %128 = vector.extract_strided_slice %121 {offsets = [0, 128], sizes = [8, 128], strides = [1, 1]} : vector<8x512xf32> to vector<8x128xf32>
    %129 = arith.negf %128 : vector<8x128xf32>
    %130 = math.exp %129 : vector<8x128xf32>
    %cst_73 = arith.constant 1.000000e+00 : f32
    %131 = vector.broadcast %cst_73 : f32 to vector<8x128xf32>
    %132 = arith.addf %131, %130 : vector<8x128xf32>
    %133 = arith.divf %131, %132 : vector<8x128xf32>
    %134 = vector.extract_strided_slice %121 {offsets = [0, 256], sizes = [8, 128], strides = [1, 1]} : vector<8x512xf32> to vector<8x128xf32>
    %135 = math.tanh %134 : vector<8x128xf32>
    %136 = vector.extract_strided_slice %121 {offsets = [0, 384], sizes = [8, 128], strides = [1, 1]} : vector<8x512xf32> to vector<8x128xf32>
    %137 = arith.negf %136 : vector<8x128xf32>
    %138 = math.exp %137 : vector<8x128xf32>
    %cst_74 = arith.constant 1.000000e+00 : f32
    %139 = vector.broadcast %cst_74 : f32 to vector<8x128xf32>
    %140 = arith.addf %139, %138 : vector<8x128xf32>
    %141 = arith.divf %139, %140 : vector<8x128xf32>
    %142 = arith.mulf %133, %116 : vector<8x128xf32>
    %143 = arith.mulf %127, %135 : vector<8x128xf32>
    %144 = arith.addf %142, %143 : vector<8x128xf32>
    %145 = math.tanh %144 : vector<8x128xf32>
    %146 = arith.mulf %141, %145 : vector<8x128xf32>
    %147 = arith.truncf %146 : vector<8x128xf32> to vector<8x128xbf16>
    %c0_75 = arith.constant 0 : index
    %c0_76 = arith.constant 0 : index
    %c0_77 = arith.constant 0 : index
    %148 = vector.load %arg12[%c0_75, %c0_76, %c0_77] : memref<2x8x128xbf16, #tpu.memory_space<vmem>>, vector<1x8x128xbf16>
    %149 = vector.shape_cast %148 : vector<1x8x128xbf16> to vector<8x128xbf16>
    %150 = vector.shape_cast %147 : vector<8x128xbf16> to vector<1x8x128xbf16>
    tpu.vector_store %arg12[%c0_75, %c0_76, %c0_77], %150 {strides = array<i32>} : memref<2x8x128xbf16, #tpu.memory_space<vmem>>, vector<1x8x128xbf16>,
    %c0_78 = arith.constant 0 : index
    %c0_79 = arith.constant 0 : index
    %c0_80 = arith.constant 0 : index
    %151 = vector.load %arg13[%c0_78, %c0_79, %c0_80] : memref<2x8x128xf32, #tpu.memory_space<vmem>>, vector<1x8x128xf32>
    %152 = vector.shape_cast %151 : vector<1x8x128xf32> to vector<8x128xf32>
    %153 = vector.shape_cast %144 : vector<8x128xf32> to vector<1x8x128xf32>
    tpu.vector_store %arg13[%c0_78, %c0_79, %c0_80], %153 {strides = array<i32>} : memref<2x8x128xf32, #tpu.memory_space<vmem>>, vector<1x8x128xf32>,
    %c0_81 = arith.constant 0 : index
    %c0_82 = arith.constant 0 : index
    %154 = vector.load %arg6[%c0_81, %c0_82] : memref<128x512xbf16, #tpu.memory_space<vmem>>, vector<128x512xbf16>
    %cst_83 = arith.constant dense<0.000000e+00> : vector<8x512xf32>
    %155 = tpu.matmul %147, %154, %cst_83 {dimension_numbers = #tpu.dot_dimension_numbers<[1], [0], [0], [1], [0, 0, 1, 1], [], []>} : vector<8x128xbf16>, vector<128x512xbf16>, vector<8x512xf32> -> vector<8x512xf32>
    %c0_84 = arith.constant 0 : index
    %c0_85 = arith.constant 0 : index
    %156 = vector.load %arg8[%c0_84, %c0_85] : memref<1x512xf32, #tpu.memory_space<vmem>>, vector<1x512xf32>
    %157 = vector.broadcast %156 : vector<1x512xf32> to vector<8x512xf32>
    %158 = arith.addf %155, %157 : vector<8x512xf32>
    %159 = arith.index_cast %112 : i32 to index
    %c0_86 = arith.constant 0 : index
    %160 = vector.load %arg15[%159, %c0_86] : memref<32x512xf32, #tpu.memory_space<vmem>>, vector<8x512xf32>
    tpu.vector_store %arg15[%159, %c0_86], %158 {strides = array<i32>} : memref<32x512xf32, #tpu.memory_space<vmem>>, vector<8x512xf32>,
    %c3_i32 = arith.constant 3 : i32
    %c8_i32_87 = arith.constant 8 : i32
    %161 = arith.muli %c3_i32, %c8_i32_87 : i32
    %162 = tpu.assume_multiple %161, 8 : i32
    %c0_88 = arith.constant 0 : index
    %c0_89 = arith.constant 0 : index
    %c0_90 = arith.constant 0 : index
    %163 = vector.load %arg12[%c0_88, %c0_89, %c0_90] : memref<2x8x128xbf16, #tpu.memory_space<vmem>>, vector<1x8x128xbf16>
    %164 = vector.shape_cast %163 : vector<1x8x128xbf16> to vector<8x128xbf16>
    %c0_91 = arith.constant 0 : index
    %c0_92 = arith.constant 0 : index
    %c0_93 = arith.constant 0 : index
    %165 = vector.load %arg13[%c0_91, %c0_92, %c0_93] : memref<2x8x128xf32, #tpu.memory_space<vmem>>, vector<1x8x128xf32>
    %166 = vector.shape_cast %165 : vector<1x8x128xf32> to vector<8x128xf32>
    %167 = arith.index_cast %162 : i32 to index
    %c0_94 = arith.constant 0 : index
    %168 = vector.load %arg14[%167, %c0_94] : memref<32x512xf32, #tpu.memory_space<vmem>>, vector<8x512xf32>
    %c0_95 = arith.constant 0 : index
    %c0_96 = arith.constant 0 : index
    %169 = vector.load %arg4[%c0_95, %c0_96] : memref<128x512xbf16, #tpu.memory_space<vmem>>, vector<128x512xbf16>
    %cst_97 = arith.constant dense<0.000000e+00> : vector<8x512xf32>
    %170 = tpu.matmul %164, %169, %cst_97 {dimension_numbers = #tpu.dot_dimension_numbers<[1], [0], [0], [1], [0, 0, 1, 1], [], []>} : vector<8x128xbf16>, vector<128x512xbf16>, vector<8x512xf32> -> vector<8x512xf32>
    %171 = arith.addf %168, %170 : vector<8x512xf32>
    %172 = vector.extract_strided_slice %171 {offsets = [0, 0], sizes = [8, 128], strides = [1, 1]} : vector<8x512xf32> to vector<8x128xf32>
    %173 = arith.negf %172 : vector<8x128xf32>
    %174 = math.exp %173 : vector<8x128xf32>
    %cst_98 = arith.constant 1.000000e+00 : f32
    %175 = vector.broadcast %cst_98 : f32 to vector<8x128xf32>
    %176 = arith.addf %175, %174 : vector<8x128xf32>
    %177 = arith.divf %175, %176 : vector<8x128xf32>
    %178 = vector.extract_strided_slice %171 {offsets = [0, 128], sizes = [8, 128], strides = [1, 1]} : vector<8x512xf32> to vector<8x128xf32>
    %179 = arith.negf %178 : vector<8x128xf32>
    %180 = math.exp %179 : vector<8x128xf32>
    %cst_99 = arith.constant 1.000000e+00 : f32
    %181 = vector.broadcast %cst_99 : f32 to vector<8x128xf32>
    %182 = arith.addf %181, %180 : vector<8x128xf32>
    %183 = arith.divf %181, %182 : vector<8x128xf32>
    %184 = vector.extract_strided_slice %171 {offsets = [0, 256], sizes = [8, 128], strides = [1, 1]} : vector<8x512xf32> to vector<8x128xf32>
    %185 = math.tanh %184 : vector<8x128xf32>
    %186 = vector.extract_strided_slice %171 {offsets = [0, 384], sizes = [8, 128], strides = [1, 1]} : vector<8x512xf32> to vector<8x128xf32>
    %187 = arith.negf %186 : vector<8x128xf32>
    %188 = math.exp %187 : vector<8x128xf32>
    %cst_100 = arith.constant 1.000000e+00 : f32
    %189 = vector.broadcast %cst_100 : f32 to vector<8x128xf32>
    %190 = arith.addf %189, %188 : vector<8x128xf32>
    %191 = arith.divf %189, %190 : vector<8x128xf32>
    %192 = arith.mulf %183, %166 : vector<8x128xf32>
    %193 = arith.mulf %177, %185 : vector<8x128xf32>
    %194 = arith.addf %192, %193 : vector<8x128xf32>
    %195 = math.tanh %194 : vector<8x128xf32>
    %196 = arith.mulf %191, %195 : vector<8x128xf32>
    %197 = arith.truncf %196 : vector<8x128xf32> to vector<8x128xbf16>
    %c0_101 = arith.constant 0 : index
    %c0_102 = arith.constant 0 : index
    %c0_103 = arith.constant 0 : index
    %198 = vector.load %arg12[%c0_101, %c0_102, %c0_103] : memref<2x8x128xbf16, #tpu.memory_space<vmem>>, vector<1x8x128xbf16>
    %199 = vector.shape_cast %198 : vector<1x8x128xbf16> to vector<8x128xbf16>
    %200 = vector.shape_cast %197 : vector<8x128xbf16> to vector<1x8x128xbf16>
    tpu.vector_store %arg12[%c0_101, %c0_102, %c0_103], %200 {strides = array<i32>} : memref<2x8x128xbf16, #tpu.memory_space<vmem>>, vector<1x8x128xbf16>,
    %c0_104 = arith.constant 0 : index
    %c0_105 = arith.constant 0 : index
    %c0_106 = arith.constant 0 : index
    %201 = vector.load %arg13[%c0_104, %c0_105, %c0_106] : memref<2x8x128xf32, #tpu.memory_space<vmem>>, vector<1x8x128xf32>
    %202 = vector.shape_cast %201 : vector<1x8x128xf32> to vector<8x128xf32>
    %203 = vector.shape_cast %194 : vector<8x128xf32> to vector<1x8x128xf32>
    tpu.vector_store %arg13[%c0_104, %c0_105, %c0_106], %203 {strides = array<i32>} : memref<2x8x128xf32, #tpu.memory_space<vmem>>, vector<1x8x128xf32>,
    %c0_107 = arith.constant 0 : index
    %c0_108 = arith.constant 0 : index
    %204 = vector.load %arg6[%c0_107, %c0_108] : memref<128x512xbf16, #tpu.memory_space<vmem>>, vector<128x512xbf16>
    %cst_109 = arith.constant dense<0.000000e+00> : vector<8x512xf32>
    %205 = tpu.matmul %197, %204, %cst_109 {dimension_numbers = #tpu.dot_dimension_numbers<[1], [0], [0], [1], [0, 0, 1, 1], [], []>} : vector<8x128xbf16>, vector<128x512xbf16>, vector<8x512xf32> -> vector<8x512xf32>
    %c0_110 = arith.constant 0 : index
    %c0_111 = arith.constant 0 : index
    %206 = vector.load %arg8[%c0_110, %c0_111] : memref<1x512xf32, #tpu.memory_space<vmem>>, vector<1x512xf32>
    %207 = vector.broadcast %206 : vector<1x512xf32> to vector<8x512xf32>
    %208 = arith.addf %205, %207 : vector<8x512xf32>
    %209 = arith.index_cast %162 : i32 to index
    %c0_112 = arith.constant 0 : index
    %210 = vector.load %arg15[%209, %c0_112] : memref<32x512xf32, #tpu.memory_space<vmem>>, vector<8x512xf32>
    tpu.vector_store %arg15[%209, %c0_112], %208 {strides = array<i32>} : memref<32x512xf32, #tpu.memory_space<vmem>>, vector<8x512xf32>,
    %c4_i32 = arith.constant 4 : i32
    %c0_i32_113 = arith.constant 0 : i32
    %c8_i32_114 = arith.constant 8 : i32
    %211 = arith.muli %c0_i32_113, %c8_i32_114 : i32
    %212 = tpu.assume_multiple %211, 8 : i32
    %c1 = arith.constant 1 : index
    %c0_115 = arith.constant 0 : index
    %c0_116 = arith.constant 0 : index
    %213 = vector.load %arg12[%c1, %c0_115, %c0_116] : memref<2x8x128xbf16, #tpu.memory_space<vmem>>, vector<1x8x128xbf16>
    %214 = vector.shape_cast %213 : vector<1x8x128xbf16> to vector<8x128xbf16>
    %c1_117 = arith.constant 1 : index
    %c0_118 = arith.constant 0 : index
    %c0_119 = arith.constant 0 : index
    %215 = vector.load %arg13[%c1_117, %c0_118, %c0_119] : memref<2x8x128xf32, #tpu.memory_space<vmem>>, vector<1x8x128xf32>
    %216 = vector.shape_cast %215 : vector<1x8x128xf32> to vector<8x128xf32>
    %217 = arith.index_cast %212 : i32 to index
    %c0_120 = arith.constant 0 : index
    %218 = vector.load %arg15[%217, %c0_120] : memref<32x512xf32, #tpu.memory_space<vmem>>, vector<8x512xf32>
    %c0_121 = arith.constant 0 : index
    %c0_122 = arith.constant 0 : index
    %219 = vector.load %arg7[%c0_121, %c0_122] : memref<128x512xbf16, #tpu.memory_space<vmem>>, vector<128x512xbf16>
    %cst_123 = arith.constant dense<0.000000e+00> : vector<8x512xf32>
    %220 = tpu.matmul %214, %219, %cst_123 {dimension_numbers = #tpu.dot_dimension_numbers<[1], [0], [0], [1], [0, 0, 1, 1], [], []>} : vector<8x128xbf16>, vector<128x512xbf16>, vector<8x512xf32> -> vector<8x512xf32>
    %221 = arith.addf %218, %220 : vector<8x512xf32>
    %222 = vector.extract_strided_slice %221 {offsets = [0, 0], sizes = [8, 128], strides = [1, 1]} : vector<8x512xf32> to vector<8x128xf32>
    %223 = arith.negf %222 : vector<8x128xf32>
    %224 = math.exp %223 : vector<8x128xf32>
    %cst_124 = arith.constant 1.000000e+00 : f32
    %225 = vector.broadcast %cst_124 : f32 to vector<8x128xf32>
    %226 = arith.addf %225, %224 : vector<8x128xf32>
    %227 = arith.divf %225, %226 : vector<8x128xf32>
    %228 = vector.extract_strided_slice %221 {offsets = [0, 128], sizes = [8, 128], strides = [1, 1]} : vector<8x512xf32> to vector<8x128xf32>
    %229 = arith.negf %228 : vector<8x128xf32>
    %230 = math.exp %229 : vector<8x128xf32>
    %cst_125 = arith.constant 1.000000e+00 : f32
    %231 = vector.broadcast %cst_125 : f32 to vector<8x128xf32>
    %232 = arith.addf %231, %230 : vector<8x128xf32>
    %233 = arith.divf %231, %232 : vector<8x128xf32>
    %234 = vector.extract_strided_slice %221 {offsets = [0, 256], sizes = [8, 128], strides = [1, 1]} : vector<8x512xf32> to vector<8x128xf32>
    %235 = math.tanh %234 : vector<8x128xf32>
    %236 = vector.extract_strided_slice %221 {offsets = [0, 384], sizes = [8, 128], strides = [1, 1]} : vector<8x512xf32> to vector<8x128xf32>
    %237 = arith.negf %236 : vector<8x128xf32>
    %238 = math.exp %237 : vector<8x128xf32>
    %cst_126 = arith.constant 1.000000e+00 : f32
    %239 = vector.broadcast %cst_126 : f32 to vector<8x128xf32>
    %240 = arith.addf %239, %238 : vector<8x128xf32>
    %241 = arith.divf %239, %240 : vector<8x128xf32>
    %242 = arith.mulf %233, %216 : vector<8x128xf32>
    %243 = arith.mulf %227, %235 : vector<8x128xf32>
    %244 = arith.addf %242, %243 : vector<8x128xf32>
    %245 = math.tanh %244 : vector<8x128xf32>
    %246 = arith.mulf %241, %245 : vector<8x128xf32>
    %247 = arith.truncf %246 : vector<8x128xf32> to vector<8x128xbf16>
    %c1_127 = arith.constant 1 : index
    %c0_128 = arith.constant 0 : index
    %c0_129 = arith.constant 0 : index
    %248 = vector.load %arg12[%c1_127, %c0_128, %c0_129] : memref<2x8x128xbf16, #tpu.memory_space<vmem>>, vector<1x8x128xbf16>
    %249 = vector.shape_cast %248 : vector<1x8x128xbf16> to vector<8x128xbf16>
    %250 = vector.shape_cast %247 : vector<8x128xbf16> to vector<1x8x128xbf16>
    tpu.vector_store %arg12[%c1_127, %c0_128, %c0_129], %250 {strides = array<i32>} : memref<2x8x128xbf16, #tpu.memory_space<vmem>>, vector<1x8x128xbf16>,
    %c1_130 = arith.constant 1 : index
    %c0_131 = arith.constant 0 : index
    %c0_132 = arith.constant 0 : index
    %251 = vector.load %arg13[%c1_130, %c0_131, %c0_132] : memref<2x8x128xf32, #tpu.memory_space<vmem>>, vector<1x8x128xf32>
    %252 = vector.shape_cast %251 : vector<1x8x128xf32> to vector<8x128xf32>
    %253 = vector.shape_cast %244 : vector<8x128xf32> to vector<1x8x128xf32>
    tpu.vector_store %arg13[%c1_130, %c0_131, %c0_132], %253 {strides = array<i32>} : memref<2x8x128xf32, #tpu.memory_space<vmem>>, vector<1x8x128xf32>,
    %c1_i32_133 = arith.constant 1 : i32
    %c8_i32_134 = arith.constant 8 : i32
    %254 = arith.muli %c1_i32_133, %c8_i32_134 : i32
    %255 = tpu.assume_multiple %254, 8 : i32
    %c1_135 = arith.constant 1 : index
    %c0_136 = arith.constant 0 : index
    %c0_137 = arith.constant 0 : index
    %256 = vector.load %arg12[%c1_135, %c0_136, %c0_137] : memref<2x8x128xbf16, #tpu.memory_space<vmem>>, vector<1x8x128xbf16>
    %257 = vector.shape_cast %256 : vector<1x8x128xbf16> to vector<8x128xbf16>
    %c1_138 = arith.constant 1 : index
    %c0_139 = arith.constant 0 : index
    %c0_140 = arith.constant 0 : index
    %258 = vector.load %arg13[%c1_138, %c0_139, %c0_140] : memref<2x8x128xf32, #tpu.memory_space<vmem>>, vector<1x8x128xf32>
    %259 = vector.shape_cast %258 : vector<1x8x128xf32> to vector<8x128xf32>
    %260 = arith.index_cast %255 : i32 to index
    %c0_141 = arith.constant 0 : index
    %261 = vector.load %arg15[%260, %c0_141] : memref<32x512xf32, #tpu.memory_space<vmem>>, vector<8x512xf32>
    %c0_142 = arith.constant 0 : index
    %c0_143 = arith.constant 0 : index
    %262 = vector.load %arg7[%c0_142, %c0_143] : memref<128x512xbf16, #tpu.memory_space<vmem>>, vector<128x512xbf16>
    %cst_144 = arith.constant dense<0.000000e+00> : vector<8x512xf32>
    %263 = tpu.matmul %257, %262, %cst_144 {dimension_numbers = #tpu.dot_dimension_numbers<[1], [0], [0], [1], [0, 0, 1, 1], [], []>} : vector<8x128xbf16>, vector<128x512xbf16>, vector<8x512xf32> -> vector<8x512xf32>
    %264 = arith.addf %261, %263 : vector<8x512xf32>
    %265 = vector.extract_strided_slice %264 {offsets = [0, 0], sizes = [8, 128], strides = [1, 1]} : vector<8x512xf32> to vector<8x128xf32>
    %266 = arith.negf %265 : vector<8x128xf32>
    %267 = math.exp %266 : vector<8x128xf32>
    %cst_145 = arith.constant 1.000000e+00 : f32
    %268 = vector.broadcast %cst_145 : f32 to vector<8x128xf32>
    %269 = arith.addf %268, %267 : vector<8x128xf32>
    %270 = arith.divf %268, %269 : vector<8x128xf32>
    %271 = vector.extract_strided_slice %264 {offsets = [0, 128], sizes = [8, 128], strides = [1, 1]} : vector<8x512xf32> to vector<8x128xf32>
    %272 = arith.negf %271 : vector<8x128xf32>
    %273 = math.exp %272 : vector<8x128xf32>
    %cst_146 = arith.constant 1.000000e+00 : f32
    %274 = vector.broadcast %cst_146 : f32 to vector<8x128xf32>
    %275 = arith.addf %274, %273 : vector<8x128xf32>
    %276 = arith.divf %274, %275 : vector<8x128xf32>
    %277 = vector.extract_strided_slice %264 {offsets = [0, 256], sizes = [8, 128], strides = [1, 1]} : vector<8x512xf32> to vector<8x128xf32>
    %278 = math.tanh %277 : vector<8x128xf32>
    %279 = vector.extract_strided_slice %264 {offsets = [0, 384], sizes = [8, 128], strides = [1, 1]} : vector<8x512xf32> to vector<8x128xf32>
    %280 = arith.negf %279 : vector<8x128xf32>
    %281 = math.exp %280 : vector<8x128xf32>
    %cst_147 = arith.constant 1.000000e+00 : f32
    %282 = vector.broadcast %cst_147 : f32 to vector<8x128xf32>
    %283 = arith.addf %282, %281 : vector<8x128xf32>
    %284 = arith.divf %282, %283 : vector<8x128xf32>
    %285 = arith.mulf %276, %259 : vector<8x128xf32>
    %286 = arith.mulf %270, %278 : vector<8x128xf32>
    %287 = arith.addf %285, %286 : vector<8x128xf32>
    %288 = math.tanh %287 : vector<8x128xf32>
    %289 = arith.mulf %284, %288 : vector<8x128xf32>
    %290 = arith.truncf %289 : vector<8x128xf32> to vector<8x128xbf16>
    %c1_148 = arith.constant 1 : index
    %c0_149 = arith.constant 0 : index
    %c0_150 = arith.constant 0 : index
    %291 = vector.load %arg12[%c1_148, %c0_149, %c0_150] : memref<2x8x128xbf16, #tpu.memory_space<vmem>>, vector<1x8x128xbf16>
    %292 = vector.shape_cast %291 : vector<1x8x128xbf16> to vector<8x128xbf16>
    %293 = vector.shape_cast %290 : vector<8x128xbf16> to vector<1x8x128xbf16>
    tpu.vector_store %arg12[%c1_148, %c0_149, %c0_150], %293 {strides = array<i32>} : memref<2x8x128xbf16, #tpu.memory_space<vmem>>, vector<1x8x128xbf16>,
    %c1_151 = arith.constant 1 : index
    %c0_152 = arith.constant 0 : index
    %c0_153 = arith.constant 0 : index
    %294 = vector.load %arg13[%c1_151, %c0_152, %c0_153] : memref<2x8x128xf32, #tpu.memory_space<vmem>>, vector<1x8x128xf32>
    %295 = vector.shape_cast %294 : vector<1x8x128xf32> to vector<8x128xf32>
    %296 = vector.shape_cast %287 : vector<8x128xf32> to vector<1x8x128xf32>
    tpu.vector_store %arg13[%c1_151, %c0_152, %c0_153], %296 {strides = array<i32>} : memref<2x8x128xf32, #tpu.memory_space<vmem>>, vector<1x8x128xf32>,
    %c2_i32_154 = arith.constant 2 : i32
    %c8_i32_155 = arith.constant 8 : i32
    %297 = arith.muli %c2_i32_154, %c8_i32_155 : i32
    %298 = tpu.assume_multiple %297, 8 : i32
    %c1_156 = arith.constant 1 : index
    %c0_157 = arith.constant 0 : index
    %c0_158 = arith.constant 0 : index
    %299 = vector.load %arg12[%c1_156, %c0_157, %c0_158] : memref<2x8x128xbf16, #tpu.memory_space<vmem>>, vector<1x8x128xbf16>
    %300 = vector.shape_cast %299 : vector<1x8x128xbf16> to vector<8x128xbf16>
    %c1_159 = arith.constant 1 : index
    %c0_160 = arith.constant 0 : index
    %c0_161 = arith.constant 0 : index
    %301 = vector.load %arg13[%c1_159, %c0_160, %c0_161] : memref<2x8x128xf32, #tpu.memory_space<vmem>>, vector<1x8x128xf32>
    %302 = vector.shape_cast %301 : vector<1x8x128xf32> to vector<8x128xf32>
    %303 = arith.index_cast %298 : i32 to index
    %c0_162 = arith.constant 0 : index
    %304 = vector.load %arg15[%303, %c0_162] : memref<32x512xf32, #tpu.memory_space<vmem>>, vector<8x512xf32>
    %c0_163 = arith.constant 0 : index
    %c0_164 = arith.constant 0 : index
    %305 = vector.load %arg7[%c0_163, %c0_164] : memref<128x512xbf16, #tpu.memory_space<vmem>>, vector<128x512xbf16>
    %cst_165 = arith.constant dense<0.000000e+00> : vector<8x512xf32>
    %306 = tpu.matmul %300, %305, %cst_165 {dimension_numbers = #tpu.dot_dimension_numbers<[1], [0], [0], [1], [0, 0, 1, 1], [], []>} : vector<8x128xbf16>, vector<128x512xbf16>, vector<8x512xf32> -> vector<8x512xf32>
    %307 = arith.addf %304, %306 : vector<8x512xf32>
    %308 = vector.extract_strided_slice %307 {offsets = [0, 0], sizes = [8, 128], strides = [1, 1]} : vector<8x512xf32> to vector<8x128xf32>
    %309 = arith.negf %308 : vector<8x128xf32>
    %310 = math.exp %309 : vector<8x128xf32>
    %cst_166 = arith.constant 1.000000e+00 : f32
    %311 = vector.broadcast %cst_166 : f32 to vector<8x128xf32>
    %312 = arith.addf %311, %310 : vector<8x128xf32>
    %313 = arith.divf %311, %312 : vector<8x128xf32>
    %314 = vector.extract_strided_slice %307 {offsets = [0, 128], sizes = [8, 128], strides = [1, 1]} : vector<8x512xf32> to vector<8x128xf32>
    %315 = arith.negf %314 : vector<8x128xf32>
    %316 = math.exp %315 : vector<8x128xf32>
    %cst_167 = arith.constant 1.000000e+00 : f32
    %317 = vector.broadcast %cst_167 : f32 to vector<8x128xf32>
    %318 = arith.addf %317, %316 : vector<8x128xf32>
    %319 = arith.divf %317, %318 : vector<8x128xf32>
    %320 = vector.extract_strided_slice %307 {offsets = [0, 256], sizes = [8, 128], strides = [1, 1]} : vector<8x512xf32> to vector<8x128xf32>
    %321 = math.tanh %320 : vector<8x128xf32>
    %322 = vector.extract_strided_slice %307 {offsets = [0, 384], sizes = [8, 128], strides = [1, 1]} : vector<8x512xf32> to vector<8x128xf32>
    %323 = arith.negf %322 : vector<8x128xf32>
    %324 = math.exp %323 : vector<8x128xf32>
    %cst_168 = arith.constant 1.000000e+00 : f32
    %325 = vector.broadcast %cst_168 : f32 to vector<8x128xf32>
    %326 = arith.addf %325, %324 : vector<8x128xf32>
    %327 = arith.divf %325, %326 : vector<8x128xf32>
    %328 = arith.mulf %319, %302 : vector<8x128xf32>
    %329 = arith.mulf %313, %321 : vector<8x128xf32>
    %330 = arith.addf %328, %329 : vector<8x128xf32>
    %331 = math.tanh %330 : vector<8x128xf32>
    %332 = arith.mulf %327, %331 : vector<8x128xf32>
    %333 = arith.truncf %332 : vector<8x128xf32> to vector<8x128xbf16>
    %c1_169 = arith.constant 1 : index
    %c0_170 = arith.constant 0 : index
    %c0_171 = arith.constant 0 : index
    %334 = vector.load %arg12[%c1_169, %c0_170, %c0_171] : memref<2x8x128xbf16, #tpu.memory_space<vmem>>, vector<1x8x128xbf16>
    %335 = vector.shape_cast %334 : vector<1x8x128xbf16> to vector<8x128xbf16>
    %336 = vector.shape_cast %333 : vector<8x128xbf16> to vector<1x8x128xbf16>
    tpu.vector_store %arg12[%c1_169, %c0_170, %c0_171], %336 {strides = array<i32>} : memref<2x8x128xbf16, #tpu.memory_space<vmem>>, vector<1x8x128xbf16>,
    %c1_172 = arith.constant 1 : index
    %c0_173 = arith.constant 0 : index
    %c0_174 = arith.constant 0 : index
    %337 = vector.load %arg13[%c1_172, %c0_173, %c0_174] : memref<2x8x128xf32, #tpu.memory_space<vmem>>, vector<1x8x128xf32>
    %338 = vector.shape_cast %337 : vector<1x8x128xf32> to vector<8x128xf32>
    %339 = vector.shape_cast %330 : vector<8x128xf32> to vector<1x8x128xf32>
    tpu.vector_store %arg13[%c1_172, %c0_173, %c0_174], %339 {strides = array<i32>} : memref<2x8x128xf32, #tpu.memory_space<vmem>>, vector<1x8x128xf32>,
    %c3_i32_175 = arith.constant 3 : i32
    %c8_i32_176 = arith.constant 8 : i32
    %340 = arith.muli %c3_i32_175, %c8_i32_176 : i32
    %341 = tpu.assume_multiple %340, 8 : i32
    %c1_177 = arith.constant 1 : index
    %c0_178 = arith.constant 0 : index
    %c0_179 = arith.constant 0 : index
    %342 = vector.load %arg12[%c1_177, %c0_178, %c0_179] : memref<2x8x128xbf16, #tpu.memory_space<vmem>>, vector<1x8x128xbf16>
    %343 = vector.shape_cast %342 : vector<1x8x128xbf16> to vector<8x128xbf16>
    %c1_180 = arith.constant 1 : index
    %c0_181 = arith.constant 0 : index
    %c0_182 = arith.constant 0 : index
    %344 = vector.load %arg13[%c1_180, %c0_181, %c0_182] : memref<2x8x128xf32, #tpu.memory_space<vmem>>, vector<1x8x128xf32>
    %345 = vector.shape_cast %344 : vector<1x8x128xf32> to vector<8x128xf32>
    %346 = arith.index_cast %341 : i32 to index
    %c0_183 = arith.constant 0 : index
    %347 = vector.load %arg15[%346, %c0_183] : memref<32x512xf32, #tpu.memory_space<vmem>>, vector<8x512xf32>
    %c0_184 = arith.constant 0 : index
    %c0_185 = arith.constant 0 : index
    %348 = vector.load %arg7[%c0_184, %c0_185] : memref<128x512xbf16, #tpu.memory_space<vmem>>, vector<128x512xbf16>
    %cst_186 = arith.constant dense<0.000000e+00> : vector<8x512xf32>
    %349 = tpu.matmul %343, %348, %cst_186 {dimension_numbers = #tpu.dot_dimension_numbers<[1], [0], [0], [1], [0, 0, 1, 1], [], []>} : vector<8x128xbf16>, vector<128x512xbf16>, vector<8x512xf32> -> vector<8x512xf32>
    %350 = arith.addf %347, %349 : vector<8x512xf32>
    %351 = vector.extract_strided_slice %350 {offsets = [0, 0], sizes = [8, 128], strides = [1, 1]} : vector<8x512xf32> to vector<8x128xf32>
    %352 = arith.negf %351 : vector<8x128xf32>
    %353 = math.exp %352 : vector<8x128xf32>
    %cst_187 = arith.constant 1.000000e+00 : f32
    %354 = vector.broadcast %cst_187 : f32 to vector<8x128xf32>
    %355 = arith.addf %354, %353 : vector<8x128xf32>
    %356 = arith.divf %354, %355 : vector<8x128xf32>
    %357 = vector.extract_strided_slice %350 {offsets = [0, 128], sizes = [8, 128], strides = [1, 1]} : vector<8x512xf32> to vector<8x128xf32>
    %358 = arith.negf %357 : vector<8x128xf32>
    %359 = math.exp %358 : vector<8x128xf32>
    %cst_188 = arith.constant 1.000000e+00 : f32
    %360 = vector.broadcast %cst_188 : f32 to vector<8x128xf32>
    %361 = arith.addf %360, %359 : vector<8x128xf32>
    %362 = arith.divf %360, %361 : vector<8x128xf32>
    %363 = vector.extract_strided_slice %350 {offsets = [0, 256], sizes = [8, 128], strides = [1, 1]} : vector<8x512xf32> to vector<8x128xf32>
    %364 = math.tanh %363 : vector<8x128xf32>
    %365 = vector.extract_strided_slice %350 {offsets = [0, 384], sizes = [8, 128], strides = [1, 1]} : vector<8x512xf32> to vector<8x128xf32>
    %366 = arith.negf %365 : vector<8x128xf32>
    %367 = math.exp %366 : vector<8x128xf32>
    %cst_189 = arith.constant 1.000000e+00 : f32
    %368 = vector.broadcast %cst_189 : f32 to vector<8x128xf32>
    %369 = arith.addf %368, %367 : vector<8x128xf32>
    %370 = arith.divf %368, %369 : vector<8x128xf32>
    %371 = arith.mulf %362, %345 : vector<8x128xf32>
    %372 = arith.mulf %356, %364 : vector<8x128xf32>
    %373 = arith.addf %371, %372 : vector<8x128xf32>
    %374 = math.tanh %373 : vector<8x128xf32>
    %375 = arith.mulf %370, %374 : vector<8x128xf32>
    %376 = arith.truncf %375 : vector<8x128xf32> to vector<8x128xbf16>
    %c1_190 = arith.constant 1 : index
    %c0_191 = arith.constant 0 : index
    %c0_192 = arith.constant 0 : index
    %377 = vector.load %arg12[%c1_190, %c0_191, %c0_192] : memref<2x8x128xbf16, #tpu.memory_space<vmem>>, vector<1x8x128xbf16>
    %378 = vector.shape_cast %377 : vector<1x8x128xbf16> to vector<8x128xbf16>
    %379 = vector.shape_cast %376 : vector<8x128xbf16> to vector<1x8x128xbf16>
    tpu.vector_store %arg12[%c1_190, %c0_191, %c0_192], %379 {strides = array<i32>} : memref<2x8x128xbf16, #tpu.memory_space<vmem>>, vector<1x8x128xbf16>,
    %c1_193 = arith.constant 1 : index
    %c0_194 = arith.constant 0 : index
    %c0_195 = arith.constant 0 : index
    %380 = vector.load %arg13[%c1_193, %c0_194, %c0_195] : memref<2x8x128xf32, #tpu.memory_space<vmem>>, vector<1x8x128xf32>
    %381 = vector.shape_cast %380 : vector<1x8x128xf32> to vector<8x128xf32>
    %382 = vector.shape_cast %373 : vector<8x128xf32> to vector<1x8x128xf32>
    tpu.vector_store %arg13[%c1_193, %c0_194, %c0_195], %382 {strides = array<i32>} : memref<2x8x128xf32, #tpu.memory_space<vmem>>, vector<1x8x128xf32>,
    %c4_i32_196 = arith.constant 4 : i32
    %c1_i32_197 = arith.constant 1 : i32
    %383 = arith.cmpi eq, %arg1, %c1_i32_197 : i32
    %384 = arith.extui %383 : i1 to i32
    %c0_i32_198 = arith.constant 0 : i32
    %385 = arith.cmpi ne, %384, %c0_i32_198 : i32
    scf.if %385 {
      %c1_199 = arith.constant 1 : index
      %c0_200 = arith.constant 0 : index
      %c0_201 = arith.constant 0 : index
      %386 = vector.load %arg12[%c1_199, %c0_200, %c0_201] : memref<2x8x128xbf16, #tpu.memory_space<vmem>>, vector<1x8x128xbf16>
      %387 = vector.shape_cast %386 : vector<1x8x128xbf16> to vector<8x128xbf16>
      %c0_202 = arith.constant 0 : index
      %c0_203 = arith.constant 0 : index
      %388 = vector.load %arg9[%c0_202, %c0_203] : memref<128x128xbf16, #tpu.memory_space<vmem>>, vector<128x128xbf16>
      %cst_204 = arith.constant dense<0.000000e+00> : vector<8x128xf32>
      %389 = tpu.matmul %387, %388, %cst_204 {dimension_numbers = #tpu.dot_dimension_numbers<[1], [0], [0], [1], [0, 0, 1, 1], [], []>} : vector<8x128xbf16>, vector<128x128xbf16>, vector<8x128xf32> -> vector<8x128xf32>
      %c0_205 = arith.constant 0 : index
      %c0_206 = arith.constant 0 : index
      %390 = vector.load %arg10[%c0_205, %c0_206] : memref<1x128xf32, #tpu.memory_space<vmem>>, vector<1x128xf32>
      %391 = vector.broadcast %390 : vector<1x128xf32> to vector<8x128xf32>
      %392 = arith.addf %389, %391 : vector<8x128xf32>
      %c0_207 = arith.constant 0 : index
      %c0_208 = arith.constant 0 : index
      %393 = vector.load %arg11[%c0_207, %c0_208] : memref<8x128xf32, #tpu.memory_space<vmem>>, vector<8x128xf32>
      tpu.vector_store %arg11[%c0_207, %c0_208], %392 {strides = array<i32>} : memref<8x128xf32, #tpu.memory_space<vmem>>, vector<8x128xf32>,
    } else {
    }
    return
  }
  func.func @transform_0(%arg0: i32, %arg1: i32) -> (i32, i32, i32) {
    %c0_i32 = arith.constant 0 : i32
    %c0_i32_0 = arith.constant 0 : i32
    return %arg1, %arg0, %c0_i32 : i32, i32, i32
  }
  func.func @transform_1(%arg0: i32, %arg1: i32) -> (i32, i32) {
    %c0_i32 = arith.constant 0 : i32
    %c0_i32_0 = arith.constant 0 : i32
    %c0_i32_1 = arith.constant 0 : i32
    return %c0_i32, %c0_i32_0 : i32, i32
  }
  func.func @transform_2(%arg0: i32, %arg1: i32) -> (i32, i32) {
    %c0_i32 = arith.constant 0 : i32
    %c0_i32_0 = arith.constant 0 : i32
    %c0_i32_1 = arith.constant 0 : i32
    return %c0_i32, %c0_i32_0 : i32, i32
  }
  func.func @transform_3(%arg0: i32, %arg1: i32) -> (i32, i32) {
    %c0_i32 = arith.constant 0 : i32
    %c0_i32_0 = arith.constant 0 : i32
    %c0_i32_1 = arith.constant 0 : i32
    return %c0_i32, %c0_i32_0 : i32, i32
  }
  func.func @transform_4(%arg0: i32, %arg1: i32) -> (i32, i32) {
    %c0_i32 = arith.constant 0 : i32
    %c0_i32_0 = arith.constant 0 : i32
    %c0_i32_1 = arith.constant 0 : i32
    return %c0_i32, %c0_i32_0 : i32, i32
  }
  func.func @transform_5(%arg0: i32, %arg1: i32) -> (i32, i32) {
    %c0_i32 = arith.constant 0 : i32
    %c0_i32_0 = arith.constant 0 : i32
    %c0_i32_1 = arith.constant 0 : i32
    return %c0_i32, %c0_i32_0 : i32, i32
  }
  func.func @transform_6(%arg0: i32, %arg1: i32) -> (i32, i32) {
    %c0_i32 = arith.constant 0 : i32
    %c0_i32_0 = arith.constant 0 : i32
    %c0_i32_1 = arith.constant 0 : i32
    return %c0_i32, %c0_i32_0 : i32, i32
  }
  func.func @transform_7(%arg0: i32, %arg1: i32) -> (i32, i32) {
    %c0_i32 = arith.constant 0 : i32
    %c0_i32_0 = arith.constant 0 : i32
    %c0_i32_1 = arith.constant 0 : i32
    return %c0_i32, %c0_i32_0 : i32, i32
  }
  func.func @transform_8(%arg0: i32, %arg1: i32) -> (i32, i32) {
    %c0_i32 = arith.constant 0 : i32
    %c0_i32_0 = arith.constant 0 : i32
    %c0_i32_1 = arith.constant 0 : i32
    return %c0_i32, %c0_i32_0 : i32, i32
  }
  func.func @transform_9(%arg0: i32, %arg1: i32) -> (i32, i32) {
    %c0_i32 = arith.constant 0 : i32
    %c0_i32_0 = arith.constant 0 : i32
    return %arg0, %c0_i32 : i32, i32
  }
}

</mosaic_0001>

<llo_original>
// kernel: lstm_model_forward.1
$region0: #{lstm_model_forward.1}
  #allocation0 [shape = 'u32[]', space=smem, size = 0x4, offset = 0x4, fixed_abs, tag = 'smem constant byte address 0x4 - core index']
  #allocation1 [shape = 'u32[144,128]{1,0:T(1,128)}', space=vmem, size = 0x12000, scoped, tag = 'internal scratch']
  #allocation2 [shape = 'bf16[2,8,128]{2,1,0:T(8,128)(2,1)}', space=vmem, size = 0x1000, scoped, tag = 'scratch operand']
  #allocation3 [shape = 'f32[2,8,128]{2,1,0:T(8,128)}', space=vmem, size = 0x2000, scoped, tag = 'scratch operand']
  #allocation4 [shape = 'f32[32,512]{1,0:T(8,128)}', space=vmem, size = 0x10000, scoped, tag = 'scratch operand']
  #allocation5 [shape = 'f32[32,512]{1,0:T(8,128)}', space=vmem, size = 0x10000, scoped, tag = 'scratch operand']
  %s0 = inlined_call_operand.vmem [shape: bf16[8,8,128], index: 0, kind: input, shape index: {}]
  %s1 = inlined_call_operand.hbm [shape: bf16[128,512], index: 1, kind: input, shape index: {}]
  %s2 = inlined_call_operand.hbm [shape: bf16[128,512], index: 2, kind: input, shape index: {}]
  %s3 = inlined_call_operand.vmem [shape: f32[1,512], index: 3, kind: input, shape index: {}]
  %s4 = inlined_call_operand.hbm [shape: bf16[128,512], index: 4, kind: input, shape index: {}]
  %s5 = inlined_call_operand.hbm [shape: bf16[128,512], index: 5, kind: input, shape index: {}]
  %s6 = inlined_call_operand.vmem [shape: f32[1,512], index: 6, kind: input, shape index: {}]
  %s7 = inlined_call_operand.vmem [shape: bf16[128,128], index: 7, kind: input, shape index: {}]
  %s8 = inlined_call_operand.vmem [shape: f32[1,128], index: 8, kind: input, shape index: {}]
  %s9 = inlined_call_operand.vmem [shape: f32[8,128], index: 9, kind: output, shape index: {}]
  %s10 = sld [smem:[#allocation0]]
  $region93: #{lstm_model_forward.1} parent=0
    _
  %s12 = ssub.s32 1, %s10
  %s13 = scalar_select 0, %s12, %s10
  $region1: #{lstm_model_forward.1} parent=0
    #allocation6 [shape = 'u8[131072]{0}', space=vmem, size = 0x20000, scoped, tag = 'input window, operand 1, single buffered']
    #allocation7 [shape = 's32[2]{0}', space=sflag, size = 0x8, scoped, tag = 'scoped memory for lstm_model_forward.1']
    #allocation8 [shape = 'u8[131072]{0}', space=vmem, size = 0x20000, scoped, tag = 'input window, operand 2, single buffered']
    #allocation9 [shape = 's32[1]{0}', space=sflag, size = 0x4, scoped, tag = 'scoped memory for lstm_model_forward.1']
    #allocation10 [shape = 'u8[131072]{0}', space=vmem, size = 0x20000, scoped, tag = 'input window, operand 4, single buffered']
    #allocation11 [shape = 'u8[131072]{0}', space=vmem, size = 0x20000, scoped, tag = 'input window, operand 5, single buffered']
    #allocation12 [shape = 's32[1]{0}', space=sflag, size = 0x4, scoped, tag = 'scoped memory for lstm_model_forward.1']
    %14 = vsyncpa [#allocation7], 0
    %15 = vsyncpa [#allocation9], 0
    %16 = vsyncpa [#allocation12], 0
    loop: start=0, step=1, limit=4
    $region2: #{lstm_model_forward.1} parent=1 // loop_pre_header
      _
    $region3: #{lstm_model_forward.1} parent=1 // loop_header
      %s18 = sphi 0, %s22
      %p19 = scmp.ge.s32.totalorder %s18, 4
      %s25 = sphi 0, %s37
      %s26 = sphi 0, %s33
      %s27 = sphi 0, %s25
      %s28 = sphi 0, %s26
      %s29 = sphi 0, %s27
      %s30 = sphi 0, %s28
      %s42 = sphi 0, %s44
      %s45 = sphi 0, %s42
      %s46 = sphi 0, %s45
      %s62 = sphi 0, %s46
      %s66 = sphi 0, %s66
      %s68 = sphi 0, %s66
      %s69 = sphi 0, %s68
      %s83 = sphi 0, %s69
      %s87 = sphi 0, %s87
      %s89 = sphi 0, %s87
      %s90 = sphi 0, %s89
      %s104 = sphi 0, %s90
      %s108 = sphi 0, %s108
      %s110 = sphi 0, %s108
      %s111 = sphi 0, %s110
      %s125 = sphi 0, %s111
      %s129 = sphi 0, %s129
      %s131 = sphi 0, %s129
      %s132 = sphi 0, %s131
      %s146 = sphi 0, %s132
      %s150 = sphi 0, %s150
      %s152 = sphi 0, %s150
      %s153 = sphi 0, %s152
      %s167 = sphi 0, %s153
      %s171 = sphi 0, %s171
      %s173 = sphi 0, %s171
      %s174 = sphi 0, %s173
      %s188 = sphi 0, %s174
      %s192 = sphi 0, %s192
      %s194 = sphi 0, %s192
      %s195 = sphi 0, %s194
      %s209 = sphi 0, %s195
      %s213 = sphi 0, %s213
      %s215 = sphi 0, %s213
      %s216 = sphi 0, %s215
      %s230 = sphi 0, %s216
      %s236 = sphi 0, %s238
      %s239 = sphi 0, %s236
      %s240 = sphi 0, %s239
      %s256 = sphi 0, %s240
    $region4: #{lstm_model_forward.1} parent=1 // loop_header_branch
      %21 = sbr.rel (%p19) target = $region8
    $region5: #{lstm_model_forward.1} parent=1 // loop_body
      %s23 = ssub.s32 %s18, 1
      %s24 = ssub.s32 %s18, 2
      %s31 = sadd.s32 1, %s26
      %p32 = scmp.ge.s32.totalorder %s31, 2
      %s33 = scalar_select %p32, 0, %s31
      %s34 = sadd.s32 1, %s25
      %s35 = scalar_select %p32, %s34, %s25
      %p36 = scmp.ge.s32.totalorder %s35, 1
      %s37 = scalar_select %p36, 0, %s35
      %s38 = ssub.s32 %s26, %s33
      %s39 = ssub.s32 %s25, %s37
      %s40 = sor.u32 %s38, %s39
      %p41 = scmp.eq.s32.totalorder %s40, 0
      %s43 = sadd.s32 %s42, 1
      %s44 = scalar_select %p41, %s42, %s43
      %p47 = pneg %p41
      %p48 = scmp.eq.s32.totalorder %s18, 1
      %p49 = por %p47, %p48
      %p50 = scmp.ne.s32.totalorder %s42, %s45
      %p51 = scmp.eq.s32.totalorder %s18, 0
      %p52 = por %p50, %p51
      %p53 = scmp.ne.s32.totalorder %s42, %s45
      %p54 = scmp.eq.s32.totalorder %s23, 1
      %p55 = por %p53, %p54
      %p56 = scmp.ne.s32.totalorder %s45, %s46
      %p57 = scmp.eq.s32.totalorder %s23, 0
      %p58 = por %p56, %p57
      %p59 = scmp.ne.s32.totalorder %s45, %s46
      %p60 = scmp.eq.s32.totalorder %s24, 1
      %p61 = por %p59, %p60
      %p63 = scmp.ne.s32.totalorder %s46, %s62
      %p64 = scmp.eq.s32.totalorder %s24, 0
      %p65 = por %p63, %p64
      %s67 = sadd.s32 %s66, 1
      %p70 = scmp.eq.s32.totalorder %s18, 1
      %p71 = scmp.ne.s32.totalorder %s66, %s68
      %p72 = scmp.eq.s32.totalorder %s18, 0
      %p73 = por %p71, %p72
      %p74 = scmp.ne.s32.totalorder %s66, %s68
      %p75 = scmp.eq.s32.totalorder %s23, 1
      %p76 = por %p74, %p75
      %p77 = scmp.ne.s32.totalorder %s68, %s69
      %p78 = scmp.eq.s32.totalorder %s23, 0
      %p79 = por %p77, %p78
      %p80 = scmp.ne.s32.totalorder %s68, %s69
      %p81 = scmp.eq.s32.totalorder %s24, 1
      %p82 = por %p80, %p81
      %p84 = scmp.ne.s32.totalorder %s69, %s83
      %p85 = scmp.eq.s32.totalorder %s24, 0
      %p86 = por %p84, %p85
      %s88 = sadd.s32 %s87, 1
      %p91 = scmp.eq.s32.totalorder %s18, 1
      %p92 = scmp.ne.s32.totalorder %s87, %s89
      %p93 = scmp.eq.s32.totalorder %s18, 0
      %p94 = por %p92, %p93
      %p95 = scmp.ne.s32.totalorder %s87, %s89
      %p96 = scmp.eq.s32.totalorder %s23, 1
      %p97 = por %p95, %p96
      %p98 = scmp.ne.s32.totalorder %s89, %s90
      %p99 = scmp.eq.s32.totalorder %s23, 0
      %p100 = por %p98, %p99
      %p101 = scmp.ne.s32.totalorder %s89, %s90
      %p102 = scmp.eq.s32.totalorder %s24, 1
      %p103 = por %p101, %p102
      %p105 = scmp.ne.s32.totalorder %s90, %s104
      %p106 = scmp.eq.s32.totalorder %s24, 0
      %p107 = por %p105, %p106
      %s109 = sadd.s32 %s108, 1
      %p112 = scmp.eq.s32.totalorder %s18, 1
      %p113 = scmp.ne.s32.totalorder %s108, %s110
      %p114 = scmp.eq.s32.totalorder %s18, 0
      %p115 = por %p113, %p114
      %p116 = scmp.ne.s32.totalorder %s108, %s110
      %p117 = scmp.eq.s32.totalorder %s23, 1
      %p118 = por %p116, %p117
      %p119 = scmp.ne.s32.totalorder %s110, %s111
      %p120 = scmp.eq.s32.totalorder %s23, 0
      %p121 = por %p119, %p120
      %p122 = scmp.ne.s32.totalorder %s110, %s111
      %p123 = scmp.eq.s32.totalorder %s24, 1
      %p124 = por %p122, %p123
      %p126 = scmp.ne.s32.totalorder %s111, %s125
      %p127 = scmp.eq.s32.totalorder %s24, 0
      %p128 = por %p126, %p127
      %s130 = sadd.s32 %s129, 1
      %p133 = scmp.eq.s32.totalorder %s18, 1
      %p134 = scmp.ne.s32.totalorder %s129, %s131
      %p135 = scmp.eq.s32.totalorder %s18, 0
      %p136 = por %p134, %p135
      %p137 = scmp.ne.s32.totalorder %s129, %s131
      %p138 = scmp.eq.s32.totalorder %s23, 1
      %p139 = por %p137, %p138
      %p140 = scmp.ne.s32.totalorder %s131, %s132
      %p141 = scmp.eq.s32.totalorder %s23, 0
      %p142 = por %p140, %p141
      %p143 = scmp.ne.s32.totalorder %s131, %s132
      %p144 = scmp.eq.s32.totalorder %s24, 1
      %p145 = por %p143, %p144
      %p147 = scmp.ne.s32.totalorder %s132, %s146
      %p148 = scmp.eq.s32.totalorder %s24, 0
      %p149 = por %p147, %p148
      %s151 = sadd.s32 %s150, 1
      %p154 = scmp.eq.s32.totalorder %s18, 1
      %p155 = scmp.ne.s32.totalorder %s150, %s152
      %p156 = scmp.eq.s32.totalorder %s18, 0
      %p157 = por %p155, %p156
      %p158 = scmp.ne.s32.totalorder %s150, %s152
      %p159 = scmp.eq.s32.totalorder %s23, 1
      %p160 = por %p158, %p159
      %p161 = scmp.ne.s32.totalorder %s152, %s153
      %p162 = scmp.eq.s32.totalorder %s23, 0
      %p163 = por %p161, %p162
      %p164 = scmp.ne.s32.totalorder %s152, %s153
      %p165 = scmp.eq.s32.totalorder %s24, 1
      %p166 = por %p164, %p165
      %p168 = scmp.ne.s32.totalorder %s153, %s167
      %p169 = scmp.eq.s32.totalorder %s24, 0
      %p170 = por %p168, %p169
      %s172 = sadd.s32 %s171, 1
      %p175 = scmp.eq.s32.totalorder %s18, 1
      %p176 = scmp.ne.s32.totalorder %s171, %s173
      %p177 = scmp.eq.s32.totalorder %s18, 0
      %p178 = por %p176, %p177
      %p179 = scmp.ne.s32.totalorder %s171, %s173
      %p180 = scmp.eq.s32.totalorder %s23, 1
      %p181 = por %p179, %p180
      %p182 = scmp.ne.s32.totalorder %s173, %s174
      %p183 = scmp.eq.s32.totalorder %s23, 0
      %p184 = por %p182, %p183
      %p185 = scmp.ne.s32.totalorder %s173, %s174
      %p186 = scmp.eq.s32.totalorder %s24, 1
      %p187 = por %p185, %p186
      %p189 = scmp.ne.s32.totalorder %s174, %s188
      %p190 = scmp.eq.s32.totalorder %s24, 0
      %p191 = por %p189, %p190
      %s193 = sadd.s32 %s192, 1
      %p196 = scmp.eq.s32.totalorder %s18, 1
      %p197 = scmp.ne.s32.totalorder %s192, %s194
      %p198 = scmp.eq.s32.totalorder %s18, 0
      %p199 = por %p197, %p198
      %p200 = scmp.ne.s32.totalorder %s192, %s194
      %p201 = scmp.eq.s32.totalorder %s23, 1
      %p202 = por %p200, %p201
      %p203 = scmp.ne.s32.totalorder %s194, %s195
      %p204 = scmp.eq.s32.totalorder %s23, 0
      %p205 = por %p203, %p204
      %p206 = scmp.ne.s32.totalorder %s194, %s195
      %p207 = scmp.eq.s32.totalorder %s24, 1
      %p208 = por %p206, %p207
      %p210 = scmp.ne.s32.totalorder %s195, %s209
      %p211 = scmp.eq.s32.totalorder %s24, 0
      %p212 = por %p210, %p211
      %s214 = sadd.s32 %s213, 1
      %p217 = scmp.eq.s32.totalorder %s18, 1
      %p218 = scmp.ne.s32.totalorder %s213, %s215
      %p219 = scmp.eq.s32.totalorder %s18, 0
      %p220 = por %p218, %p219
      %p221 = scmp.ne.s32.totalorder %s213, %s215
      %p222 = scmp.eq.s32.totalorder %s23, 1
      %p223 = por %p221, %p222
      %p224 = scmp.ne.s32.totalorder %s215, %s216
      %p225 = scmp.eq.s32.totalorder %s23, 0
      %p226 = por %p224, %p225
      %p227 = scmp.ne.s32.totalorder %s215, %s216
      %p228 = scmp.eq.s32.totalorder %s24, 1
      %p229 = por %p227, %p228
      %p231 = scmp.ne.s32.totalorder %s216, %s230
      %p232 = scmp.eq.s32.totalorder %s24, 0
      %p233 = por %p231, %p232
      %s234 = ssub.s32 %s25, %s37
      %p235 = scmp.eq.s32.totalorder %s234, 0
      %s237 = sadd.s32 %s236, 1
      %s238 = scalar_select %p235, %s236, %s237
      %p241 = pneg %p235
      %p242 = scmp.eq.s32.totalorder %s18, 1
      %p243 = por %p241, %p242
      %p244 = scmp.ne.s32.totalorder %s236, %s239
      %p245 = scmp.eq.s32.totalorder %s18, 0
      %p246 = por %p244, %p245
      %p247 = scmp.ne.s32.totalorder %s236, %s239
      %p248 = scmp.eq.s32.totalorder %s23, 1
      %p249 = por %p247, %p248
      %p250 = scmp.ne.s32.totalorder %s239, %s240
      %p251 = scmp.eq.s32.totalorder %s23, 0
      %p252 = por %p250, %p251
      %p253 = scmp.ne.s32.totalorder %s239, %s240
      %p254 = scmp.eq.s32.totalorder %s24, 1
      %p255 = por %p253, %p254
      %p257 = scmp.ne.s32.totalorder %s240, %s256
      %p258 = scmp.eq.s32.totalorder %s24, 0
      %p259 = por %p257, %p258
      %p260 = scmp.le.s32.totalorder 1, %s18
      %p261 = scmp.lt.s32.totalorder %s18, 3
      %p262 = pnand %p260, %p261
      %p263 = pneg %p262
      // Predicated region
      $region9: #{lstm_model_forward.1} parent=5 // pred_check
        _
      $region10: #{lstm_model_forward.1} parent=5 // pred_check_branch
        %265 = sbr.rel (%p262) target = $region12
      $region11: #{lstm_model_forward.1} parent=5 // pred_region
        %s266 = ssub.s32 %s18, 1
        // Predicated region
        $region13: #{lstm_model_forward.1} parent=11 // pred_check
          %p267 = pneg %p79
        $region14: #{lstm_model_forward.1} parent=11 // pred_check_branch
          %269 = sbr.rel (%p267) target = $region16
        $region15: #{lstm_model_forward.1} parent=11 // pred_region
          %s271 = ssub.s32 4096, 4096
          %272 = vsyncadd [#allocation7], %s271
          %s273 = sshll.u32 [#allocation6], 4
          %s274 = int_to_ptr.vmem [resolvable:$true] %s273
          %279 = dma.hbm_to_vmem [thread:$0]  %s1, 4096, %s274, [#allocation7], 256, 256, 16
        $region16: #{lstm_model_forward.1} parent=11 // pred_fallthru
          _
        // Predicated region
        $region17: #{lstm_model_forward.1} parent=11 // pred_check
          %p280 = pneg %p100
        $region18: #{lstm_model_forward.1} parent=11 // pred_check_branch
          %282 = sbr.rel (%p280) target = $region20
        $region19: #{lstm_model_forward.1} parent=11 // pred_region
          %s284 = ssub.s32 4096, 4096
          %285 = vsyncadd [#allocation9], %s284
          %s286 = sshll.u32 [#allocation8], 4
          %s287 = int_to_ptr.vmem [resolvable:$true] %s286
          %292 = dma.hbm_to_vmem [thread:$0]  %s2, 4096, %s287, [#allocation9], 256, 256, 16
        $region20: #{lstm_model_forward.1} parent=11 // pred_fallthru
          _
        // Predicated region
        $region21: #{lstm_model_forward.1} parent=11 // pred_check
          %p293 = pneg %p121
        $region22: #{lstm_model_forward.1} parent=11 // pred_check_branch
          %295 = sbr.rel (%p293) target = $region24
        $region23: #{lstm_model_forward.1} parent=11 // pred_region
          _
        $region24: #{lstm_model_forward.1} parent=11 // pred_fallthru
          _
        // Predicated region
        $region25: #{lstm_model_forward.1} parent=11 // pred_check
          %p296 = pneg %p142
        $region26: #{lstm_model_forward.1} parent=11 // pred_check_branch
          %298 = sbr.rel (%p296) target = $region28
        $region27: #{lstm_model_forward.1} parent=11 // pred_region
          %s300 = ssub.s32 4096, 4096
          %301 = vsyncadd [#allocation9], %s300
          %s302 = sshll.u32 [#allocation10], 4
          %s303 = int_to_ptr.vmem [resolvable:$true] %s302
          %308 = dma.hbm_to_vmem [thread:$0]  %s4, 4096, %s303, [#allocation9], 256, 256, 16
        $region28: #{lstm_model_forward.1} parent=11 // pred_fallthru
          _
        // Predicated region
        $region29: #{lstm_model_forward.1} parent=11 // pred_check
          %p309 = pneg %p163
        $region30: #{lstm_model_forward.1} parent=11 // pred_check_branch
          %311 = sbr.rel (%p309) target = $region32
        $region31: #{lstm_model_forward.1} parent=11 // pred_region
          %s313 = ssub.s32 4096, 4096
          %314 = vsyncadd [#allocation12], %s313
          %s315 = sshll.u32 [#allocation11], 4
          %s316 = int_to_ptr.vmem [resolvable:$true] %s315
          %321 = dma.hbm_to_vmem [thread:$0]  %s5, 4096, %s316, [#allocation12], 256, 256, 16
        $region32: #{lstm_model_forward.1} parent=11 // pred_fallthru
          _
        // Predicated region
        $region33: #{lstm_model_forward.1} parent=11 // pred_check
          %p322 = pneg %p184
        $region34: #{lstm_model_forward.1} parent=11 // pred_check_branch
          %324 = sbr.rel (%p322) target = $region36
        $region35: #{lstm_model_forward.1} parent=11 // pred_region
          _
        $region36: #{lstm_model_forward.1} parent=11 // pred_fallthru
          _
        // Predicated region
        $region37: #{lstm_model_forward.1} parent=11 // pred_check
          %p325 = pneg %p205
        $region38: #{lstm_model_forward.1} parent=11 // pred_check_branch
          %327 = sbr.rel (%p325) target = $region40
        $region39: #{lstm_model_forward.1} parent=11 // pred_region
          _
        $region40: #{lstm_model_forward.1} parent=11 // pred_fallthru
          _
        // Predicated region
        $region41: #{lstm_model_forward.1} parent=11 // pred_check
          %p328 = pneg %p226
        $region42: #{lstm_model_forward.1} parent=11 // pred_check_branch
          %330 = sbr.rel (%p328) target = $region44
        $region43: #{lstm_model_forward.1} parent=11 // pred_region
          _
        $region44: #{lstm_model_forward.1} parent=11 // pred_fallthru
          _
      $region12: #{lstm_model_forward.1} parent=5 // pred_fallthru
        _
      %p331 = scmp.lt.s32.totalorder %s18, 2
      // Predicated region
      $region45: #{lstm_model_forward.1} parent=5 // pred_check
        %p332 = pneg %p331
      $region46: #{lstm_model_forward.1} parent=5 // pred_check_branch
        %334 = sbr.rel (%p332) target = $region48
      $region47: #{lstm_model_forward.1} parent=5 // pred_region
        // Predicated region
        $region49: #{lstm_model_forward.1} parent=47 // pred_check
          %p335 = pneg %p52
        $region50: #{lstm_model_forward.1} parent=47 // pred_check_branch
          %337 = sbr.rel (%p335) target = $region52
        $region51: #{lstm_model_forward.1} parent=47 // pred_region
          %s338 = smul.u32 4, %s26
          %p339 = scmp.lt.s32.totalorder %s338, 7
          %s340 = scalar_select %p339, %s338, 7
          %p341 = scmp.lt.s32.totalorder %s25, 0
          %s342 = scalar_select %p341, %s25, 0
          %s343 = sadd.s32 %s342, %s340
          %s344 = smul.addr %s343, 4
          %s345 = scalar_lea.vmem %s0, %s344
          %s346 = smul.u32 4, %s26
        $region52: #{lstm_model_forward.1} parent=47 // pred_fallthru
          _
      $region48: #{lstm_model_forward.1} parent=5 // pred_fallthru
        _
      %p347 = scmp.le.s32.totalorder 1, %s18
      %p348 = scmp.lt.s32.totalorder %s18, 3
      %p349 = pnand %p347, %p348
      %p350 = pneg %p349
      // Predicated region
      $region53: #{lstm_model_forward.1} parent=5 // pred_check
        _
      $region54: #{lstm_model_forward.1} parent=5 // pred_check_branch
        %352 = sbr.rel (%p349) target = $region56
      $region55: #{lstm_model_forward.1} parent=5 // pred_region
        %s353 = ssub.s32 %s18, 1
        // Predicated region
        $region57: #{lstm_model_forward.1} parent=55 // pred_check
          %p354 = pneg %p79
        $region58: #{lstm_model_forward.1} parent=55 // pred_check_branch
          %356 = sbr.rel (%p354) target = $region60
        $region59: #{lstm_model_forward.1} parent=55 // pred_region
          %357 = dma.done [#allocation7], 4096
        $region60: #{lstm_model_forward.1} parent=55 // pred_fallthru
          _
        // Predicated region
        $region61: #{lstm_model_forward.1} parent=55 // pred_check
          %p358 = pneg %p100
        $region62: #{lstm_model_forward.1} parent=55 // pred_check_branch
          %360 = sbr.rel (%p358) target = $region64
        $region63: #{lstm_model_forward.1} parent=55 // pred_region
          %361 = dma.done [#allocation9], 4096
        $region64: #{lstm_model_forward.1} parent=55 // pred_fallthru
          _
        // Predicated region
        $region65: #{lstm_model_forward.1} parent=55 // pred_check
          %p362 = pneg %p142
        $region66: #{lstm_model_forward.1} parent=55 // pred_check_branch
          %364 = sbr.rel (%p362) target = $region68
        $region67: #{lstm_model_forward.1} parent=55 // pred_region
          %365 = dma.done [#allocation9], 4096
        $region68: #{lstm_model_forward.1} parent=55 // pred_fallthru
          _
        // Predicated region
        $region69: #{lstm_model_forward.1} parent=55 // pred_check
          %p366 = pneg %p163
        $region70: #{lstm_model_forward.1} parent=55 // pred_check_branch
          %368 = sbr.rel (%p366) target = $region72
        $region71: #{lstm_model_forward.1} parent=55 // pred_region
          %369 = dma.done [#allocation12], 4096
        $region72: #{lstm_model_forward.1} parent=55 // pred_fallthru
          _
        %s370 = smul.u32 4, %s28
        %p371 = scmp.lt.s32.totalorder %s370, 7
        %s372 = scalar_select %p371, %s370, 7
        %p373 = scmp.lt.s32.totalorder %s27, 0
        %s374 = scalar_select %p373, %s27, 0
        %s375 = sadd.s32 %s374, %s372
        %s376 = smul.addr %s375, 4
        %s377 = scalar_lea.vmem %s0, %s376
        %p378 = pneg %p58
        %p379 = pneg %p55
        %p380 = pneg %p79
        %p381 = pneg %p76
        %p382 = pneg %p100
        %p383 = pneg %p97
        %p384 = pneg %p121
        %p385 = pneg %p118
        %p386 = pneg %p142
        %p387 = pneg %p139
        %p388 = pneg %p163
        %p389 = pneg %p160
        %p390 = pneg %p184
        %p391 = pneg %p181
        %p392 = pneg %p205
        %p393 = pneg %p202
        %p394 = pneg %p226
        %p395 = pneg %p223
        %p396 = pneg %p252
        %p397 = pneg %p249
        %p398 = scmp.lt.s32.totalorder %s27, 0
        %s399 = scalar_select %p398, %s27, 0
        %s400 = smul.addr %s399, 8
        %s401 = scalar_lea.vmem %s9, %s400
        %s402 = smul.u32 4, %s28
        %p403 = scmp.lt.s32.totalorder %s402, 7
        %s404 = scalar_select %p403, %s402, 7
        %p405 = scmp.lt.s32.totalorder %s27, 0
        %s406 = scalar_select %p405, %s27, 0
        %s407 = sadd.s32 %s406, %s404
        %s408 = smul.addr %s407, 4
        %s409 = scalar_lea.vmem %s0, %s408
        %s410 = smul.u32 4, %s28
        %p411 = scmp.lt.s32.totalorder %s27, 0
        %s412 = scalar_select %p411, %s27, 0
        %s413 = smul.addr %s412, 8
        %s414 = scalar_lea.vmem %s9, %s413
        %p416 = scmp.eq.s32.totalorder %s28, 0
        // Predicated region
        $region73: #{lstm_model_forward.1} parent=55 // pred_check
          %p417 = pneg %p416
        $region74: #{lstm_model_forward.1} parent=55 // pred_check_branch
          %419 = sbr.rel (%p417) target = $region76
        $region75: #{lstm_model_forward.1} parent=55 // pred_region
          %420 = vst [vmem:[#allocation2] sm:$0xf] 0
          %421 = vst [vmem:[#allocation2 + $0x4] sm:$0xf] 0
          %422 = vst [vmem:[#allocation3] sm:$0xff] 0.0
          %423 = vst [vmem:[#allocation3 + $0x8] sm:$0xff] 0.0
        $region76: #{lstm_model_forward.1} parent=55 // pred_fallthru
          _
        %v424 = vld [vmem:[%s409] sm:$0xf]
        %v425 = vld [vmem:[%s409 + $0x4] sm:$0xf]
        %v426 = vld [vmem:[%s409 + $0x8] sm:$0xf]
        %v427 = vld [vmem:[%s409 + $0xc] sm:$0xf]
        %v428 = vld [vmem:[#allocation6] sm:$0xff]
        %v429 = vld [vmem:[#allocation6 + $0x8] sm:$0xff]
        %v430 = vld [vmem:[#allocation6 + $0x10] sm:$0xff]
        %v431 = vld [vmem:[#allocation6 + $0x18] sm:$0xff]
        %v432 = vld [vmem:[#allocation6 + $0x20] sm:$0xff]
        %v433 = vld [vmem:[#allocation6 + $0x28] sm:$0xff]
        %v434 = vld [vmem:[#allocation6 + $0x30] sm:$0xff]
        %v435 = vld [vmem:[#allocation6 + $0x38] sm:$0xff]
        %v436 = vld [vmem:[#allocation6 + $0x40] sm:$0xff]
        %v437 = vld [vmem:[#allocation6 + $0x48] sm:$0xff]
        %v438 = vld [vmem:[#allocation6 + $0x50] sm:$0xff]
        %v439 = vld [vmem:[#allocation6 + $0x58] sm:$0xff]
        %v440 = vld [vmem:[#allocation6 + $0x60] sm:$0xff]
        %v441 = vld [vmem:[#allocation6 + $0x68] sm:$0xff]
        %v442 = vld [vmem:[#allocation6 + $0x70] sm:$0xff]
        %v443 = vld [vmem:[#allocation6 + $0x78] sm:$0xff]
        %v444 = vld [vmem:[#allocation6 + $0x80] sm:$0xff]
        %v445 = vld [vmem:[#allocation6 + $0x88] sm:$0xff]
        %v446 = vld [vmem:[#allocation6 + $0x90] sm:$0xff]
        %v447 = vld [vmem:[#allocation6 + $0x98] sm:$0xff]
        %v448 = vld [vmem:[#allocation6 + $0xa0] sm:$0xff]
        %v449 = vld [vmem:[#allocation6 + $0xa8] sm:$0xff]
        %v450 = vld [vmem:[#allocation6 + $0xb0] sm:$0xff]
        %v451 = vld [vmem:[#allocation6 + $0xb8] sm:$0xff]
        %v452 = vld [vmem:[#allocation6 + $0xc0] sm:$0xff]
        %v453 = vld [vmem:[#allocation6 + $0xc8] sm:$0xff]
        %v454 = vld [vmem:[#allocation6 + $0xd0] sm:$0xff]
        %v455 = vld [vmem:[#allocation6 + $0xd8] sm:$0xff]
        %v456 = vld [vmem:[#allocation6 + $0xe0] sm:$0xff]
        %v457 = vld [vmem:[#allocation6 + $0xe8] sm:$0xff]
        %v458 = vld [vmem:[#allocation6 + $0xf0] sm:$0xff]
        %v459 = vld [vmem:[#allocation6 + $0xf8] sm:$0xff]
        %v460 = vld [vmem:[%s3] sm:$0xf]
        %v462 = vlaneseq
        %v463 = vshrl.u32 %v462, 7
        %v464 = vsub.s32 0, %v463
        %v465 = vrot.slane %v460, %v464
        %v466 = vlaneseq
        %v467 = vshrl.u32 %v466, 7
        %v468 = vsub.s32 1, %v467
        %v469 = vrot.slane %v460, %v468
        %v470 = vlaneseq
        %v471 = vshrl.u32 %v470, 7
        %v472 = vsub.s32 2, %v471
        %v473 = vrot.slane %v460, %v472
        %v474 = vlaneseq
        %v475 = vshrl.u32 %v474, 7
        %v476 = vsub.s32 3, %v475
        %v477 = vrot.slane %v460, %v476
        %v486 = vunpack.c.l.b16 %v424
        %v487 = vunpack.c.l.b16 %v425
        %v488 = vunpack.c.l.b16 %v426
        %v489 = vunpack.c.l.b16 %v427
        %v490 = vpack.c.b16 %v487, %v486
        %v491 = vpack.c.b16 %v489, %v488
        %v526 = vunpack.c.l.b16 %v428
        %v527 = vunpack.c.h.b16 %v428
        %v528 = vunpack.c.l.b16 %v429
        %v529 = vunpack.c.h.b16 %v429
        %v530 = vunpack.c.l.b16 %v430
        %v531 = vunpack.c.h.b16 %v430
        %v532 = vunpack.c.l.b16 %v431
        %v533 = vunpack.c.h.b16 %v431
        %v534 = vunpack.c.l.b16 %v432
        %v535 = vunpack.c.h.b16 %v432
        %v536 = vunpack.c.l.b16 %v433
        %v537 = vunpack.c.h.b16 %v433
        %v538 = vunpack.c.l.b16 %v434
        %v539 = vunpack.c.h.b16 %v434
        %v540 = vunpack.c.l.b16 %v435
        %v541 = vunpack.c.h.b16 %v435
        %v542 = vunpack.c.l.b16 %v436
        %v543 = vunpack.c.h.b16 %v436
        %v544 = vunpack.c.l.b16 %v437
        %v545 = vunpack.c.h.b16 %v437
        %v546 = vunpack.c.l.b16 %v438
        %v547 = vunpack.c.h.b16 %v438
        %v548 = vunpack.c.l.b16 %v439
        %v549 = vunpack.c.h.b16 %v439
        %v550 = vunpack.c.l.b16 %v440
        %v551 = vunpack.c.h.b16 %v440
        %v552 = vunpack.c.l.b16 %v441
        %v553 = vunpack.c.h.b16 %v441
        %v554 = vunpack.c.l.b16 %v442
        %v555 = vunpack.c.h.b16 %v442
        %v556 = vunpack.c.l.b16 %v443
        %v557 = vunpack.c.h.b16 %v443
        %v558 = vunpack.c.l.b16 %v444
        %v559 = vunpack.c.h.b16 %v444
        %v560 = vunpack.c.l.b16 %v445
        %v561 = vunpack.c.h.b16 %v445
        %v562 = vunpack.c.l.b16 %v446
        %v563 = vunpack.c.h.b16 %v446
        %v564 = vunpack.c.l.b16 %v447
        %v565 = vunpack.c.h.b16 %v447
        %v566 = vunpack.c.l.b16 %v448
        %v567 = vunpack.c.h.b16 %v448
        %v568 = vunpack.c.l.b16 %v449
        %v569 = vunpack.c.h.b16 %v449
        %v570 = vunpack.c.l.b16 %v450
        %v571 = vunpack.c.h.b16 %v450
        %v572 = vunpack.c.l.b16 %v451
        %v573 = vunpack.c.h.b16 %v451
        %v574 = vunpack.c.l.b16 %v452
        %v575 = vunpack.c.h.b16 %v452
        %v576 = vunpack.c.l.b16 %v453
        %v577 = vunpack.c.h.b16 %v453
        %v578 = vunpack.c.l.b16 %v454
        %v579 = vunpack.c.h.b16 %v454
        %v580 = vunpack.c.l.b16 %v455
        %v581 = vunpack.c.h.b16 %v455
        %v582 = vunpack.c.l.b16 %v456
        %v583 = vunpack.c.h.b16 %v456
        %v584 = vunpack.c.l.b16 %v457
        %v585 = vunpack.c.h.b16 %v457
        %v586 = vunpack.c.l.b16 %v458
        %v587 = vunpack.c.h.b16 %v458
        %v588 = vunpack.c.l.b16 %v459
        %v589 = vunpack.c.h.b16 %v459
        %v590 = vpack.c.b16 %v530, %v526
        %v591 = vpack.c.b16 %v531, %v527
        %v592 = vpack.c.b16 %v532, %v528
        %v593 = vpack.c.b16 %v533, %v529
        %v594 = vpack.c.b16 %v538, %v534
        %v595 = vpack.c.b16 %v539, %v535
        %v596 = vpack.c.b16 %v540, %v536
        %v597 = vpack.c.b16 %v541, %v537
        %v598 = vpack.c.b16 %v546, %v542
        %v599 = vpack.c.b16 %v547, %v543
        %v600 = vpack.c.b16 %v548, %v544
        %v601 = vpack.c.b16 %v549, %v545
        %v602 = vpack.c.b16 %v554, %v550
        %v603 = vpack.c.b16 %v555, %v551
        %v604 = vpack.c.b16 %v556, %v552
        %v605 = vpack.c.b16 %v557, %v553
        %v606 = vpack.c.b16 %v562, %v558
        %v607 = vpack.c.b16 %v563, %v559
        %v608 = vpack.c.b16 %v564, %v560
        %v609 = vpack.c.b16 %v565, %v561
        %v610 = vpack.c.b16 %v570, %v566
        %v611 = vpack.c.b16 %v571, %v567
        %v612 = vpack.c.b16 %v572, %v568
        %v613 = vpack.c.b16 %v573, %v569
        %v614 = vpack.c.b16 %v578, %v574
        %v615 = vpack.c.b16 %v579, %v575
        %v616 = vpack.c.b16 %v580, %v576
        %v617 = vpack.c.b16 %v581, %v577
        %v618 = vpack.c.b16 %v586, %v582
        %v619 = vpack.c.b16 %v587, %v583
        %v620 = vpack.c.b16 %v588, %v584
        %v621 = vpack.c.b16 %v589, %v585
        %654 = vmatprep.subr.bf16.mxu0 %v591
        %655 = vmatpush1.bf16.msra.mxu0 %v590
        %656 = vmatprep.subr.bf16.mxu0 %v595
        %657 = vmatpush1.bf16.msra.mxu0 %v594
        %658 = vmatprep.subr.bf16.mxu0 %v599
        %659 = vmatpush1.bf16.msra.mxu0 %v598
        %660 = vmatprep.subr.bf16.mxu0 %v603
        %661 = vmatpush1.bf16.msra.mxu0 %v602
        %662 = vmatprep.subr.bf16.mxu0 %v607
        %663 = vmatpush1.bf16.msra.mxu0 %v606
        %664 = vmatprep.subr.bf16.mxu0 %v611
        %665 = vmatpush1.bf16.msra.mxu0 %v610
        %666 = vmatprep.subr.bf16.mxu0 %v615
        %667 = vmatpush1.bf16.msra.mxu0 %v614
        %668 = vmatprep.subr.bf16.mxu0 %v619
        %669 = vmatpush1.bf16.msra.mxu0 %v618
        %670 = vmatprep.subr.bf16.mxu0 0
        %671 = vmatpush1.bf16.msra.mxu0 0
        %672 = vmatprep.subr.bf16.mxu0 0
        %673 = vmatpush1.bf16.msra.mxu0 0
        %674 = vmatprep.subr.bf16.mxu0 0
        %675 = vmatpush1.bf16.msra.mxu0 0
        %676 = vmatprep.subr.bf16.mxu0 0
        %677 = vmatpush1.bf16.msra.mxu0 0
        %678 = vmatprep.subr.bf16.mxu0 0
        %679 = vmatpush1.bf16.msra.mxu0 0
        %680 = vmatprep.subr.bf16.mxu0 0
        %681 = vmatpush1.bf16.msra.mxu0 0
        %682 = vmatprep.subr.bf16.mxu0 0
        %683 = vmatpush1.bf16.msra.mxu0 0
        %684 = vmatprep.subr.bf16.mxu0 0
        %685 = vmatpush1.bf16.msra.mxu0 0
        %686 = vmatprep.mubr.bf16.mxu0 0
        %687 = vmatmul.mubr.bf16.gmra.mrb[0].mxu0 %v490
        %v688 = vpop.f32.mrb[0].mxu0
        %v689 = vadd.f32 %v465, %v688
        %v690 = vpop.f32.mrb[0].mxu0
        %v691 = vadd.f32 %v469, %v690
        %v692 = vpop.f32.mrb[0].mxu0
        %v693 = vadd.f32 %v465, %v692
        %v694 = vpop.f32.mrb[0].mxu0
        %v695 = vadd.f32 %v469, %v694
        %696 = vmatprep.mubr.bf16.mxu0 0
        %697 = vmatmul.mubr.bf16.gmra.mrb[0].mxu0 %v491
        %v698 = vpop.f32.mrb[0].mxu0
        %v699 = vadd.f32 %v465, %v698
        %v700 = vpop.f32.mrb[0].mxu0
        %v701 = vadd.f32 %v469, %v700
        %v702 = vpop.f32.mrb[0].mxu0
        %v703 = vadd.f32 %v465, %v702
        %v704 = vpop.f32.mrb[0].mxu0
        %v705 = vadd.f32 %v469, %v704
        %706 = vdwg.mxu0
        %707 = vmatprep.subr.bf16.mxu0 %v593
        %708 = vmatpush1.bf16.msra.mxu0 %v592
        %709 = vmatprep.subr.bf16.mxu0 %v597
        %710 = vmatpush1.bf16.msra.mxu0 %v596
        %711 = vmatprep.subr.bf16.mxu0 %v601
        %712 = vmatpush1.bf16.msra.mxu0 %v600
        %713 = vmatprep.subr.bf16.mxu0 %v605
        %714 = vmatpush1.bf16.msra.mxu0 %v604
        %715 = vmatprep.subr.bf16.mxu0 %v609
        %716 = vmatpush1.bf16.msra.mxu0 %v608
        %717 = vmatprep.subr.bf16.mxu0 %v613
        %718 = vmatpush1.bf16.msra.mxu0 %v612
        %719 = vmatprep.subr.bf16.mxu0 %v617
        %720 = vmatpush1.bf16.msra.mxu0 %v616
        %721 = vmatprep.subr.bf16.mxu0 %v621
        %722 = vmatpush1.bf16.msra.mxu0 %v620
        %723 = vmatprep.subr.bf16.mxu0 0
        %724 = vmatpush1.bf16.msra.mxu0 0
        %725 = vmatprep.subr.bf16.mxu0 0
        %726 = vmatpush1.bf16.msra.mxu0 0
        %727 = vmatprep.subr.bf16.mxu0 0
        %728 = vmatpush1.bf16.msra.mxu0 0
        %729 = vmatprep.subr.bf16.mxu0 0
        %730 = vmatpush1.bf16.msra.mxu0 0
        %731 = vmatprep.subr.bf16.mxu0 0
        %732 = vmatpush1.bf16.msra.mxu0 0
        %733 = vmatprep.subr.bf16.mxu0 0
        %734 = vmatpush1.bf16.msra.mxu0 0
        %735 = vmatprep.subr.bf16.mxu0 0
        %736 = vmatpush1.bf16.msra.mxu0 0
        %737 = vmatprep.subr.bf16.mxu0 0
        %738 = vmatpush1.bf16.msra.mxu0 0
        %739 = vmatprep.mubr.bf16.mxu0 0
        %740 = vmatmul.mubr.bf16.gmra.mrb[0].mxu0 %v490
        %v741 = vpop.f32.mrb[0].mxu0
        %v742 = vadd.f32 %v473, %v741
        %v743 = vpop.f32.mrb[0].mxu0
        %v744 = vadd.f32 %v477, %v743
        %v745 = vpop.f32.mrb[0].mxu0
        %v746 = vadd.f32 %v473, %v745
        %v747 = vpop.f32.mrb[0].mxu0
        %v748 = vadd.f32 %v477, %v747
        %749 = vmatprep.mubr.bf16.mxu0 0
        %750 = vmatmul.mubr.bf16.gmra.mrb[0].mxu0 %v491
        %v751 = vpop.f32.mrb[0].mxu0
        %v752 = vadd.f32 %v473, %v751
        %v753 = vpop.f32.mrb[0].mxu0
        %v754 = vadd.f32 %v477, %v753
        %v755 = vpop.f32.mrb[0].mxu0
        %v756 = vadd.f32 %v473, %v755
        %v757 = vpop.f32.mrb[0].mxu0
        %v758 = vadd.f32 %v477, %v757
        %759 = vdwg.mxu0
        %760 = vst [vmem:[#allocation4] sm:$0xff] %v689
        %761 = vst [vmem:[#allocation4 + $0x8] sm:$0xff] %v691
        %762 = vst [vmem:[#allocation4 + $0x10] sm:$0xff] %v742
        %763 = vst [vmem:[#allocation4 + $0x18] sm:$0xff] %v744
        %764 = vst [vmem:[#allocation4 + $0x20] sm:$0xff] %v693
        %765 = vst [vmem:[#allocation4 + $0x28] sm:$0xff] %v695
        %766 = vst [vmem:[#allocation4 + $0x30] sm:$0xff] %v746
        %767 = vst [vmem:[#allocation4 + $0x38] sm:$0xff] %v748
        %768 = vst [vmem:[#allocation4 + $0x40] sm:$0xff] %v699
        %769 = vst [vmem:[#allocation4 + $0x48] sm:$0xff] %v701
        %770 = vst [vmem:[#allocation4 + $0x50] sm:$0xff] %v752
        %771 = vst [vmem:[#allocation4 + $0x58] sm:$0xff] %v754
        %772 = vst [vmem:[#allocation4 + $0x60] sm:$0xff] %v703
        %773 = vst [vmem:[#allocation4 + $0x68] sm:$0xff] %v705
        %774 = vst [vmem:[#allocation4 + $0x70] sm:$0xff] %v756
        %775 = vst [vmem:[#allocation4 + $0x78] sm:$0xff] %v758
        %v776 = vld [vmem:[#allocation2] sm:$0xf]
        %v777 = vld [vmem:[#allocation3] sm:$0xff]
        %s778 = smul.u32 0, 4
        %s779 = smul.addr %s778, 8
        %s780 = scalar_lea.vmem [#allocation4], %s779
        %v781 = vld [vmem:[%s780] sm:$0xff]
        %v782 = vld [vmem:[%s780 + $0x8] sm:$0xff]
        %v783 = vld [vmem:[%s780 + $0x10] sm:$0xff]
        %v784 = vld [vmem:[%s780 + $0x18] sm:$0xff]
        %v785 = vld [vmem:[#allocation8] sm:$0xff]
        %v786 = vld [vmem:[#allocation8 + $0x8] sm:$0xff]
        %v787 = vld [vmem:[#allocation8 + $0x10] sm:$0xff]
        %v788 = vld [vmem:[#allocation8 + $0x18] sm:$0xff]
        %v789 = vld [vmem:[#allocation8 + $0x20] sm:$0xff]
        %v790 = vld [vmem:[#allocation8 + $0x28] sm:$0xff]
        %v791 = vld [vmem:[#allocation8 + $0x30] sm:$0xff]
        %v792 = vld [vmem:[#allocation8 + $0x38] sm:$0xff]
        %v793 = vld [vmem:[#allocation8 + $0x40] sm:$0xff]
        %v794 = vld [vmem:[#allocation8 + $0x48] sm:$0xff]
        %v795 = vld [vmem:[#allocation8 + $0x50] sm:$0xff]
        %v796 = vld [vmem:[#allocation8 + $0x58] sm:$0xff]
        %v797 = vld [vmem:[#allocation8 + $0x60] sm:$0xff]
        %v798 = vld [vmem:[#allocation8 + $0x68] sm:$0xff]
        %v799 = vld [vmem:[#allocation8 + $0x70] sm:$0xff]
        %v800 = vld [vmem:[#allocation8 + $0x78] sm:$0xff]
        %v801 = vld [vmem:[#allocation8 + $0x80] sm:$0xff]
        %v802 = vld [vmem:[#allocation8 + $0x88] sm:$0xff]
        %v803 = vld [vmem:[#allocation8 + $0x90] sm:$0xff]
        %v804 = vld [vmem:[#allocation8 + $0x98] sm:$0xff]
        %v805 = vld [vmem:[#allocation8 + $0xa0] sm:$0xff]
        %v806 = vld [vmem:[#allocation8 + $0xa8] sm:$0xff]
        %v807 = vld [vmem:[#allocation8 + $0xb0] sm:$0xff]
        %v808 = vld [vmem:[#allocation8 + $0xb8] sm:$0xff]
        %v809 = vld [vmem:[#allocation8 + $0xc0] sm:$0xff]
        %v810 = vld [vmem:[#allocation8 + $0xc8] sm:$0xff]
        %v811 = vld [vmem:[#allocation8 + $0xd0] sm:$0xff]
        %v812 = vld [vmem:[#allocation8 + $0xd8] sm:$0xff]
        %v813 = vld [vmem:[#allocation8 + $0xe0] sm:$0xff]
        %v814 = vld [vmem:[#allocation8 + $0xe8] sm:$0xff]
        %v815 = vld [vmem:[#allocation8 + $0xf0] sm:$0xff]
        %v816 = vld [vmem:[#allocation8 + $0xf8] sm:$0xff]
        %v849 = vunpack.c.l.b16 %v785
        %v850 = vunpack.c.h.b16 %v785
        %v851 = vunpack.c.l.b16 %v786
        %v852 = vunpack.c.h.b16 %v786
        %v853 = vunpack.c.l.b16 %v787
        %v854 = vunpack.c.h.b16 %v787
        %v855 = vunpack.c.l.b16 %v788
        %v856 = vunpack.c.h.b16 %v788
        %v857 = vunpack.c.l.b16 %v789
        %v858 = vunpack.c.h.b16 %v789
        %v859 = vunpack.c.l.b16 %v790
        %v860 = vunpack.c.h.b16 %v790
        %v861 = vunpack.c.l.b16 %v791
        %v862 = vunpack.c.h.b16 %v791
        %v863 = vunpack.c.l.b16 %v792
        %v864 = vunpack.c.h.b16 %v792
        %v865 = vunpack.c.l.b16 %v793
        %v866 = vunpack.c.h.b16 %v793
        %v867 = vunpack.c.l.b16 %v794
        %v868 = vunpack.c.h.b16 %v794
        %v869 = vunpack.c.l.b16 %v795
        %v870 = vunpack.c.h.b16 %v795
        %v871 = vunpack.c.l.b16 %v796
        %v872 = vunpack.c.h.b16 %v796
        %v873 = vunpack.c.l.b16 %v797
        %v874 = vunpack.c.h.b16 %v797
        %v875 = vunpack.c.l.b16 %v798
        %v876 = vunpack.c.h.b16 %v798
        %v877 = vunpack.c.l.b16 %v799
        %v878 = vunpack.c.h.b16 %v799
        %v879 = vunpack.c.l.b16 %v800
        %v880 = vunpack.c.h.b16 %v800
        %v881 = vunpack.c.l.b16 %v801
        %v882 = vunpack.c.h.b16 %v801
        %v883 = vunpack.c.l.b16 %v802
        %v884 = vunpack.c.h.b16 %v802
        %v885 = vunpack.c.l.b16 %v803
        %v886 = vunpack.c.h.b16 %v803
        %v887 = vunpack.c.l.b16 %v804
        %v888 = vunpack.c.h.b16 %v804
        %v889 = vunpack.c.l.b16 %v805
        %v890 = vunpack.c.h.b16 %v805
        %v891 = vunpack.c.l.b16 %v806
        %v892 = vunpack.c.h.b16 %v806
        %v893 = vunpack.c.l.b16 %v807
        %v894 = vunpack.c.h.b16 %v807
        %v895 = vunpack.c.l.b16 %v808
        %v896 = vunpack.c.h.b16 %v808
        %v897 = vunpack.c.l.b16 %v809
        %v898 = vunpack.c.h.b16 %v809
        %v899 = vunpack.c.l.b16 %v810
        %v900 = vunpack.c.h.b16 %v810
        %v901 = vunpack.c.l.b16 %v811
        %v902 = vunpack.c.h.b16 %v811
        %v903 = vunpack.c.l.b16 %v812
        %v904 = vunpack.c.h.b16 %v812
        %v905 = vunpack.c.l.b16 %v813
        %v906 = vunpack.c.h.b16 %v813
        %v907 = vunpack.c.l.b16 %v814
        %v908 = vunpack.c.h.b16 %v814
        %v909 = vunpack.c.l.b16 %v815
        %v910 = vunpack.c.h.b16 %v815
        %v911 = vunpack.c.l.b16 %v816
        %v912 = vunpack.c.h.b16 %v816
        %v913 = vpack.c.b16 %v853, %v849
        %v914 = vpack.c.b16 %v854, %v850
        %v915 = vpack.c.b16 %v855, %v851
        %v916 = vpack.c.b16 %v856, %v852
        %v917 = vpack.c.b16 %v861, %v857
        %v918 = vpack.c.b16 %v862, %v858
        %v919 = vpack.c.b16 %v863, %v859
        %v920 = vpack.c.b16 %v864, %v860
        %v921 = vpack.c.b16 %v869, %v865
        %v922 = vpack.c.b16 %v870, %v866
        %v923 = vpack.c.b16 %v871, %v867
        %v924 = vpack.c.b16 %v872, %v868
        %v925 = vpack.c.b16 %v877, %v873
        %v926 = vpack.c.b16 %v878, %v874
        %v927 = vpack.c.b16 %v879, %v875
        %v928 = vpack.c.b16 %v880, %v876
        %v929 = vpack.c.b16 %v885, %v881
        %v930 = vpack.c.b16 %v886, %v882
        %v931 = vpack.c.b16 %v887, %v883
        %v932 = vpack.c.b16 %v888, %v884
        %v933 = vpack.c.b16 %v893, %v889
        %v934 = vpack.c.b16 %v894, %v890
        %v935 = vpack.c.b16 %v895, %v891
        %v936 = vpack.c.b16 %v896, %v892
        %v937 = vpack.c.b16 %v901, %v897
        %v938 = vpack.c.b16 %v902, %v898
        %v939 = vpack.c.b16 %v903, %v899
        %v940 = vpack.c.b16 %v904, %v900
        %v941 = vpack.c.b16 %v909, %v905
        %v942 = vpack.c.b16 %v910, %v906
        %v943 = vpack.c.b16 %v911, %v907
        %v944 = vpack.c.b16 %v912, %v908
        %977 = vmatprep.subr.bf16.mxu0 %v914
        %978 = vmatpush1.bf16.msra.mxu0 %v913
        %979 = vmatprep.subr.bf16.mxu0 %v918
        %980 = vmatpush1.bf16.msra.mxu0 %v917
        %981 = vmatprep.subr.bf16.mxu0 %v922
        %982 = vmatpush1.bf16.msra.mxu0 %v921
        %983 = vmatprep.subr.bf16.mxu0 %v926
        %984 = vmatpush1.bf16.msra.mxu0 %v925
        %985 = vmatprep.subr.bf16.mxu0 %v930
        %986 = vmatpush1.bf16.msra.mxu0 %v929
        %987 = vmatprep.subr.bf16.mxu0 %v934
        %988 = vmatpush1.bf16.msra.mxu0 %v933
        %989 = vmatprep.subr.bf16.mxu0 %v938
        %990 = vmatpush1.bf16.msra.mxu0 %v937
        %991 = vmatprep.subr.bf16.mxu0 %v942
        %992 = vmatpush1.bf16.msra.mxu0 %v941
        %993 = vmatprep.subr.bf16.mxu0 0
        %994 = vmatpush1.bf16.msra.mxu0 0
        %995 = vmatprep.subr.bf16.mxu0 0
        %996 = vmatpush1.bf16.msra.mxu0 0
        %997 = vmatprep.subr.bf16.mxu0 0
        %998 = vmatpush1.bf16.msra.mxu0 0
        %999 = vmatprep.subr.bf16.mxu0 0
        %1000 = vmatpush1.bf16.msra.mxu0 0
        %1001 = vmatprep.subr.bf16.mxu0 0
        %1002 = vmatpush1.bf16.msra.mxu0 0
        %1003 = vmatprep.subr.bf16.mxu0 0
        %1004 = vmatpush1.bf16.msra.mxu0 0
        %1005 = vmatprep.subr.bf16.mxu0 0
        %1006 = vmatpush1.bf16.msra.mxu0 0
        %1007 = vmatprep.subr.bf16.mxu0 0
        %1008 = vmatpush1.bf16.msra.mxu0 0
        %1009 = vmatprep.mubr.bf16.mxu0 0
        %1010 = vmatmul.mubr.bf16.gmra.mrb[0].mxu0 %v776
        %v1011 = vpop.f32.mrb[0].mxu0
        %v1012 = vadd.f32 0.0, %v1011
        %v1013 = vpop.f32.mrb[0].mxu0
        %v1014 = vadd.f32 0.0, %v1013
        %v1015 = vpop.f32.mrb[0].mxu0
        %v1016 = vpop.f32.mrb[0].mxu0
        %1017 = vdwg.mxu0
        %1018 = vmatprep.subr.bf16.mxu0 %v916
        %1019 = vmatpush1.bf16.msra.mxu0 %v915
        %1020 = vmatprep.subr.bf16.mxu0 %v920
        %1021 = vmatpush1.bf16.msra.mxu0 %v919
        %1022 = vmatprep.subr.bf16.mxu0 %v924
        %1023 = vmatpush1.bf16.msra.mxu0 %v923
        %1024 = vmatprep.subr.bf16.mxu0 %v928
        %1025 = vmatpush1.bf16.msra.mxu0 %v927
        %1026 = vmatprep.subr.bf16.mxu0 %v932
        %1027 = vmatpush1.bf16.msra.mxu0 %v931
        %1028 = vmatprep.subr.bf16.mxu0 %v936
        %1029 = vmatpush1.bf16.msra.mxu0 %v935
        %1030 = vmatprep.subr.bf16.mxu0 %v940
        %1031 = vmatpush1.bf16.msra.mxu0 %v939
        %1032 = vmatprep.subr.bf16.mxu0 %v944
        %1033 = vmatpush1.bf16.msra.mxu0 %v943
        %1034 = vmatprep.subr.bf16.mxu0 0
        %1035 = vmatpush1.bf16.msra.mxu0 0
        %1036 = vmatprep.subr.bf16.mxu0 0
        %1037 = vmatpush1.bf16.msra.mxu0 0
        %1038 = vmatprep.subr.bf16.mxu0 0
        %1039 = vmatpush1.bf16.msra.mxu0 0
        %1040 = vmatprep.subr.bf16.mxu0 0
        %1041 = vmatpush1.bf16.msra.mxu0 0
        %1042 = vmatprep.subr.bf16.mxu0 0
        %1043 = vmatpush1.bf16.msra.mxu0 0
        %1044 = vmatprep.subr.bf16.mxu0 0
        %1045 = vmatpush1.bf16.msra.mxu0 0
        %1046 = vmatprep.subr.bf16.mxu0 0
        %1047 = vmatpush1.bf16.msra.mxu0 0
        %1048 = vmatprep.subr.bf16.mxu0 0
        %1049 = vmatpush1.bf16.msra.mxu0 0
        %1050 = vmatprep.mubr.bf16.mxu0 0
        %1051 = vmatmul.mubr.bf16.gmra.mrb[0].mxu0 %v776
        %v1052 = vpop.f32.mrb[0].mxu0
        %v1053 = vadd.f32 0.0, %v1052
        %v1054 = vpop.f32.mrb[0].mxu0
        %v1055 = vadd.f32 0.0, %v1054
        %v1056 = vpop.f32.mrb[0].mxu0
        %v1057 = vpop.f32.mrb[0].mxu0
        %1058 = vdwg.mxu0
        %v1059 = vadd.f32 %v781, %v1012
        %v1060 = vadd.f32 %v782, %v1014
        %v1061 = vadd.f32 %v783, %v1053
        %v1062 = vadd.f32 %v784, %v1055
        %v1063 = vxor.u32 %v1059, 2147483648
        %v1064 = vmul.f32 %v1063, 1.442695
        %v1065 = vpow.pop %v1064
        %v1066 = vadd.f32 %v1065, 1.0
        %v1067 = vrcp.pop %v1066
        %v1068 = vmul.f32 1.0, %v1067
        %v1069 = vxor.u32 %v1060, 2147483648
        %v1070 = vmul.f32 %v1069, 1.442695
        %v1071 = vpow.pop %v1070
        %v1072 = vadd.f32 %v1071, 1.0
        %v1073 = vrcp.pop %v1072
        %v1074 = vmul.f32 1.0, %v1073
        %v1075 = vtanh.pop %v1061
        %v1076 = vxor.u32 %v1062, 2147483648
        %v1077 = vmul.f32 %v1076, 1.442695
        %v1078 = vpow.pop %v1077
        %v1079 = vadd.f32 %v1078, 1.0
        %v1080 = vrcp.pop %v1079
        %v1081 = vmul.f32 1.0, %v1080
        %v1082 = vmul.f32 %v1074, %v777
        %v1083 = vmul.f32 %v1068, %v1075
        %v1084 = vadd.f32 %v1082, %v1083
        %v1085 = vtanh.pop %v1084
        %v1086 = vmul.f32 %v1081, %v1085
        %v1087 = vpack.c.bf16 %v1086, %v1086
        %1088 = vst [vmem:[#allocation2] sm:$0xf] %v1087
        %1089 = vst [vmem:[#allocation3] sm:$0xff] %v1084
        %v1090 = vld [vmem:[#allocation10] sm:$0xff]
        %v1091 = vld [vmem:[#allocation10 + $0x8] sm:$0xff]
        %v1092 = vld [vmem:[#allocation10 + $0x10] sm:$0xff]
        %v1093 = vld [vmem:[#allocation10 + $0x18] sm:$0xff]
        %v1094 = vld [vmem:[#allocation10 + $0x20] sm:$0xff]
        %v1095 = vld [vmem:[#allocation10 + $0x28] sm:$0xff]
        %v1096 = vld [vmem:[#allocation10 + $0x30] sm:$0xff]
        %v1097 = vld [vmem:[#allocation10 + $0x38] sm:$0xff]
        %v1098 = vld [vmem:[#allocation10 + $0x40] sm:$0xff]
        %v1099 = vld [vmem:[#allocation10 + $0x48] sm:$0xff]
        %v1100 = vld [vmem:[#allocation10 + $0x50] sm:$0xff]
        %v1101 = vld [vmem:[#allocation10 + $0x58] sm:$0xff]
        %v1102 = vld [vmem:[#allocation10 + $0x60] sm:$0xff]
        %v1103 = vld [vmem:[#allocation10 + $0x68] sm:$0xff]
        %v1104 = vld [vmem:[#allocation10 + $0x70] sm:$0xff]
        %v1105 = vld [vmem:[#allocation10 + $0x78] sm:$0xff]
        %v1106 = vld [vmem:[#allocation10 + $0x80] sm:$0xff]
        %v1107 = vld [vmem:[#allocation10 + $0x88] sm:$0xff]
        %v1108 = vld [vmem:[#allocation10 + $0x90] sm:$0xff]
        %v1109 = vld [vmem:[#allocation10 + $0x98] sm:$0xff]
        %v1110 = vld [vmem:[#allocation10 + $0xa0] sm:$0xff]
        %v1111 = vld [vmem:[#allocation10 + $0xa8] sm:$0xff]
        %v1112 = vld [vmem:[#allocation10 + $0xb0] sm:$0xff]
        %v1113 = vld [vmem:[#allocation10 + $0xb8] sm:$0xff]
        %v1114 = vld [vmem:[#allocation10 + $0xc0] sm:$0xff]
        %v1115 = vld [vmem:[#allocation10 + $0xc8] sm:$0xff]
        %v1116 = vld [vmem:[#allocation10 + $0xd0] sm:$0xff]
        %v1117 = vld [vmem:[#allocation10 + $0xd8] sm:$0xff]
        %v1118 = vld [vmem:[#allocation10 + $0xe0] sm:$0xff]
        %v1119 = vld [vmem:[#allocation10 + $0xe8] sm:$0xff]
        %v1120 = vld [vmem:[#allocation10 + $0xf0] sm:$0xff]
        %v1121 = vld [vmem:[#allocation10 + $0xf8] sm:$0xff]
        %v1122 = vld [vmem:[%s6] sm:$0xf]
        %v1124 = vlaneseq
        %v1125 = vshrl.u32 %v1124, 7
        %v1126 = vsub.s32 0, %v1125
        %v1127 = vrot.slane %v1122, %v1126
        %v1128 = vlaneseq
        %v1129 = vshrl.u32 %v1128, 7
        %v1130 = vsub.s32 1, %v1129
        %v1131 = vrot.slane %v1122, %v1130
        %v1132 = vlaneseq
        %v1133 = vshrl.u32 %v1132, 7
        %v1134 = vsub.s32 2, %v1133
        %v1135 = vrot.slane %v1122, %v1134
        %v1136 = vlaneseq
        %v1137 = vshrl.u32 %v1136, 7
        %v1138 = vsub.s32 3, %v1137
        %v1139 = vrot.slane %v1122, %v1138
        %v1176 = vunpack.c.l.b16 %v1090
        %v1177 = vunpack.c.h.b16 %v1090
        %v1178 = vunpack.c.l.b16 %v1091
        %v1179 = vunpack.c.h.b16 %v1091
        %v1180 = vunpack.c.l.b16 %v1092
        %v1181 = vunpack.c.h.b16 %v1092
        %v1182 = vunpack.c.l.b16 %v1093
        %v1183 = vunpack.c.h.b16 %v1093
        %v1184 = vunpack.c.l.b16 %v1094
        %v1185 = vunpack.c.h.b16 %v1094
        %v1186 = vunpack.c.l.b16 %v1095
        %v1187 = vunpack.c.h.b16 %v1095
        %v1188 = vunpack.c.l.b16 %v1096
        %v1189 = vunpack.c.h.b16 %v1096
        %v1190 = vunpack.c.l.b16 %v1097
        %v1191 = vunpack.c.h.b16 %v1097
        %v1192 = vunpack.c.l.b16 %v1098
        %v1193 = vunpack.c.h.b16 %v1098
        %v1194 = vunpack.c.l.b16 %v1099
        %v1195 = vunpack.c.h.b16 %v1099
        %v1196 = vunpack.c.l.b16 %v1100
        %v1197 = vunpack.c.h.b16 %v1100
        %v1198 = vunpack.c.l.b16 %v1101
        %v1199 = vunpack.c.h.b16 %v1101
        %v1200 = vunpack.c.l.b16 %v1102
        %v1201 = vunpack.c.h.b16 %v1102
        %v1202 = vunpack.c.l.b16 %v1103
        %v1203 = vunpack.c.h.b16 %v1103
        %v1204 = vunpack.c.l.b16 %v1104
        %v1205 = vunpack.c.h.b16 %v1104
        %v1206 = vunpack.c.l.b16 %v1105
        %v1207 = vunpack.c.h.b16 %v1105
        %v1208 = vunpack.c.l.b16 %v1106
        %v1209 = vunpack.c.h.b16 %v1106
        %v1210 = vunpack.c.l.b16 %v1107
        %v1211 = vunpack.c.h.b16 %v1107
        %v1212 = vunpack.c.l.b16 %v1108
        %v1213 = vunpack.c.h.b16 %v1108
        %v1214 = vunpack.c.l.b16 %v1109
        %v1215 = vunpack.c.h.b16 %v1109
        %v1216 = vunpack.c.l.b16 %v1110
        %v1217 = vunpack.c.h.b16 %v1110
        %v1218 = vunpack.c.l.b16 %v1111
        %v1219 = vunpack.c.h.b16 %v1111
        %v1220 = vunpack.c.l.b16 %v1112
        %v1221 = vunpack.c.h.b16 %v1112
        %v1222 = vunpack.c.l.b16 %v1113
        %v1223 = vunpack.c.h.b16 %v1113
        %v1224 = vunpack.c.l.b16 %v1114
        %v1225 = vunpack.c.h.b16 %v1114
        %v1226 = vunpack.c.l.b16 %v1115
        %v1227 = vunpack.c.h.b16 %v1115
        %v1228 = vunpack.c.l.b16 %v1116
        %v1229 = vunpack.c.h.b16 %v1116
        %v1230 = vunpack.c.l.b16 %v1117
        %v1231 = vunpack.c.h.b16 %v1117
        %v1232 = vunpack.c.l.b16 %v1118
        %v1233 = vunpack.c.h.b16 %v1118
        %v1234 = vunpack.c.l.b16 %v1119
        %v1235 = vunpack.c.h.b16 %v1119
        %v1236 = vunpack.c.l.b16 %v1120
        %v1237 = vunpack.c.h.b16 %v1120
        %v1238 = vunpack.c.l.b16 %v1121
        %v1239 = vunpack.c.h.b16 %v1121
        %v1240 = vpack.c.b16 %v1180, %v1176
        %v1241 = vpack.c.b16 %v1181, %v1177
        %v1242 = vpack.c.b16 %v1182, %v1178
        %v1243 = vpack.c.b16 %v1183, %v1179
        %v1244 = vpack.c.b16 %v1188, %v1184
        %v1245 = vpack.c.b16 %v1189, %v1185
        %v1246 = vpack.c.b16 %v1190, %v1186
        %v1247 = vpack.c.b16 %v1191, %v1187
        %v1248 = vpack.c.b16 %v1196, %v1192
        %v1249 = vpack.c.b16 %v1197, %v1193
        %v1250 = vpack.c.b16 %v1198, %v1194
        %v1251 = vpack.c.b16 %v1199, %v1195
        %v1252 = vpack.c.b16 %v1204, %v1200
        %v1253 = vpack.c.b16 %v1205, %v1201
        %v1254 = vpack.c.b16 %v1206, %v1202
        %v1255 = vpack.c.b16 %v1207, %v1203
        %v1256 = vpack.c.b16 %v1212, %v1208
        %v1257 = vpack.c.b16 %v1213, %v1209
        %v1258 = vpack.c.b16 %v1214, %v1210
        %v1259 = vpack.c.b16 %v1215, %v1211
        %v1260 = vpack.c.b16 %v1220, %v1216
        %v1261 = vpack.c.b16 %v1221, %v1217
        %v1262 = vpack.c.b16 %v1222, %v1218
        %v1263 = vpack.c.b16 %v1223, %v1219
        %v1264 = vpack.c.b16 %v1228, %v1224
        %v1265 = vpack.c.b16 %v1229, %v1225
        %v1266 = vpack.c.b16 %v1230, %v1226
        %v1267 = vpack.c.b16 %v1231, %v1227
        %v1268 = vpack.c.b16 %v1236, %v1232
        %v1269 = vpack.c.b16 %v1237, %v1233
        %v1270 = vpack.c.b16 %v1238, %v1234
        %v1271 = vpack.c.b16 %v1239, %v1235
        %1304 = vmatprep.subr.bf16.mxu0 %v1241
        %1305 = vmatpush1.bf16.msra.mxu0 %v1240
        %1306 = vmatprep.subr.bf16.mxu0 %v1245
        %1307 = vmatpush1.bf16.msra.mxu0 %v1244
        %1308 = vmatprep.subr.bf16.mxu0 %v1249
        %1309 = vmatpush1.bf16.msra.mxu0 %v1248
        %1310 = vmatprep.subr.bf16.mxu0 %v1253
        %1311 = vmatpush1.bf16.msra.mxu0 %v1252
        %1312 = vmatprep.subr.bf16.mxu0 %v1257
        %1313 = vmatpush1.bf16.msra.mxu0 %v1256
        %1314 = vmatprep.subr.bf16.mxu0 %v1261
        %1315 = vmatpush1.bf16.msra.mxu0 %v1260
        %1316 = vmatprep.subr.bf16.mxu0 %v1265
        %1317 = vmatpush1.bf16.msra.mxu0 %v1264
        %1318 = vmatprep.subr.bf16.mxu0 %v1269
        %1319 = vmatpush1.bf16.msra.mxu0 %v1268
        %1320 = vmatprep.subr.bf16.mxu0 0
        %1321 = vmatpush1.bf16.msra.mxu0 0
        %1322 = vmatprep.subr.bf16.mxu0 0
        %1323 = vmatpush1.bf16.msra.mxu0 0
        %1324 = vmatprep.subr.bf16.mxu0 0
        %1325 = vmatpush1.bf16.msra.mxu0 0
        %1326 = vmatprep.subr.bf16.mxu0 0
        %1327 = vmatpush1.bf16.msra.mxu0 0
        %1328 = vmatprep.subr.bf16.mxu0 0
        %1329 = vmatpush1.bf16.msra.mxu0 0
        %1330 = vmatprep.subr.bf16.mxu0 0
        %1331 = vmatpush1.bf16.msra.mxu0 0
        %1332 = vmatprep.subr.bf16.mxu0 0
        %1333 = vmatpush1.bf16.msra.mxu0 0
        %1334 = vmatprep.subr.bf16.mxu0 0
        %1335 = vmatpush1.bf16.msra.mxu0 0
        %1336 = vmatprep.mubr.bf16.mxu0 0
        %1337 = vmatmul.mubr.bf16.gmra.mrb[0].mxu0 %v1087
        %v1338 = vpop.f32.mrb[0].mxu0
        %v1339 = vadd.f32 %v1127, %v1338
        %v1340 = vpop.f32.mrb[0].mxu0
        %v1341 = vadd.f32 %v1131, %v1340
        %v1342 = vpop.f32.mrb[0].mxu0
        %v1343 = vpop.f32.mrb[0].mxu0
        %1344 = vdwg.mxu0
        %1345 = vmatprep.subr.bf16.mxu0 %v1243
        %1346 = vmatpush1.bf16.msra.mxu0 %v1242
        %1347 = vmatprep.subr.bf16.mxu0 %v1247
        %1348 = vmatpush1.bf16.msra.mxu0 %v1246
        %1349 = vmatprep.subr.bf16.mxu0 %v1251
        %1350 = vmatpush1.bf16.msra.mxu0 %v1250
        %1351 = vmatprep.subr.bf16.mxu0 %v1255
        %1352 = vmatpush1.bf16.msra.mxu0 %v1254
        %1353 = vmatprep.subr.bf16.mxu0 %v1259
        %1354 = vmatpush1.bf16.msra.mxu0 %v1258
        %1355 = vmatprep.subr.bf16.mxu0 %v1263
        %1356 = vmatpush1.bf16.msra.mxu0 %v1262
        %1357 = vmatprep.subr.bf16.mxu0 %v1267
        %1358 = vmatpush1.bf16.msra.mxu0 %v1266
        %1359 = vmatprep.subr.bf16.mxu0 %v1271
        %1360 = vmatpush1.bf16.msra.mxu0 %v1270
        %1361 = vmatprep.subr.bf16.mxu0 0
        %1362 = vmatpush1.bf16.msra.mxu0 0
        %1363 = vmatprep.subr.bf16.mxu0 0
        %1364 = vmatpush1.bf16.msra.mxu0 0
        %1365 = vmatprep.subr.bf16.mxu0 0
        %1366 = vmatpush1.bf16.msra.mxu0 0
        %1367 = vmatprep.subr.bf16.mxu0 0
        %1368 = vmatpush1.bf16.msra.mxu0 0
        %1369 = vmatprep.subr.bf16.mxu0 0
        %1370 = vmatpush1.bf16.msra.mxu0 0
        %1371 = vmatprep.subr.bf16.mxu0 0
        %1372 = vmatpush1.bf16.msra.mxu0 0
        %1373 = vmatprep.subr.bf16.mxu0 0
        %1374 = vmatpush1.bf16.msra.mxu0 0
        %1375 = vmatprep.subr.bf16.mxu0 0
        %1376 = vmatpush1.bf16.msra.mxu0 0
        %1377 = vmatprep.mubr.bf16.mxu0 0
        %1378 = vmatmul.mubr.bf16.gmra.mrb[0].mxu0 %v1087
        %v1379 = vpop.f32.mrb[0].mxu0
        %v1380 = vadd.f32 %v1135, %v1379
        %v1381 = vpop.f32.mrb[0].mxu0
        %v1382 = vadd.f32 %v1139, %v1381
        %v1383 = vpop.f32.mrb[0].mxu0
        %v1384 = vpop.f32.mrb[0].mxu0
        %1385 = vdwg.mxu0
        %s1386 = smul.addr %s778, 8
        %s1387 = scalar_lea.vmem [#allocation5], %s1386
        %1388 = vst [vmem:[%s1387] sm:$0xff] %v1339
        %1389 = vst [vmem:[%s1387 + $0x8] sm:$0xff] %v1341
        %1390 = vst [vmem:[%s1387 + $0x10] sm:$0xff] %v1380
        %1391 = vst [vmem:[%s1387 + $0x18] sm:$0xff] %v1382
        %v1392 = vld [vmem:[#allocation2] sm:$0xf]
        %v1393 = vld [vmem:[#allocation3] sm:$0xff]
        %s1394 = smul.u32 1, 4
        %s1395 = smul.addr %s1394, 8
        %s1396 = scalar_lea.vmem [#allocation4], %s1395
        %v1397 = vld [vmem:[%s1396] sm:$0xff]
        %v1398 = vld [vmem:[%s1396 + $0x8] sm:$0xff]
        %v1399 = vld [vmem:[%s1396 + $0x10] sm:$0xff]
        %v1400 = vld [vmem:[%s1396 + $0x18] sm:$0xff]
        %v1401 = vld [vmem:[#allocation8] sm:$0xff]
        %v1402 = vld [vmem:[#allocation8 + $0x8] sm:$0xff]
        %v1403 = vld [vmem:[#allocation8 + $0x10] sm:$0xff]
        %v1404 = vld [vmem:[#allocation8 + $0x18] sm:$0xff]
        %v1405 = vld [vmem:[#allocation8 + $0x20] sm:$0xff]
        %v1406 = vld [vmem:[#allocation8 + $0x28] sm:$0xff]
        %v1407 = vld [vmem:[#allocation8 + $0x30] sm:$0xff]
        %v1408 = vld [vmem:[#allocation8 + $0x38] sm:$0xff]
        %v1409 = vld [vmem:[#allocation8 + $0x40] sm:$0xff]
        %v1410 = vld [vmem:[#allocation8 + $0x48] sm:$0xff]
        %v1411 = vld [vmem:[#allocation8 + $0x50] sm:$0xff]
        %v1412 = vld [vmem:[#allocation8 + $0x58] sm:$0xff]
        %v1413 = vld [vmem:[#allocation8 + $0x60] sm:$0xff]
        %v1414 = vld [vmem:[#allocation8 + $0x68] sm:$0xff]
        %v1415 = vld [vmem:[#allocation8 + $0x70] sm:$0xff]
        %v1416 = vld [vmem:[#allocation8 + $0x78] sm:$0xff]
        %v1417 = vld [vmem:[#allocation8 + $0x80] sm:$0xff]
        %v1418 = vld [vmem:[#allocation8 + $0x88] sm:$0xff]
        %v1419 = vld [vmem:[#allocation8 + $0x90] sm:$0xff]
        %v1420 = vld [vmem:[#allocation8 + $0x98] sm:$0xff]
        %v1421 = vld [vmem:[#allocation8 + $0xa0] sm:$0xff]
        %v1422 = vld [vmem:[#allocation8 + $0xa8] sm:$0xff]
        %v1423 = vld [vmem:[#allocation8 + $0xb0] sm:$0xff]
        %v1424 = vld [vmem:[#allocation8 + $0xb8] sm:$0xff]
        %v1425 = vld [vmem:[#allocation8 + $0xc0] sm:$0xff]
        %v1426 = vld [vmem:[#allocation8 + $0xc8] sm:$0xff]
        %v1427 = vld [vmem:[#allocation8 + $0xd0] sm:$0xff]
        %v1428 = vld [vmem:[#allocation8 + $0xd8] sm:$0xff]
        %v1429 = vld [vmem:[#allocation8 + $0xe0] sm:$0xff]
        %v1430 = vld [vmem:[#allocation8 + $0xe8] sm:$0xff]
        %v1431 = vld [vmem:[#allocation8 + $0xf0] sm:$0xff]
        %v1432 = vld [vmem:[#allocation8 + $0xf8] sm:$0xff]
        %v1465 = vunpack.c.l.b16 %v1401
        %v1466 = vunpack.c.h.b16 %v1401
        %v1467 = vunpack.c.l.b16 %v1402
        %v1468 = vunpack.c.h.b16 %v1402
        %v1469 = vunpack.c.l.b16 %v1403
        %v1470 = vunpack.c.h.b16 %v1403
        %v1471 = vunpack.c.l.b16 %v1404
        %v1472 = vunpack.c.h.b16 %v1404
        %v1473 = vunpack.c.l.b16 %v1405
        %v1474 = vunpack.c.h.b16 %v1405
        %v1475 = vunpack.c.l.b16 %v1406
        %v1476 = vunpack.c.h.b16 %v1406
        %v1477 = vunpack.c.l.b16 %v1407
        %v1478 = vunpack.c.h.b16 %v1407
        %v1479 = vunpack.c.l.b16 %v1408
        %v1480 = vunpack.c.h.b16 %v1408
        %v1481 = vunpack.c.l.b16 %v1409
        %v1482 = vunpack.c.h.b16 %v1409
        %v1483 = vunpack.c.l.b16 %v1410
        %v1484 = vunpack.c.h.b16 %v1410
        %v1485 = vunpack.c.l.b16 %v1411
        %v1486 = vunpack.c.h.b16 %v1411
        %v1487 = vunpack.c.l.b16 %v1412
        %v1488 = vunpack.c.h.b16 %v1412
        %v1489 = vunpack.c.l.b16 %v1413
        %v1490 = vunpack.c.h.b16 %v1413
        %v1491 = vunpack.c.l.b16 %v1414
        %v1492 = vunpack.c.h.b16 %v1414
        %v1493 = vunpack.c.l.b16 %v1415
        %v1494 = vunpack.c.h.b16 %v1415
        %v1495 = vunpack.c.l.b16 %v1416
        %v1496 = vunpack.c.h.b16 %v1416
        %v1497 = vunpack.c.l.b16 %v1417
        %v1498 = vunpack.c.h.b16 %v1417
        %v1499 = vunpack.c.l.b16 %v1418
        %v1500 = vunpack.c.h.b16 %v1418
        %v1501 = vunpack.c.l.b16 %v1419
        %v1502 = vunpack.c.h.b16 %v1419
        %v1503 = vunpack.c.l.b16 %v1420
        %v1504 = vunpack.c.h.b16 %v1420
        %v1505 = vunpack.c.l.b16 %v1421
        %v1506 = vunpack.c.h.b16 %v1421
        %v1507 = vunpack.c.l.b16 %v1422
        %v1508 = vunpack.c.h.b16 %v1422
        %v1509 = vunpack.c.l.b16 %v1423
        %v1510 = vunpack.c.h.b16 %v1423
        %v1511 = vunpack.c.l.b16 %v1424
        %v1512 = vunpack.c.h.b16 %v1424
        %v1513 = vunpack.c.l.b16 %v1425
        %v1514 = vunpack.c.h.b16 %v1425
        %v1515 = vunpack.c.l.b16 %v1426
        %v1516 = vunpack.c.h.b16 %v1426
        %v1517 = vunpack.c.l.b16 %v1427
        %v1518 = vunpack.c.h.b16 %v1427
        %v1519 = vunpack.c.l.b16 %v1428
        %v1520 = vunpack.c.h.b16 %v1428
        %v1521 = vunpack.c.l.b16 %v1429
        %v1522 = vunpack.c.h.b16 %v1429
        %v1523 = vunpack.c.l.b16 %v1430
        %v1524 = vunpack.c.h.b16 %v1430
        %v1525 = vunpack.c.l.b16 %v1431
        %v1526 = vunpack.c.h.b16 %v1431
        %v1527 = vunpack.c.l.b16 %v1432
        %v1528 = vunpack.c.h.b16 %v1432
        %v1529 = vpack.c.b16 %v1469, %v1465
        %v1530 = vpack.c.b16 %v1470, %v1466
        %v1531 = vpack.c.b16 %v1471, %v1467
        %v1532 = vpack.c.b16 %v1472, %v1468
        %v1533 = vpack.c.b16 %v1477, %v1473
        %v1534 = vpack.c.b16 %v1478, %v1474
        %v1535 = vpack.c.b16 %v1479, %v1475
        %v1536 = vpack.c.b16 %v1480, %v1476
        %v1537 = vpack.c.b16 %v1485, %v1481
        %v1538 = vpack.c.b16 %v1486, %v1482
        %v1539 = vpack.c.b16 %v1487, %v1483
        %v1540 = vpack.c.b16 %v1488, %v1484
        %v1541 = vpack.c.b16 %v1493, %v1489
        %v1542 = vpack.c.b16 %v1494, %v1490
        %v1543 = vpack.c.b16 %v1495, %v1491
        %v1544 = vpack.c.b16 %v1496, %v1492
        %v1545 = vpack.c.b16 %v1501, %v1497
        %v1546 = vpack.c.b16 %v1502, %v1498
        %v1547 = vpack.c.b16 %v1503, %v1499
        %v1548 = vpack.c.b16 %v1504, %v1500
        %v1549 = vpack.c.b16 %v1509, %v1505
        %v1550 = vpack.c.b16 %v1510, %v1506
        %v1551 = vpack.c.b16 %v1511, %v1507
        %v1552 = vpack.c.b16 %v1512, %v1508
        %v1553 = vpack.c.b16 %v1517, %v1513
        %v1554 = vpack.c.b16 %v1518, %v1514
        %v1555 = vpack.c.b16 %v1519, %v1515
        %v1556 = vpack.c.b16 %v1520, %v1516
        %v1557 = vpack.c.b16 %v1525, %v1521
        %v1558 = vpack.c.b16 %v1526, %v1522
        %v1559 = vpack.c.b16 %v1527, %v1523
        %v1560 = vpack.c.b16 %v1528, %v1524
        %1593 = vmatprep.subr.bf16.mxu0 %v1530
        %1594 = vmatpush1.bf16.msra.mxu0 %v1529
        %1595 = vmatprep.subr.bf16.mxu0 %v1534
        %1596 = vmatpush1.bf16.msra.mxu0 %v1533
        %1597 = vmatprep.subr.bf16.mxu0 %v1538
        %1598 = vmatpush1.bf16.msra.mxu0 %v1537
        %1599 = vmatprep.subr.bf16.mxu0 %v1542
        %1600 = vmatpush1.bf16.msra.mxu0 %v1541
        %1601 = vmatprep.subr.bf16.mxu0 %v1546
        %1602 = vmatpush1.bf16.msra.mxu0 %v1545
        %1603 = vmatprep.subr.bf16.mxu0 %v1550
        %1604 = vmatpush1.bf16.msra.mxu0 %v1549
        %1605 = vmatprep.subr.bf16.mxu0 %v1554
        %1606 = vmatpush1.bf16.msra.mxu0 %v1553
        %1607 = vmatprep.subr.bf16.mxu0 %v1558
        %1608 = vmatpush1.bf16.msra.mxu0 %v1557
        %1609 = vmatprep.subr.bf16.mxu0 0
        %1610 = vmatpush1.bf16.msra.mxu0 0
        %1611 = vmatprep.subr.bf16.mxu0 0
        %1612 = vmatpush1.bf16.msra.mxu0 0
        %1613 = vmatprep.subr.bf16.mxu0 0
        %1614 = vmatpush1.bf16.msra.mxu0 0
        %1615 = vmatprep.subr.bf16.mxu0 0
        %1616 = vmatpush1.bf16.msra.mxu0 0
        %1617 = vmatprep.subr.bf16.mxu0 0
        %1618 = vmatpush1.bf16.msra.mxu0 0
        %1619 = vmatprep.subr.bf16.mxu0 0
        %1620 = vmatpush1.bf16.msra.mxu0 0
        %1621 = vmatprep.subr.bf16.mxu0 0
        %1622 = vmatpush1.bf16.msra.mxu0 0
        %1623 = vmatprep.subr.bf16.mxu0 0
        %1624 = vmatpush1.bf16.msra.mxu0 0
        %1625 = vmatprep.mubr.bf16.mxu0 0
        %1626 = vmatmul.mubr.bf16.gmra.mrb[0].mxu0 %v1392
        %v1627 = vpop.f32.mrb[0].mxu0
        %v1628 = vadd.f32 0.0, %v1627
        %v1629 = vpop.f32.mrb[0].mxu0
        %v1630 = vadd.f32 0.0, %v1629
        %v1631 = vpop.f32.mrb[0].mxu0
        %v1632 = vpop.f32.mrb[0].mxu0
        %1633 = vdwg.mxu0
        %1634 = vmatprep.subr.bf16.mxu0 %v1532
        %1635 = vmatpush1.bf16.msra.mxu0 %v1531
        %1636 = vmatprep.subr.bf16.mxu0 %v1536
        %1637 = vmatpush1.bf16.msra.mxu0 %v1535
        %1638 = vmatprep.subr.bf16.mxu0 %v1540
        %1639 = vmatpush1.bf16.msra.mxu0 %v1539
        %1640 = vmatprep.subr.bf16.mxu0 %v1544
        %1641 = vmatpush1.bf16.msra.mxu0 %v1543
        %1642 = vmatprep.subr.bf16.mxu0 %v1548
        %1643 = vmatpush1.bf16.msra.mxu0 %v1547
        %1644 = vmatprep.subr.bf16.mxu0 %v1552
        %1645 = vmatpush1.bf16.msra.mxu0 %v1551
        %1646 = vmatprep.subr.bf16.mxu0 %v1556
        %1647 = vmatpush1.bf16.msra.mxu0 %v1555
        %1648 = vmatprep.subr.bf16.mxu0 %v1560
        %1649 = vmatpush1.bf16.msra.mxu0 %v1559
        %1650 = vmatprep.subr.bf16.mxu0 0
        %1651 = vmatpush1.bf16.msra.mxu0 0
        %1652 = vmatprep.subr.bf16.mxu0 0
        %1653 = vmatpush1.bf16.msra.mxu0 0
        %1654 = vmatprep.subr.bf16.mxu0 0
        %1655 = vmatpush1.bf16.msra.mxu0 0
        %1656 = vmatprep.subr.bf16.mxu0 0
        %1657 = vmatpush1.bf16.msra.mxu0 0
        %1658 = vmatprep.subr.bf16.mxu0 0
        %1659 = vmatpush1.bf16.msra.mxu0 0
        %1660 = vmatprep.subr.bf16.mxu0 0
        %1661 = vmatpush1.bf16.msra.mxu0 0
        %1662 = vmatprep.subr.bf16.mxu0 0
        %1663 = vmatpush1.bf16.msra.mxu0 0
        %1664 = vmatprep.subr.bf16.mxu0 0
        %1665 = vmatpush1.bf16.msra.mxu0 0
        %1666 = vmatprep.mubr.bf16.mxu0 0
        %1667 = vmatmul.mubr.bf16.gmra.mrb[0].mxu0 %v1392
        %v1668 = vpop.f32.mrb[0].mxu0
        %v1669 = vadd.f32 0.0, %v1668
        %v1670 = vpop.f32.mrb[0].mxu0
        %v1671 = vadd.f32 0.0, %v1670
        %v1672 = vpop.f32.mrb[0].mxu0
        %v1673 = vpop.f32.mrb[0].mxu0
        %1674 = vdwg.mxu0
        %v1675 = vadd.f32 %v1397, %v1628
        %v1676 = vadd.f32 %v1398, %v1630
        %v1677 = vadd.f32 %v1399, %v1669
        %v1678 = vadd.f32 %v1400, %v1671
        %v1679 = vxor.u32 %v1675, 2147483648
        %v1680 = vmul.f32 %v1679, 1.442695
        %v1681 = vpow.pop %v1680
        %v1682 = vadd.f32 %v1681, 1.0
        %v1683 = vrcp.pop %v1682
        %v1684 = vmul.f32 1.0, %v1683
        %v1685 = vxor.u32 %v1676, 2147483648
        %v1686 = vmul.f32 %v1685, 1.442695
        %v1687 = vpow.pop %v1686
        %v1688 = vadd.f32 %v1687, 1.0
        %v1689 = vrcp.pop %v1688
        %v1690 = vmul.f32 1.0, %v1689
        %v1691 = vtanh.pop %v1677
        %v1692 = vxor.u32 %v1678, 2147483648
        %v1693 = vmul.f32 %v1692, 1.442695
        %v1694 = vpow.pop %v1693
        %v1695 = vadd.f32 %v1694, 1.0
        %v1696 = vrcp.pop %v1695
        %v1697 = vmul.f32 1.0, %v1696
        %v1698 = vmul.f32 %v1690, %v1393
        %v1699 = vmul.f32 %v1684, %v1691
        %v1700 = vadd.f32 %v1698, %v1699
        %v1701 = vtanh.pop %v1700
        %v1702 = vmul.f32 %v1697, %v1701
        %v1703 = vpack.c.bf16 %v1702, %v1702
        %1704 = vst [vmem:[#allocation2] sm:$0xf] %v1703
        %1705 = vst [vmem:[#allocation3] sm:$0xff] %v1700
        %v1706 = vld [vmem:[#allocation10] sm:$0xff]
        %v1707 = vld [vmem:[#allocation10 + $0x8] sm:$0xff]
        %v1708 = vld [vmem:[#allocation10 + $0x10] sm:$0xff]
        %v1709 = vld [vmem:[#allocation10 + $0x18] sm:$0xff]
        %v1710 = vld [vmem:[#allocation10 + $0x20] sm:$0xff]
        %v1711 = vld [vmem:[#allocation10 + $0x28] sm:$0xff]
        %v1712 = vld [vmem:[#allocation10 + $0x30] sm:$0xff]
        %v1713 = vld [vmem:[#allocation10 + $0x38] sm:$0xff]
        %v1714 = vld [vmem:[#allocation10 + $0x40] sm:$0xff]
        %v1715 = vld [vmem:[#allocation10 + $0x48] sm:$0xff]
        %v1716 = vld [vmem:[#allocation10 + $0x50] sm:$0xff]
        %v1717 = vld [vmem:[#allocation10 + $0x58] sm:$0xff]
        %v1718 = vld [vmem:[#allocation10 + $0x60] sm:$0xff]
        %v1719 = vld [vmem:[#allocation10 + $0x68] sm:$0xff]
        %v1720 = vld [vmem:[#allocation10 + $0x70] sm:$0xff]
        %v1721 = vld [vmem:[#allocation10 + $0x78] sm:$0xff]
        %v1722 = vld [vmem:[#allocation10 + $0x80] sm:$0xff]
        %v1723 = vld [vmem:[#allocation10 + $0x88] sm:$0xff]
        %v1724 = vld [vmem:[#allocation10 + $0x90] sm:$0xff]
        %v1725 = vld [vmem:[#allocation10 + $0x98] sm:$0xff]
        %v1726 = vld [vmem:[#allocation10 + $0xa0] sm:$0xff]
        %v1727 = vld [vmem:[#allocation10 + $0xa8] sm:$0xff]
        %v1728 = vld [vmem:[#allocation10 + $0xb0] sm:$0xff]
        %v1729 = vld [vmem:[#allocation10 + $0xb8] sm:$0xff]
        %v1730 = vld [vmem:[#allocation10 + $0xc0] sm:$0xff]
        %v1731 = vld [vmem:[#allocation10 + $0xc8] sm:$0xff]
        %v1732 = vld [vmem:[#allocation10 + $0xd0] sm:$0xff]
        %v1733 = vld [vmem:[#allocation10 + $0xd8] sm:$0xff]
        %v1734 = vld [vmem:[#allocation10 + $0xe0] sm:$0xff]
        %v1735 = vld [vmem:[#allocation10 + $0xe8] sm:$0xff]
        %v1736 = vld [vmem:[#allocation10 + $0xf0] sm:$0xff]
        %v1737 = vld [vmem:[#allocation10 + $0xf8] sm:$0xff]
        %v1738 = vld [vmem:[%s6] sm:$0xf]
        %v1740 = vlaneseq
        %v1741 = vshrl.u32 %v1740, 7
        %v1742 = vsub.s32 0, %v1741
        %v1743 = vrot.slane %v1738, %v1742
        %v1744 = vlaneseq
        %v1745 = vshrl.u32 %v1744, 7
        %v1746 = vsub.s32 1, %v1745
        %v1747 = vrot.slane %v1738, %v1746
        %v1748 = vlaneseq
        %v1749 = vshrl.u32 %v1748, 7
        %v1750 = vsub.s32 2, %v1749
        %v1751 = vrot.slane %v1738, %v1750
        %v1752 = vlaneseq
        %v1753 = vshrl.u32 %v1752, 7
        %v1754 = vsub.s32 3, %v1753
        %v1755 = vrot.slane %v1738, %v1754
        %v1792 = vunpack.c.l.b16 %v1706
        %v1793 = vunpack.c.h.b16 %v1706
        %v1794 = vunpack.c.l.b16 %v1707
        %v1795 = vunpack.c.h.b16 %v1707
        %v1796 = vunpack.c.l.b16 %v1708
        %v1797 = vunpack.c.h.b16 %v1708
        %v1798 = vunpack.c.l.b16 %v1709
        %v1799 = vunpack.c.h.b16 %v1709
        %v1800 = vunpack.c.l.b16 %v1710
        %v1801 = vunpack.c.h.b16 %v1710
        %v1802 = vunpack.c.l.b16 %v1711
        %v1803 = vunpack.c.h.b16 %v1711
        %v1804 = vunpack.c.l.b16 %v1712
        %v1805 = vunpack.c.h.b16 %v1712
        %v1806 = vunpack.c.l.b16 %v1713
        %v1807 = vunpack.c.h.b16 %v1713
        %v1808 = vunpack.c.l.b16 %v1714
        %v1809 = vunpack.c.h.b16 %v1714
        %v1810 = vunpack.c.l.b16 %v1715
        %v1811 = vunpack.c.h.b16 %v1715
        %v1812 = vunpack.c.l.b16 %v1716
        %v1813 = vunpack.c.h.b16 %v1716
        %v1814 = vunpack.c.l.b16 %v1717
        %v1815 = vunpack.c.h.b16 %v1717
        %v1816 = vunpack.c.l.b16 %v1718
        %v1817 = vunpack.c.h.b16 %v1718
        %v1818 = vunpack.c.l.b16 %v1719
        %v1819 = vunpack.c.h.b16 %v1719
        %v1820 = vunpack.c.l.b16 %v1720
        %v1821 = vunpack.c.h.b16 %v1720
        %v1822 = vunpack.c.l.b16 %v1721
        %v1823 = vunpack.c.h.b16 %v1721
        %v1824 = vunpack.c.l.b16 %v1722
        %v1825 = vunpack.c.h.b16 %v1722
        %v1826 = vunpack.c.l.b16 %v1723
        %v1827 = vunpack.c.h.b16 %v1723
        %v1828 = vunpack.c.l.b16 %v1724
        %v1829 = vunpack.c.h.b16 %v1724
        %v1830 = vunpack.c.l.b16 %v1725
        %v1831 = vunpack.c.h.b16 %v1725
        %v1832 = vunpack.c.l.b16 %v1726
        %v1833 = vunpack.c.h.b16 %v1726
        %v1834 = vunpack.c.l.b16 %v1727
        %v1835 = vunpack.c.h.b16 %v1727
        %v1836 = vunpack.c.l.b16 %v1728
        %v1837 = vunpack.c.h.b16 %v1728
        %v1838 = vunpack.c.l.b16 %v1729
        %v1839 = vunpack.c.h.b16 %v1729
        %v1840 = vunpack.c.l.b16 %v1730
        %v1841 = vunpack.c.h.b16 %v1730
        %v1842 = vunpack.c.l.b16 %v1731
        %v1843 = vunpack.c.h.b16 %v1731
        %v1844 = vunpack.c.l.b16 %v1732
        %v1845 = vunpack.c.h.b16 %v1732
        %v1846 = vunpack.c.l.b16 %v1733
        %v1847 = vunpack.c.h.b16 %v1733
        %v1848 = vunpack.c.l.b16 %v1734
        %v1849 = vunpack.c.h.b16 %v1734
        %v1850 = vunpack.c.l.b16 %v1735
        %v1851 = vunpack.c.h.b16 %v1735
        %v1852 = vunpack.c.l.b16 %v1736
        %v1853 = vunpack.c.h.b16 %v1736
        %v1854 = vunpack.c.l.b16 %v1737
        %v1855 = vunpack.c.h.b16 %v1737
        %v1856 = vpack.c.b16 %v1796, %v1792
        %v1857 = vpack.c.b16 %v1797, %v1793
        %v1858 = vpack.c.b16 %v1798, %v1794
        %v1859 = vpack.c.b16 %v1799, %v1795
        %v1860 = vpack.c.b16 %v1804, %v1800
        %v1861 = vpack.c.b16 %v1805, %v1801
        %v1862 = vpack.c.b16 %v1806, %v1802
        %v1863 = vpack.c.b16 %v1807, %v1803
        %v1864 = vpack.c.b16 %v1812, %v1808
        %v1865 = vpack.c.b16 %v1813, %v1809
        %v1866 = vpack.c.b16 %v1814, %v1810
        %v1867 = vpack.c.b16 %v1815, %v1811
        %v1868 = vpack.c.b16 %v1820, %v1816
        %v1869 = vpack.c.b16 %v1821, %v1817
        %v1870 = vpack.c.b16 %v1822, %v1818
        %v1871 = vpack.c.b16 %v1823, %v1819
        %v1872 = vpack.c.b16 %v1828, %v1824
        %v1873 = vpack.c.b16 %v1829, %v1825
        %v1874 = vpack.c.b16 %v1830, %v1826
        %v1875 = vpack.c.b16 %v1831, %v1827
        %v1876 = vpack.c.b16 %v1836, %v1832
        %v1877 = vpack.c.b16 %v1837, %v1833
        %v1878 = vpack.c.b16 %v1838, %v1834
        %v1879 = vpack.c.b16 %v1839, %v1835
        %v1880 = vpack.c.b16 %v1844, %v1840
        %v1881 = vpack.c.b16 %v1845, %v1841
        %v1882 = vpack.c.b16 %v1846, %v1842
        %v1883 = vpack.c.b16 %v1847, %v1843
        %v1884 = vpack.c.b16 %v1852, %v1848
        %v1885 = vpack.c.b16 %v1853, %v1849
        %v1886 = vpack.c.b16 %v1854, %v1850
        %v1887 = vpack.c.b16 %v1855, %v1851
        %1920 = vmatprep.subr.bf16.mxu0 %v1857
        %1921 = vmatpush1.bf16.msra.mxu0 %v1856
        %1922 = vmatprep.subr.bf16.mxu0 %v1861
        %1923 = vmatpush1.bf16.msra.mxu0 %v1860
        %1924 = vmatprep.subr.bf16.mxu0 %v1865
        %1925 = vmatpush1.bf16.msra.mxu0 %v1864
        %1926 = vmatprep.subr.bf16.mxu0 %v1869
        %1927 = vmatpush1.bf16.msra.mxu0 %v1868
        %1928 = vmatprep.subr.bf16.mxu0 %v1873
        %1929 = vmatpush1.bf16.msra.mxu0 %v1872
        %1930 = vmatprep.subr.bf16.mxu0 %v1877
        %1931 = vmatpush1.bf16.msra.mxu0 %v1876
        %1932 = vmatprep.subr.bf16.mxu0 %v1881
        %1933 = vmatpush1.bf16.msra.mxu0 %v1880
        %1934 = vmatprep.subr.bf16.mxu0 %v1885
        %1935 = vmatpush1.bf16.msra.mxu0 %v1884
        %1936 = vmatprep.subr.bf16.mxu0 0
        %1937 = vmatpush1.bf16.msra.mxu0 0
        %1938 = vmatprep.subr.bf16.mxu0 0
        %1939 = vmatpush1.bf16.msra.mxu0 0
        %1940 = vmatprep.subr.bf16.mxu0 0
        %1941 = vmatpush1.bf16.msra.mxu0 0
        %1942 = vmatprep.subr.bf16.mxu0 0
        %1943 = vmatpush1.bf16.msra.mxu0 0
        %1944 = vmatprep.subr.bf16.mxu0 0
        %1945 = vmatpush1.bf16.msra.mxu0 0
        %1946 = vmatprep.subr.bf16.mxu0 0
        %1947 = vmatpush1.bf16.msra.mxu0 0
        %1948 = vmatprep.subr.bf16.mxu0 0
        %1949 = vmatpush1.bf16.msra.mxu0 0
        %1950 = vmatprep.subr.bf16.mxu0 0
        %1951 = vmatpush1.bf16.msra.mxu0 0
        %1952 = vmatprep.mubr.bf16.mxu0 0
        %1953 = vmatmul.mubr.bf16.gmra.mrb[0].mxu0 %v1703
        %v1954 = vpop.f32.mrb[0].mxu0
        %v1955 = vadd.f32 %v1743, %v1954
        %v1956 = vpop.f32.mrb[0].mxu0
        %v1957 = vadd.f32 %v1747, %v1956
        %v1958 = vpop.f32.mrb[0].mxu0
        %v1959 = vpop.f32.mrb[0].mxu0
        %1960 = vdwg.mxu0
        %1961 = vmatprep.subr.bf16.mxu0 %v1859
        %1962 = vmatpush1.bf16.msra.mxu0 %v1858
        %1963 = vmatprep.subr.bf16.mxu0 %v1863
        %1964 = vmatpush1.bf16.msra.mxu0 %v1862
        %1965 = vmatprep.subr.bf16.mxu0 %v1867
        %1966 = vmatpush1.bf16.msra.mxu0 %v1866
        %1967 = vmatprep.subr.bf16.mxu0 %v1871
        %1968 = vmatpush1.bf16.msra.mxu0 %v1870
        %1969 = vmatprep.subr.bf16.mxu0 %v1875
        %1970 = vmatpush1.bf16.msra.mxu0 %v1874
        %1971 = vmatprep.subr.bf16.mxu0 %v1879
        %1972 = vmatpush1.bf16.msra.mxu0 %v1878
        %1973 = vmatprep.subr.bf16.mxu0 %v1883
        %1974 = vmatpush1.bf16.msra.mxu0 %v1882
        %1975 = vmatprep.subr.bf16.mxu0 %v1887
        %1976 = vmatpush1.bf16.msra.mxu0 %v1886
        %1977 = vmatprep.subr.bf16.mxu0 0
        %1978 = vmatpush1.bf16.msra.mxu0 0
        %1979 = vmatprep.subr.bf16.mxu0 0
        %1980 = vmatpush1.bf16.msra.mxu0 0
        %1981 = vmatprep.subr.bf16.mxu0 0
        %1982 = vmatpush1.bf16.msra.mxu0 0
        %1983 = vmatprep.subr.bf16.mxu0 0
        %1984 = vmatpush1.bf16.msra.mxu0 0
        %1985 = vmatprep.subr.bf16.mxu0 0
        %1986 = vmatpush1.bf16.msra.mxu0 0
        %1987 = vmatprep.subr.bf16.mxu0 0
        %1988 = vmatpush1.bf16.msra.mxu0 0
        %1989 = vmatprep.subr.bf16.mxu0 0
        %1990 = vmatpush1.bf16.msra.mxu0 0
        %1991 = vmatprep.subr.bf16.mxu0 0
        %1992 = vmatpush1.bf16.msra.mxu0 0
        %1993 = vmatprep.mubr.bf16.mxu0 0
        %1994 = vmatmul.mubr.bf16.gmra.mrb[0].mxu0 %v1703
        %v1995 = vpop.f32.mrb[0].mxu0
        %v1996 = vadd.f32 %v1751, %v1995
        %v1997 = vpop.f32.mrb[0].mxu0
        %v1998 = vadd.f32 %v1755, %v1997
        %v1999 = vpop.f32.mrb[0].mxu0
        %v2000 = vpop.f32.mrb[0].mxu0
        %2001 = vdwg.mxu0
        %s2002 = smul.addr %s1394, 8
        %s2003 = scalar_lea.vmem [#allocation5], %s2002
        %2004 = vst [vmem:[%s2003] sm:$0xff] %v1955
        %2005 = vst [vmem:[%s2003 + $0x8] sm:$0xff] %v1957
        %2006 = vst [vmem:[%s2003 + $0x10] sm:$0xff] %v1996
        %2007 = vst [vmem:[%s2003 + $0x18] sm:$0xff] %v1998
        %v2008 = vld [vmem:[#allocation2] sm:$0xf]
        %v2009 = vld [vmem:[#allocation3] sm:$0xff]
        %s2010 = smul.u32 2, 4
        %s2011 = smul.addr %s2010, 8
        %s2012 = scalar_lea.vmem [#allocation4], %s2011
        %v2013 = vld [vmem:[%s2012] sm:$0xff]
        %v2014 = vld [vmem:[%s2012 + $0x8] sm:$0xff]
        %v2015 = vld [vmem:[%s2012 + $0x10] sm:$0xff]
        %v2016 = vld [vmem:[%s2012 + $0x18] sm:$0xff]
        %v2017 = vld [vmem:[#allocation8] sm:$0xff]
        %v2018 = vld [vmem:[#allocation8 + $0x8] sm:$0xff]
        %v2019 = vld [vmem:[#allocation8 + $0x10] sm:$0xff]
        %v2020 = vld [vmem:[#allocation8 + $0x18] sm:$0xff]
        %v2021 = vld [vmem:[#allocation8 + $0x20] sm:$0xff]
        %v2022 = vld [vmem:[#allocation8 + $0x28] sm:$0xff]
        %v2023 = vld [vmem:[#allocation8 + $0x30] sm:$0xff]
        %v2024 = vld [vmem:[#allocation8 + $0x38] sm:$0xff]
        %v2025 = vld [vmem:[#allocation8 + $0x40] sm:$0xff]
        %v2026 = vld [vmem:[#allocation8 + $0x48] sm:$0xff]
        %v2027 = vld [vmem:[#allocation8 + $0x50] sm:$0xff]
        %v2028 = vld [vmem:[#allocation8 + $0x58] sm:$0xff]
        %v2029 = vld [vmem:[#allocation8 + $0x60] sm:$0xff]
        %v2030 = vld [vmem:[#allocation8 + $0x68] sm:$0xff]
        %v2031 = vld [vmem:[#allocation8 + $0x70] sm:$0xff]
        %v2032 = vld [vmem:[#allocation8 + $0x78] sm:$0xff]
        %v2033 = vld [vmem:[#allocation8 + $0x80] sm:$0xff]
        %v2034 = vld [vmem:[#allocation8 + $0x88] sm:$0xff]
        %v2035 = vld [vmem:[#allocation8 + $0x90] sm:$0xff]
        %v2036 = vld [vmem:[#allocation8 + $0x98] sm:$0xff]
        %v2037 = vld [vmem:[#allocation8 + $0xa0] sm:$0xff]
        %v2038 = vld [vmem:[#allocation8 + $0xa8] sm:$0xff]
        %v2039 = vld [vmem:[#allocation8 + $0xb0] sm:$0xff]
        %v2040 = vld [vmem:[#allocation8 + $0xb8] sm:$0xff]
        %v2041 = vld [vmem:[#allocation8 + $0xc0] sm:$0xff]
        %v2042 = vld [vmem:[#allocation8 + $0xc8] sm:$0xff]
        %v2043 = vld [vmem:[#allocation8 + $0xd0] sm:$0xff]
        %v2044 = vld [vmem:[#allocation8 + $0xd8] sm:$0xff]
        %v2045 = vld [vmem:[#allocation8 + $0xe0] sm:$0xff]
        %v2046 = vld [vmem:[#allocation8 + $0xe8] sm:$0xff]
        %v2047 = vld [vmem:[#allocation8 + $0xf0] sm:$0xff]
        %v2048 = vld [vmem:[#allocation8 + $0xf8] sm:$0xff]
        %v2081 = vunpack.c.l.b16 %v2017
        %v2082 = vunpack.c.h.b16 %v2017
        %v2083 = vunpack.c.l.b16 %v2018
        %v2084 = vunpack.c.h.b16 %v2018
        %v2085 = vunpack.c.l.b16 %v2019
        %v2086 = vunpack.c.h.b16 %v2019
        %v2087 = vunpack.c.l.b16 %v2020
        %v2088 = vunpack.c.h.b16 %v2020
        %v2089 = vunpack.c.l.b16 %v2021
        %v2090 = vunpack.c.h.b16 %v2021
        %v2091 = vunpack.c.l.b16 %v2022
        %v2092 = vunpack.c.h.b16 %v2022
        %v2093 = vunpack.c.l.b16 %v2023
        %v2094 = vunpack.c.h.b16 %v2023
        %v2095 = vunpack.c.l.b16 %v2024
        %v2096 = vunpack.c.h.b16 %v2024
        %v2097 = vunpack.c.l.b16 %v2025
        %v2098 = vunpack.c.h.b16 %v2025
        %v2099 = vunpack.c.l.b16 %v2026
        %v2100 = vunpack.c.h.b16 %v2026
        %v2101 = vunpack.c.l.b16 %v2027
        %v2102 = vunpack.c.h.b16 %v2027
        %v2103 = vunpack.c.l.b16 %v2028
        %v2104 = vunpack.c.h.b16 %v2028
        %v2105 = vunpack.c.l.b16 %v2029
        %v2106 = vunpack.c.h.b16 %v2029
        %v2107 = vunpack.c.l.b16 %v2030
        %v2108 = vunpack.c.h.b16 %v2030
        %v2109 = vunpack.c.l.b16 %v2031
        %v2110 = vunpack.c.h.b16 %v2031
        %v2111 = vunpack.c.l.b16 %v2032
        %v2112 = vunpack.c.h.b16 %v2032
        %v2113 = vunpack.c.l.b16 %v2033
        %v2114 = vunpack.c.h.b16 %v2033
        %v2115 = vunpack.c.l.b16 %v2034
        %v2116 = vunpack.c.h.b16 %v2034
        %v2117 = vunpack.c.l.b16 %v2035
        %v2118 = vunpack.c.h.b16 %v2035
        %v2119 = vunpack.c.l.b16 %v2036
        %v2120 = vunpack.c.h.b16 %v2036
        %v2121 = vunpack.c.l.b16 %v2037
        %v2122 = vunpack.c.h.b16 %v2037
        %v2123 = vunpack.c.l.b16 %v2038
        %v2124 = vunpack.c.h.b16 %v2038
        %v2125 = vunpack.c.l.b16 %v2039
        %v2126 = vunpack.c.h.b16 %v2039
        %v2127 = vunpack.c.l.b16 %v2040
        %v2128 = vunpack.c.h.b16 %v2040
        %v2129 = vunpack.c.l.b16 %v2041
        %v2130 = vunpack.c.h.b16 %v2041
        %v2131 = vunpack.c.l.b16 %v2042
        %v2132 = vunpack.c.h.b16 %v2042
        %v2133 = vunpack.c.l.b16 %v2043
        %v2134 = vunpack.c.h.b16 %v2043
        %v2135 = vunpack.c.l.b16 %v2044
        %v2136 = vunpack.c.h.b16 %v2044
        %v2137 = vunpack.c.l.b16 %v2045
        %v2138 = vunpack.c.h.b16 %v2045
        %v2139 = vunpack.c.l.b16 %v2046
        %v2140 = vunpack.c.h.b16 %v2046
        %v2141 = vunpack.c.l.b16 %v2047
        %v2142 = vunpack.c.h.b16 %v2047
        %v2143 = vunpack.c.l.b16 %v2048
        %v2144 = vunpack.c.h.b16 %v2048
        %v2145 = vpack.c.b16 %v2085, %v2081
        %v2146 = vpack.c.b16 %v2086, %v2082
        %v2147 = vpack.c.b16 %v2087, %v2083
        %v2148 = vpack.c.b16 %v2088, %v2084
        %v2149 = vpack.c.b16 %v2093, %v2089
        %v2150 = vpack.c.b16 %v2094, %v2090
        %v2151 = vpack.c.b16 %v2095, %v2091
        %v2152 = vpack.c.b16 %v2096, %v2092
        %v2153 = vpack.c.b16 %v2101, %v2097
        %v2154 = vpack.c.b16 %v2102, %v2098
        %v2155 = vpack.c.b16 %v2103, %v2099
        %v2156 = vpack.c.b16 %v2104, %v2100
        %v2157 = vpack.c.b16 %v2109, %v2105
        %v2158 = vpack.c.b16 %v2110, %v2106
        %v2159 = vpack.c.b16 %v2111, %v2107
        %v2160 = vpack.c.b16 %v2112, %v2108
        %v2161 = vpack.c.b16 %v2117, %v2113
        %v2162 = vpack.c.b16 %v2118, %v2114
        %v2163 = vpack.c.b16 %v2119, %v2115
        %v2164 = vpack.c.b16 %v2120, %v2116
        %v2165 = vpack.c.b16 %v2125, %v2121
        %v2166 = vpack.c.b16 %v2126, %v2122
        %v2167 = vpack.c.b16 %v2127, %v2123
        %v2168 = vpack.c.b16 %v2128, %v2124
        %v2169 = vpack.c.b16 %v2133, %v2129
        %v2170 = vpack.c.b16 %v2134, %v2130
        %v2171 = vpack.c.b16 %v2135, %v2131
        %v2172 = vpack.c.b16 %v2136, %v2132
        %v2173 = vpack.c.b16 %v2141, %v2137
        %v2174 = vpack.c.b16 %v2142, %v2138
        %v2175 = vpack.c.b16 %v2143, %v2139
        %v2176 = vpack.c.b16 %v2144, %v2140
        %2209 = vmatprep.subr.bf16.mxu0 %v2146
        %2210 = vmatpush1.bf16.msra.mxu0 %v2145
        %2211 = vmatprep.subr.bf16.mxu0 %v2150
        %2212 = vmatpush1.bf16.msra.mxu0 %v2149
        %2213 = vmatprep.subr.bf16.mxu0 %v2154
        %2214 = vmatpush1.bf16.msra.mxu0 %v2153
        %2215 = vmatprep.subr.bf16.mxu0 %v2158
        %2216 = vmatpush1.bf16.msra.mxu0 %v2157
        %2217 = vmatprep.subr.bf16.mxu0 %v2162
        %2218 = vmatpush1.bf16.msra.mxu0 %v2161
        %2219 = vmatprep.subr.bf16.mxu0 %v2166
        %2220 = vmatpush1.bf16.msra.mxu0 %v2165
        %2221 = vmatprep.subr.bf16.mxu0 %v2170
        %2222 = vmatpush1.bf16.msra.mxu0 %v2169
        %2223 = vmatprep.subr.bf16.mxu0 %v2174
        %2224 = vmatpush1.bf16.msra.mxu0 %v2173
        %2225 = vmatprep.subr.bf16.mxu0 0
        %2226 = vmatpush1.bf16.msra.mxu0 0
        %2227 = vmatprep.subr.bf16.mxu0 0
        %2228 = vmatpush1.bf16.msra.mxu0 0
        %2229 = vmatprep.subr.bf16.mxu0 0
        %2230 = vmatpush1.bf16.msra.mxu0 0
        %2231 = vmatprep.subr.bf16.mxu0 0
        %2232 = vmatpush1.bf16.msra.mxu0 0
        %2233 = vmatprep.subr.bf16.mxu0 0
        %2234 = vmatpush1.bf16.msra.mxu0 0
        %2235 = vmatprep.subr.bf16.mxu0 0
        %2236 = vmatpush1.bf16.msra.mxu0 0
        %2237 = vmatprep.subr.bf16.mxu0 0
        %2238 = vmatpush1.bf16.msra.mxu0 0
        %2239 = vmatprep.subr.bf16.mxu0 0
        %2240 = vmatpush1.bf16.msra.mxu0 0
        %2241 = vmatprep.mubr.bf16.mxu0 0
        %2242 = vmatmul.mubr.bf16.gmra.mrb[0].mxu0 %v2008
        %v2243 = vpop.f32.mrb[0].mxu0
        %v2244 = vadd.f32 0.0, %v2243
        %v2245 = vpop.f32.mrb[0].mxu0
        %v2246 = vadd.f32 0.0, %v2245
        %v2247 = vpop.f32.mrb[0].mxu0
        %v2248 = vpop.f32.mrb[0].mxu0
        %2249 = vdwg.mxu0
        %2250 = vmatprep.subr.bf16.mxu0 %v2148
        %2251 = vmatpush1.bf16.msra.mxu0 %v2147
        %2252 = vmatprep.subr.bf16.mxu0 %v2152
        %2253 = vmatpush1.bf16.msra.mxu0 %v2151
        %2254 = vmatprep.subr.bf16.mxu0 %v2156
        %2255 = vmatpush1.bf16.msra.mxu0 %v2155
        %2256 = vmatprep.subr.bf16.mxu0 %v2160
        %2257 = vmatpush1.bf16.msra.mxu0 %v2159
        %2258 = vmatprep.subr.bf16.mxu0 %v2164
        %2259 = vmatpush1.bf16.msra.mxu0 %v2163
        %2260 = vmatprep.subr.bf16.mxu0 %v2168
        %2261 = vmatpush1.bf16.msra.mxu0 %v2167
        %2262 = vmatprep.subr.bf16.mxu0 %v2172
        %2263 = vmatpush1.bf16.msra.mxu0 %v2171
        %2264 = vmatprep.subr.bf16.mxu0 %v2176
        %2265 = vmatpush1.bf16.msra.mxu0 %v2175
        %2266 = vmatprep.subr.bf16.mxu0 0
        %2267 = vmatpush1.bf16.msra.mxu0 0
        %2268 = vmatprep.subr.bf16.mxu0 0
        %2269 = vmatpush1.bf16.msra.mxu0 0
        %2270 = vmatprep.subr.bf16.mxu0 0
        %2271 = vmatpush1.bf16.msra.mxu0 0
        %2272 = vmatprep.subr.bf16.mxu0 0
        %2273 = vmatpush1.bf16.msra.mxu0 0
        %2274 = vmatprep.subr.bf16.mxu0 0
        %2275 = vmatpush1.bf16.msra.mxu0 0
        %2276 = vmatprep.subr.bf16.mxu0 0
        %2277 = vmatpush1.bf16.msra.mxu0 0
        %2278 = vmatprep.subr.bf16.mxu0 0
        %2279 = vmatpush1.bf16.msra.mxu0 0
        %2280 = vmatprep.subr.bf16.mxu0 0
        %2281 = vmatpush1.bf16.msra.mxu0 0
        %2282 = vmatprep.mubr.bf16.mxu0 0
        %2283 = vmatmul.mubr.bf16.gmra.mrb[0].mxu0 %v2008
        %v2284 = vpop.f32.mrb[0].mxu0
        %v2285 = vadd.f32 0.0, %v2284
        %v2286 = vpop.f32.mrb[0].mxu0
        %v2287 = vadd.f32 0.0, %v2286
        %v2288 = vpop.f32.mrb[0].mxu0
        %v2289 = vpop.f32.mrb[0].mxu0
        %2290 = vdwg.mxu0
        %v2291 = vadd.f32 %v2013, %v2244
        %v2292 = vadd.f32 %v2014, %v2246
        %v2293 = vadd.f32 %v2015, %v2285
        %v2294 = vadd.f32 %v2016, %v2287
        %v2295 = vxor.u32 %v2291, 2147483648
        %v2296 = vmul.f32 %v2295, 1.442695
        %v2297 = vpow.pop %v2296
        %v2298 = vadd.f32 %v2297, 1.0
        %v2299 = vrcp.pop %v2298
        %v2300 = vmul.f32 1.0, %v2299
        %v2301 = vxor.u32 %v2292, 2147483648
        %v2302 = vmul.f32 %v2301, 1.442695
        %v2303 = vpow.pop %v2302
        %v2304 = vadd.f32 %v2303, 1.0
        %v2305 = vrcp.pop %v2304
        %v2306 = vmul.f32 1.0, %v2305
        %v2307 = vtanh.pop %v2293
        %v2308 = vxor.u32 %v2294, 2147483648
        %v2309 = vmul.f32 %v2308, 1.442695
        %v2310 = vpow.pop %v2309
        %v2311 = vadd.f32 %v2310, 1.0
        %v2312 = vrcp.pop %v2311
        %v2313 = vmul.f32 1.0, %v2312
        %v2314 = vmul.f32 %v2306, %v2009
        %v2315 = vmul.f32 %v2300, %v2307
        %v2316 = vadd.f32 %v2314, %v2315
        %v2317 = vtanh.pop %v2316
        %v2318 = vmul.f32 %v2313, %v2317
        %v2319 = vpack.c.bf16 %v2318, %v2318
        %2320 = vst [vmem:[#allocation2] sm:$0xf] %v2319
        %2321 = vst [vmem:[#allocation3] sm:$0xff] %v2316
        %v2322 = vld [vmem:[#allocation10] sm:$0xff]
        %v2323 = vld [vmem:[#allocation10 + $0x8] sm:$0xff]
        %v2324 = vld [vmem:[#allocation10 + $0x10] sm:$0xff]
        %v2325 = vld [vmem:[#allocation10 + $0x18] sm:$0xff]
        %v2326 = vld [vmem:[#allocation10 + $0x20] sm:$0xff]
        %v2327 = vld [vmem:[#allocation10 + $0x28] sm:$0xff]
        %v2328 = vld [vmem:[#allocation10 + $0x30] sm:$0xff]
        %v2329 = vld [vmem:[#allocation10 + $0x38] sm:$0xff]
        %v2330 = vld [vmem:[#allocation10 + $0x40] sm:$0xff]
        %v2331 = vld [vmem:[#allocation10 + $0x48] sm:$0xff]
        %v2332 = vld [vmem:[#allocation10 + $0x50] sm:$0xff]
        %v2333 = vld [vmem:[#allocation10 + $0x58] sm:$0xff]
        %v2334 = vld [vmem:[#allocation10 + $0x60] sm:$0xff]
        %v2335 = vld [vmem:[#allocation10 + $0x68] sm:$0xff]
        %v2336 = vld [vmem:[#allocation10 + $0x70] sm:$0xff]
        %v2337 = vld [vmem:[#allocation10 + $0x78] sm:$0xff]
        %v2338 = vld [vmem:[#allocation10 + $0x80] sm:$0xff]
        %v2339 = vld [vmem:[#allocation10 + $0x88] sm:$0xff]
        %v2340 = vld [vmem:[#allocation10 + $0x90] sm:$0xff]
        %v2341 = vld [vmem:[#allocation10 + $0x98] sm:$0xff]
        %v2342 = vld [vmem:[#allocation10 + $0xa0] sm:$0xff]
        %v2343 = vld [vmem:[#allocation10 + $0xa8] sm:$0xff]
        %v2344 = vld [vmem:[#allocation10 + $0xb0] sm:$0xff]
        %v2345 = vld [vmem:[#allocation10 + $0xb8] sm:$0xff]
        %v2346 = vld [vmem:[#allocation10 + $0xc0] sm:$0xff]
        %v2347 = vld [vmem:[#allocation10 + $0xc8] sm:$0xff]
        %v2348 = vld [vmem:[#allocation10 + $0xd0] sm:$0xff]
        %v2349 = vld [vmem:[#allocation10 + $0xd8] sm:$0xff]
        %v2350 = vld [vmem:[#allocation10 + $0xe0] sm:$0xff]
        %v2351 = vld [vmem:[#allocation10 + $0xe8] sm:$0xff]
        %v2352 = vld [vmem:[#allocation10 + $0xf0] sm:$0xff]
        %v2353 = vld [vmem:[#allocation10 + $0xf8] sm:$0xff]
        %v2354 = vld [vmem:[%s6] sm:$0xf]
        %v2356 = vlaneseq
        %v2357 = vshrl.u32 %v2356, 7
        %v2358 = vsub.s32 0, %v2357
        %v2359 = vrot.slane %v2354, %v2358
        %v2360 = vlaneseq
        %v2361 = vshrl.u32 %v2360, 7
        %v2362 = vsub.s32 1, %v2361
        %v2363 = vrot.slane %v2354, %v2362
        %v2364 = vlaneseq
        %v2365 = vshrl.u32 %v2364, 7
        %v2366 = vsub.s32 2, %v2365
        %v2367 = vrot.slane %v2354, %v2366
        %v2368 = vlaneseq
        %v2369 = vshrl.u32 %v2368, 7
        %v2370 = vsub.s32 3, %v2369
        %v2371 = vrot.slane %v2354, %v2370
        %v2408 = vunpack.c.l.b16 %v2322
        %v2409 = vunpack.c.h.b16 %v2322
        %v2410 = vunpack.c.l.b16 %v2323
        %v2411 = vunpack.c.h.b16 %v2323
        %v2412 = vunpack.c.l.b16 %v2324
        %v2413 = vunpack.c.h.b16 %v2324
        %v2414 = vunpack.c.l.b16 %v2325
        %v2415 = vunpack.c.h.b16 %v2325
        %v2416 = vunpack.c.l.b16 %v2326
        %v2417 = vunpack.c.h.b16 %v2326
        %v2418 = vunpack.c.l.b16 %v2327
        %v2419 = vunpack.c.h.b16 %v2327
        %v2420 = vunpack.c.l.b16 %v2328
        %v2421 = vunpack.c.h.b16 %v2328
        %v2422 = vunpack.c.l.b16 %v2329
        %v2423 = vunpack.c.h.b16 %v2329
        %v2424 = vunpack.c.l.b16 %v2330
        %v2425 = vunpack.c.h.b16 %v2330
        %v2426 = vunpack.c.l.b16 %v2331
        %v2427 = vunpack.c.h.b16 %v2331
        %v2428 = vunpack.c.l.b16 %v2332
        %v2429 = vunpack.c.h.b16 %v2332
        %v2430 = vunpack.c.l.b16 %v2333
        %v2431 = vunpack.c.h.b16 %v2333
        %v2432 = vunpack.c.l.b16 %v2334
        %v2433 = vunpack.c.h.b16 %v2334
        %v2434 = vunpack.c.l.b16 %v2335
        %v2435 = vunpack.c.h.b16 %v2335
        %v2436 = vunpack.c.l.b16 %v2336
        %v2437 = vunpack.c.h.b16 %v2336
        %v2438 = vunpack.c.l.b16 %v2337
        %v2439 = vunpack.c.h.b16 %v2337
        %v2440 = vunpack.c.l.b16 %v2338
        %v2441 = vunpack.c.h.b16 %v2338
        %v2442 = vunpack.c.l.b16 %v2339
        %v2443 = vunpack.c.h.b16 %v2339
        %v2444 = vunpack.c.l.b16 %v2340
        %v2445 = vunpack.c.h.b16 %v2340
        %v2446 = vunpack.c.l.b16 %v2341
        %v2447 = vunpack.c.h.b16 %v2341
        %v2448 = vunpack.c.l.b16 %v2342
        %v2449 = vunpack.c.h.b16 %v2342
        %v2450 = vunpack.c.l.b16 %v2343
        %v2451 = vunpack.c.h.b16 %v2343
        %v2452 = vunpack.c.l.b16 %v2344
        %v2453 = vunpack.c.h.b16 %v2344
        %v2454 = vunpack.c.l.b16 %v2345
        %v2455 = vunpack.c.h.b16 %v2345
        %v2456 = vunpack.c.l.b16 %v2346
        %v2457 = vunpack.c.h.b16 %v2346
        %v2458 = vunpack.c.l.b16 %v2347
        %v2459 = vunpack.c.h.b16 %v2347
        %v2460 = vunpack.c.l.b16 %v2348
        %v2461 = vunpack.c.h.b16 %v2348
        %v2462 = vunpack.c.l.b16 %v2349
        %v2463 = vunpack.c.h.b16 %v2349
        %v2464 = vunpack.c.l.b16 %v2350
        %v2465 = vunpack.c.h.b16 %v2350
        %v2466 = vunpack.c.l.b16 %v2351
        %v2467 = vunpack.c.h.b16 %v2351
        %v2468 = vunpack.c.l.b16 %v2352
        %v2469 = vunpack.c.h.b16 %v2352
        %v2470 = vunpack.c.l.b16 %v2353
        %v2471 = vunpack.c.h.b16 %v2353
        %v2472 = vpack.c.b16 %v2412, %v2408
        %v2473 = vpack.c.b16 %v2413, %v2409
        %v2474 = vpack.c.b16 %v2414, %v2410
        %v2475 = vpack.c.b16 %v2415, %v2411
        %v2476 = vpack.c.b16 %v2420, %v2416
        %v2477 = vpack.c.b16 %v2421, %v2417
        %v2478 = vpack.c.b16 %v2422, %v2418
        %v2479 = vpack.c.b16 %v2423, %v2419
        %v2480 = vpack.c.b16 %v2428, %v2424
        %v2481 = vpack.c.b16 %v2429, %v2425
        %v2482 = vpack.c.b16 %v2430, %v2426
        %v2483 = vpack.c.b16 %v2431, %v2427
        %v2484 = vpack.c.b16 %v2436, %v2432
        %v2485 = vpack.c.b16 %v2437, %v2433
        %v2486 = vpack.c.b16 %v2438, %v2434
        %v2487 = vpack.c.b16 %v2439, %v2435
        %v2488 = vpack.c.b16 %v2444, %v2440
        %v2489 = vpack.c.b16 %v2445, %v2441
        %v2490 = vpack.c.b16 %v2446, %v2442
        %v2491 = vpack.c.b16 %v2447, %v2443
        %v2492 = vpack.c.b16 %v2452, %v2448
        %v2493 = vpack.c.b16 %v2453, %v2449
        %v2494 = vpack.c.b16 %v2454, %v2450
        %v2495 = vpack.c.b16 %v2455, %v2451
        %v2496 = vpack.c.b16 %v2460, %v2456
        %v2497 = vpack.c.b16 %v2461, %v2457
        %v2498 = vpack.c.b16 %v2462, %v2458
        %v2499 = vpack.c.b16 %v2463, %v2459
        %v2500 = vpack.c.b16 %v2468, %v2464
        %v2501 = vpack.c.b16 %v2469, %v2465
        %v2502 = vpack.c.b16 %v2470, %v2466
        %v2503 = vpack.c.b16 %v2471, %v2467
        %2536 = vmatprep.subr.bf16.mxu0 %v2473
        %2537 = vmatpush1.bf16.msra.mxu0 %v2472
        %2538 = vmatprep.subr.bf16.mxu0 %v2477
        %2539 = vmatpush1.bf16.msra.mxu0 %v2476
        %2540 = vmatprep.subr.bf16.mxu0 %v2481
        %2541 = vmatpush1.bf16.msra.mxu0 %v2480
        %2542 = vmatprep.subr.bf16.mxu0 %v2485
        %2543 = vmatpush1.bf16.msra.mxu0 %v2484
        %2544 = vmatprep.subr.bf16.mxu0 %v2489
        %2545 = vmatpush1.bf16.msra.mxu0 %v2488
        %2546 = vmatprep.subr.bf16.mxu0 %v2493
        %2547 = vmatpush1.bf16.msra.mxu0 %v2492
        %2548 = vmatprep.subr.bf16.mxu0 %v2497
        %2549 = vmatpush1.bf16.msra.mxu0 %v2496
        %2550 = vmatprep.subr.bf16.mxu0 %v2501
        %2551 = vmatpush1.bf16.msra.mxu0 %v2500
        %2552 = vmatprep.subr.bf16.mxu0 0
        %2553 = vmatpush1.bf16.msra.mxu0 0
        %2554 = vmatprep.subr.bf16.mxu0 0
        %2555 = vmatpush1.bf16.msra.mxu0 0
        %2556 = vmatprep.subr.bf16.mxu0 0
        %2557 = vmatpush1.bf16.msra.mxu0 0
        %2558 = vmatprep.subr.bf16.mxu0 0
        %2559 = vmatpush1.bf16.msra.mxu0 0
        %2560 = vmatprep.subr.bf16.mxu0 0
        %2561 = vmatpush1.bf16.msra.mxu0 0
        %2562 = vmatprep.subr.bf16.mxu0 0
        %2563 = vmatpush1.bf16.msra.mxu0 0
        %2564 = vmatprep.subr.bf16.mxu0 0
        %2565 = vmatpush1.bf16.msra.mxu0 0
        %2566 = vmatprep.subr.bf16.mxu0 0
        %2567 = vmatpush1.bf16.msra.mxu0 0
        %2568 = vmatprep.mubr.bf16.mxu0 0
        %2569 = vmatmul.mubr.bf16.gmra.mrb[0].mxu0 %v2319
        %v2570 = vpop.f32.mrb[0].mxu0
        %v2571 = vadd.f32 %v2359, %v2570
        %v2572 = vpop.f32.mrb[0].mxu0
        %v2573 = vadd.f32 %v2363, %v2572
        %v2574 = vpop.f32.mrb[0].mxu0
        %v2575 = vpop.f32.mrb[0].mxu0
        %2576 = vdwg.mxu0
        %2577 = vmatprep.subr.bf16.mxu0 %v2475
        %2578 = vmatpush1.bf16.msra.mxu0 %v2474
        %2579 = vmatprep.subr.bf16.mxu0 %v2479
        %2580 = vmatpush1.bf16.msra.mxu0 %v2478
        %2581 = vmatprep.subr.bf16.mxu0 %v2483
        %2582 = vmatpush1.bf16.msra.mxu0 %v2482
        %2583 = vmatprep.subr.bf16.mxu0 %v2487
        %2584 = vmatpush1.bf16.msra.mxu0 %v2486
        %2585 = vmatprep.subr.bf16.mxu0 %v2491
        %2586 = vmatpush1.bf16.msra.mxu0 %v2490
        %2587 = vmatprep.subr.bf16.mxu0 %v2495
        %2588 = vmatpush1.bf16.msra.mxu0 %v2494
        %2589 = vmatprep.subr.bf16.mxu0 %v2499
        %2590 = vmatpush1.bf16.msra.mxu0 %v2498
        %2591 = vmatprep.subr.bf16.mxu0 %v2503
        %2592 = vmatpush1.bf16.msra.mxu0 %v2502
        %2593 = vmatprep.subr.bf16.mxu0 0
        %2594 = vmatpush1.bf16.msra.mxu0 0
        %2595 = vmatprep.subr.bf16.mxu0 0
        %2596 = vmatpush1.bf16.msra.mxu0 0
        %2597 = vmatprep.subr.bf16.mxu0 0
        %2598 = vmatpush1.bf16.msra.mxu0 0
        %2599 = vmatprep.subr.bf16.mxu0 0
        %2600 = vmatpush1.bf16.msra.mxu0 0
        %2601 = vmatprep.subr.bf16.mxu0 0
        %2602 = vmatpush1.bf16.msra.mxu0 0
        %2603 = vmatprep.subr.bf16.mxu0 0
        %2604 = vmatpush1.bf16.msra.mxu0 0
        %2605 = vmatprep.subr.bf16.mxu0 0
        %2606 = vmatpush1.bf16.msra.mxu0 0
        %2607 = vmatprep.subr.bf16.mxu0 0
        %2608 = vmatpush1.bf16.msra.mxu0 0
        %2609 = vmatprep.mubr.bf16.mxu0 0
        %2610 = vmatmul.mubr.bf16.gmra.mrb[0].mxu0 %v2319
        %v2611 = vpop.f32.mrb[0].mxu0
        %v2612 = vadd.f32 %v2367, %v2611
        %v2613 = vpop.f32.mrb[0].mxu0
        %v2614 = vadd.f32 %v2371, %v2613
        %v2615 = vpop.f32.mrb[0].mxu0
        %v2616 = vpop.f32.mrb[0].mxu0
        %2617 = vdwg.mxu0
        %s2618 = smul.addr %s2010, 8
        %s2619 = scalar_lea.vmem [#allocation5], %s2618
        %2620 = vst [vmem:[%s2619] sm:$0xff] %v2571
        %2621 = vst [vmem:[%s2619 + $0x8] sm:$0xff] %v2573
        %2622 = vst [vmem:[%s2619 + $0x10] sm:$0xff] %v2612
        %2623 = vst [vmem:[%s2619 + $0x18] sm:$0xff] %v2614
        %v2624 = vld [vmem:[#allocation2] sm:$0xf]
        %v2625 = vld [vmem:[#allocation3] sm:$0xff]
        %s2626 = smul.u32 3, 4
        %s2627 = smul.addr %s2626, 8
        %s2628 = scalar_lea.vmem [#allocation4], %s2627
        %v2629 = vld [vmem:[%s2628] sm:$0xff]
        %v2630 = vld [vmem:[%s2628 + $0x8] sm:$0xff]
        %v2631 = vld [vmem:[%s2628 + $0x10] sm:$0xff]
        %v2632 = vld [vmem:[%s2628 + $0x18] sm:$0xff]
        %v2633 = vld [vmem:[#allocation8] sm:$0xff]
        %v2634 = vld [vmem:[#allocation8 + $0x8] sm:$0xff]
        %v2635 = vld [vmem:[#allocation8 + $0x10] sm:$0xff]
        %v2636 = vld [vmem:[#allocation8 + $0x18] sm:$0xff]
        %v2637 = vld [vmem:[#allocation8 + $0x20] sm:$0xff]
        %v2638 = vld [vmem:[#allocation8 + $0x28] sm:$0xff]
        %v2639 = vld [vmem:[#allocation8 + $0x30] sm:$0xff]
        %v2640 = vld [vmem:[#allocation8 + $0x38] sm:$0xff]
        %v2641 = vld [vmem:[#allocation8 + $0x40] sm:$0xff]
        %v2642 = vld [vmem:[#allocation8 + $0x48] sm:$0xff]
        %v2643 = vld [vmem:[#allocation8 + $0x50] sm:$0xff]
        %v2644 = vld [vmem:[#allocation8 + $0x58] sm:$0xff]
        %v2645 = vld [vmem:[#allocation8 + $0x60] sm:$0xff]
        %v2646 = vld [vmem:[#allocation8 + $0x68] sm:$0xff]
        %v2647 = vld [vmem:[#allocation8 + $0x70] sm:$0xff]
        %v2648 = vld [vmem:[#allocation8 + $0x78] sm:$0xff]
        %v2649 = vld [vmem:[#allocation8 + $0x80] sm:$0xff]
        %v2650 = vld [vmem:[#allocation8 + $0x88] sm:$0xff]
        %v2651 = vld [vmem:[#allocation8 + $0x90] sm:$0xff]
        %v2652 = vld [vmem:[#allocation8 + $0x98] sm:$0xff]
        %v2653 = vld [vmem:[#allocation8 + $0xa0] sm:$0xff]
        %v2654 = vld [vmem:[#allocation8 + $0xa8] sm:$0xff]
        %v2655 = vld [vmem:[#allocation8 + $0xb0] sm:$0xff]
        %v2656 = vld [vmem:[#allocation8 + $0xb8] sm:$0xff]
        %v2657 = vld [vmem:[#allocation8 + $0xc0] sm:$0xff]
        %v2658 = vld [vmem:[#allocation8 + $0xc8] sm:$0xff]
        %v2659 = vld [vmem:[#allocation8 + $0xd0] sm:$0xff]
        %v2660 = vld [vmem:[#allocation8 + $0xd8] sm:$0xff]
        %v2661 = vld [vmem:[#allocation8 + $0xe0] sm:$0xff]
        %v2662 = vld [vmem:[#allocation8 + $0xe8] sm:$0xff]
        %v2663 = vld [vmem:[#allocation8 + $0xf0] sm:$0xff]
        %v2664 = vld [vmem:[#allocation8 + $0xf8] sm:$0xff]
        %v2697 = vunpack.c.l.b16 %v2633
        %v2698 = vunpack.c.h.b16 %v2633
        %v2699 = vunpack.c.l.b16 %v2634
        %v2700 = vunpack.c.h.b16 %v2634
        %v2701 = vunpack.c.l.b16 %v2635
        %v2702 = vunpack.c.h.b16 %v2635
        %v2703 = vunpack.c.l.b16 %v2636
        %v2704 = vunpack.c.h.b16 %v2636
        %v2705 = vunpack.c.l.b16 %v2637
        %v2706 = vunpack.c.h.b16 %v2637
        %v2707 = vunpack.c.l.b16 %v2638
        %v2708 = vunpack.c.h.b16 %v2638
        %v2709 = vunpack.c.l.b16 %v2639
        %v2710 = vunpack.c.h.b16 %v2639
        %v2711 = vunpack.c.l.b16 %v2640
        %v2712 = vunpack.c.h.b16 %v2640
        %v2713 = vunpack.c.l.b16 %v2641
        %v2714 = vunpack.c.h.b16 %v2641
        %v2715 = vunpack.c.l.b16 %v2642
        %v2716 = vunpack.c.h.b16 %v2642
        %v2717 = vunpack.c.l.b16 %v2643
        %v2718 = vunpack.c.h.b16 %v2643
        %v2719 = vunpack.c.l.b16 %v2644
        %v2720 = vunpack.c.h.b16 %v2644
        %v2721 = vunpack.c.l.b16 %v2645
        %v2722 = vunpack.c.h.b16 %v2645
        %v2723 = vunpack.c.l.b16 %v2646
        %v2724 = vunpack.c.h.b16 %v2646
        %v2725 = vunpack.c.l.b16 %v2647
        %v2726 = vunpack.c.h.b16 %v2647
        %v2727 = vunpack.c.l.b16 %v2648
        %v2728 = vunpack.c.h.b16 %v2648
        %v2729 = vunpack.c.l.b16 %v2649
        %v2730 = vunpack.c.h.b16 %v2649
        %v2731 = vunpack.c.l.b16 %v2650
        %v2732 = vunpack.c.h.b16 %v2650
        %v2733 = vunpack.c.l.b16 %v2651
        %v2734 = vunpack.c.h.b16 %v2651
        %v2735 = vunpack.c.l.b16 %v2652
        %v2736 = vunpack.c.h.b16 %v2652
        %v2737 = vunpack.c.l.b16 %v2653
        %v2738 = vunpack.c.h.b16 %v2653
        %v2739 = vunpack.c.l.b16 %v2654
        %v2740 = vunpack.c.h.b16 %v2654
        %v2741 = vunpack.c.l.b16 %v2655
        %v2742 = vunpack.c.h.b16 %v2655
        %v2743 = vunpack.c.l.b16 %v2656
        %v2744 = vunpack.c.h.b16 %v2656
        %v2745 = vunpack.c.l.b16 %v2657
        %v2746 = vunpack.c.h.b16 %v2657
        %v2747 = vunpack.c.l.b16 %v2658
        %v2748 = vunpack.c.h.b16 %v2658
        %v2749 = vunpack.c.l.b16 %v2659
        %v2750 = vunpack.c.h.b16 %v2659
        %v2751 = vunpack.c.l.b16 %v2660
        %v2752 = vunpack.c.h.b16 %v2660
        %v2753 = vunpack.c.l.b16 %v2661
        %v2754 = vunpack.c.h.b16 %v2661
        %v2755 = vunpack.c.l.b16 %v2662
        %v2756 = vunpack.c.h.b16 %v2662
        %v2757 = vunpack.c.l.b16 %v2663
        %v2758 = vunpack.c.h.b16 %v2663
        %v2759 = vunpack.c.l.b16 %v2664
        %v2760 = vunpack.c.h.b16 %v2664
        %v2761 = vpack.c.b16 %v2701, %v2697
        %v2762 = vpack.c.b16 %v2702, %v2698
        %v2763 = vpack.c.b16 %v2703, %v2699
        %v2764 = vpack.c.b16 %v2704, %v2700
        %v2765 = vpack.c.b16 %v2709, %v2705
        %v2766 = vpack.c.b16 %v2710, %v2706
        %v2767 = vpack.c.b16 %v2711, %v2707
        %v2768 = vpack.c.b16 %v2712, %v2708
        %v2769 = vpack.c.b16 %v2717, %v2713
        %v2770 = vpack.c.b16 %v2718, %v2714
        %v2771 = vpack.c.b16 %v2719, %v2715
        %v2772 = vpack.c.b16 %v2720, %v2716
        %v2773 = vpack.c.b16 %v2725, %v2721
        %v2774 = vpack.c.b16 %v2726, %v2722
        %v2775 = vpack.c.b16 %v2727, %v2723
        %v2776 = vpack.c.b16 %v2728, %v2724
        %v2777 = vpack.c.b16 %v2733, %v2729
        %v2778 = vpack.c.b16 %v2734, %v2730
        %v2779 = vpack.c.b16 %v2735, %v2731
        %v2780 = vpack.c.b16 %v2736, %v2732
        %v2781 = vpack.c.b16 %v2741, %v2737
        %v2782 = vpack.c.b16 %v2742, %v2738
        %v2783 = vpack.c.b16 %v2743, %v2739
        %v2784 = vpack.c.b16 %v2744, %v2740
        %v2785 = vpack.c.b16 %v2749, %v2745
        %v2786 = vpack.c.b16 %v2750, %v2746
        %v2787 = vpack.c.b16 %v2751, %v2747
        %v2788 = vpack.c.b16 %v2752, %v2748
        %v2789 = vpack.c.b16 %v2757, %v2753
        %v2790 = vpack.c.b16 %v2758, %v2754
        %v2791 = vpack.c.b16 %v2759, %v2755
        %v2792 = vpack.c.b16 %v2760, %v2756
        %2825 = vmatprep.subr.bf16.mxu0 %v2762
        %2826 = vmatpush1.bf16.msra.mxu0 %v2761
        %2827 = vmatprep.subr.bf16.mxu0 %v2766
        %2828 = vmatpush1.bf16.msra.mxu0 %v2765
        %2829 = vmatprep.subr.bf16.mxu0 %v2770
        %2830 = vmatpush1.bf16.msra.mxu0 %v2769
        %2831 = vmatprep.subr.bf16.mxu0 %v2774
        %2832 = vmatpush1.bf16.msra.mxu0 %v2773
        %2833 = vmatprep.subr.bf16.mxu0 %v2778
        %2834 = vmatpush1.bf16.msra.mxu0 %v2777
        %2835 = vmatprep.subr.bf16.mxu0 %v2782
        %2836 = vmatpush1.bf16.msra.mxu0 %v2781
        %2837 = vmatprep.subr.bf16.mxu0 %v2786
        %2838 = vmatpush1.bf16.msra.mxu0 %v2785
        %2839 = vmatprep.subr.bf16.mxu0 %v2790
        %2840 = vmatpush1.bf16.msra.mxu0 %v2789
        %2841 = vmatprep.subr.bf16.mxu0 0
        %2842 = vmatpush1.bf16.msra.mxu0 0
        %2843 = vmatprep.subr.bf16.mxu0 0
        %2844 = vmatpush1.bf16.msra.mxu0 0
        %2845 = vmatprep.subr.bf16.mxu0 0
        %2846 = vmatpush1.bf16.msra.mxu0 0
        %2847 = vmatprep.subr.bf16.mxu0 0
        %2848 = vmatpush1.bf16.msra.mxu0 0
        %2849 = vmatprep.subr.bf16.mxu0 0
        %2850 = vmatpush1.bf16.msra.mxu0 0
        %2851 = vmatprep.subr.bf16.mxu0 0
        %2852 = vmatpush1.bf16.msra.mxu0 0
        %2853 = vmatprep.subr.bf16.mxu0 0
        %2854 = vmatpush1.bf16.msra.mxu0 0
        %2855 = vmatprep.subr.bf16.mxu0 0
        %2856 = vmatpush1.bf16.msra.mxu0 0
        %2857 = vmatprep.mubr.bf16.mxu0 0
        %2858 = vmatmul.mubr.bf16.gmra.mrb[0].mxu0 %v2624
        %v2859 = vpop.f32.mrb[0].mxu0
        %v2860 = vadd.f32 0.0, %v2859
        %v2861 = vpop.f32.mrb[0].mxu0
        %v2862 = vadd.f32 0.0, %v2861
        %v2863 = vpop.f32.mrb[0].mxu0
        %v2864 = vpop.f32.mrb[0].mxu0
        %2865 = vdwg.mxu0
        %2866 = vmatprep.subr.bf16.mxu0 %v2764
        %2867 = vmatpush1.bf16.msra.mxu0 %v2763
        %2868 = vmatprep.subr.bf16.mxu0 %v2768
        %2869 = vmatpush1.bf16.msra.mxu0 %v2767
        %2870 = vmatprep.subr.bf16.mxu0 %v2772
        %2871 = vmatpush1.bf16.msra.mxu0 %v2771
        %2872 = vmatprep.subr.bf16.mxu0 %v2776
        %2873 = vmatpush1.bf16.msra.mxu0 %v2775
        %2874 = vmatprep.subr.bf16.mxu0 %v2780
        %2875 = vmatpush1.bf16.msra.mxu0 %v2779
        %2876 = vmatprep.subr.bf16.mxu0 %v2784
        %2877 = vmatpush1.bf16.msra.mxu0 %v2783
        %2878 = vmatprep.subr.bf16.mxu0 %v2788
        %2879 = vmatpush1.bf16.msra.mxu0 %v2787
        %2880 = vmatprep.subr.bf16.mxu0 %v2792
        %2881 = vmatpush1.bf16.msra.mxu0 %v2791
        %2882 = vmatprep.subr.bf16.mxu0 0
        %2883 = vmatpush1.bf16.msra.mxu0 0
        %2884 = vmatprep.subr.bf16.mxu0 0
        %2885 = vmatpush1.bf16.msra.mxu0 0
        %2886 = vmatprep.subr.bf16.mxu0 0
        %2887 = vmatpush1.bf16.msra.mxu0 0
        %2888 = vmatprep.subr.bf16.mxu0 0
        %2889 = vmatpush1.bf16.msra.mxu0 0
        %2890 = vmatprep.subr.bf16.mxu0 0
        %2891 = vmatpush1.bf16.msra.mxu0 0
        %2892 = vmatprep.subr.bf16.mxu0 0
        %2893 = vmatpush1.bf16.msra.mxu0 0
        %2894 = vmatprep.subr.bf16.mxu0 0
        %2895 = vmatpush1.bf16.msra.mxu0 0
        %2896 = vmatprep.subr.bf16.mxu0 0
        %2897 = vmatpush1.bf16.msra.mxu0 0
        %2898 = vmatprep.mubr.bf16.mxu0 0
        %2899 = vmatmul.mubr.bf16.gmra.mrb[0].mxu0 %v2624
        %v2900 = vpop.f32.mrb[0].mxu0
        %v2901 = vadd.f32 0.0, %v2900
        %v2902 = vpop.f32.mrb[0].mxu0
        %v2903 = vadd.f32 0.0, %v2902
        %v2904 = vpop.f32.mrb[0].mxu0
        %v2905 = vpop.f32.mrb[0].mxu0
        %2906 = vdwg.mxu0
        %v2907 = vadd.f32 %v2629, %v2860
        %v2908 = vadd.f32 %v2630, %v2862
        %v2909 = vadd.f32 %v2631, %v2901
        %v2910 = vadd.f32 %v2632, %v2903
        %v2911 = vxor.u32 %v2907, 2147483648
        %v2912 = vmul.f32 %v2911, 1.442695
        %v2913 = vpow.pop %v2912
        %v2914 = vadd.f32 %v2913, 1.0
        %v2915 = vrcp.pop %v2914
        %v2916 = vmul.f32 1.0, %v2915
        %v2917 = vxor.u32 %v2908, 2147483648
        %v2918 = vmul.f32 %v2917, 1.442695
        %v2919 = vpow.pop %v2918
        %v2920 = vadd.f32 %v2919, 1.0
        %v2921 = vrcp.pop %v2920
        %v2922 = vmul.f32 1.0, %v2921
        %v2923 = vtanh.pop %v2909
        %v2924 = vxor.u32 %v2910, 2147483648
        %v2925 = vmul.f32 %v2924, 1.442695
        %v2926 = vpow.pop %v2925
        %v2927 = vadd.f32 %v2926, 1.0
        %v2928 = vrcp.pop %v2927
        %v2929 = vmul.f32 1.0, %v2928
        %v2930 = vmul.f32 %v2922, %v2625
        %v2931 = vmul.f32 %v2916, %v2923
        %v2932 = vadd.f32 %v2930, %v2931
        %v2933 = vtanh.pop %v2932
        %v2934 = vmul.f32 %v2929, %v2933
        %v2935 = vpack.c.bf16 %v2934, %v2934
        %2936 = vst [vmem:[#allocation2] sm:$0xf] %v2935
        %2937 = vst [vmem:[#allocation3] sm:$0xff] %v2932
        %v2938 = vld [vmem:[#allocation10] sm:$0xff]
        %v2939 = vld [vmem:[#allocation10 + $0x8] sm:$0xff]
        %v2940 = vld [vmem:[#allocation10 + $0x10] sm:$0xff]
        %v2941 = vld [vmem:[#allocation10 + $0x18] sm:$0xff]
        %v2942 = vld [vmem:[#allocation10 + $0x20] sm:$0xff]
        %v2943 = vld [vmem:[#allocation10 + $0x28] sm:$0xff]
        %v2944 = vld [vmem:[#allocation10 + $0x30] sm:$0xff]
        %v2945 = vld [vmem:[#allocation10 + $0x38] sm:$0xff]
        %v2946 = vld [vmem:[#allocation10 + $0x40] sm:$0xff]
        %v2947 = vld [vmem:[#allocation10 + $0x48] sm:$0xff]
        %v2948 = vld [vmem:[#allocation10 + $0x50] sm:$0xff]
        %v2949 = vld [vmem:[#allocation10 + $0x58] sm:$0xff]
        %v2950 = vld [vmem:[#allocation10 + $0x60] sm:$0xff]
        %v2951 = vld [vmem:[#allocation10 + $0x68] sm:$0xff]
        %v2952 = vld [vmem:[#allocation10 + $0x70] sm:$0xff]
        %v2953 = vld [vmem:[#allocation10 + $0x78] sm:$0xff]
        %v2954 = vld [vmem:[#allocation10 + $0x80] sm:$0xff]
        %v2955 = vld [vmem:[#allocation10 + $0x88] sm:$0xff]
        %v2956 = vld [vmem:[#allocation10 + $0x90] sm:$0xff]
        %v2957 = vld [vmem:[#allocation10 + $0x98] sm:$0xff]
        %v2958 = vld [vmem:[#allocation10 + $0xa0] sm:$0xff]
        %v2959 = vld [vmem:[#allocation10 + $0xa8] sm:$0xff]
        %v2960 = vld [vmem:[#allocation10 + $0xb0] sm:$0xff]
        %v2961 = vld [vmem:[#allocation10 + $0xb8] sm:$0xff]
        %v2962 = vld [vmem:[#allocation10 + $0xc0] sm:$0xff]
        %v2963 = vld [vmem:[#allocation10 + $0xc8] sm:$0xff]
        %v2964 = vld [vmem:[#allocation10 + $0xd0] sm:$0xff]
        %v2965 = vld [vmem:[#allocation10 + $0xd8] sm:$0xff]
        %v2966 = vld [vmem:[#allocation10 + $0xe0] sm:$0xff]
        %v2967 = vld [vmem:[#allocation10 + $0xe8] sm:$0xff]
        %v2968 = vld [vmem:[#allocation10 + $0xf0] sm:$0xff]
        %v2969 = vld [vmem:[#allocation10 + $0xf8] sm:$0xff]
        %v2970 = vld [vmem:[%s6] sm:$0xf]
        %v2972 = vlaneseq
        %v2973 = vshrl.u32 %v2972, 7
        %v2974 = vsub.s32 0, %v2973
        %v2975 = vrot.slane %v2970, %v2974
        %v2976 = vlaneseq
        %v2977 = vshrl.u32 %v2976, 7
        %v2978 = vsub.s32 1, %v2977
        %v2979 = vrot.slane %v2970, %v2978
        %v2980 = vlaneseq
        %v2981 = vshrl.u32 %v2980, 7
        %v2982 = vsub.s32 2, %v2981
        %v2983 = vrot.slane %v2970, %v2982
        %v2984 = vlaneseq
        %v2985 = vshrl.u32 %v2984, 7
        %v2986 = vsub.s32 3, %v2985
        %v2987 = vrot.slane %v2970, %v2986
        %v3024 = vunpack.c.l.b16 %v2938
        %v3025 = vunpack.c.h.b16 %v2938
        %v3026 = vunpack.c.l.b16 %v2939
        %v3027 = vunpack.c.h.b16 %v2939
        %v3028 = vunpack.c.l.b16 %v2940
        %v3029 = vunpack.c.h.b16 %v2940
        %v3030 = vunpack.c.l.b16 %v2941
        %v3031 = vunpack.c.h.b16 %v2941
        %v3032 = vunpack.c.l.b16 %v2942
        %v3033 = vunpack.c.h.b16 %v2942
        %v3034 = vunpack.c.l.b16 %v2943
        %v3035 = vunpack.c.h.b16 %v2943
        %v3036 = vunpack.c.l.b16 %v2944
        %v3037 = vunpack.c.h.b16 %v2944
        %v3038 = vunpack.c.l.b16 %v2945
        %v3039 = vunpack.c.h.b16 %v2945
        %v3040 = vunpack.c.l.b16 %v2946
        %v3041 = vunpack.c.h.b16 %v2946
        %v3042 = vunpack.c.l.b16 %v2947
        %v3043 = vunpack.c.h.b16 %v2947
        %v3044 = vunpack.c.l.b16 %v2948
        %v3045 = vunpack.c.h.b16 %v2948
        %v3046 = vunpack.c.l.b16 %v2949
        %v3047 = vunpack.c.h.b16 %v2949
        %v3048 = vunpack.c.l.b16 %v2950
        %v3049 = vunpack.c.h.b16 %v2950
        %v3050 = vunpack.c.l.b16 %v2951
        %v3051 = vunpack.c.h.b16 %v2951
        %v3052 = vunpack.c.l.b16 %v2952
        %v3053 = vunpack.c.h.b16 %v2952
        %v3054 = vunpack.c.l.b16 %v2953
        %v3055 = vunpack.c.h.b16 %v2953
        %v3056 = vunpack.c.l.b16 %v2954
        %v3057 = vunpack.c.h.b16 %v2954
        %v3058 = vunpack.c.l.b16 %v2955
        %v3059 = vunpack.c.h.b16 %v2955
        %v3060 = vunpack.c.l.b16 %v2956
        %v3061 = vunpack.c.h.b16 %v2956
        %v3062 = vunpack.c.l.b16 %v2957
        %v3063 = vunpack.c.h.b16 %v2957
        %v3064 = vunpack.c.l.b16 %v2958
        %v3065 = vunpack.c.h.b16 %v2958
        %v3066 = vunpack.c.l.b16 %v2959
        %v3067 = vunpack.c.h.b16 %v2959
        %v3068 = vunpack.c.l.b16 %v2960
        %v3069 = vunpack.c.h.b16 %v2960
        %v3070 = vunpack.c.l.b16 %v2961
        %v3071 = vunpack.c.h.b16 %v2961
        %v3072 = vunpack.c.l.b16 %v2962
        %v3073 = vunpack.c.h.b16 %v2962
        %v3074 = vunpack.c.l.b16 %v2963
        %v3075 = vunpack.c.h.b16 %v2963
        %v3076 = vunpack.c.l.b16 %v2964
        %v3077 = vunpack.c.h.b16 %v2964
        %v3078 = vunpack.c.l.b16 %v2965
        %v3079 = vunpack.c.h.b16 %v2965
        %v3080 = vunpack.c.l.b16 %v2966
        %v3081 = vunpack.c.h.b16 %v2966
        %v3082 = vunpack.c.l.b16 %v2967
        %v3083 = vunpack.c.h.b16 %v2967
        %v3084 = vunpack.c.l.b16 %v2968
        %v3085 = vunpack.c.h.b16 %v2968
        %v3086 = vunpack.c.l.b16 %v2969
        %v3087 = vunpack.c.h.b16 %v2969
        %v3088 = vpack.c.b16 %v3028, %v3024
        %v3089 = vpack.c.b16 %v3029, %v3025
        %v3090 = vpack.c.b16 %v3030, %v3026
        %v3091 = vpack.c.b16 %v3031, %v3027
        %v3092 = vpack.c.b16 %v3036, %v3032
        %v3093 = vpack.c.b16 %v3037, %v3033
        %v3094 = vpack.c.b16 %v3038, %v3034
        %v3095 = vpack.c.b16 %v3039, %v3035
        %v3096 = vpack.c.b16 %v3044, %v3040
        %v3097 = vpack.c.b16 %v3045, %v3041
        %v3098 = vpack.c.b16 %v3046, %v3042
        %v3099 = vpack.c.b16 %v3047, %v3043
        %v3100 = vpack.c.b16 %v3052, %v3048
        %v3101 = vpack.c.b16 %v3053, %v3049
        %v3102 = vpack.c.b16 %v3054, %v3050
        %v3103 = vpack.c.b16 %v3055, %v3051
        %v3104 = vpack.c.b16 %v3060, %v3056
        %v3105 = vpack.c.b16 %v3061, %v3057
        %v3106 = vpack.c.b16 %v3062, %v3058
        %v3107 = vpack.c.b16 %v3063, %v3059
        %v3108 = vpack.c.b16 %v3068, %v3064
        %v3109 = vpack.c.b16 %v3069, %v3065
        %v3110 = vpack.c.b16 %v3070, %v3066
        %v3111 = vpack.c.b16 %v3071, %v3067
        %v3112 = vpack.c.b16 %v3076, %v3072
        %v3113 = vpack.c.b16 %v3077, %v3073
        %v3114 = vpack.c.b16 %v3078, %v3074
        %v3115 = vpack.c.b16 %v3079, %v3075
        %v3116 = vpack.c.b16 %v3084, %v3080
        %v3117 = vpack.c.b16 %v3085, %v3081
        %v3118 = vpack.c.b16 %v3086, %v3082
        %v3119 = vpack.c.b16 %v3087, %v3083
        %3152 = vmatprep.subr.bf16.mxu0 %v3089
        %3153 = vmatpush1.bf16.msra.mxu0 %v3088
        %3154 = vmatprep.subr.bf16.mxu0 %v3093
        %3155 = vmatpush1.bf16.msra.mxu0 %v3092
        %3156 = vmatprep.subr.bf16.mxu0 %v3097
        %3157 = vmatpush1.bf16.msra.mxu0 %v3096
        %3158 = vmatprep.subr.bf16.mxu0 %v3101
        %3159 = vmatpush1.bf16.msra.mxu0 %v3100
        %3160 = vmatprep.subr.bf16.mxu0 %v3105
        %3161 = vmatpush1.bf16.msra.mxu0 %v3104
        %3162 = vmatprep.subr.bf16.mxu0 %v3109
        %3163 = vmatpush1.bf16.msra.mxu0 %v3108
        %3164 = vmatprep.subr.bf16.mxu0 %v3113
        %3165 = vmatpush1.bf16.msra.mxu0 %v3112
        %3166 = vmatprep.subr.bf16.mxu0 %v3117
        %3167 = vmatpush1.bf16.msra.mxu0 %v3116
        %3168 = vmatprep.subr.bf16.mxu0 0
        %3169 = vmatpush1.bf16.msra.mxu0 0
        %3170 = vmatprep.subr.bf16.mxu0 0
        %3171 = vmatpush1.bf16.msra.mxu0 0
        %3172 = vmatprep.subr.bf16.mxu0 0
        %3173 = vmatpush1.bf16.msra.mxu0 0
        %3174 = vmatprep.subr.bf16.mxu0 0
        %3175 = vmatpush1.bf16.msra.mxu0 0
        %3176 = vmatprep.subr.bf16.mxu0 0
        %3177 = vmatpush1.bf16.msra.mxu0 0
        %3178 = vmatprep.subr.bf16.mxu0 0
        %3179 = vmatpush1.bf16.msra.mxu0 0
        %3180 = vmatprep.subr.bf16.mxu0 0
        %3181 = vmatpush1.bf16.msra.mxu0 0
        %3182 = vmatprep.subr.bf16.mxu0 0
        %3183 = vmatpush1.bf16.msra.mxu0 0
        %3184 = vmatprep.mubr.bf16.mxu0 0
        %3185 = vmatmul.mubr.bf16.gmra.mrb[0].mxu0 %v2935
        %v3186 = vpop.f32.mrb[0].mxu0
        %v3187 = vadd.f32 %v2975, %v3186
        %v3188 = vpop.f32.mrb[0].mxu0
        %v3189 = vadd.f32 %v2979, %v3188
        %v3190 = vpop.f32.mrb[0].mxu0
        %v3191 = vpop.f32.mrb[0].mxu0
        %3192 = vdwg.mxu0
        %3193 = vmatprep.subr.bf16.mxu0 %v3091
        %3194 = vmatpush1.bf16.msra.mxu0 %v3090
        %3195 = vmatprep.subr.bf16.mxu0 %v3095
        %3196 = vmatpush1.bf16.msra.mxu0 %v3094
        %3197 = vmatprep.subr.bf16.mxu0 %v3099
        %3198 = vmatpush1.bf16.msra.mxu0 %v3098
        %3199 = vmatprep.subr.bf16.mxu0 %v3103
        %3200 = vmatpush1.bf16.msra.mxu0 %v3102
        %3201 = vmatprep.subr.bf16.mxu0 %v3107
        %3202 = vmatpush1.bf16.msra.mxu0 %v3106
        %3203 = vmatprep.subr.bf16.mxu0 %v3111
        %3204 = vmatpush1.bf16.msra.mxu0 %v3110
        %3205 = vmatprep.subr.bf16.mxu0 %v3115
        %3206 = vmatpush1.bf16.msra.mxu0 %v3114
        %3207 = vmatprep.subr.bf16.mxu0 %v3119
        %3208 = vmatpush1.bf16.msra.mxu0 %v3118
        %3209 = vmatprep.subr.bf16.mxu0 0
        %3210 = vmatpush1.bf16.msra.mxu0 0
        %3211 = vmatprep.subr.bf16.mxu0 0
        %3212 = vmatpush1.bf16.msra.mxu0 0
        %3213 = vmatprep.subr.bf16.mxu0 0
        %3214 = vmatpush1.bf16.msra.mxu0 0
        %3215 = vmatprep.subr.bf16.mxu0 0
        %3216 = vmatpush1.bf16.msra.mxu0 0
        %3217 = vmatprep.subr.bf16.mxu0 0
        %3218 = vmatpush1.bf16.msra.mxu0 0
        %3219 = vmatprep.subr.bf16.mxu0 0
        %3220 = vmatpush1.bf16.msra.mxu0 0
        %3221 = vmatprep.subr.bf16.mxu0 0
        %3222 = vmatpush1.bf16.msra.mxu0 0
        %3223 = vmatprep.subr.bf16.mxu0 0
        %3224 = vmatpush1.bf16.msra.mxu0 0
        %3225 = vmatprep.mubr.bf16.mxu0 0
        %3226 = vmatmul.mubr.bf16.gmra.mrb[0].mxu0 %v2935
        %v3227 = vpop.f32.mrb[0].mxu0
        %v3228 = vadd.f32 %v2983, %v3227
        %v3229 = vpop.f32.mrb[0].mxu0
        %v3230 = vadd.f32 %v2987, %v3229
        %v3231 = vpop.f32.mrb[0].mxu0
        %v3232 = vpop.f32.mrb[0].mxu0
        %3233 = vdwg.mxu0
        %s3234 = smul.addr %s2626, 8
        %s3235 = scalar_lea.vmem [#allocation5], %s3234
        %3236 = vst [vmem:[%s3235] sm:$0xff] %v3187
        %3237 = vst [vmem:[%s3235 + $0x8] sm:$0xff] %v3189
        %3238 = vst [vmem:[%s3235 + $0x10] sm:$0xff] %v3228
        %3239 = vst [vmem:[%s3235 + $0x18] sm:$0xff] %v3230
        %s3240 = scalar_lea.vmem [#allocation2], 4
        %v3241 = vld [vmem:[%s3240] sm:$0xf]
        %s3242 = scalar_lea.vmem [#allocation3], 8
        %v3243 = vld [vmem:[%s3242] sm:$0xff]
        %v3244 = vld [vmem:[%s1387] sm:$0xff]
        %v3245 = vld [vmem:[%s1387 + $0x8] sm:$0xff]
        %v3246 = vld [vmem:[%s1387 + $0x10] sm:$0xff]
        %v3247 = vld [vmem:[%s1387 + $0x18] sm:$0xff]
        %v3248 = vld [vmem:[#allocation11] sm:$0xff]
        %v3249 = vld [vmem:[#allocation11 + $0x8] sm:$0xff]
        %v3250 = vld [vmem:[#allocation11 + $0x10] sm:$0xff]
        %v3251 = vld [vmem:[#allocation11 + $0x18] sm:$0xff]
        %v3252 = vld [vmem:[#allocation11 + $0x20] sm:$0xff]
        %v3253 = vld [vmem:[#allocation11 + $0x28] sm:$0xff]
        %v3254 = vld [vmem:[#allocation11 + $0x30] sm:$0xff]
        %v3255 = vld [vmem:[#allocation11 + $0x38] sm:$0xff]
        %v3256 = vld [vmem:[#allocation11 + $0x40] sm:$0xff]
        %v3257 = vld [vmem:[#allocation11 + $0x48] sm:$0xff]
        %v3258 = vld [vmem:[#allocation11 + $0x50] sm:$0xff]
        %v3259 = vld [vmem:[#allocation11 + $0x58] sm:$0xff]
        %v3260 = vld [vmem:[#allocation11 + $0x60] sm:$0xff]
        %v3261 = vld [vmem:[#allocation11 + $0x68] sm:$0xff]
        %v3262 = vld [vmem:[#allocation11 + $0x70] sm:$0xff]
        %v3263 = vld [vmem:[#allocation11 + $0x78] sm:$0xff]
        %v3264 = vld [vmem:[#allocation11 + $0x80] sm:$0xff]
        %v3265 = vld [vmem:[#allocation11 + $0x88] sm:$0xff]
        %v3266 = vld [vmem:[#allocation11 + $0x90] sm:$0xff]
        %v3267 = vld [vmem:[#allocation11 + $0x98] sm:$0xff]
        %v3268 = vld [vmem:[#allocation11 + $0xa0] sm:$0xff]
        %v3269 = vld [vmem:[#allocation11 + $0xa8] sm:$0xff]
        %v3270 = vld [vmem:[#allocation11 + $0xb0] sm:$0xff]
        %v3271 = vld [vmem:[#allocation11 + $0xb8] sm:$0xff]
        %v3272 = vld [vmem:[#allocation11 + $0xc0] sm:$0xff]
        %v3273 = vld [vmem:[#allocation11 + $0xc8] sm:$0xff]
        %v3274 = vld [vmem:[#allocation11 + $0xd0] sm:$0xff]
        %v3275 = vld [vmem:[#allocation11 + $0xd8] sm:$0xff]
        %v3276 = vld [vmem:[#allocation11 + $0xe0] sm:$0xff]
        %v3277 = vld [vmem:[#allocation11 + $0xe8] sm:$0xff]
        %v3278 = vld [vmem:[#allocation11 + $0xf0] sm:$0xff]
        %v3279 = vld [vmem:[#allocation11 + $0xf8] sm:$0xff]
        %v3312 = vunpack.c.l.b16 %v3248
        %v3313 = vunpack.c.h.b16 %v3248
        %v3314 = vunpack.c.l.b16 %v3249
        %v3315 = vunpack.c.h.b16 %v3249
        %v3316 = vunpack.c.l.b16 %v3250
        %v3317 = vunpack.c.h.b16 %v3250
        %v3318 = vunpack.c.l.b16 %v3251
        %v3319 = vunpack.c.h.b16 %v3251
        %v3320 = vunpack.c.l.b16 %v3252
        %v3321 = vunpack.c.h.b16 %v3252
        %v3322 = vunpack.c.l.b16 %v3253
        %v3323 = vunpack.c.h.b16 %v3253
        %v3324 = vunpack.c.l.b16 %v3254
        %v3325 = vunpack.c.h.b16 %v3254
        %v3326 = vunpack.c.l.b16 %v3255
        %v3327 = vunpack.c.h.b16 %v3255
        %v3328 = vunpack.c.l.b16 %v3256
        %v3329 = vunpack.c.h.b16 %v3256
        %v3330 = vunpack.c.l.b16 %v3257
        %v3331 = vunpack.c.h.b16 %v3257
        %v3332 = vunpack.c.l.b16 %v3258
        %v3333 = vunpack.c.h.b16 %v3258
        %v3334 = vunpack.c.l.b16 %v3259
        %v3335 = vunpack.c.h.b16 %v3259
        %v3336 = vunpack.c.l.b16 %v3260
        %v3337 = vunpack.c.h.b16 %v3260
        %v3338 = vunpack.c.l.b16 %v3261
        %v3339 = vunpack.c.h.b16 %v3261
        %v3340 = vunpack.c.l.b16 %v3262
        %v3341 = vunpack.c.h.b16 %v3262
        %v3342 = vunpack.c.l.b16 %v3263
        %v3343 = vunpack.c.h.b16 %v3263
        %v3344 = vunpack.c.l.b16 %v3264
        %v3345 = vunpack.c.h.b16 %v3264
        %v3346 = vunpack.c.l.b16 %v3265
        %v3347 = vunpack.c.h.b16 %v3265
        %v3348 = vunpack.c.l.b16 %v3266
        %v3349 = vunpack.c.h.b16 %v3266
        %v3350 = vunpack.c.l.b16 %v3267
        %v3351 = vunpack.c.h.b16 %v3267
        %v3352 = vunpack.c.l.b16 %v3268
        %v3353 = vunpack.c.h.b16 %v3268
        %v3354 = vunpack.c.l.b16 %v3269
        %v3355 = vunpack.c.h.b16 %v3269
        %v3356 = vunpack.c.l.b16 %v3270
        %v3357 = vunpack.c.h.b16 %v3270
        %v3358 = vunpack.c.l.b16 %v3271
        %v3359 = vunpack.c.h.b16 %v3271
        %v3360 = vunpack.c.l.b16 %v3272
        %v3361 = vunpack.c.h.b16 %v3272
        %v3362 = vunpack.c.l.b16 %v3273
        %v3363 = vunpack.c.h.b16 %v3273
        %v3364 = vunpack.c.l.b16 %v3274
        %v3365 = vunpack.c.h.b16 %v3274
        %v3366 = vunpack.c.l.b16 %v3275
        %v3367 = vunpack.c.h.b16 %v3275
        %v3368 = vunpack.c.l.b16 %v3276
        %v3369 = vunpack.c.h.b16 %v3276
        %v3370 = vunpack.c.l.b16 %v3277
        %v3371 = vunpack.c.h.b16 %v3277
        %v3372 = vunpack.c.l.b16 %v3278
        %v3373 = vunpack.c.h.b16 %v3278
        %v3374 = vunpack.c.l.b16 %v3279
        %v3375 = vunpack.c.h.b16 %v3279
        %v3376 = vpack.c.b16 %v3316, %v3312
        %v3377 = vpack.c.b16 %v3317, %v3313
        %v3378 = vpack.c.b16 %v3318, %v3314
        %v3379 = vpack.c.b16 %v3319, %v3315
        %v3380 = vpack.c.b16 %v3324, %v3320
        %v3381 = vpack.c.b16 %v3325, %v3321
        %v3382 = vpack.c.b16 %v3326, %v3322
        %v3383 = vpack.c.b16 %v3327, %v3323
        %v3384 = vpack.c.b16 %v3332, %v3328
        %v3385 = vpack.c.b16 %v3333, %v3329
        %v3386 = vpack.c.b16 %v3334, %v3330
        %v3387 = vpack.c.b16 %v3335, %v3331
        %v3388 = vpack.c.b16 %v3340, %v3336
        %v3389 = vpack.c.b16 %v3341, %v3337
        %v3390 = vpack.c.b16 %v3342, %v3338
        %v3391 = vpack.c.b16 %v3343, %v3339
        %v3392 = vpack.c.b16 %v3348, %v3344
        %v3393 = vpack.c.b16 %v3349, %v3345
        %v3394 = vpack.c.b16 %v3350, %v3346
        %v3395 = vpack.c.b16 %v3351, %v3347
        %v3396 = vpack.c.b16 %v3356, %v3352
        %v3397 = vpack.c.b16 %v3357, %v3353
        %v3398 = vpack.c.b16 %v3358, %v3354
        %v3399 = vpack.c.b16 %v3359, %v3355
        %v3400 = vpack.c.b16 %v3364, %v3360
        %v3401 = vpack.c.b16 %v3365, %v3361
        %v3402 = vpack.c.b16 %v3366, %v3362
        %v3403 = vpack.c.b16 %v3367, %v3363
        %v3404 = vpack.c.b16 %v3372, %v3368
        %v3405 = vpack.c.b16 %v3373, %v3369
        %v3406 = vpack.c.b16 %v3374, %v3370
        %v3407 = vpack.c.b16 %v3375, %v3371
        %3440 = vmatprep.subr.bf16.mxu0 %v3377
        %3441 = vmatpush1.bf16.msra.mxu0 %v3376
        %3442 = vmatprep.subr.bf16.mxu0 %v3381
        %3443 = vmatpush1.bf16.msra.mxu0 %v3380
        %3444 = vmatprep.subr.bf16.mxu0 %v3385
        %3445 = vmatpush1.bf16.msra.mxu0 %v3384
        %3446 = vmatprep.subr.bf16.mxu0 %v3389
        %3447 = vmatpush1.bf16.msra.mxu0 %v3388
        %3448 = vmatprep.subr.bf16.mxu0 %v3393
        %3449 = vmatpush1.bf16.msra.mxu0 %v3392
        %3450 = vmatprep.subr.bf16.mxu0 %v3397
        %3451 = vmatpush1.bf16.msra.mxu0 %v3396
        %3452 = vmatprep.subr.bf16.mxu0 %v3401
        %3453 = vmatpush1.bf16.msra.mxu0 %v3400
        %3454 = vmatprep.subr.bf16.mxu0 %v3405
        %3455 = vmatpush1.bf16.msra.mxu0 %v3404
        %3456 = vmatprep.subr.bf16.mxu0 0
        %3457 = vmatpush1.bf16.msra.mxu0 0
        %3458 = vmatprep.subr.bf16.mxu0 0
        %3459 = vmatpush1.bf16.msra.mxu0 0
        %3460 = vmatprep.subr.bf16.mxu0 0
        %3461 = vmatpush1.bf16.msra.mxu0 0
        %3462 = vmatprep.subr.bf16.mxu0 0
        %3463 = vmatpush1.bf16.msra.mxu0 0
        %3464 = vmatprep.subr.bf16.mxu0 0
        %3465 = vmatpush1.bf16.msra.mxu0 0
        %3466 = vmatprep.subr.bf16.mxu0 0
        %3467 = vmatpush1.bf16.msra.mxu0 0
        %3468 = vmatprep.subr.bf16.mxu0 0
        %3469 = vmatpush1.bf16.msra.mxu0 0
        %3470 = vmatprep.subr.bf16.mxu0 0
        %3471 = vmatpush1.bf16.msra.mxu0 0
        %3472 = vmatprep.mubr.bf16.mxu0 0
        %3473 = vmatmul.mubr.bf16.gmra.mrb[0].mxu0 %v3241
        %v3474 = vpop.f32.mrb[0].mxu0
        %v3475 = vadd.f32 0.0, %v3474
        %v3476 = vpop.f32.mrb[0].mxu0
        %v3477 = vadd.f32 0.0, %v3476
        %v3478 = vpop.f32.mrb[0].mxu0
        %v3479 = vpop.f32.mrb[0].mxu0
        %3480 = vdwg.mxu0
        %3481 = vmatprep.subr.bf16.mxu0 %v3379
        %3482 = vmatpush1.bf16.msra.mxu0 %v3378
        %3483 = vmatprep.subr.bf16.mxu0 %v3383
        %3484 = vmatpush1.bf16.msra.mxu0 %v3382
        %3485 = vmatprep.subr.bf16.mxu0 %v3387
        %3486 = vmatpush1.bf16.msra.mxu0 %v3386
        %3487 = vmatprep.subr.bf16.mxu0 %v3391
        %3488 = vmatpush1.bf16.msra.mxu0 %v3390
        %3489 = vmatprep.subr.bf16.mxu0 %v3395
        %3490 = vmatpush1.bf16.msra.mxu0 %v3394
        %3491 = vmatprep.subr.bf16.mxu0 %v3399
        %3492 = vmatpush1.bf16.msra.mxu0 %v3398
        %3493 = vmatprep.subr.bf16.mxu0 %v3403
        %3494 = vmatpush1.bf16.msra.mxu0 %v3402
        %3495 = vmatprep.subr.bf16.mxu0 %v3407
        %3496 = vmatpush1.bf16.msra.mxu0 %v3406
        %3497 = vmatprep.subr.bf16.mxu0 0
        %3498 = vmatpush1.bf16.msra.mxu0 0
        %3499 = vmatprep.subr.bf16.mxu0 0
        %3500 = vmatpush1.bf16.msra.mxu0 0
        %3501 = vmatprep.subr.bf16.mxu0 0
        %3502 = vmatpush1.bf16.msra.mxu0 0
        %3503 = vmatprep.subr.bf16.mxu0 0
        %3504 = vmatpush1.bf16.msra.mxu0 0
        %3505 = vmatprep.subr.bf16.mxu0 0
        %3506 = vmatpush1.bf16.msra.mxu0 0
        %3507 = vmatprep.subr.bf16.mxu0 0
        %3508 = vmatpush1.bf16.msra.mxu0 0
        %3509 = vmatprep.subr.bf16.mxu0 0
        %3510 = vmatpush1.bf16.msra.mxu0 0
        %3511 = vmatprep.subr.bf16.mxu0 0
        %3512 = vmatpush1.bf16.msra.mxu0 0
        %3513 = vmatprep.mubr.bf16.mxu0 0
        %3514 = vmatmul.mubr.bf16.gmra.mrb[0].mxu0 %v3241
        %v3515 = vpop.f32.mrb[0].mxu0
        %v3516 = vadd.f32 0.0, %v3515
        %v3517 = vpop.f32.mrb[0].mxu0
        %v3518 = vadd.f32 0.0, %v3517
        %v3519 = vpop.f32.mrb[0].mxu0
        %v3520 = vpop.f32.mrb[0].mxu0
        %3521 = vdwg.mxu0
        %v3522 = vadd.f32 %v3244, %v3475
        %v3523 = vadd.f32 %v3245, %v3477
        %v3524 = vadd.f32 %v3246, %v3516
        %v3525 = vadd.f32 %v3247, %v3518
        %v3526 = vxor.u32 %v3522, 2147483648
        %v3527 = vmul.f32 %v3526, 1.442695
        %v3528 = vpow.pop %v3527
        %v3529 = vadd.f32 %v3528, 1.0
        %v3530 = vrcp.pop %v3529
        %v3531 = vmul.f32 1.0, %v3530
        %v3532 = vxor.u32 %v3523, 2147483648
        %v3533 = vmul.f32 %v3532, 1.442695
        %v3534 = vpow.pop %v3533
        %v3535 = vadd.f32 %v3534, 1.0
        %v3536 = vrcp.pop %v3535
        %v3537 = vmul.f32 1.0, %v3536
        %v3538 = vtanh.pop %v3524
        %v3539 = vxor.u32 %v3525, 2147483648
        %v3540 = vmul.f32 %v3539, 1.442695
        %v3541 = vpow.pop %v3540
        %v3542 = vadd.f32 %v3541, 1.0
        %v3543 = vrcp.pop %v3542
        %v3544 = vmul.f32 1.0, %v3543
        %v3545 = vmul.f32 %v3537, %v3243
        %v3546 = vmul.f32 %v3531, %v3538
        %v3547 = vadd.f32 %v3545, %v3546
        %v3548 = vtanh.pop %v3547
        %v3549 = vmul.f32 %v3544, %v3548
        %v3550 = vpack.c.bf16 %v3549, %v3549
        %3551 = vst [vmem:[%s3240] sm:$0xf] %v3550
        %3552 = vst [vmem:[%s3242] sm:$0xff] %v3547
        %v3553 = vld [vmem:[%s3240] sm:$0xf]
        %v3554 = vld [vmem:[%s3242] sm:$0xff]
        %v3555 = vld [vmem:[%s2003] sm:$0xff]
        %v3556 = vld [vmem:[%s2003 + $0x8] sm:$0xff]
        %v3557 = vld [vmem:[%s2003 + $0x10] sm:$0xff]
        %v3558 = vld [vmem:[%s2003 + $0x18] sm:$0xff]
        %v3559 = vld [vmem:[#allocation11] sm:$0xff]
        %v3560 = vld [vmem:[#allocation11 + $0x8] sm:$0xff]
        %v3561 = vld [vmem:[#allocation11 + $0x10] sm:$0xff]
        %v3562 = vld [vmem:[#allocation11 + $0x18] sm:$0xff]
        %v3563 = vld [vmem:[#allocation11 + $0x20] sm:$0xff]
        %v3564 = vld [vmem:[#allocation11 + $0x28] sm:$0xff]
        %v3565 = vld [vmem:[#allocation11 + $0x30] sm:$0xff]
        %v3566 = vld [vmem:[#allocation11 + $0x38] sm:$0xff]
        %v3567 = vld [vmem:[#allocation11 + $0x40] sm:$0xff]
        %v3568 = vld [vmem:[#allocation11 + $0x48] sm:$0xff]
        %v3569 = vld [vmem:[#allocation11 + $0x50] sm:$0xff]
        %v3570 = vld [vmem:[#allocation11 + $0x58] sm:$0xff]
        %v3571 = vld [vmem:[#allocation11 + $0x60] sm:$0xff]
        %v3572 = vld [vmem:[#allocation11 + $0x68] sm:$0xff]
        %v3573 = vld [vmem:[#allocation11 + $0x70] sm:$0xff]
        %v3574 = vld [vmem:[#allocation11 + $0x78] sm:$0xff]
        %v3575 = vld [vmem:[#allocation11 + $0x80] sm:$0xff]
        %v3576 = vld [vmem:[#allocation11 + $0x88] sm:$0xff]
        %v3577 = vld [vmem:[#allocation11 + $0x90] sm:$0xff]
        %v3578 = vld [vmem:[#allocation11 + $0x98] sm:$0xff]
        %v3579 = vld [vmem:[#allocation11 + $0xa0] sm:$0xff]
        %v3580 = vld [vmem:[#allocation11 + $0xa8] sm:$0xff]
        %v3581 = vld [vmem:[#allocation11 + $0xb0] sm:$0xff]
        %v3582 = vld [vmem:[#allocation11 + $0xb8] sm:$0xff]
        %v3583 = vld [vmem:[#allocation11 + $0xc0] sm:$0xff]
        %v3584 = vld [vmem:[#allocation11 + $0xc8] sm:$0xff]
        %v3585 = vld [vmem:[#allocation11 + $0xd0] sm:$0xff]
        %v3586 = vld [vmem:[#allocation11 + $0xd8] sm:$0xff]
        %v3587 = vld [vmem:[#allocation11 + $0xe0] sm:$0xff]
        %v3588 = vld [vmem:[#allocation11 + $0xe8] sm:$0xff]
        %v3589 = vld [vmem:[#allocation11 + $0xf0] sm:$0xff]
        %v3590 = vld [vmem:[#allocation11 + $0xf8] sm:$0xff]
        %v3623 = vunpack.c.l.b16 %v3559
        %v3624 = vunpack.c.h.b16 %v3559
        %v3625 = vunpack.c.l.b16 %v3560
        %v3626 = vunpack.c.h.b16 %v3560
        %v3627 = vunpack.c.l.b16 %v3561
        %v3628 = vunpack.c.h.b16 %v3561
        %v3629 = vunpack.c.l.b16 %v3562
        %v3630 = vunpack.c.h.b16 %v3562
        %v3631 = vunpack.c.l.b16 %v3563
        %v3632 = vunpack.c.h.b16 %v3563
        %v3633 = vunpack.c.l.b16 %v3564
        %v3634 = vunpack.c.h.b16 %v3564
        %v3635 = vunpack.c.l.b16 %v3565
        %v3636 = vunpack.c.h.b16 %v3565
        %v3637 = vunpack.c.l.b16 %v3566
        %v3638 = vunpack.c.h.b16 %v3566
        %v3639 = vunpack.c.l.b16 %v3567
        %v3640 = vunpack.c.h.b16 %v3567
        %v3641 = vunpack.c.l.b16 %v3568
        %v3642 = vunpack.c.h.b16 %v3568
        %v3643 = vunpack.c.l.b16 %v3569
        %v3644 = vunpack.c.h.b16 %v3569
        %v3645 = vunpack.c.l.b16 %v3570
        %v3646 = vunpack.c.h.b16 %v3570
        %v3647 = vunpack.c.l.b16 %v3571
        %v3648 = vunpack.c.h.b16 %v3571
        %v3649 = vunpack.c.l.b16 %v3572
        %v3650 = vunpack.c.h.b16 %v3572
        %v3651 = vunpack.c.l.b16 %v3573
        %v3652 = vunpack.c.h.b16 %v3573
        %v3653 = vunpack.c.l.b16 %v3574
        %v3654 = vunpack.c.h.b16 %v3574
        %v3655 = vunpack.c.l.b16 %v3575
        %v3656 = vunpack.c.h.b16 %v3575
        %v3657 = vunpack.c.l.b16 %v3576
        %v3658 = vunpack.c.h.b16 %v3576
        %v3659 = vunpack.c.l.b16 %v3577
        %v3660 = vunpack.c.h.b16 %v3577
        %v3661 = vunpack.c.l.b16 %v3578
        %v3662 = vunpack.c.h.b16 %v3578
        %v3663 = vunpack.c.l.b16 %v3579
        %v3664 = vunpack.c.h.b16 %v3579
        %v3665 = vunpack.c.l.b16 %v3580
        %v3666 = vunpack.c.h.b16 %v3580
        %v3667 = vunpack.c.l.b16 %v3581
        %v3668 = vunpack.c.h.b16 %v3581
        %v3669 = vunpack.c.l.b16 %v3582
        %v3670 = vunpack.c.h.b16 %v3582
        %v3671 = vunpack.c.l.b16 %v3583
        %v3672 = vunpack.c.h.b16 %v3583
        %v3673 = vunpack.c.l.b16 %v3584
        %v3674 = vunpack.c.h.b16 %v3584
        %v3675 = vunpack.c.l.b16 %v3585
        %v3676 = vunpack.c.h.b16 %v3585
        %v3677 = vunpack.c.l.b16 %v3586
        %v3678 = vunpack.c.h.b16 %v3586
        %v3679 = vunpack.c.l.b16 %v3587
        %v3680 = vunpack.c.h.b16 %v3587
        %v3681 = vunpack.c.l.b16 %v3588
        %v3682 = vunpack.c.h.b16 %v3588
        %v3683 = vunpack.c.l.b16 %v3589
        %v3684 = vunpack.c.h.b16 %v3589
        %v3685 = vunpack.c.l.b16 %v3590
        %v3686 = vunpack.c.h.b16 %v3590
        %v3687 = vpack.c.b16 %v3627, %v3623
        %v3688 = vpack.c.b16 %v3628, %v3624
        %v3689 = vpack.c.b16 %v3629, %v3625
        %v3690 = vpack.c.b16 %v3630, %v3626
        %v3691 = vpack.c.b16 %v3635, %v3631
        %v3692 = vpack.c.b16 %v3636, %v3632
        %v3693 = vpack.c.b16 %v3637, %v3633
        %v3694 = vpack.c.b16 %v3638, %v3634
        %v3695 = vpack.c.b16 %v3643, %v3639
        %v3696 = vpack.c.b16 %v3644, %v3640
        %v3697 = vpack.c.b16 %v3645, %v3641
        %v3698 = vpack.c.b16 %v3646, %v3642
        %v3699 = vpack.c.b16 %v3651, %v3647
        %v3700 = vpack.c.b16 %v3652, %v3648
        %v3701 = vpack.c.b16 %v3653, %v3649
        %v3702 = vpack.c.b16 %v3654, %v3650
        %v3703 = vpack.c.b16 %v3659, %v3655
        %v3704 = vpack.c.b16 %v3660, %v3656
        %v3705 = vpack.c.b16 %v3661, %v3657
        %v3706 = vpack.c.b16 %v3662, %v3658
        %v3707 = vpack.c.b16 %v3667, %v3663
        %v3708 = vpack.c.b16 %v3668, %v3664
        %v3709 = vpack.c.b16 %v3669, %v3665
        %v3710 = vpack.c.b16 %v3670, %v3666
        %v3711 = vpack.c.b16 %v3675, %v3671
        %v3712 = vpack.c.b16 %v3676, %v3672
        %v3713 = vpack.c.b16 %v3677, %v3673
        %v3714 = vpack.c.b16 %v3678, %v3674
        %v3715 = vpack.c.b16 %v3683, %v3679
        %v3716 = vpack.c.b16 %v3684, %v3680
        %v3717 = vpack.c.b16 %v3685, %v3681
        %v3718 = vpack.c.b16 %v3686, %v3682
        %3751 = vmatprep.subr.bf16.mxu0 %v3688
        %3752 = vmatpush1.bf16.msra.mxu0 %v3687
        %3753 = vmatprep.subr.bf16.mxu0 %v3692
        %3754 = vmatpush1.bf16.msra.mxu0 %v3691
        %3755 = vmatprep.subr.bf16.mxu0 %v3696
        %3756 = vmatpush1.bf16.msra.mxu0 %v3695
        %3757 = vmatprep.subr.bf16.mxu0 %v3700
        %3758 = vmatpush1.bf16.msra.mxu0 %v3699
        %3759 = vmatprep.subr.bf16.mxu0 %v3704
        %3760 = vmatpush1.bf16.msra.mxu0 %v3703
        %3761 = vmatprep.subr.bf16.mxu0 %v3708
        %3762 = vmatpush1.bf16.msra.mxu0 %v3707
        %3763 = vmatprep.subr.bf16.mxu0 %v3712
        %3764 = vmatpush1.bf16.msra.mxu0 %v3711
        %3765 = vmatprep.subr.bf16.mxu0 %v3716
        %3766 = vmatpush1.bf16.msra.mxu0 %v3715
        %3767 = vmatprep.subr.bf16.mxu0 0
        %3768 = vmatpush1.bf16.msra.mxu0 0
        %3769 = vmatprep.subr.bf16.mxu0 0
        %3770 = vmatpush1.bf16.msra.mxu0 0
        %3771 = vmatprep.subr.bf16.mxu0 0
        %3772 = vmatpush1.bf16.msra.mxu0 0
        %3773 = vmatprep.subr.bf16.mxu0 0
        %3774 = vmatpush1.bf16.msra.mxu0 0
        %3775 = vmatprep.subr.bf16.mxu0 0
        %3776 = vmatpush1.bf16.msra.mxu0 0
        %3777 = vmatprep.subr.bf16.mxu0 0
        %3778 = vmatpush1.bf16.msra.mxu0 0
        %3779 = vmatprep.subr.bf16.mxu0 0
        %3780 = vmatpush1.bf16.msra.mxu0 0
        %3781 = vmatprep.subr.bf16.mxu0 0
        %3782 = vmatpush1.bf16.msra.mxu0 0
        %3783 = vmatprep.mubr.bf16.mxu0 0
        %3784 = vmatmul.mubr.bf16.gmra.mrb[0].mxu0 %v3553
        %v3785 = vpop.f32.mrb[0].mxu0
        %v3786 = vadd.f32 0.0, %v3785
        %v3787 = vpop.f32.mrb[0].mxu0
        %v3788 = vadd.f32 0.0, %v3787
        %v3789 = vpop.f32.mrb[0].mxu0
        %v3790 = vpop.f32.mrb[0].mxu0
        %3791 = vdwg.mxu0
        %3792 = vmatprep.subr.bf16.mxu0 %v3690
        %3793 = vmatpush1.bf16.msra.mxu0 %v3689
        %3794 = vmatprep.subr.bf16.mxu0 %v3694
        %3795 = vmatpush1.bf16.msra.mxu0 %v3693
        %3796 = vmatprep.subr.bf16.mxu0 %v3698
        %3797 = vmatpush1.bf16.msra.mxu0 %v3697
        %3798 = vmatprep.subr.bf16.mxu0 %v3702
        %3799 = vmatpush1.bf16.msra.mxu0 %v3701
        %3800 = vmatprep.subr.bf16.mxu0 %v3706
        %3801 = vmatpush1.bf16.msra.mxu0 %v3705
        %3802 = vmatprep.subr.bf16.mxu0 %v3710
        %3803 = vmatpush1.bf16.msra.mxu0 %v3709
        %3804 = vmatprep.subr.bf16.mxu0 %v3714
        %3805 = vmatpush1.bf16.msra.mxu0 %v3713
        %3806 = vmatprep.subr.bf16.mxu0 %v3718
        %3807 = vmatpush1.bf16.msra.mxu0 %v3717
        %3808 = vmatprep.subr.bf16.mxu0 0
        %3809 = vmatpush1.bf16.msra.mxu0 0
        %3810 = vmatprep.subr.bf16.mxu0 0
        %3811 = vmatpush1.bf16.msra.mxu0 0
        %3812 = vmatprep.subr.bf16.mxu0 0
        %3813 = vmatpush1.bf16.msra.mxu0 0
        %3814 = vmatprep.subr.bf16.mxu0 0
        %3815 = vmatpush1.bf16.msra.mxu0 0
        %3816 = vmatprep.subr.bf16.mxu0 0
        %3817 = vmatpush1.bf16.msra.mxu0 0
        %3818 = vmatprep.subr.bf16.mxu0 0
        %3819 = vmatpush1.bf16.msra.mxu0 0
        %3820 = vmatprep.subr.bf16.mxu0 0
        %3821 = vmatpush1.bf16.msra.mxu0 0
        %3822 = vmatprep.subr.bf16.mxu0 0
        %3823 = vmatpush1.bf16.msra.mxu0 0
        %3824 = vmatprep.mubr.bf16.mxu0 0
        %3825 = vmatmul.mubr.bf16.gmra.mrb[0].mxu0 %v3553
        %v3826 = vpop.f32.mrb[0].mxu0
        %v3827 = vadd.f32 0.0, %v3826
        %v3828 = vpop.f32.mrb[0].mxu0
        %v3829 = vadd.f32 0.0, %v3828
        %v3830 = vpop.f32.mrb[0].mxu0
        %v3831 = vpop.f32.mrb[0].mxu0
        %3832 = vdwg.mxu0
        %v3833 = vadd.f32 %v3555, %v3786
        %v3834 = vadd.f32 %v3556, %v3788
        %v3835 = vadd.f32 %v3557, %v3827
        %v3836 = vadd.f32 %v3558, %v3829
        %v3837 = vxor.u32 %v3833, 2147483648
        %v3838 = vmul.f32 %v3837, 1.442695
        %v3839 = vpow.pop %v3838
        %v3840 = vadd.f32 %v3839, 1.0
        %v3841 = vrcp.pop %v3840
        %v3842 = vmul.f32 1.0, %v3841
        %v3843 = vxor.u32 %v3834, 2147483648
        %v3844 = vmul.f32 %v3843, 1.442695
        %v3845 = vpow.pop %v3844
        %v3846 = vadd.f32 %v3845, 1.0
        %v3847 = vrcp.pop %v3846
        %v3848 = vmul.f32 1.0, %v3847
        %v3849 = vtanh.pop %v3835
        %v3850 = vxor.u32 %v3836, 2147483648
        %v3851 = vmul.f32 %v3850, 1.442695
        %v3852 = vpow.pop %v3851
        %v3853 = vadd.f32 %v3852, 1.0
        %v3854 = vrcp.pop %v3853
        %v3855 = vmul.f32 1.0, %v3854
        %v3856 = vmul.f32 %v3848, %v3554
        %v3857 = vmul.f32 %v3842, %v3849
        %v3858 = vadd.f32 %v3856, %v3857
        %v3859 = vtanh.pop %v3858
        %v3860 = vmul.f32 %v3855, %v3859
        %v3861 = vpack.c.bf16 %v3860, %v3860
        %3862 = vst [vmem:[%s3240] sm:$0xf] %v3861
        %3863 = vst [vmem:[%s3242] sm:$0xff] %v3858
        %v3864 = vld [vmem:[%s3240] sm:$0xf]
        %v3865 = vld [vmem:[%s3242] sm:$0xff]
        %v3866 = vld [vmem:[%s2619] sm:$0xff]
        %v3867 = vld [vmem:[%s2619 + $0x8] sm:$0xff]
        %v3868 = vld [vmem:[%s2619 + $0x10] sm:$0xff]
        %v3869 = vld [vmem:[%s2619 + $0x18] sm:$0xff]
        %v3870 = vld [vmem:[#allocation11] sm:$0xff]
        %v3871 = vld [vmem:[#allocation11 + $0x8] sm:$0xff]
        %v3872 = vld [vmem:[#allocation11 + $0x10] sm:$0xff]
        %v3873 = vld [vmem:[#allocation11 + $0x18] sm:$0xff]
        %v3874 = vld [vmem:[#allocation11 + $0x20] sm:$0xff]
        %v3875 = vld [vmem:[#allocation11 + $0x28] sm:$0xff]
        %v3876 = vld [vmem:[#allocation11 + $0x30] sm:$0xff]
        %v3877 = vld [vmem:[#allocation11 + $0x38] sm:$0xff]
        %v3878 = vld [vmem:[#allocation11 + $0x40] sm:$0xff]
        %v3879 = vld [vmem:[#allocation11 + $0x48] sm:$0xff]
        %v3880 = vld [vmem:[#allocation11 + $0x50] sm:$0xff]
        %v3881 = vld [vmem:[#allocation11 + $0x58] sm:$0xff]
        %v3882 = vld [vmem:[#allocation11 + $0x60] sm:$0xff]
        %v3883 = vld [vmem:[#allocation11 + $0x68] sm:$0xff]
        %v3884 = vld [vmem:[#allocation11 + $0x70] sm:$0xff]
        %v3885 = vld [vmem:[#allocation11 + $0x78] sm:$0xff]
        %v3886 = vld [vmem:[#allocation11 + $0x80] sm:$0xff]
        %v3887 = vld [vmem:[#allocation11 + $0x88] sm:$0xff]
        %v3888 = vld [vmem:[#allocation11 + $0x90] sm:$0xff]
        %v3889 = vld [vmem:[#allocation11 + $0x98] sm:$0xff]
        %v3890 = vld [vmem:[#allocation11 + $0xa0] sm:$0xff]
        %v3891 = vld [vmem:[#allocation11 + $0xa8] sm:$0xff]
        %v3892 = vld [vmem:[#allocation11 + $0xb0] sm:$0xff]
        %v3893 = vld [vmem:[#allocation11 + $0xb8] sm:$0xff]
        %v3894 = vld [vmem:[#allocation11 + $0xc0] sm:$0xff]
        %v3895 = vld [vmem:[#allocation11 + $0xc8] sm:$0xff]
        %v3896 = vld [vmem:[#allocation11 + $0xd0] sm:$0xff]
        %v3897 = vld [vmem:[#allocation11 + $0xd8] sm:$0xff]
        %v3898 = vld [vmem:[#allocation11 + $0xe0] sm:$0xff]
        %v3899 = vld [vmem:[#allocation11 + $0xe8] sm:$0xff]
        %v3900 = vld [vmem:[#allocation11 + $0xf0] sm:$0xff]
        %v3901 = vld [vmem:[#allocation11 + $0xf8] sm:$0xff]
        %v3934 = vunpack.c.l.b16 %v3870
        %v3935 = vunpack.c.h.b16 %v3870
        %v3936 = vunpack.c.l.b16 %v3871
        %v3937 = vunpack.c.h.b16 %v3871
        %v3938 = vunpack.c.l.b16 %v3872
        %v3939 = vunpack.c.h.b16 %v3872
        %v3940 = vunpack.c.l.b16 %v3873
        %v3941 = vunpack.c.h.b16 %v3873
        %v3942 = vunpack.c.l.b16 %v3874
        %v3943 = vunpack.c.h.b16 %v3874
        %v3944 = vunpack.c.l.b16 %v3875
        %v3945 = vunpack.c.h.b16 %v3875
        %v3946 = vunpack.c.l.b16 %v3876
        %v3947 = vunpack.c.h.b16 %v3876
        %v3948 = vunpack.c.l.b16 %v3877
        %v3949 = vunpack.c.h.b16 %v3877
        %v3950 = vunpack.c.l.b16 %v3878
        %v3951 = vunpack.c.h.b16 %v3878
        %v3952 = vunpack.c.l.b16 %v3879
        %v3953 = vunpack.c.h.b16 %v3879
        %v3954 = vunpack.c.l.b16 %v3880
        %v3955 = vunpack.c.h.b16 %v3880
        %v3956 = vunpack.c.l.b16 %v3881
        %v3957 = vunpack.c.h.b16 %v3881
        %v3958 = vunpack.c.l.b16 %v3882
        %v3959 = vunpack.c.h.b16 %v3882
        %v3960 = vunpack.c.l.b16 %v3883
        %v3961 = vunpack.c.h.b16 %v3883
        %v3962 = vunpack.c.l.b16 %v3884
        %v3963 = vunpack.c.h.b16 %v3884
        %v3964 = vunpack.c.l.b16 %v3885
        %v3965 = vunpack.c.h.b16 %v3885
        %v3966 = vunpack.c.l.b16 %v3886
        %v3967 = vunpack.c.h.b16 %v3886
        %v3968 = vunpack.c.l.b16 %v3887
        %v3969 = vunpack.c.h.b16 %v3887
        %v3970 = vunpack.c.l.b16 %v3888
        %v3971 = vunpack.c.h.b16 %v3888
        %v3972 = vunpack.c.l.b16 %v3889
        %v3973 = vunpack.c.h.b16 %v3889
        %v3974 = vunpack.c.l.b16 %v3890
        %v3975 = vunpack.c.h.b16 %v3890
        %v3976 = vunpack.c.l.b16 %v3891
        %v3977 = vunpack.c.h.b16 %v3891
        %v3978 = vunpack.c.l.b16 %v3892
        %v3979 = vunpack.c.h.b16 %v3892
        %v3980 = vunpack.c.l.b16 %v3893
        %v3981 = vunpack.c.h.b16 %v3893
        %v3982 = vunpack.c.l.b16 %v3894
        %v3983 = vunpack.c.h.b16 %v3894
        %v3984 = vunpack.c.l.b16 %v3895
        %v3985 = vunpack.c.h.b16 %v3895
        %v3986 = vunpack.c.l.b16 %v3896
        %v3987 = vunpack.c.h.b16 %v3896
        %v3988 = vunpack.c.l.b16 %v3897
        %v3989 = vunpack.c.h.b16 %v3897
        %v3990 = vunpack.c.l.b16 %v3898
        %v3991 = vunpack.c.h.b16 %v3898
        %v3992 = vunpack.c.l.b16 %v3899
        %v3993 = vunpack.c.h.b16 %v3899
        %v3994 = vunpack.c.l.b16 %v3900
        %v3995 = vunpack.c.h.b16 %v3900
        %v3996 = vunpack.c.l.b16 %v3901
        %v3997 = vunpack.c.h.b16 %v3901
        %v3998 = vpack.c.b16 %v3938, %v3934
        %v3999 = vpack.c.b16 %v3939, %v3935
        %v4000 = vpack.c.b16 %v3940, %v3936
        %v4001 = vpack.c.b16 %v3941, %v3937
        %v4002 = vpack.c.b16 %v3946, %v3942
        %v4003 = vpack.c.b16 %v3947, %v3943
        %v4004 = vpack.c.b16 %v3948, %v3944
        %v4005 = vpack.c.b16 %v3949, %v3945
        %v4006 = vpack.c.b16 %v3954, %v3950
        %v4007 = vpack.c.b16 %v3955, %v3951
        %v4008 = vpack.c.b16 %v3956, %v3952
        %v4009 = vpack.c.b16 %v3957, %v3953
        %v4010 = vpack.c.b16 %v3962, %v3958
        %v4011 = vpack.c.b16 %v3963, %v3959
        %v4012 = vpack.c.b16 %v3964, %v3960
        %v4013 = vpack.c.b16 %v3965, %v3961
        %v4014 = vpack.c.b16 %v3970, %v3966
        %v4015 = vpack.c.b16 %v3971, %v3967
        %v4016 = vpack.c.b16 %v3972, %v3968
        %v4017 = vpack.c.b16 %v3973, %v3969
        %v4018 = vpack.c.b16 %v3978, %v3974
        %v4019 = vpack.c.b16 %v3979, %v3975
        %v4020 = vpack.c.b16 %v3980, %v3976
        %v4021 = vpack.c.b16 %v3981, %v3977
        %v4022 = vpack.c.b16 %v3986, %v3982
        %v4023 = vpack.c.b16 %v3987, %v3983
        %v4024 = vpack.c.b16 %v3988, %v3984
        %v4025 = vpack.c.b16 %v3989, %v3985
        %v4026 = vpack.c.b16 %v3994, %v3990
        %v4027 = vpack.c.b16 %v3995, %v3991
        %v4028 = vpack.c.b16 %v3996, %v3992
        %v4029 = vpack.c.b16 %v3997, %v3993
        %4062 = vmatprep.subr.bf16.mxu0 %v3999
        %4063 = vmatpush1.bf16.msra.mxu0 %v3998
        %4064 = vmatprep.subr.bf16.mxu0 %v4003
        %4065 = vmatpush1.bf16.msra.mxu0 %v4002
        %4066 = vmatprep.subr.bf16.mxu0 %v4007
        %4067 = vmatpush1.bf16.msra.mxu0 %v4006
        %4068 = vmatprep.subr.bf16.mxu0 %v4011
        %4069 = vmatpush1.bf16.msra.mxu0 %v4010
        %4070 = vmatprep.subr.bf16.mxu0 %v4015
        %4071 = vmatpush1.bf16.msra.mxu0 %v4014
        %4072 = vmatprep.subr.bf16.mxu0 %v4019
        %4073 = vmatpush1.bf16.msra.mxu0 %v4018
        %4074 = vmatprep.subr.bf16.mxu0 %v4023
        %4075 = vmatpush1.bf16.msra.mxu0 %v4022
        %4076 = vmatprep.subr.bf16.mxu0 %v4027
        %4077 = vmatpush1.bf16.msra.mxu0 %v4026
        %4078 = vmatprep.subr.bf16.mxu0 0
        %4079 = vmatpush1.bf16.msra.mxu0 0
        %4080 = vmatprep.subr.bf16.mxu0 0
        %4081 = vmatpush1.bf16.msra.mxu0 0
        %4082 = vmatprep.subr.bf16.mxu0 0
        %4083 = vmatpush1.bf16.msra.mxu0 0
        %4084 = vmatprep.subr.bf16.mxu0 0
        %4085 = vmatpush1.bf16.msra.mxu0 0
        %4086 = vmatprep.subr.bf16.mxu0 0
        %4087 = vmatpush1.bf16.msra.mxu0 0
        %4088 = vmatprep.subr.bf16.mxu0 0
        %4089 = vmatpush1.bf16.msra.mxu0 0
        %4090 = vmatprep.subr.bf16.mxu0 0
        %4091 = vmatpush1.bf16.msra.mxu0 0
        %4092 = vmatprep.subr.bf16.mxu0 0
        %4093 = vmatpush1.bf16.msra.mxu0 0
        %4094 = vmatprep.mubr.bf16.mxu0 0
        %4095 = vmatmul.mubr.bf16.gmra.mrb[0].mxu0 %v3864
        %v4096 = vpop.f32.mrb[0].mxu0
        %v4097 = vadd.f32 0.0, %v4096
        %v4098 = vpop.f32.mrb[0].mxu0
        %v4099 = vadd.f32 0.0, %v4098
        %v4100 = vpop.f32.mrb[0].mxu0
        %v4101 = vpop.f32.mrb[0].mxu0
        %4102 = vdwg.mxu0
        %4103 = vmatprep.subr.bf16.mxu0 %v4001
        %4104 = vmatpush1.bf16.msra.mxu0 %v4000
        %4105 = vmatprep.subr.bf16.mxu0 %v4005
        %4106 = vmatpush1.bf16.msra.mxu0 %v4004
        %4107 = vmatprep.subr.bf16.mxu0 %v4009
        %4108 = vmatpush1.bf16.msra.mxu0 %v4008
        %4109 = vmatprep.subr.bf16.mxu0 %v4013
        %4110 = vmatpush1.bf16.msra.mxu0 %v4012
        %4111 = vmatprep.subr.bf16.mxu0 %v4017
        %4112 = vmatpush1.bf16.msra.mxu0 %v4016
        %4113 = vmatprep.subr.bf16.mxu0 %v4021
        %4114 = vmatpush1.bf16.msra.mxu0 %v4020
        %4115 = vmatprep.subr.bf16.mxu0 %v4025
        %4116 = vmatpush1.bf16.msra.mxu0 %v4024
        %4117 = vmatprep.subr.bf16.mxu0 %v4029
        %4118 = vmatpush1.bf16.msra.mxu0 %v4028
        %4119 = vmatprep.subr.bf16.mxu0 0
        %4120 = vmatpush1.bf16.msra.mxu0 0
        %4121 = vmatprep.subr.bf16.mxu0 0
        %4122 = vmatpush1.bf16.msra.mxu0 0
        %4123 = vmatprep.subr.bf16.mxu0 0
        %4124 = vmatpush1.bf16.msra.mxu0 0
        %4125 = vmatprep.subr.bf16.mxu0 0
        %4126 = vmatpush1.bf16.msra.mxu0 0
        %4127 = vmatprep.subr.bf16.mxu0 0
        %4128 = vmatpush1.bf16.msra.mxu0 0
        %4129 = vmatprep.subr.bf16.mxu0 0
        %4130 = vmatpush1.bf16.msra.mxu0 0
        %4131 = vmatprep.subr.bf16.mxu0 0
        %4132 = vmatpush1.bf16.msra.mxu0 0
        %4133 = vmatprep.subr.bf16.mxu0 0
        %4134 = vmatpush1.bf16.msra.mxu0 0
        %4135 = vmatprep.mubr.bf16.mxu0 0
        %4136 = vmatmul.mubr.bf16.gmra.mrb[0].mxu0 %v3864
        %v4137 = vpop.f32.mrb[0].mxu0
        %v4138 = vadd.f32 0.0, %v4137
        %v4139 = vpop.f32.mrb[0].mxu0
        %v4140 = vadd.f32 0.0, %v4139
        %v4141 = vpop.f32.mrb[0].mxu0
        %v4142 = vpop.f32.mrb[0].mxu0
        %4143 = vdwg.mxu0
        %v4144 = vadd.f32 %v3866, %v4097
        %v4145 = vadd.f32 %v3867, %v4099
        %v4146 = vadd.f32 %v3868, %v4138
        %v4147 = vadd.f32 %v3869, %v4140
        %v4148 = vxor.u32 %v4144, 2147483648
        %v4149 = vmul.f32 %v4148, 1.442695
        %v4150 = vpow.pop %v4149
        %v4151 = vadd.f32 %v4150, 1.0
        %v4152 = vrcp.pop %v4151
        %v4153 = vmul.f32 1.0, %v4152
        %v4154 = vxor.u32 %v4145, 2147483648
        %v4155 = vmul.f32 %v4154, 1.442695
        %v4156 = vpow.pop %v4155
        %v4157 = vadd.f32 %v4156, 1.0
        %v4158 = vrcp.pop %v4157
        %v4159 = vmul.f32 1.0, %v4158
        %v4160 = vtanh.pop %v4146
        %v4161 = vxor.u32 %v4147, 2147483648
        %v4162 = vmul.f32 %v4161, 1.442695
        %v4163 = vpow.pop %v4162
        %v4164 = vadd.f32 %v4163, 1.0
        %v4165 = vrcp.pop %v4164
        %v4166 = vmul.f32 1.0, %v4165
        %v4167 = vmul.f32 %v4159, %v3865
        %v4168 = vmul.f32 %v4153, %v4160
        %v4169 = vadd.f32 %v4167, %v4168
        %v4170 = vtanh.pop %v4169
        %v4171 = vmul.f32 %v4166, %v4170
        %v4172 = vpack.c.bf16 %v4171, %v4171
        %4173 = vst [vmem:[%s3240] sm:$0xf] %v4172
        %4174 = vst [vmem:[%s3242] sm:$0xff] %v4169
        %v4175 = vld [vmem:[%s3240] sm:$0xf]
        %v4176 = vld [vmem:[%s3242] sm:$0xff]
        %v4177 = vld [vmem:[%s3235] sm:$0xff]
        %v4178 = vld [vmem:[%s3235 + $0x8] sm:$0xff]
        %v4179 = vld [vmem:[%s3235 + $0x10] sm:$0xff]
        %v4180 = vld [vmem:[%s3235 + $0x18] sm:$0xff]
        %v4181 = vld [vmem:[#allocation11] sm:$0xff]
        %v4182 = vld [vmem:[#allocation11 + $0x8] sm:$0xff]
        %v4183 = vld [vmem:[#allocation11 + $0x10] sm:$0xff]
        %v4184 = vld [vmem:[#allocation11 + $0x18] sm:$0xff]
        %v4185 = vld [vmem:[#allocation11 + $0x20] sm:$0xff]
        %v4186 = vld [vmem:[#allocation11 + $0x28] sm:$0xff]
        %v4187 = vld [vmem:[#allocation11 + $0x30] sm:$0xff]
        %v4188 = vld [vmem:[#allocation11 + $0x38] sm:$0xff]
        %v4189 = vld [vmem:[#allocation11 + $0x40] sm:$0xff]
        %v4190 = vld [vmem:[#allocation11 + $0x48] sm:$0xff]
        %v4191 = vld [vmem:[#allocation11 + $0x50] sm:$0xff]
        %v4192 = vld [vmem:[#allocation11 + $0x58] sm:$0xff]
        %v4193 = vld [vmem:[#allocation11 + $0x60] sm:$0xff]
        %v4194 = vld [vmem:[#allocation11 + $0x68] sm:$0xff]
        %v4195 = vld [vmem:[#allocation11 + $0x70] sm:$0xff]
        %v4196 = vld [vmem:[#allocation11 + $0x78] sm:$0xff]
        %v4197 = vld [vmem:[#allocation11 + $0x80] sm:$0xff]
        %v4198 = vld [vmem:[#allocation11 + $0x88] sm:$0xff]
        %v4199 = vld [vmem:[#allocation11 + $0x90] sm:$0xff]
        %v4200 = vld [vmem:[#allocation11 + $0x98] sm:$0xff]
        %v4201 = vld [vmem:[#allocation11 + $0xa0] sm:$0xff]
        %v4202 = vld [vmem:[#allocation11 + $0xa8] sm:$0xff]
        %v4203 = vld [vmem:[#allocation11 + $0xb0] sm:$0xff]
        %v4204 = vld [vmem:[#allocation11 + $0xb8] sm:$0xff]
        %v4205 = vld [vmem:[#allocation11 + $0xc0] sm:$0xff]
        %v4206 = vld [vmem:[#allocation11 + $0xc8] sm:$0xff]
        %v4207 = vld [vmem:[#allocation11 + $0xd0] sm:$0xff]
        %v4208 = vld [vmem:[#allocation11 + $0xd8] sm:$0xff]
        %v4209 = vld [vmem:[#allocation11 + $0xe0] sm:$0xff]
        %v4210 = vld [vmem:[#allocation11 + $0xe8] sm:$0xff]
        %v4211 = vld [vmem:[#allocation11 + $0xf0] sm:$0xff]
        %v4212 = vld [vmem:[#allocation11 + $0xf8] sm:$0xff]
        %v4245 = vunpack.c.l.b16 %v4181
        %v4246 = vunpack.c.h.b16 %v4181
        %v4247 = vunpack.c.l.b16 %v4182
        %v4248 = vunpack.c.h.b16 %v4182
        %v4249 = vunpack.c.l.b16 %v4183
        %v4250 = vunpack.c.h.b16 %v4183
        %v4251 = vunpack.c.l.b16 %v4184
        %v4252 = vunpack.c.h.b16 %v4184
        %v4253 = vunpack.c.l.b16 %v4185
        %v4254 = vunpack.c.h.b16 %v4185
        %v4255 = vunpack.c.l.b16 %v4186
        %v4256 = vunpack.c.h.b16 %v4186
        %v4257 = vunpack.c.l.b16 %v4187
        %v4258 = vunpack.c.h.b16 %v4187
        %v4259 = vunpack.c.l.b16 %v4188
        %v4260 = vunpack.c.h.b16 %v4188
        %v4261 = vunpack.c.l.b16 %v4189
        %v4262 = vunpack.c.h.b16 %v4189
        %v4263 = vunpack.c.l.b16 %v4190
        %v4264 = vunpack.c.h.b16 %v4190
        %v4265 = vunpack.c.l.b16 %v4191
        %v4266 = vunpack.c.h.b16 %v4191
        %v4267 = vunpack.c.l.b16 %v4192
        %v4268 = vunpack.c.h.b16 %v4192
        %v4269 = vunpack.c.l.b16 %v4193
        %v4270 = vunpack.c.h.b16 %v4193
        %v4271 = vunpack.c.l.b16 %v4194
        %v4272 = vunpack.c.h.b16 %v4194
        %v4273 = vunpack.c.l.b16 %v4195
        %v4274 = vunpack.c.h.b16 %v4195
        %v4275 = vunpack.c.l.b16 %v4196
        %v4276 = vunpack.c.h.b16 %v4196
        %v4277 = vunpack.c.l.b16 %v4197
        %v4278 = vunpack.c.h.b16 %v4197
        %v4279 = vunpack.c.l.b16 %v4198
        %v4280 = vunpack.c.h.b16 %v4198
        %v4281 = vunpack.c.l.b16 %v4199
        %v4282 = vunpack.c.h.b16 %v4199
        %v4283 = vunpack.c.l.b16 %v4200
        %v4284 = vunpack.c.h.b16 %v4200
        %v4285 = vunpack.c.l.b16 %v4201
        %v4286 = vunpack.c.h.b16 %v4201
        %v4287 = vunpack.c.l.b16 %v4202
        %v4288 = vunpack.c.h.b16 %v4202
        %v4289 = vunpack.c.l.b16 %v4203
        %v4290 = vunpack.c.h.b16 %v4203
        %v4291 = vunpack.c.l.b16 %v4204
        %v4292 = vunpack.c.h.b16 %v4204
        %v4293 = vunpack.c.l.b16 %v4205
        %v4294 = vunpack.c.h.b16 %v4205
        %v4295 = vunpack.c.l.b16 %v4206
        %v4296 = vunpack.c.h.b16 %v4206
        %v4297 = vunpack.c.l.b16 %v4207
        %v4298 = vunpack.c.h.b16 %v4207
        %v4299 = vunpack.c.l.b16 %v4208
        %v4300 = vunpack.c.h.b16 %v4208
        %v4301 = vunpack.c.l.b16 %v4209
        %v4302 = vunpack.c.h.b16 %v4209
        %v4303 = vunpack.c.l.b16 %v4210
        %v4304 = vunpack.c.h.b16 %v4210
        %v4305 = vunpack.c.l.b16 %v4211
        %v4306 = vunpack.c.h.b16 %v4211
        %v4307 = vunpack.c.l.b16 %v4212
        %v4308 = vunpack.c.h.b16 %v4212
        %v4309 = vpack.c.b16 %v4249, %v4245
        %v4310 = vpack.c.b16 %v4250, %v4246
        %v4311 = vpack.c.b16 %v4251, %v4247
        %v4312 = vpack.c.b16 %v4252, %v4248
        %v4313 = vpack.c.b16 %v4257, %v4253
        %v4314 = vpack.c.b16 %v4258, %v4254
        %v4315 = vpack.c.b16 %v4259, %v4255
        %v4316 = vpack.c.b16 %v4260, %v4256
        %v4317 = vpack.c.b16 %v4265, %v4261
        %v4318 = vpack.c.b16 %v4266, %v4262
        %v4319 = vpack.c.b16 %v4267, %v4263
        %v4320 = vpack.c.b16 %v4268, %v4264
        %v4321 = vpack.c.b16 %v4273, %v4269
        %v4322 = vpack.c.b16 %v4274, %v4270
        %v4323 = vpack.c.b16 %v4275, %v4271
        %v4324 = vpack.c.b16 %v4276, %v4272
        %v4325 = vpack.c.b16 %v4281, %v4277
        %v4326 = vpack.c.b16 %v4282, %v4278
        %v4327 = vpack.c.b16 %v4283, %v4279
        %v4328 = vpack.c.b16 %v4284, %v4280
        %v4329 = vpack.c.b16 %v4289, %v4285
        %v4330 = vpack.c.b16 %v4290, %v4286
        %v4331 = vpack.c.b16 %v4291, %v4287
        %v4332 = vpack.c.b16 %v4292, %v4288
        %v4333 = vpack.c.b16 %v4297, %v4293
        %v4334 = vpack.c.b16 %v4298, %v4294
        %v4335 = vpack.c.b16 %v4299, %v4295
        %v4336 = vpack.c.b16 %v4300, %v4296
        %v4337 = vpack.c.b16 %v4305, %v4301
        %v4338 = vpack.c.b16 %v4306, %v4302
        %v4339 = vpack.c.b16 %v4307, %v4303
        %v4340 = vpack.c.b16 %v4308, %v4304
        %4373 = vmatprep.subr.bf16.mxu0 %v4310
        %4374 = vmatpush1.bf16.msra.mxu0 %v4309
        %4375 = vmatprep.subr.bf16.mxu0 %v4314
        %4376 = vmatpush1.bf16.msra.mxu0 %v4313
        %4377 = vmatprep.subr.bf16.mxu0 %v4318
        %4378 = vmatpush1.bf16.msra.mxu0 %v4317
        %4379 = vmatprep.subr.bf16.mxu0 %v4322
        %4380 = vmatpush1.bf16.msra.mxu0 %v4321
        %4381 = vmatprep.subr.bf16.mxu0 %v4326
        %4382 = vmatpush1.bf16.msra.mxu0 %v4325
        %4383 = vmatprep.subr.bf16.mxu0 %v4330
        %4384 = vmatpush1.bf16.msra.mxu0 %v4329
        %4385 = vmatprep.subr.bf16.mxu0 %v4334
        %4386 = vmatpush1.bf16.msra.mxu0 %v4333
        %4387 = vmatprep.subr.bf16.mxu0 %v4338
        %4388 = vmatpush1.bf16.msra.mxu0 %v4337
        %4389 = vmatprep.subr.bf16.mxu0 0
        %4390 = vmatpush1.bf16.msra.mxu0 0
        %4391 = vmatprep.subr.bf16.mxu0 0
        %4392 = vmatpush1.bf16.msra.mxu0 0
        %4393 = vmatprep.subr.bf16.mxu0 0
        %4394 = vmatpush1.bf16.msra.mxu0 0
        %4395 = vmatprep.subr.bf16.mxu0 0
        %4396 = vmatpush1.bf16.msra.mxu0 0
        %4397 = vmatprep.subr.bf16.mxu0 0
        %4398 = vmatpush1.bf16.msra.mxu0 0
        %4399 = vmatprep.subr.bf16.mxu0 0
        %4400 = vmatpush1.bf16.msra.mxu0 0
        %4401 = vmatprep.subr.bf16.mxu0 0
        %4402 = vmatpush1.bf16.msra.mxu0 0
        %4403 = vmatprep.subr.bf16.mxu0 0
        %4404 = vmatpush1.bf16.msra.mxu0 0
        %4405 = vmatprep.mubr.bf16.mxu0 0
        %4406 = vmatmul.mubr.bf16.gmra.mrb[0].mxu0 %v4175
        %v4407 = vpop.f32.mrb[0].mxu0
        %v4408 = vadd.f32 0.0, %v4407
        %v4409 = vpop.f32.mrb[0].mxu0
        %v4410 = vadd.f32 0.0, %v4409
        %v4411 = vpop.f32.mrb[0].mxu0
        %v4412 = vpop.f32.mrb[0].mxu0
        %4413 = vdwg.mxu0
        %4414 = vmatprep.subr.bf16.mxu0 %v4312
        %4415 = vmatpush1.bf16.msra.mxu0 %v4311
        %4416 = vmatprep.subr.bf16.mxu0 %v4316
        %4417 = vmatpush1.bf16.msra.mxu0 %v4315
        %4418 = vmatprep.subr.bf16.mxu0 %v4320
        %4419 = vmatpush1.bf16.msra.mxu0 %v4319
        %4420 = vmatprep.subr.bf16.mxu0 %v4324
        %4421 = vmatpush1.bf16.msra.mxu0 %v4323
        %4422 = vmatprep.subr.bf16.mxu0 %v4328
        %4423 = vmatpush1.bf16.msra.mxu0 %v4327
        %4424 = vmatprep.subr.bf16.mxu0 %v4332
        %4425 = vmatpush1.bf16.msra.mxu0 %v4331
        %4426 = vmatprep.subr.bf16.mxu0 %v4336
        %4427 = vmatpush1.bf16.msra.mxu0 %v4335
        %4428 = vmatprep.subr.bf16.mxu0 %v4340
        %4429 = vmatpush1.bf16.msra.mxu0 %v4339
        %4430 = vmatprep.subr.bf16.mxu0 0
        %4431 = vmatpush1.bf16.msra.mxu0 0
        %4432 = vmatprep.subr.bf16.mxu0 0
        %4433 = vmatpush1.bf16.msra.mxu0 0
        %4434 = vmatprep.subr.bf16.mxu0 0
        %4435 = vmatpush1.bf16.msra.mxu0 0
        %4436 = vmatprep.subr.bf16.mxu0 0
        %4437 = vmatpush1.bf16.msra.mxu0 0
        %4438 = vmatprep.subr.bf16.mxu0 0
        %4439 = vmatpush1.bf16.msra.mxu0 0
        %4440 = vmatprep.subr.bf16.mxu0 0
        %4441 = vmatpush1.bf16.msra.mxu0 0
        %4442 = vmatprep.subr.bf16.mxu0 0
        %4443 = vmatpush1.bf16.msra.mxu0 0
        %4444 = vmatprep.subr.bf16.mxu0 0
        %4445 = vmatpush1.bf16.msra.mxu0 0
        %4446 = vmatprep.mubr.bf16.mxu0 0
        %4447 = vmatmul.mubr.bf16.gmra.mrb[0].mxu0 %v4175
        %v4448 = vpop.f32.mrb[0].mxu0
        %v4449 = vadd.f32 0.0, %v4448
        %v4450 = vpop.f32.mrb[0].mxu0
        %v4451 = vadd.f32 0.0, %v4450
        %v4452 = vpop.f32.mrb[0].mxu0
        %v4453 = vpop.f32.mrb[0].mxu0
        %4454 = vdwg.mxu0
        %v4455 = vadd.f32 %v4177, %v4408
        %v4456 = vadd.f32 %v4178, %v4410
        %v4457 = vadd.f32 %v4179, %v4449
        %v4458 = vadd.f32 %v4180, %v4451
        %v4459 = vxor.u32 %v4455, 2147483648
        %v4460 = vmul.f32 %v4459, 1.442695
        %v4461 = vpow.pop %v4460
        %v4462 = vadd.f32 %v4461, 1.0
        %v4463 = vrcp.pop %v4462
        %v4464 = vmul.f32 1.0, %v4463
        %v4465 = vxor.u32 %v4456, 2147483648
        %v4466 = vmul.f32 %v4465, 1.442695
        %v4467 = vpow.pop %v4466
        %v4468 = vadd.f32 %v4467, 1.0
        %v4469 = vrcp.pop %v4468
        %v4470 = vmul.f32 1.0, %v4469
        %v4471 = vtanh.pop %v4457
        %v4472 = vxor.u32 %v4458, 2147483648
        %v4473 = vmul.f32 %v4472, 1.442695
        %v4474 = vpow.pop %v4473
        %v4475 = vadd.f32 %v4474, 1.0
        %v4476 = vrcp.pop %v4475
        %v4477 = vmul.f32 1.0, %v4476
        %v4478 = vmul.f32 %v4470, %v4176
        %v4479 = vmul.f32 %v4464, %v4471
        %v4480 = vadd.f32 %v4478, %v4479
        %v4481 = vtanh.pop %v4480
        %v4482 = vmul.f32 %v4477, %v4481
        %v4483 = vpack.c.bf16 %v4482, %v4482
        %4484 = vst [vmem:[%s3240] sm:$0xf] %v4483
        %4485 = vst [vmem:[%s3242] sm:$0xff] %v4480
        %p4486 = scmp.eq.s32.totalorder %s28, 1
        // Predicated region
        $region77: #{lstm_model_forward.1} parent=55 // pred_check
          %p4487 = pneg %p4486
        $region78: #{lstm_model_forward.1} parent=55 // pred_check_branch
          %4489 = sbr.rel (%p4487) target = $region80
        $region79: #{lstm_model_forward.1} parent=55 // pred_region
          %v4490 = vld [vmem:[%s3240] sm:$0xf]
          %v4491 = vld [vmem:[%s7] sm:$0xf]
          %v4492 = vld [vmem:[%s7 + $0x4] sm:$0xf]
          %v4493 = vld [vmem:[%s7 + $0x8] sm:$0xf]
          %v4494 = vld [vmem:[%s7 + $0xc] sm:$0xf]
          %v4495 = vld [vmem:[%s7 + $0x10] sm:$0xf]
          %v4496 = vld [vmem:[%s7 + $0x14] sm:$0xf]
          %v4497 = vld [vmem:[%s7 + $0x18] sm:$0xf]
          %v4498 = vld [vmem:[%s7 + $0x1c] sm:$0xf]
          %v4499 = vld [vmem:[%s7 + $0x20] sm:$0xf]
          %v4500 = vld [vmem:[%s7 + $0x24] sm:$0xf]
          %v4501 = vld [vmem:[%s7 + $0x28] sm:$0xf]
          %v4502 = vld [vmem:[%s7 + $0x2c] sm:$0xf]
          %v4503 = vld [vmem:[%s7 + $0x30] sm:$0xf]
          %v4504 = vld [vmem:[%s7 + $0x34] sm:$0xf]
          %v4505 = vld [vmem:[%s7 + $0x38] sm:$0xf]
          %v4506 = vld [vmem:[%s7 + $0x3c] sm:$0xf]
          %v4507 = vld [vmem:[%s8] sm:$0x1]
          %v4509 = vlaneseq
          %v4510 = vshrl.u32 %v4509, 7
          %v4511 = vsub.s32 0, %v4510
          %v4512 = vrot.slane %v4507, %v4511
          %v4530 = vunpack.c.l.b16 %v4491
          %v4531 = vunpack.c.l.b16 %v4492
          %v4532 = vunpack.c.l.b16 %v4493
          %v4533 = vunpack.c.l.b16 %v4494
          %v4534 = vunpack.c.l.b16 %v4495
          %v4535 = vunpack.c.l.b16 %v4496
          %v4536 = vunpack.c.l.b16 %v4497
          %v4537 = vunpack.c.l.b16 %v4498
          %v4538 = vunpack.c.l.b16 %v4499
          %v4539 = vunpack.c.l.b16 %v4500
          %v4540 = vunpack.c.l.b16 %v4501
          %v4541 = vunpack.c.l.b16 %v4502
          %v4542 = vunpack.c.l.b16 %v4503
          %v4543 = vunpack.c.l.b16 %v4504
          %v4544 = vunpack.c.l.b16 %v4505
          %v4545 = vunpack.c.l.b16 %v4506
          %v4546 = vpack.c.b16 %v4531, %v4530
          %v4547 = vpack.c.b16 %v4533, %v4532
          %v4548 = vpack.c.b16 %v4535, %v4534
          %v4549 = vpack.c.b16 %v4537, %v4536
          %v4550 = vpack.c.b16 %v4539, %v4538
          %v4551 = vpack.c.b16 %v4541, %v4540
          %v4552 = vpack.c.b16 %v4543, %v4542
          %v4553 = vpack.c.b16 %v4545, %v4544
          %4562 = vmatprep.subr.bf16.mxu0 0
          %4563 = vmatpush1.bf16.msra.mxu0 %v4546
          %4564 = vmatprep.subr.bf16.mxu0 0
          %4565 = vmatpush1.bf16.msra.mxu0 %v4547
          %4566 = vmatprep.subr.bf16.mxu0 0
          %4567 = vmatpush1.bf16.msra.mxu0 %v4548
          %4568 = vmatprep.subr.bf16.mxu0 0
          %4569 = vmatpush1.bf16.msra.mxu0 %v4549
          %4570 = vmatprep.subr.bf16.mxu0 0
          %4571 = vmatpush1.bf16.msra.mxu0 %v4550
          %4572 = vmatprep.subr.bf16.mxu0 0
          %4573 = vmatpush1.bf16.msra.mxu0 %v4551
          %4574 = vmatprep.subr.bf16.mxu0 0
          %4575 = vmatpush1.bf16.msra.mxu0 %v4552
          %4576 = vmatprep.subr.bf16.mxu0 0
          %4577 = vmatpush1.bf16.msra.mxu0 %v4553
          %4578 = vmatprep.subr.bf16.mxu0 0
          %4579 = vmatpush1.bf16.msra.mxu0 0
          %4580 = vmatprep.subr.bf16.mxu0 0
          %4581 = vmatpush1.bf16.msra.mxu0 0
          %4582 = vmatprep.subr.bf16.mxu0 0
          %4583 = vmatpush1.bf16.msra.mxu0 0
          %4584 = vmatprep.subr.bf16.mxu0 0
          %4585 = vmatpush1.bf16.msra.mxu0 0
          %4586 = vmatprep.subr.bf16.mxu0 0
          %4587 = vmatpush1.bf16.msra.mxu0 0
          %4588 = vmatprep.subr.bf16.mxu0 0
          %4589 = vmatpush1.bf16.msra.mxu0 0
          %4590 = vmatprep.subr.bf16.mxu0 0
          %4591 = vmatpush1.bf16.msra.mxu0 0
          %4592 = vmatprep.subr.bf16.mxu0 0
          %4593 = vmatpush1.bf16.msra.mxu0 0
          %4594 = vmatprep.mubr.bf16.mxu0 0
          %4595 = vmatmul.mubr.bf16.gmra.mrb[0].mxu0 %v4490
          %v4596 = vpop.f32.mrb[0].mxu0
          %v4597 = vadd.f32 %v4512, %v4596
          %v4598 = vpop.f32.mrb[0].mxu0
          %v4599 = vpop.f32.mrb[0].mxu0
          %v4600 = vpop.f32.mrb[0].mxu0
          %4601 = vdwg.mxu0
          %4602 = vst [vmem:[%s414] sm:$0xff] %v4597
        $region80: #{lstm_model_forward.1} parent=55 // pred_fallthru
          _
        %p4603 = scmp.lt.s32.totalorder %s27, 0
        %s4604 = scalar_select %p4603, %s27, 0
        %s4605 = smul.addr %s4604, 8
        %s4606 = scalar_lea.vmem %s9, %s4605
        // Predicated region
        $region81: #{lstm_model_forward.1} parent=55 // pred_check
          %p4607 = pneg %p249
        $region82: #{lstm_model_forward.1} parent=55 // pred_check_branch
          %4609 = sbr.rel (%p4607) target = $region84
        $region83: #{lstm_model_forward.1} parent=55 // pred_region
          _
        $region84: #{lstm_model_forward.1} parent=55 // pred_fallthru
          _
        // Predicated region
        $region85: #{lstm_model_forward.1} parent=55 // pred_check
          %p4610 = pneg %p249
        $region86: #{lstm_model_forward.1} parent=55 // pred_check_branch
          %4612 = sbr.rel (%p4610) target = $region88
        $region87: #{lstm_model_forward.1} parent=55 // pred_region
          %p4613 = scmp.lt.s32.totalorder %s27, 0
          %s4614 = scalar_select %p4613, %s27, 0
          %s4615 = smul.addr %s4614, 8
          %s4616 = scalar_lea.vmem %s9, %s4615
        $region88: #{lstm_model_forward.1} parent=55 // pred_fallthru
          _
      $region56: #{lstm_model_forward.1} parent=5 // pred_fallthru
        _
      %p4617 = scmp.le.s32.totalorder 2, %s18
      // Predicated region
      $region89: #{lstm_model_forward.1} parent=5 // pred_check
        %p4618 = pneg %p4617
      $region90: #{lstm_model_forward.1} parent=5 // pred_check_branch
        %4620 = sbr.rel (%p4618) target = $region92
      $region91: #{lstm_model_forward.1} parent=5 // pred_region
        %s4621 = ssub.s32 %s18, 2
      $region92: #{lstm_model_forward.1} parent=5 // pred_fallthru
        _
    $region6: #{lstm_model_forward.1} parent=1 // loop_footer
      %s22 = sadd.s32 1, %s18
    $region7: #{lstm_model_forward.1} parent=1 // loop_footer_branch
      %17 = sbr.rel target = $region3
    $region8: #{lstm_model_forward.1} parent=1 // loop_exit
      _
    %4622 = vsyncpa [#allocation7], 1
    %s4623 = scalar_lea.sflag [#allocation7], 1
    %4624 = vsyncpa %s4623, 1
    %4625 = vsyncpa [#allocation9], 1
    %4626 = vsyncpa [#allocation12], 1

// kernel: lstm_model_forward.1
$region0: #{lstm_model_forward.1}
  #allocation0 [shape = 'u32[]', space=smem, size = 0x4, offset = 0x4, fixed_abs, tag = 'smem constant byte address 0x4 - core index']
  #allocation1 [shape = 'u32[144,128]{1,0:T(1,128)}', space=vmem, size = 0x12000, scoped, tag = 'internal scratch']
  #allocation2 [shape = 'bf16[2,8,128]{2,1,0:T(8,128)(2,1)}', space=vmem, size = 0x1000, scoped, tag = 'scratch operand']
  #allocation3 [shape = 'f32[2,8,128]{2,1,0:T(8,128)}', space=vmem, size = 0x2000, scoped, tag = 'scratch operand']
  #allocation4 [shape = 'f32[32,512]{1,0:T(8,128)}', space=vmem, size = 0x10000, scoped, tag = 'scratch operand']
  #allocation5 [shape = 'f32[32,512]{1,0:T(8,128)}', space=vmem, size = 0x10000, scoped, tag = 'scratch operand']
  %s0 = inlined_call_operand.vmem [shape: bf16[8,8,128], index: 0, kind: input, shape index: {}]
  %s1 = inlined_call_operand.hbm [shape: bf16[128,512], index: 1, kind: input, shape index: {}]
  %s2 = inlined_call_operand.hbm [shape: bf16[128,512], index: 2, kind: input, shape index: {}]
  %s3 = inlined_call_operand.vmem [shape: f32[1,512], index: 3, kind: input, shape index: {}]
  %s4 = inlined_call_operand.hbm [shape: bf16[128,512], index: 4, kind: input, shape index: {}]
  %s5 = inlined_call_operand.hbm [shape: bf16[128,512], index: 5, kind: input, shape index: {}]
  %s6 = inlined_call_operand.vmem [shape: f32[1,512], index: 6, kind: input, shape index: {}]
  %s7 = inlined_call_operand.vmem [shape: bf16[128,128], index: 7, kind: input, shape index: {}]
  %s8 = inlined_call_operand.vmem [shape: f32[1,128], index: 8, kind: input, shape index: {}]
  %s9 = inlined_call_operand.vmem [shape: f32[8,128], index: 9, kind: output, shape index: {}]
  %s10 = sld [smem:[#allocation0]]
  $region93: #{lstm_model_forward.1} parent=0
    _
  %s12 = ssub.s32 1, %s10
  %s13 = scalar_select 0, %s12, %s10
  $region1: #{lstm_model_forward.1} parent=0
    #allocation6 [shape = 'u8[131072]{0}', space=vmem, size = 0x20000, scoped, tag = 'input window, operand 1, single buffered']
    #allocation7 [shape = 's32[2]{0}', space=sflag, size = 0x8, scoped, tag = 'scoped memory for lstm_model_forward.1']
    #allocation8 [shape = 'u8[131072]{0}', space=vmem, size = 0x20000, scoped, tag = 'input window, operand 2, single buffered']
    #allocation9 [shape = 's32[1]{0}', space=sflag, size = 0x4, scoped, tag = 'scoped memory for lstm_model_forward.1']
    #allocation10 [shape = 'u8[131072]{0}', space=vmem, size = 0x20000, scoped, tag = 'input window, operand 4, single buffered']
    #allocation11 [shape = 'u8[131072]{0}', space=vmem, size = 0x20000, scoped, tag = 'input window, operand 5, single buffered']
    #allocation12 [shape = 's32[1]{0}', space=sflag, size = 0x4, scoped, tag = 'scoped memory for lstm_model_forward.1']
    %14 = vsyncpa [#allocation7], 0
    %15 = vsyncpa [#allocation9], 0
    %16 = vsyncpa [#allocation12], 0
    loop: start=0, step=1, limit=4
    $region2: #{lstm_model_forward.1} parent=1 // loop_pre_header
      _
    $region3: #{lstm_model_forward.1} parent=1 // loop_header
      %s18 = sphi 0, %s22
      %p19 = scmp.ge.s32.totalorder %s18, 4
      %s25 = sphi 0, %s37
      %s26 = sphi 0, %s33
      %s27 = sphi 0, %s25
      %s28 = sphi 0, %s26
      %s29 = sphi 0, %s27
      %s30 = sphi 0, %s28
      %s42 = sphi 0, %s44
      %s45 = sphi 0, %s42
      %s46 = sphi 0, %s45
      %s62 = sphi 0, %s46
      %s66 = sphi 0, %s66
      %s68 = sphi 0, %s66
      %s69 = sphi 0, %s68
      %s83 = sphi 0, %s69
      %s87 = sphi 0, %s87
      %s89 = sphi 0, %s87
      %s90 = sphi 0, %s89
      %s104 = sphi 0, %s90
      %s108 = sphi 0, %s108
      %s110 = sphi 0, %s108
      %s111 = sphi 0, %s110
      %s125 = sphi 0, %s111
      %s129 = sphi 0, %s129
      %s131 = sphi 0, %s129
      %s132 = sphi 0, %s131
      %s146 = sphi 0, %s132
      %s150 = sphi 0, %s150
      %s152 = sphi 0, %s150
      %s153 = sphi 0, %s152
      %s167 = sphi 0, %s153
      %s171 = sphi 0, %s171
      %s173 = sphi 0, %s171
      %s174 = sphi 0, %s173
      %s188 = sphi 0, %s174
      %s192 = sphi 0, %s192
      %s194 = sphi 0, %s192
      %s195 = sphi 0, %s194
      %s209 = sphi 0, %s195
      %s213 = sphi 0, %s213
      %s215 = sphi 0, %s213
      %s216 = sphi 0, %s215
      %s230 = sphi 0, %s216
      %s236 = sphi 0, %s238
      %s239 = sphi 0, %s236
      %s240 = sphi 0, %s239
      %s256 = sphi 0, %s240
    $region4: #{lstm_model_forward.1} parent=1 // loop_header_branch
      %21 = sbr.rel (%p19) target = $region8
    $region5: #{lstm_model_forward.1} parent=1 // loop_body
      %s23 = ssub.s32 %s18, 1
      %s24 = ssub.s32 %s18, 2
      %s31 = sadd.s32 1, %s26
      %p32 = scmp.ge.s32.totalorder %s31, 2
      %s33 = scalar_select %p32, 0, %s31
      %s34 = sadd.s32 1, %s25
      %s35 = scalar_select %p32, %s34, %s25
      %p36 = scmp.ge.s32.totalorder %s35, 1
      %s37 = scalar_select %p36, 0, %s35
      %s38 = ssub.s32 %s26, %s33
      %s39 = ssub.s32 %s25, %s37
      %s40 = sor.u32 %s38, %s39
      %p41 = scmp.eq.s32.totalorder %s40, 0
      %s43 = sadd.s32 %s42, 1
      %s44 = scalar_select %p41, %s42, %s43
      %p47 = pneg %p41
      %p48 = scmp.eq.s32.totalorder %s18, 1
      %p49 = por %p47, %p48
      %p50 = scmp.ne.s32.totalorder %s42, %s45
      %p51 = scmp.eq.s32.totalorder %s18, 0
      %p52 = por %p50, %p51
      %p53 = scmp.ne.s32.totalorder %s42, %s45
      %p54 = scmp.eq.s32.totalorder %s23, 1
      %p55 = por %p53, %p54
      %p56 = scmp.ne.s32.totalorder %s45, %s46
      %p57 = scmp.eq.s32.totalorder %s23, 0
      %p58 = por %p56, %p57
      %p59 = scmp.ne.s32.totalorder %s45, %s46
      %p60 = scmp.eq.s32.totalorder %s24, 1
      %p61 = por %p59, %p60
      %p63 = scmp.ne.s32.totalorder %s46, %s62
      %p64 = scmp.eq.s32.totalorder %s24, 0
      %p65 = por %p63, %p64
      %s67 = sadd.s32 %s66, 1
      %p70 = scmp.eq.s32.totalorder %s18, 1
      %p71 = scmp.ne.s32.totalorder %s66, %s68
      %p72 = scmp.eq.s32.totalorder %s18, 0
      %p73 = por %p71, %p72
      %p74 = scmp.ne.s32.totalorder %s66, %s68
      %p75 = scmp.eq.s32.totalorder %s23, 1
      %p76 = por %p74, %p75
      %p77 = scmp.ne.s32.totalorder %s68, %s69
      %p78 = scmp.eq.s32.totalorder %s23, 0
      %p79 = por %p77, %p78
      %p80 = scmp.ne.s32.totalorder %s68, %s69
      %p81 = scmp.eq.s32.totalorder %s24, 1
      %p82 = por %p80, %p81
      %p84 = scmp.ne.s32.totalorder %s69, %s83
      %p85 = scmp.eq.s32.totalorder %s24, 0
      %p86 = por %p84, %p85
      %s88 = sadd.s32 %s87, 1
      %p91 = scmp.eq.s32.totalorder %s18, 1
      %p92 = scmp.ne.s32.totalorder %s87, %s89
      %p93 = scmp.eq.s32.totalorder %s18, 0
      %p94 = por %p92, %p93
      %p95 = scmp.ne.s32.totalorder %s87, %s89
      %p96 = scmp.eq.s32.totalorder %s23, 1
      %p97 = por %p95, %p96
      %p98 = scmp.ne.s32.totalorder %s89, %s90
      %p99 = scmp.eq.s32.totalorder %s23, 0
      %p100 = por %p98, %p99
      %p101 = scmp.ne.s32.totalorder %s89, %s90
      %p102 = scmp.eq.s32.totalorder %s24, 1
      %p103 = por %p101, %p102
      %p105 = scmp.ne.s32.totalorder %s90, %s104
      %p106 = scmp.eq.s32.totalorder %s24, 0
      %p107 = por %p105, %p106
      %s109 = sadd.s32 %s108, 1
      %p112 = scmp.eq.s32.totalorder %s18, 1
      %p113 = scmp.ne.s32.totalorder %s108, %s110
      %p114 = scmp.eq.s32.totalorder %s18, 0
      %p115 = por %p113, %p114
      %p116 = scmp.ne.s32.totalorder %s108, %s110
      %p117 = scmp.eq.s32.totalorder %s23, 1
      %p118 = por %p116, %p117
      %p119 = scmp.ne.s32.totalorder %s110, %s111
      %p120 = scmp.eq.s32.totalorder %s23, 0
      %p121 = por %p119, %p120
      %p122 = scmp.ne.s32.totalorder %s110, %s111
      %p123 = scmp.eq.s32.totalorder %s24, 1
      %p124 = por %p122, %p123
      %p126 = scmp.ne.s32.totalorder %s111, %s125
      %p127 = scmp.eq.s32.totalorder %s24, 0
      %p128 = por %p126, %p127
      %s130 = sadd.s32 %s129, 1
      %p133 = scmp.eq.s32.totalorder %s18, 1
      %p134 = scmp.ne.s32.totalorder %s129, %s131
      %p135 = scmp.eq.s32.totalorder %s18, 0
      %p136 = por %p134, %p135
      %p137 = scmp.ne.s32.totalorder %s129, %s131
      %p138 = scmp.eq.s32.totalorder %s23, 1
      %p139 = por %p137, %p138
      %p140 = scmp.ne.s32.totalorder %s131, %s132
      %p141 = scmp.eq.s32.totalorder %s23, 0
      %p142 = por %p140, %p141
      %p143 = scmp.ne.s32.totalorder %s131, %s132
      %p144 = scmp.eq.s32.totalorder %s24, 1
      %p145 = por %p143, %p144
      %p147 = scmp.ne.s32.totalorder %s132, %s146
      %p148 = scmp.eq.s32.totalorder %s24, 0
      %p149 = por %p147, %p148
      %s151 = sadd.s32 %s150, 1
      %p154 = scmp.eq.s32.totalorder %s18, 1
      %p155 = scmp.ne.s32.totalorder %s150, %s152
      %p156 = scmp.eq.s32.totalorder %s18, 0
      %p157 = por %p155, %p156
      %p158 = scmp.ne.s32.totalorder %s150, %s152
      %p159 = scmp.eq.s32.totalorder %s23, 1
      %p160 = por %p158, %p159
      %p161 = scmp.ne.s32.totalorder %s152, %s153
      %p162 = scmp.eq.s32.totalorder %s23, 0
      %p163 = por %p161, %p162
      %p164 = scmp.ne.s32.totalorder %s152, %s153
      %p165 = scmp.eq.s32.totalorder %s24, 1
      %p166 = por %p164, %p165
      %p168 = scmp.ne.s32.totalorder %s153, %s167
      %p169 = scmp.eq.s32.totalorder %s24, 0
      %p170 = por %p168, %p169
      %s172 = sadd.s32 %s171, 1
      %p175 = scmp.eq.s32.totalorder %s18, 1
      %p176 = scmp.ne.s32.totalorder %s171, %s173
      %p177 = scmp.eq.s32.totalorder %s18, 0
      %p178 = por %p176, %p177
      %p179 = scmp.ne.s32.totalorder %s171, %s173
      %p180 = scmp.eq.s32.totalorder %s23, 1
      %p181 = por %p179, %p180
      %p182 = scmp.ne.s32.totalorder %s173, %s174
      %p183 = scmp.eq.s32.totalorder %s23, 0
      %p184 = por %p182, %p183
      %p185 = scmp.ne.s32.totalorder %s173, %s174
      %p186 = scmp.eq.s32.totalorder %s24, 1
      %p187 = por %p185, %p186
      %p189 = scmp.ne.s32.totalorder %s174, %s188
      %p190 = scmp.eq.s32.totalorder %s24, 0
      %p191 = por %p189, %p190
      %s193 = sadd.s32 %s192, 1
      %p196 = scmp.eq.s32.totalorder %s18, 1
      %p197 = scmp.ne.s32.totalorder %s192, %s194
      %p198 = scmp.eq.s32.totalorder %s18, 0
      %p199 = por %p197, %p198
      %p200 = scmp.ne.s32.totalorder %s192, %s194
      %p201 = scmp.eq.s32.totalorder %s23, 1
      %p202 = por %p200, %p201
      %p203 = scmp.ne.s32.totalorder %s194, %s195
      %p204 = scmp.eq.s32.totalorder %s23, 0
      %p205 = por %p203, %p204
      %p206 = scmp.ne.s32.totalorder %s194, %s195
      %p207 = scmp.eq.s32.totalorder %s24, 1
      %p208 = por %p206, %p207
      %p210 = scmp.ne.s32.totalorder %s195, %s209
      %p211 = scmp.eq.s32.totalorder %s24, 0
      %p212 = por %p210, %p211
      %s214 = sadd.s32 %s213, 1
      %p217 = scmp.eq.s32.totalorder %s18, 1
      %p218 = scmp.ne.s32.totalorder %s213, %s215
      %p219 = scmp.eq.s32.totalorder %s18, 0
      %p220 = por %p218, %p219
      %p221 = scmp.ne.s32.totalorder %s213, %s215
      %p222 = scmp.eq.s32.totalorder %s23, 1
      %p223 = por %p221, %p222
      %p224 = scmp.ne.s32.totalorder %s215, %s216
      %p225 = scmp.eq.s32.totalorder %s23, 0
      %p226 = por %p224, %p225
      %p227 = scmp.ne.s32.totalorder %s215, %s216
      %p228 = scmp.eq.s32.totalorder %s24, 1
      %p229 = por %p227, %p228
      %p231 = scmp.ne.s32.totalorder %s216, %s230
      %p232 = scmp.eq.s32.totalorder %s24, 0
      %p233 = por %p231, %p232
      %s234 = ssub.s32 %s25, %s37
      %p235 = scmp.eq.s32.totalorder %s234, 0
      %s237 = sadd.s32 %s236, 1
      %s238 = scalar_select %p235, %s236, %s237
      %p241 = pneg %p235
      %p242 = scmp.eq.s32.totalorder %s18, 1
      %p243 = por %p241, %p242
      %p244 = scmp.ne.s32.totalorder %s236, %s239
      %p245 = scmp.eq.s32.totalorder %s18, 0
      %p246 = por %p244, %p245
      %p247 = scmp.ne.s32.totalorder %s236, %s239
      %p248 = scmp.eq.s32.totalorder %s23, 1
      %p249 = por %p247, %p248
      %p250 = scmp.ne.s32.totalorder %s239, %s240
      %p251 = scmp.eq.s32.totalorder %s23, 0
      %p252 = por %p250, %p251
      %p253 = scmp.ne.s32.totalorder %s239, %s240
      %p254 = scmp.eq.s32.totalorder %s24, 1
      %p255 = por %p253, %p254
      %p257 = scmp.ne.s32.totalorder %s240, %s256
      %p258 = scmp.eq.s32.totalorder %s24, 0
      %p259 = por %p257, %p258
      %p260 = scmp.le.s32.totalorder 1, %s18
      %p261 = scmp.lt.s32.totalorder %s18, 3
      %p262 = pnand %p260, %p261
      %p263 = pneg %p262
      // Predicated region
      $region9: #{lstm_model_forward.1} parent=5 // pred_check
        _
      $region10: #{lstm_model_forward.1} parent=5 // pred_check_branch
        %265 = sbr.rel (%p262) target = $region12
      $region11: #{lstm_model_forward.1} parent=5 // pred_region
        %s266 = ssub.s32 %s18, 1
        // Predicated region
        $region13: #{lstm_model_forward.1} parent=11 // pred_check
          %p267 = pneg %p79
        $region14: #{lstm_model_forward.1} parent=11 // pred_check_branch
          %269 = sbr.rel (%p267) target = $region16
        $region15: #{lstm_model_forward.1} parent=11 // pred_region
          %s271 = ssub.s32 4096, 4096
          %272 = vsyncadd [#allocation7], %s271
          %s273 = sshll.u32 [#allocation6], 4
          %s274 = int_to_ptr.vmem [resolvable:$true] %s273
          %279 = dma.hbm_to_vmem [thread:$0]  %s1, 4096, %s274, [#allocation7], 256, 256, 16
        $region16: #{lstm_model_forward.1} parent=11 // pred_fallthru
          _
        // Predicated region
        $region17: #{lstm_model_forward.1} parent=11 // pred_check
          %p280 = pneg %p100
        $region18: #{lstm_model_forward.1} parent=11 // pred_check_branch
          %282 = sbr.rel (%p280) target = $region20
        $region19: #{lstm_model_forward.1} parent=11 // pred_region
          %s284 = ssub.s32 4096, 4096
          %285 = vsyncadd [#allocation9], %s284
          %s286 = sshll.u32 [#allocation8], 4
          %s287 = int_to_ptr.vmem [resolvable:$true] %s286
          %292 = dma.hbm_to_vmem [thread:$0]  %s2, 4096, %s287, [#allocation9], 256, 256, 16
        $region20: #{lstm_model_forward.1} parent=11 // pred_fallthru
          _
        // Predicated region
        $region21: #{lstm_model_forward.1} parent=11 // pred_check
          %p293 = pneg %p121
        $region22: #{lstm_model_forward.1} parent=11 // pred_check_branch
          %295 = sbr.rel (%p293) target = $region24
        $region23: #{lstm_model_forward.1} parent=11 // pred_region
          _
        $region24: #{lstm_model_forward.1} parent=11 // pred_fallthru
          _
        // Predicated region
        $region25: #{lstm_model_forward.1} parent=11 // pred_check
          %p296 = pneg %p142
        $region26: #{lstm_model_forward.1} parent=11 // pred_check_branch
          %298 = sbr.rel (%p296) target = $region28
        $region27: #{lstm_model_forward.1} parent=11 // pred_region
          %s300 = ssub.s32 4096, 4096
          %301 = vsyncadd [#allocation9], %s300
          %s302 = sshll.u32 [#allocation10], 4
          %s303 = int_to_ptr.vmem [resolvable:$true] %s302
          %308 = dma.hbm_to_vmem [thread:$0]  %s4, 4096, %s303, [#allocation9], 256, 256, 16
        $region28: #{lstm_model_forward.1} parent=11 // pred_fallthru
          _
        // Predicated region
        $region29: #{lstm_model_forward.1} parent=11 // pred_check
          %p309 = pneg %p163
        $region30: #{lstm_model_forward.1} parent=11 // pred_check_branch
          %311 = sbr.rel (%p309) target = $region32
        $region31: #{lstm_model_forward.1} parent=11 // pred_region
          %s313 = ssub.s32 4096, 4096
          %314 = vsyncadd [#allocation12], %s313
          %s315 = sshll.u32 [#allocation11], 4
          %s316 = int_to_ptr.vmem [resolvable:$true] %s315
          %321 = dma.hbm_to_vmem [thread:$0]  %s5, 4096, %s316, [#allocation12], 256, 256, 16
        $region32: #{lstm_model_forward.1} parent=11 // pred_fallthru
          _
        // Predicated region
        $region33: #{lstm_model_forward.1} parent=11 // pred_check
          %p322 = pneg %p184
        $region34: #{lstm_model_forward.1} parent=11 // pred_check_branch
          %324 = sbr.rel (%p322) target = $region36
        $region35: #{lstm_model_forward.1} parent=11 // pred_region
          _
        $region36: #{lstm_model_forward.1} parent=11 // pred_fallthru
          _
        // Predicated region
        $region37: #{lstm_model_forward.1} parent=11 // pred_check
          %p325 = pneg %p205
        $region38: #{lstm_model_forward.1} parent=11 // pred_check_branch
          %327 = sbr.rel (%p325) target = $region40
        $region39: #{lstm_model_forward.1} parent=11 // pred_region
          _
        $region40: #{lstm_model_forward.1} parent=11 // pred_fallthru
          _
        // Predicated region
        $region41: #{lstm_model_forward.1} parent=11 // pred_check
          %p328 = pneg %p226
        $region42: #{lstm_model_forward.1} parent=11 // pred_check_branch
          %330 = sbr.rel (%p328) target = $region44
        $region43: #{lstm_model_forward.1} parent=11 // pred_region
          _
        $region44: #{lstm_model_forward.1} parent=11 // pred_fallthru
          _
      $region12: #{lstm_model_forward.1} parent=5 // pred_fallthru
        _
      %p331 = scmp.lt.s32.totalorder %s18, 2
      // Predicated region
      $region45: #{lstm_model_forward.1} parent=5 // pred_check
        %p332 = pneg %p331
      $region46: #{lstm_model_forward.1} parent=5 // pred_check_branch
        %334 = sbr.rel (%p332) target = $region48
      $region47: #{lstm_model_forward.1} parent=5 // pred_region
        // Predicated region
        $region49: #{lstm_model_forward.1} parent=47 // pred_check
          %p335 = pneg %p52
        $region50: #{lstm_model_forward.1} parent=47 // pred_check_branch
          %337 = sbr.rel (%p335) target = $region52
        $region51: #{lstm_model_forward.1} parent=47 // pred_region
          %s338 = smul.u32 4, %s26
          %p339 = scmp.lt.s32.totalorder %s338, 7
          %s340 = scalar_select %p339, %s338, 7
          %p341 = scmp.lt.s32.totalorder %s25, 0
          %s342 = scalar_select %p341, %s25, 0
          %s343 = sadd.s32 %s342, %s340
          %s344 = smul.addr %s343, 4
          %s345 = scalar_lea.vmem %s0, %s344
          %s346 = smul.u32 4, %s26
        $region52: #{lstm_model_forward.1} parent=47 // pred_fallthru
          _
      $region48: #{lstm_model_forward.1} parent=5 // pred_fallthru
        _
      %p347 = scmp.le.s32.totalorder 1, %s18
      %p348 = scmp.lt.s32.totalorder %s18, 3
      %p349 = pnand %p347, %p348
      %p350 = pneg %p349
      // Predicated region
      $region53: #{lstm_model_forward.1} parent=5 // pred_check
        _
      $region54: #{lstm_model_forward.1} parent=5 // pred_check_branch
        %352 = sbr.rel (%p349) target = $region56
      $region55: #{lstm_model_forward.1} parent=5 // pred_region
        %s353 = ssub.s32 %s18, 1
        // Predicated region
        $region57: #{lstm_model_forward.1} parent=55 // pred_check
          %p354 = pneg %p79
        $region58: #{lstm_model_forward.1} parent=55 // pred_check_branch
          %356 = sbr.rel (%p354) target = $region60
        $region59: #{lstm_model_forward.1} parent=55 // pred_region
          %357 = dma.done [#allocation7], 4096
        $region60: #{lstm_model_forward.1} parent=55 // pred_fallthru
          _
        // Predicated region
        $region61: #{lstm_model_forward.1} parent=55 // pred_check
          %p358 = pneg %p100
        $region62: #{lstm_model_forward.1} parent=55 // pred_check_branch
          %360 = sbr.rel (%p358) target = $region64
        $region63: #{lstm_model_forward.1} parent=55 // pred_region
          %361 = dma.done [#allocation9], 4096
        $region64: #{lstm_model_forward.1} parent=55 // pred_fallthru
          _
        // Predicated region
        $region65: #{lstm_model_forward.1} parent=55 // pred_check
          %p362 = pneg %p142
        $region66: #{lstm_model_forward.1} parent=55 // pred_check_branch
          %364 = sbr.rel (%p362) target = $region68
        $region67: #{lstm_model_forward.1} parent=55 // pred_region
          %365 = dma.done [#allocation9], 4096
        $region68: #{lstm_model_forward.1} parent=55 // pred_fallthru
          _
        // Predicated region
        $region69: #{lstm_model_forward.1} parent=55 // pred_check
          %p366 = pneg %p163
        $region70: #{lstm_model_forward.1} parent=55 // pred_check_branch
          %368 = sbr.rel (%p366) target = $region72
        $region71: #{lstm_model_forward.1} parent=55 // pred_region
          %369 = dma.done [#allocation12], 4096
        $region72: #{lstm_model_forward.1} parent=55 // pred_fallthru
          _
        %s370 = smul.u32 4, %s28
        %p371 = scmp.lt.s32.totalorder %s370, 7
        %s372 = scalar_select %p371, %s370, 7
        %p373 = scmp.lt.s32.totalorder %s27, 0
        %s374 = scalar_select %p373, %s27, 0
        %s375 = sadd.s32 %s374, %s372
        %s376 = smul.addr %s375, 4
        %s377 = scalar_lea.vmem %s0, %s376
        %p378 = pneg %p58
        %p379 = pneg %p55
        %p380 = pneg %p79
        %p381 = pneg %p76
        %p382 = pneg %p100
        %p383 = pneg %p97
        %p384 = pneg %p121
        %p385 = pneg %p118
        %p386 = pneg %p142
        %p387 = pneg %p139
        %p388 = pneg %p163
        %p389 = pneg %p160
        %p390 = pneg %p184
        %p391 = pneg %p181
        %p392 = pneg %p205
        %p393 = pneg %p202
        %p394 = pneg %p226
        %p395 = pneg %p223
        %p396 = pneg %p252
        %p397 = pneg %p249
        %p398 = scmp.lt.s32.totalorder %s27, 0
        %s399 = scalar_select %p398, %s27, 0
        %s400 = smul.addr %s399, 8
        %s401 = scalar_lea.vmem %s9, %s400
        %s402 = smul.u32 4, %s28
        %p403 = scmp.lt.s32.totalorder %s402, 7
        %s404 = scalar_select %p403, %s402, 7
        %p405 = scmp.lt.s32.totalorder %s27, 0
        %s406 = scalar_select %p405, %s27, 0
        %s407 = sadd.s32 %s406, %s404
        %s408 = smul.addr %s407, 4
        %s409 = scalar_lea.vmem %s0, %s408
        %s410 = smul.u32 4, %s28
        %p411 = scmp.lt.s32.totalorder %s27, 0
        %s412 = scalar_select %p411, %s27, 0
        %s413 = smul.addr %s412, 8
        %s414 = scalar_lea.vmem %s9, %s413
        %p416 = scmp.eq.s32.totalorder %s28, 0
        // Predicated region
        $region73: #{lstm_model_forward.1} parent=55 // pred_check
          %p417 = pneg %p416
        $region74: #{lstm_model_forward.1} parent=55 // pred_check_branch
          %419 = sbr.rel (%p417) target = $region76
        $region75: #{lstm_model_forward.1} parent=55 // pred_region
          %420 = vst [vmem:[#allocation2] sm:$0xf] 0
          %421 = vst [vmem:[#allocation2 + $0x4] sm:$0xf] 0
          %422 = vst [vmem:[#allocation3] sm:$0xff] 0.0
          %423 = vst [vmem:[#allocation3 + $0x8] sm:$0xff] 0.0
        $region76: #{lstm_model_forward.1} parent=55 // pred_fallthru
          _
        %v424 = vld [vmem:[%s409] sm:$0xf]
        %v425 = vld [vmem:[%s409 + $0x4] sm:$0xf]
        %v426 = vld [vmem:[%s409 + $0x8] sm:$0xf]
        %v427 = vld [vmem:[%s409 + $0xc] sm:$0xf]
        %v428 = vld [vmem:[#allocation6] sm:$0xff]
        %v429 = vld [vmem:[#allocation6 + $0x8] sm:$0xff]
        %v430 = vld [vmem:[#allocation6 + $0x10] sm:$0xff]
        %v431 = vld [vmem:[#allocation6 + $0x18] sm:$0xff]
        %v432 = vld [vmem:[#allocation6 + $0x20] sm:$0xff]
        %v433 = vld [vmem:[#allocation6 + $0x28] sm:$0xff]
        %v434 = vld [vmem:[#allocation6 + $0x30] sm:$0xff]
        %v435 = vld [vmem:[#allocation6 + $0x38] sm:$0xff]
        %v436 = vld [vmem:[#allocation6 + $0x40] sm:$0xff]
        %v437 = vld [vmem:[#allocation6 + $0x48] sm:$0xff]
        %v438 = vld [vmem:[#allocation6 + $0x50] sm:$0xff]
        %v439 = vld [vmem:[#allocation6 + $0x58] sm:$0xff]
        %v440 = vld [vmem:[#allocation6 + $0x60] sm:$0xff]
        %v441 = vld [vmem:[#allocation6 + $0x68] sm:$0xff]
        %v442 = vld [vmem:[#allocation6 + $0x70] sm:$0xff]
        %v443 = vld [vmem:[#allocation6 + $0x78] sm:$0xff]
        %v444 = vld [vmem:[#allocation6 + $0x80] sm:$0xff]
        %v445 = vld [vmem:[#allocation6 + $0x88] sm:$0xff]
        %v446 = vld [vmem:[#allocation6 + $0x90] sm:$0xff]
        %v447 = vld [vmem:[#allocation6 + $0x98] sm:$0xff]
        %v448 = vld [vmem:[#allocation6 + $0xa0] sm:$0xff]
        %v449 = vld [vmem:[#allocation6 + $0xa8] sm:$0xff]
        %v450 = vld [vmem:[#allocation6 + $0xb0] sm:$0xff]
        %v451 = vld [vmem:[#allocation6 + $0xb8] sm:$0xff]
        %v452 = vld [vmem:[#allocation6 + $0xc0] sm:$0xff]
        %v453 = vld [vmem:[#allocation6 + $0xc8] sm:$0xff]
        %v454 = vld [vmem:[#allocation6 + $0xd0] sm:$0xff]
        %v455 = vld [vmem:[#allocation6 + $0xd8] sm:$0xff]
        %v456 = vld [vmem:[#allocation6 + $0xe0] sm:$0xff]
        %v457 = vld [vmem:[#allocation6 + $0xe8] sm:$0xff]
        %v458 = vld [vmem:[#allocation6 + $0xf0] sm:$0xff]
        %v459 = vld [vmem:[#allocation6 + $0xf8] sm:$0xff]
        %v460 = vld [vmem:[%s3] sm:$0xf]
        %v462 = vlaneseq
        %v463 = vshrl.u32 %v462, 7
        %v464 = vsub.s32 0, %v463
        %v465 = vrot.slane %v460, %v464
        %v466 = vlaneseq
        %v467 = vshrl.u32 %v466, 7
        %v468 = vsub.s32 1, %v467
        %v469 = vrot.slane %v460, %v468
        %v470 = vlaneseq
        %v471 = vshrl.u32 %v470, 7
        %v472 = vsub.s32 2, %v471
        %v473 = vrot.slane %v460, %v472
        %v474 = vlaneseq
        %v475 = vshrl.u32 %v474, 7
        %v476 = vsub.s32 3, %v475
        %v477 = vrot.slane %v460, %v476
        %v486 = vunpack.c.l.b16 %v424
        %v487 = vunpack.c.l.b16 %v425
        %v488 = vunpack.c.l.b16 %v426
        %v489 = vunpack.c.l.b16 %v427
        %v490 = vpack.c.b16 %v487, %v486
        %v491 = vpack.c.b16 %v489, %v488
        %v526 = vunpack.c.l.b16 %v428
        %v527 = vunpack.c.h.b16 %v428
        %v528 = vunpack.c.l.b16 %v429
        %v529 = vunpack.c.h.b16 %v429
        %v530 = vunpack.c.l.b16 %v430
        %v531 = vunpack.c.h.b16 %v430
        %v532 = vunpack.c.l.b16 %v431
        %v533 = vunpack.c.h.b16 %v431
        %v534 = vunpack.c.l.b16 %v432
        %v535 = vunpack.c.h.b16 %v432
        %v536 = vunpack.c.l.b16 %v433
        %v537 = vunpack.c.h.b16 %v433
        %v538 = vunpack.c.l.b16 %v434
        %v539 = vunpack.c.h.b16 %v434
        %v540 = vunpack.c.l.b16 %v435
        %v541 = vunpack.c.h.b16 %v435
        %v542 = vunpack.c.l.b16 %v436
        %v543 = vunpack.c.h.b16 %v436
        %v544 = vunpack.c.l.b16 %v437
        %v545 = vunpack.c.h.b16 %v437
        %v546 = vunpack.c.l.b16 %v438
        %v547 = vunpack.c.h.b16 %v438
        %v548 = vunpack.c.l.b16 %v439
        %v549 = vunpack.c.h.b16 %v439
        %v550 = vunpack.c.l.b16 %v440
        %v551 = vunpack.c.h.b16 %v440
        %v552 = vunpack.c.l.b16 %v441
        %v553 = vunpack.c.h.b16 %v441
        %v554 = vunpack.c.l.b16 %v442
        %v555 = vunpack.c.h.b16 %v442
        %v556 = vunpack.c.l.b16 %v443
        %v557 = vunpack.c.h.b16 %v443
        %v558 = vunpack.c.l.b16 %v444
        %v559 = vunpack.c.h.b16 %v444
        %v560 = vunpack.c.l.b16 %v445
        %v561 = vunpack.c.h.b16 %v445
        %v562 = vunpack.c.l.b16 %v446
        %v563 = vunpack.c.h.b16 %v446
        %v564 = vunpack.c.l.b16 %v447
        %v565 = vunpack.c.h.b16 %v447
        %v566 = vunpack.c.l.b16 %v448
        %v567 = vunpack.c.h.b16 %v448
        %v568 = vunpack.c.l.b16 %v449
        %v569 = vunpack.c.h.b16 %v449
        %v570 = vunpack.c.l.b16 %v450
        %v571 = vunpack.c.h.b16 %v450
        %v572 = vunpack.c.l.b16 %v451
        %v573 = vunpack.c.h.b16 %v451
        %v574 = vunpack.c.l.b16 %v452
        %v575 = vunpack.c.h.b16 %v452
        %v576 = vunpack.c.l.b16 %v453
        %v577 = vunpack.c.h.b16 %v453
        %v578 = vunpack.c.l.b16 %v454
        %v579 = vunpack.c.h.b16 %v454
        %v580 = vunpack.c.l.b16 %v455
        %v581 = vunpack.c.h.b16 %v455
        %v582 = vunpack.c.l.b16 %v456
        %v583 = vunpack.c.h.b16 %v456
        %v584 = vunpack.c.l.b16 %v457
        %v585 = vunpack.c.h.b16 %v457
        %v586 = vunpack.c.l.b16 %v458
        %v587 = vunpack.c.h.b16 %v458
        %v588 = vunpack.c.l.b16 %v459
        %v589 = vunpack.c.h.b16 %v459
        %v590 = vpack.c.b16 %v530, %v526
        %v591 = vpack.c.b16 %v531, %v527
        %v592 = vpack.c.b16 %v532, %v528
        %v593 = vpack.c.b16 %v533, %v529
        %v594 = vpack.c.b16 %v538, %v534
        %v595 = vpack.c.b16 %v539, %v535
        %v596 = vpack.c.b16 %v540, %v536
        %v597 = vpack.c.b16 %v541, %v537
        %v598 = vpack.c.b16 %v546, %v542
        %v599 = vpack.c.b16 %v547, %v543
        %v600 = vpack.c.b16 %v548, %v544
        %v601 = vpack.c.b16 %v549, %v545
        %v602 = vpack.c.b16 %v554, %v550
        %v603 = vpack.c.b16 %v555, %v551
        %v604 = vpack.c.b16 %v556, %v552
        %v605 = vpack.c.b16 %v557, %v553
        %v606 = vpack.c.b16 %v562, %v558
        %v607 = vpack.c.b16 %v563, %v559
        %v608 = vpack.c.b16 %v564, %v560
        %v609 = vpack.c.b16 %v565, %v561
        %v610 = vpack.c.b16 %v570, %v566
        %v611 = vpack.c.b16 %v571, %v567
        %v612 = vpack.c.b16 %v572, %v568
        %v613 = vpack.c.b16 %v573, %v569
        %v614 = vpack.c.b16 %v578, %v574
        %v615 = vpack.c.b16 %v579, %v575
        %v616 = vpack.c.b16 %v580, %v576
        %v617 = vpack.c.b16 %v581, %v577
        %v618 = vpack.c.b16 %v586, %v582
        %v619 = vpack.c.b16 %v587, %v583
        %v620 = vpack.c.b16 %v588, %v584
        %v621 = vpack.c.b16 %v589, %v585
        %654 = vmatprep.subr.bf16.mxu0 %v591
        %655 = vmatpush1.bf16.msra.mxu0 %v590
        %656 = vmatprep.subr.bf16.mxu0 %v595
        %657 = vmatpush1.bf16.msra.mxu0 %v594
        %658 = vmatprep.subr.bf16.mxu0 %v599
        %659 = vmatpush1.bf16.msra.mxu0 %v598
        %660 = vmatprep.subr.bf16.mxu0 %v603
        %661 = vmatpush1.bf16.msra.mxu0 %v602
        %662 = vmatprep.subr.bf16.mxu0 %v607
        %663 = vmatpush1.bf16.msra.mxu0 %v606
        %664 = vmatprep.subr.bf16.mxu0 %v611
        %665 = vmatpush1.bf16.msra.mxu0 %v610
        %666 = vmatprep.subr.bf16.mxu0 %v615
        %667 = vmatpush1.bf16.msra.mxu0 %v614
        %668 = vmatprep.subr.bf16.mxu0 %v619
        %669 = vmatpush1.bf16.msra.mxu0 %v618
        %670 = vmatprep.subr.bf16.mxu0 0
        %671 = vmatpush1.bf16.msra.mxu0 0
        %672 = vmatprep.subr.bf16.mxu0 0
        %673 = vmatpush1.bf16.msra.mxu0 0
        %674 = vmatprep.subr.bf16.mxu0 0
        %675 = vmatpush1.bf16.msra.mxu0 0
        %676 = vmatprep.subr.bf16.mxu0 0
        %677 = vmatpush1.bf16.msra.mxu0 0
        %678 = vmatprep.subr.bf16.mxu0 0
        %679 = vmatpush1.bf16.msra.mxu0 0
        %680 = vmatprep.subr.bf16.mxu0 0
        %681 = vmatpush1.bf16.msra.mxu0 0
        %682 = vmatprep.subr.bf16.mxu0 0
        %683 = vmatpush1.bf16.msra.mxu0 0
        %684 = vmatprep.subr.bf16.mxu0 0
        %685 = vmatpush1.bf16.msra.mxu0 0
        %686 = vmatprep.mubr.bf16.mxu0 0
        %687 = vmatmul.mubr.bf16.gmra.mrb[0].mxu0 %v490
        %v688 = vpop.f32.mrb[0].mxu0
        %v689 = vadd.f32 %v465, %v688
        %v690 = vpop.f32.mrb[0].mxu0
        %v691 = vadd.f32 %v469, %v690
        %v692 = vpop.f32.mrb[0].mxu0
        %v693 = vadd.f32 %v465, %v692
        %v694 = vpop.f32.mrb[0].mxu0
        %v695 = vadd.f32 %v469, %v694
        %696 = vmatprep.mubr.bf16.mxu0 0
        %697 = vmatmul.mubr.bf16.gmra.mrb[0].mxu0 %v491
        %v698 = vpop.f32.mrb[0].mxu0
        %v699 = vadd.f32 %v465, %v698
        %v700 = vpop.f32.mrb[0].mxu0
        %v701 = vadd.f32 %v469, %v700
        %v702 = vpop.f32.mrb[0].mxu0
        %v703 = vadd.f32 %v465, %v702
        %v704 = vpop.f32.mrb[0].mxu0
        %v705 = vadd.f32 %v469, %v704
        %706 = vdwg.mxu0
        %707 = vmatprep.subr.bf16.mxu0 %v593
        %708 = vmatpush1.bf16.msra.mxu0 %v592
        %709 = vmatprep.subr.bf16.mxu0 %v597
        %710 = vmatpush1.bf16.msra.mxu0 %v596
        %711 = vmatprep.subr.bf16.mxu0 %v601
        %712 = vmatpush1.bf16.msra.mxu0 %v600
        %713 = vmatprep.subr.bf16.mxu0 %v605
        %714 = vmatpush1.bf16.msra.mxu0 %v604
        %715 = vmatprep.subr.bf16.mxu0 %v609
        %716 = vmatpush1.bf16.msra.mxu0 %v608
        %717 = vmatprep.subr.bf16.mxu0 %v613
        %718 = vmatpush1.bf16.msra.mxu0 %v612
        %719 = vmatprep.subr.bf16.mxu0 %v617
        %720 = vmatpush1.bf16.msra.mxu0 %v616
        %721 = vmatprep.subr.bf16.mxu0 %v621
        %722 = vmatpush1.bf16.msra.mxu0 %v620
        %723 = vmatprep.subr.bf16.mxu0 0
        %724 = vmatpush1.bf16.msra.mxu0 0
        %725 = vmatprep.subr.bf16.mxu0 0
        %726 = vmatpush1.bf16.msra.mxu0 0
        %727 = vmatprep.subr.bf16.mxu0 0
        %728 = vmatpush1.bf16.msra.mxu0 0
        %729 = vmatprep.subr.bf16.mxu0 0
        %730 = vmatpush1.bf16.msra.mxu0 0
        %731 = vmatprep.subr.bf16.mxu0 0
        %732 = vmatpush1.bf16.msra.mxu0 0
        %733 = vmatprep.subr.bf16.mxu0 0
        %734 = vmatpush1.bf16.msra.mxu0 0
        %735 = vmatprep.subr.bf16.mxu0 0
        %736 = vmatpush1.bf16.msra.mxu0 0
        %737 = vmatprep.subr.bf16.mxu0 0
        %738 = vmatpush1.bf16.msra.mxu0 0
        %739 = vmatprep.mubr.bf16.mxu0 0
        %740 = vmatmul.mubr.bf16.gmra.mrb[0].mxu0 %v490
        %v741 = vpop.f32.mrb[0].mxu0
        %v742 = vadd.f32 %v473, %v741
        %v743 = vpop.f32.mrb[0].mxu0
        %v744 = vadd.f32 %v477, %v743
        %v745 = vpop.f32.mrb[0].mxu0
        %v746 = vadd.f32 %v473, %v745
        %v747 = vpop.f32.mrb[0].mxu0
        %v748 = vadd.f32 %v477, %v747
        %749 = vmatprep.mubr.bf16.mxu0 0
        %750 = vmatmul.mubr.bf16.gmra.mrb[0].mxu0 %v491
        %v751 = vpop.f32.mrb[0].mxu0
        %v752 = vadd.f32 %v473, %v751
        %v753 = vpop.f32.mrb[0].mxu0
        %v754 = vadd.f32 %v477, %v753
        %v755 = vpop.f32.mrb[0].mxu0
        %v756 = vadd.f32 %v473, %v755
        %v757 = vpop.f32.mrb[0].mxu0
        %v758 = vadd.f32 %v477, %v757
        %759 = vdwg.mxu0
        %760 = vst [vmem:[#allocation4] sm:$0xff] %v689
        %761 = vst [vmem:[#allocation4 + $0x8] sm:$0xff] %v691
        %762 = vst [vmem:[#allocation4 + $0x10] sm:$0xff] %v742
        %763 = vst [vmem:[#allocation4 + $0x18] sm:$0xff] %v744
        %764 = vst [vmem:[#allocation4 + $0x20] sm:$0xff] %v693
        %765 = vst [vmem:[#allocation4 + $0x28] sm:$0xff] %v695
        %766 = vst [vmem:[#allocation4 + $0x30] sm:$0xff] %v746
        %767 = vst [vmem:[#allocation4 + $0x38] sm:$0xff] %v748
        %768 = vst [vmem:[#allocation4 + $0x40] sm:$0xff] %v699
        %769 = vst [vmem:[#allocation4 + $0x48] sm:$0xff] %v701
        %770 = vst [vmem:[#allocation4 + $0x50] sm:$0xff] %v752
        %771 = vst [vmem:[#allocation4 + $0x58] sm:$0xff] %v754
        %772 = vst [vmem:[#allocation4 + $0x60] sm:$0xff] %v703
        %773 = vst [vmem:[#allocation4 + $0x68] sm:$0xff] %v705
        %774 = vst [vmem:[#allocation4 + $0x70] sm:$0xff] %v756
        %775 = vst [vmem:[#allocation4 + $0x78] sm:$0xff] %v758
        %v776 = vld [vmem:[#allocation2] sm:$0xf]
        %v777 = vld [vmem:[#allocation3] sm:$0xff]
        %s778 = smul.u32 0, 4
        %s779 = smul.addr %s778, 8
        %s780 = scalar_lea.vmem [#allocation4], %s779
        %v781 = vld [vmem:[%s780] sm:$0xff]
        %v782 = vld [vmem:[%s780 + $0x8] sm:$0xff]
        %v783 = vld [vmem:[%s780 + $0x10] sm:$0xff]
        %v784 = vld [vmem:[%s780 + $0x18] sm:$0xff]
        %v785 = vld [vmem:[#allocation8] sm:$0xff]
        %v786 = vld [vmem:[#allocation8 + $0x8] sm:$0xff]
        %v787 = vld [vmem:[#allocation8 + $0x10] sm:$0xff]
        %v788 = vld [vmem:[#allocation8 + $0x18] sm:$0xff]
        %v789 = vld [vmem:[#allocation8 + $0x20] sm:$0xff]
        %v790 = vld [vmem:[#allocation8 + $0x28] sm:$0xff]
        %v791 = vld [vmem:[#allocation8 + $0x30] sm:$0xff]
        %v792 = vld [vmem:[#allocation8 + $0x38] sm:$0xff]
        %v793 = vld [vmem:[#allocation8 + $0x40] sm:$0xff]
        %v794 = vld [vmem:[#allocation8 + $0x48] sm:$0xff]
        %v795 = vld [vmem:[#allocation8 + $0x50] sm:$0xff]
        %v796 = vld [vmem:[#allocation8 + $0x58] sm:$0xff]
        %v797 = vld [vmem:[#allocation8 + $0x60] sm:$0xff]
        %v798 = vld [vmem:[#allocation8 + $0x68] sm:$0xff]
        %v799 = vld [vmem:[#allocation8 + $0x70] sm:$0xff]
        %v800 = vld [vmem:[#allocation8 + $0x78] sm:$0xff]
        %v801 = vld [vmem:[#allocation8 + $0x80] sm:$0xff]
        %v802 = vld [vmem:[#allocation8 + $0x88] sm:$0xff]
        %v803 = vld [vmem:[#allocation8 + $0x90] sm:$0xff]
        %v804 = vld [vmem:[#allocation8 + $0x98] sm:$0xff]
        %v805 = vld [vmem:[#allocation8 + $0xa0] sm:$0xff]
        %v806 = vld [vmem:[#allocation8 + $0xa8] sm:$0xff]
        %v807 = vld [vmem:[#allocation8 + $0xb0] sm:$0xff]
        %v808 = vld [vmem:[#allocation8 + $0xb8] sm:$0xff]
        %v809 = vld [vmem:[#allocation8 + $0xc0] sm:$0xff]
        %v810 = vld [vmem:[#allocation8 + $0xc8] sm:$0xff]
        %v811 = vld [vmem:[#allocation8 + $0xd0] sm:$0xff]
        %v812 = vld [vmem:[#allocation8 + $0xd8] sm:$0xff]
        %v813 = vld [vmem:[#allocation8 + $0xe0] sm:$0xff]
        %v814 = vld [vmem:[#allocation8 + $0xe8] sm:$0xff]
        %v815 = vld [vmem:[#allocation8 + $0xf0] sm:$0xff]
        %v816 = vld [vmem:[#allocation8 + $0xf8] sm:$0xff]
        %v849 = vunpack.c.l.b16 %v785
        %v850 = vunpack.c.h.b16 %v785
        %v851 = vunpack.c.l.b16 %v786
        %v852 = vunpack.c.h.b16 %v786
        %v853 = vunpack.c.l.b16 %v787
        %v854 = vunpack.c.h.b16 %v787
        %v855 = vunpack.c.l.b16 %v788
        %v856 = vunpack.c.h.b16 %v788
        %v857 = vunpack.c.l.b16 %v789
        %v858 = vunpack.c.h.b16 %v789
        %v859 = vunpack.c.l.b16 %v790
        %v860 = vunpack.c.h.b16 %v790
        %v861 = vunpack.c.l.b16 %v791
        %v862 = vunpack.c.h.b16 %v791
        %v863 = vunpack.c.l.b16 %v792
        %v864 = vunpack.c.h.b16 %v792
        %v865 = vunpack.c.l.b16 %v793
        %v866 = vunpack.c.h.b16 %v793
        %v867 = vunpack.c.l.b16 %v794
        %v868 = vunpack.c.h.b16 %v794
        %v869 = vunpack.c.l.b16 %v795
        %v870 = vunpack.c.h.b16 %v795
        %v871 = vunpack.c.l.b16 %v796
        %v872 = vunpack.c.h.b16 %v796
        %v873 = vunpack.c.l.b16 %v797
        %v874 = vunpack.c.h.b16 %v797
        %v875 = vunpack.c.l.b16 %v798
        %v876 = vunpack.c.h.b16 %v798
        %v877 = vunpack.c.l.b16 %v799
        %v878 = vunpack.c.h.b16 %v799
        %v879 = vunpack.c.l.b16 %v800
        %v880 = vunpack.c.h.b16 %v800
        %v881 = vunpack.c.l.b16 %v801
        %v882 = vunpack.c.h.b16 %v801
        %v883 = vunpack.c.l.b16 %v802
        %v884 = vunpack.c.h.b16 %v802
        %v885 = vunpack.c.l.b16 %v803
        %v886 = vunpack.c.h.b16 %v803
        %v887 = vunpack.c.l.b16 %v804
        %v888 = vunpack.c.h.b16 %v804
        %v889 = vunpack.c.l.b16 %v805
        %v890 = vunpack.c.h.b16 %v805
        %v891 = vunpack.c.l.b16 %v806
        %v892 = vunpack.c.h.b16 %v806
        %v893 = vunpack.c.l.b16 %v807
        %v894 = vunpack.c.h.b16 %v807
        %v895 = vunpack.c.l.b16 %v808
        %v896 = vunpack.c.h.b16 %v808
        %v897 = vunpack.c.l.b16 %v809
        %v898 = vunpack.c.h.b16 %v809
        %v899 = vunpack.c.l.b16 %v810
        %v900 = vunpack.c.h.b16 %v810
        %v901 = vunpack.c.l.b16 %v811
        %v902 = vunpack.c.h.b16 %v811
        %v903 = vunpack.c.l.b16 %v812
        %v904 = vunpack.c.h.b16 %v812
        %v905 = vunpack.c.l.b16 %v813
        %v906 = vunpack.c.h.b16 %v813
        %v907 = vunpack.c.l.b16 %v814
        %v908 = vunpack.c.h.b16 %v814
        %v909 = vunpack.c.l.b16 %v815
        %v910 = vunpack.c.h.b16 %v815
        %v911 = vunpack.c.l.b16 %v816
        %v912 = vunpack.c.h.b16 %v816
        %v913 = vpack.c.b16 %v853, %v849
        %v914 = vpack.c.b16 %v854, %v850
        %v915 = vpack.c.b16 %v855, %v851
        %v916 = vpack.c.b16 %v856, %v852
        %v917 = vpack.c.b16 %v861, %v857
        %v918 = vpack.c.b16 %v862, %v858
        %v919 = vpack.c.b16 %v863, %v859
        %v920 = vpack.c.b16 %v864, %v860
        %v921 = vpack.c.b16 %v869, %v865
        %v922 = vpack.c.b16 %v870, %v866
        %v923 = vpack.c.b16 %v871, %v867
        %v924 = vpack.c.b16 %v872, %v868
        %v925 = vpack.c.b16 %v877, %v873
        %v926 = vpack.c.b16 %v878, %v874
        %v927 = vpack.c.b16 %v879, %v875
        %v928 = vpack.c.b16 %v880, %v876
        %v929 = vpack.c.b16 %v885, %v881
        %v930 = vpack.c.b16 %v886, %v882
        %v931 = vpack.c.b16 %v887, %v883
        %v932 = vpack.c.b16 %v888, %v884
        %v933 = vpack.c.b16 %v893, %v889
        %v934 = vpack.c.b16 %v894, %v890
        %v935 = vpack.c.b16 %v895, %v891
        %v936 = vpack.c.b16 %v896, %v892
        %v937 = vpack.c.b16 %v901, %v897
        %v938 = vpack.c.b16 %v902, %v898
        %v939 = vpack.c.b16 %v903, %v899
        %v940 = vpack.c.b16 %v904, %v900
        %v941 = vpack.c.b16 %v909, %v905
        %v942 = vpack.c.b16 %v910, %v906
        %v943 = vpack.c.b16 %v911, %v907
        %v944 = vpack.c.b16 %v912, %v908
        %977 = vmatprep.subr.bf16.mxu0 %v914
        %978 = vmatpush1.bf16.msra.mxu0 %v913
        %979 = vmatprep.subr.bf16.mxu0 %v918
        %980 = vmatpush1.bf16.msra.mxu0 %v917
        %981 = vmatprep.subr.bf16.mxu0 %v922
        %982 = vmatpush1.bf16.msra.mxu0 %v921
        %983 = vmatprep.subr.bf16.mxu0 %v926
        %984 = vmatpush1.bf16.msra.mxu0 %v925
        %985 = vmatprep.subr.bf16.mxu0 %v930
        %986 = vmatpush1.bf16.msra.mxu0 %v929
        %987 = vmatprep.subr.bf16.mxu0 %v934
        %988 = vmatpush1.bf16.msra.mxu0 %v933
        %989 = vmatprep.subr.bf16.mxu0 %v938
        %990 = vmatpush1.bf16.msra.mxu0 %v937
        %991 = vmatprep.subr.bf16.mxu0 %v942
        %992 = vmatpush1.bf16.msra.mxu0 %v941
        %993 = vmatprep.subr.bf16.mxu0 0
        %994 = vmatpush1.bf16.msra.mxu0 0
        %995 = vmatprep.subr.bf16.mxu0 0
        %996 = vmatpush1.bf16.msra.mxu0 0
        %997 = vmatprep.subr.bf16.mxu0 0
        %998 = vmatpush1.bf16.msra.mxu0 0
        %999 = vmatprep.subr.bf16.mxu0 0
        %1000 = vmatpush1.bf16.msra.mxu0 0
        %1001 = vmatprep.subr.bf16.mxu0 0
        %1002 = vmatpush1.bf16.msra.mxu0 0
        %1003 = vmatprep.subr.bf16.mxu0 0
        %1004 = vmatpush1.bf16.msra.mxu0 0
        %1005 = vmatprep.subr.bf16.mxu0 0
        %1006 = vmatpush1.bf16.msra.mxu0 0
        %1007 = vmatprep.subr.bf16.mxu0 0
        %1008 = vmatpush1.bf16.msra.mxu0 0
        %1009 = vmatprep.mubr.bf16.mxu0 0
        %1010 = vmatmul.mubr.bf16.gmra.mrb[0].mxu0 %v776
        %v1011 = vpop.f32.mrb[0].mxu0
        %v1012 = vadd.f32 0.0, %v1011
        %v1013 = vpop.f32.mrb[0].mxu0
        %v1014 = vadd.f32 0.0, %v1013
        %v1015 = vpop.f32.mrb[0].mxu0
        %v1016 = vpop.f32.mrb[0].mxu0
        %1017 = vdwg.mxu0
        %1018 = vmatprep.subr.bf16.mxu0 %v916
        %1019 = vmatpush1.bf16.msra.mxu0 %v915
        %1020 = vmatprep.subr.bf16.mxu0 %v920
        %1021 = vmatpush1.bf16.msra.mxu0 %v919
        %1022 = vmatprep.subr.bf16.mxu0 %v924
        %1023 = vmatpush1.bf16.msra.mxu0 %v923
        %1024 = vmatprep.subr.bf16.mxu0 %v928
        %1025 = vmatpush1.bf16.msra.mxu0 %v927
        %1026 = vmatprep.subr.bf16.mxu0 %v932
        %1027 = vmatpush1.bf16.msra.mxu0 %v931
        %1028 = vmatprep.subr.bf16.mxu0 %v936
        %1029 = vmatpush1.bf16.msra.mxu0 %v935
        %1030 = vmatprep.subr.bf16.mxu0 %v940
        %1031 = vmatpush1.bf16.msra.mxu0 %v939
        %1032 = vmatprep.subr.bf16.mxu0 %v944
        %1033 = vmatpush1.bf16.msra.mxu0 %v943
        %1034 = vmatprep.subr.bf16.mxu0 0
        %1035 = vmatpush1.bf16.msra.mxu0 0
        %1036 = vmatprep.subr.bf16.mxu0 0
        %1037 = vmatpush1.bf16.msra.mxu0 0
        %1038 = vmatprep.subr.bf16.mxu0 0
        %1039 = vmatpush1.bf16.msra.mxu0 0
        %1040 = vmatprep.subr.bf16.mxu0 0
        %1041 = vmatpush1.bf16.msra.mxu0 0
        %1042 = vmatprep.subr.bf16.mxu0 0
        %1043 = vmatpush1.bf16.msra.mxu0 0
        %1044 = vmatprep.subr.bf16.mxu0 0
        %1045 = vmatpush1.bf16.msra.mxu0 0
        %1046 = vmatprep.subr.bf16.mxu0 0
        %1047 = vmatpush1.bf16.msra.mxu0 0
        %1048 = vmatprep.subr.bf16.mxu0 0
        %1049 = vmatpush1.bf16.msra.mxu0 0
        %1050 = vmatprep.mubr.bf16.mxu0 0
        %1051 = vmatmul.mubr.bf16.gmra.mrb[0].mxu0 %v776
        %v1052 = vpop.f32.mrb[0].mxu0
        %v1053 = vadd.f32 0.0, %v1052
        %v1054 = vpop.f32.mrb[0].mxu0
        %v1055 = vadd.f32 0.0, %v1054
        %v1056 = vpop.f32.mrb[0].mxu0
        %v1057 = vpop.f32.mrb[0].mxu0
        %1058 = vdwg.mxu0
        %v1059 = vadd.f32 %v781, %v1012
        %v1060 = vadd.f32 %v782, %v1014
        %v1061 = vadd.f32 %v783, %v1053
        %v1062 = vadd.f32 %v784, %v1055
        %v1063 = vxor.u32 %v1059, 2147483648
        %v1064 = vmul.f32 %v1063, 1.442695
        %v1065 = vpow.pop %v1064
        %v1066 = vadd.f32 %v1065, 1.0
        %v1067 = vrcp.pop %v1066
        %v1068 = vmul.f32 1.0, %v1067
        %v1069 = vxor.u32 %v1060, 2147483648
        %v1070 = vmul.f32 %v1069, 1.442695
        %v1071 = vpow.pop %v1070
        %v1072 = vadd.f32 %v1071, 1.0
        %v1073 = vrcp.pop %v1072
        %v1074 = vmul.f32 1.0, %v1073
        %v1075 = vtanh.pop %v1061
        %v1076 = vxor.u32 %v1062, 2147483648
        %v1077 = vmul.f32 %v1076, 1.442695
        %v1078 = vpow.pop %v1077
        %v1079 = vadd.f32 %v1078, 1.0
        %v1080 = vrcp.pop %v1079
        %v1081 = vmul.f32 1.0, %v1080
        %v1082 = vmul.f32 %v1074, %v777
        %v1083 = vmul.f32 %v1068, %v1075
        %v1084 = vadd.f32 %v1082, %v1083
        %v1085 = vtanh.pop %v1084
        %v1086 = vmul.f32 %v1081, %v1085
        %v1087 = vpack.c.bf16 %v1086, %v1086
        %1088 = vst [vmem:[#allocation2] sm:$0xf] %v1087
        %1089 = vst [vmem:[#allocation3] sm:$0xff] %v1084
        %v1090 = vld [vmem:[#allocation10] sm:$0xff]
        %v1091 = vld [vmem:[#allocation10 + $0x8] sm:$0xff]
        %v1092 = vld [vmem:[#allocation10 + $0x10] sm:$0xff]
        %v1093 = vld [vmem:[#allocation10 + $0x18] sm:$0xff]
        %v1094 = vld [vmem:[#allocation10 + $0x20] sm:$0xff]
        %v1095 = vld [vmem:[#allocation10 + $0x28] sm:$0xff]
        %v1096 = vld [vmem:[#allocation10 + $0x30] sm:$0xff]
        %v1097 = vld [vmem:[#allocation10 + $0x38] sm:$0xff]
        %v1098 = vld [vmem:[#allocation10 + $0x40] sm:$0xff]
        %v1099 = vld [vmem:[#allocation10 + $0x48] sm:$0xff]
        %v1100 = vld [vmem:[#allocation10 + $0x50] sm:$0xff]
        %v1101 = vld [vmem:[#allocation10 + $0x58] sm:$0xff]
        %v1102 = vld [vmem:[#allocation10 + $0x60] sm:$0xff]
        %v1103 = vld [vmem:[#allocation10 + $0x68] sm:$0xff]
        %v1104 = vld [vmem:[#allocation10 + $0x70] sm:$0xff]
        %v1105 = vld [vmem:[#allocation10 + $0x78] sm:$0xff]
        %v1106 = vld [vmem:[#allocation10 + $0x80] sm:$0xff]
        %v1107 = vld [vmem:[#allocation10 + $0x88] sm:$0xff]
        %v1108 = vld [vmem:[#allocation10 + $0x90] sm:$0xff]
        %v1109 = vld [vmem:[#allocation10 + $0x98] sm:$0xff]
        %v1110 = vld [vmem:[#allocation10 + $0xa0] sm:$0xff]
        %v1111 = vld [vmem:[#allocation10 + $0xa8] sm:$0xff]
        %v1112 = vld [vmem:[#allocation10 + $0xb0] sm:$0xff]
        %v1113 = vld [vmem:[#allocation10 + $0xb8] sm:$0xff]
        %v1114 = vld [vmem:[#allocation10 + $0xc0] sm:$0xff]
        %v1115 = vld [vmem:[#allocation10 + $0xc8] sm:$0xff]
        %v1116 = vld [vmem:[#allocation10 + $0xd0] sm:$0xff]
        %v1117 = vld [vmem:[#allocation10 + $0xd8] sm:$0xff]
        %v1118 = vld [vmem:[#allocation10 + $0xe0] sm:$0xff]
        %v1119 = vld [vmem:[#allocation10 + $0xe8] sm:$0xff]
        %v1120 = vld [vmem:[#allocation10 + $0xf0] sm:$0xff]
        %v1121 = vld [vmem:[#allocation10 + $0xf8] sm:$0xff]
        %v1122 = vld [vmem:[%s6] sm:$0xf]
        %v1124 = vlaneseq
        %v1125 = vshrl.u32 %v1124, 7
        %v1126 = vsub.s32 0, %v1125
        %v1127 = vrot.slane %v1122, %v1126
        %v1128 = vlaneseq
        %v1129 = vshrl.u32 %v1128, 7
        %v1130 = vsub.s32 1, %v1129
        %v1131 = vrot.slane %v1122, %v1130
        %v1132 = vlaneseq
        %v1133 = vshrl.u32 %v1132, 7
        %v1134 = vsub.s32 2, %v1133
        %v1135 = vrot.slane %v1122, %v1134
        %v1136 = vlaneseq
        %v1137 = vshrl.u32 %v1136, 7
        %v1138 = vsub.s32 3, %v1137
        %v1139 = vrot.slane %v1122, %v1138
        %v1176 = vunpack.c.l.b16 %v1090
        %v1177 = vunpack.c.h.b16 %v1090
        %v1178 = vunpack.c.l.b16 %v1091
        %v1179 = vunpack.c.h.b16 %v1091
        %v1180 = vunpack.c.l.b16 %v1092
        %v1181 = vunpack.c.h.b16 %v1092
        %v1182 = vunpack.c.l.b16 %v1093
        %v1183 = vunpack.c.h.b16 %v1093
        %v1184 = vunpack.c.l.b16 %v1094
        %v1185 = vunpack.c.h.b16 %v1094
        %v1186 = vunpack.c.l.b16 %v1095
        %v1187 = vunpack.c.h.b16 %v1095
        %v1188 = vunpack.c.l.b16 %v1096
        %v1189 = vunpack.c.h.b16 %v1096
        %v1190 = vunpack.c.l.b16 %v1097
        %v1191 = vunpack.c.h.b16 %v1097
        %v1192 = vunpack.c.l.b16 %v1098
        %v1193 = vunpack.c.h.b16 %v1098
        %v1194 = vunpack.c.l.b16 %v1099
        %v1195 = vunpack.c.h.b16 %v1099
        %v1196 = vunpack.c.l.b16 %v1100
        %v1197 = vunpack.c.h.b16 %v1100
        %v1198 = vunpack.c.l.b16 %v1101
        %v1199 = vunpack.c.h.b16 %v1101
        %v1200 = vunpack.c.l.b16 %v1102
        %v1201 = vunpack.c.h.b16 %v1102
        %v1202 = vunpack.c.l.b16 %v1103
        %v1203 = vunpack.c.h.b16 %v1103
        %v1204 = vunpack.c.l.b16 %v1104
        %v1205 = vunpack.c.h.b16 %v1104
        %v1206 = vunpack.c.l.b16 %v1105
        %v1207 = vunpack.c.h.b16 %v1105
        %v1208 = vunpack.c.l.b16 %v1106
        %v1209 = vunpack.c.h.b16 %v1106
        %v1210 = vunpack.c.l.b16 %v1107
        %v1211 = vunpack.c.h.b16 %v1107
        %v1212 = vunpack.c.l.b16 %v1108
        %v1213 = vunpack.c.h.b16 %v1108
        %v1214 = vunpack.c.l.b16 %v1109
        %v1215 = vunpack.c.h.b16 %v1109
        %v1216 = vunpack.c.l.b16 %v1110
        %v1217 = vunpack.c.h.b16 %v1110
        %v1218 = vunpack.c.l.b16 %v1111
        %v1219 = vunpack.c.h.b16 %v1111
        %v1220 = vunpack.c.l.b16 %v1112
        %v1221 = vunpack.c.h.b16 %v1112
        %v1222 = vunpack.c.l.b16 %v1113
        %v1223 = vunpack.c.h.b16 %v1113
        %v1224 = vunpack.c.l.b16 %v1114
        %v1225 = vunpack.c.h.b16 %v1114
        %v1226 = vunpack.c.l.b16 %v1115
        %v1227 = vunpack.c.h.b16 %v1115
        %v1228 = vunpack.c.l.b16 %v1116
        %v1229 = vunpack.c.h.b16 %v1116
        %v1230 = vunpack.c.l.b16 %v1117
        %v1231 = vunpack.c.h.b16 %v1117
        %v1232 = vunpack.c.l.b16 %v1118
        %v1233 = vunpack.c.h.b16 %v1118
        %v1234 = vunpack.c.l.b16 %v1119
        %v1235 = vunpack.c.h.b16 %v1119
        %v1236 = vunpack.c.l.b16 %v1120
        %v1237 = vunpack.c.h.b16 %v1120
        %v1238 = vunpack.c.l.b16 %v1121
        %v1239 = vunpack.c.h.b16 %v1121
        %v1240 = vpack.c.b16 %v1180, %v1176
        %v1241 = vpack.c.b16 %v1181, %v1177
        %v1242 = vpack.c.b16 %v1182, %v1178
        %v1243 = vpack.c.b16 %v1183, %v1179
        %v1244 = vpack.c.b16 %v1188, %v1184
        %v1245 = vpack.c.b16 %v1189, %v1185
        %v1246 = vpack.c.b16 %v1190, %v1186
        %v1247 = vpack.c.b16 %v1191, %v1187
        %v1248 = vpack.c.b16 %v1196, %v1192
        %v1249 = vpack.c.b16 %v1197, %v1193
        %v1250 = vpack.c.b16 %v1198, %v1194
        %v1251 = vpack.c.b16 %v1199, %v1195
        %v1252 = vpack.c.b16 %v1204, %v1200
        %v1253 = vpack.c.b16 %v1205, %v1201
        %v1254 = vpack.c.b16 %v1206, %v1202
        %v1255 = vpack.c.b16 %v1207, %v1203
        %v1256 = vpack.c.b16 %v1212, %v1208
        %v1257 = vpack.c.b16 %v1213, %v1209
        %v1258 = vpack.c.b16 %v1214, %v1210
        %v1259 = vpack.c.b16 %v1215, %v1211
        %v1260 = vpack.c.b16 %v1220, %v1216
        %v1261 = vpack.c.b16 %v1221, %v1217
        %v1262 = vpack.c.b16 %v1222, %v1218
        %v1263 = vpack.c.b16 %v1223, %v1219
        %v1264 = vpack.c.b16 %v1228, %v1224
        %v1265 = vpack.c.b16 %v1229, %v1225
        %v1266 = vpack.c.b16 %v1230, %v1226
        %v1267 = vpack.c.b16 %v1231, %v1227
        %v1268 = vpack.c.b16 %v1236, %v1232
        %v1269 = vpack.c.b16 %v1237, %v1233
        %v1270 = vpack.c.b16 %v1238, %v1234
        %v1271 = vpack.c.b16 %v1239, %v1235
        %1304 = vmatprep.subr.bf16.mxu0 %v1241
        %1305 = vmatpush1.bf16.msra.mxu0 %v1240
        %1306 = vmatprep.subr.bf16.mxu0 %v1245
        %1307 = vmatpush1.bf16.msra.mxu0 %v1244
        %1308 = vmatprep.subr.bf16.mxu0 %v1249
        %1309 = vmatpush1.bf16.msra.mxu0 %v1248
        %1310 = vmatprep.subr.bf16.mxu0 %v1253
        %1311 = vmatpush1.bf16.msra.mxu0 %v1252
        %1312 = vmatprep.subr.bf16.mxu0 %v1257
        %1313 = vmatpush1.bf16.msra.mxu0 %v1256
        %1314 = vmatprep.subr.bf16.mxu0 %v1261
        %1315 = vmatpush1.bf16.msra.mxu0 %v1260
        %1316 = vmatprep.subr.bf16.mxu0 %v1265
        %1317 = vmatpush1.bf16.msra.mxu0 %v1264
        %1318 = vmatprep.subr.bf16.mxu0 %v1269
        %1319 = vmatpush1.bf16.msra.mxu0 %v1268
        %1320 = vmatprep.subr.bf16.mxu0 0
        %1321 = vmatpush1.bf16.msra.mxu0 0
        %1322 = vmatprep.subr.bf16.mxu0 0
        %1323 = vmatpush1.bf16.msra.mxu0 0
        %1324 = vmatprep.subr.bf16.mxu0 0
        %1325 = vmatpush1.bf16.msra.mxu0 0
        %1326 = vmatprep.subr.bf16.mxu0 0
        %1327 = vmatpush1.bf16.msra.mxu0 0
        %1328 = vmatprep.subr.bf16.mxu0 0
        %1329 = vmatpush1.bf16.msra.mxu0 0
        %1330 = vmatprep.subr.bf16.mxu0 0
        %1331 = vmatpush1.bf16.msra.mxu0 0
        %1332 = vmatprep.subr.bf16.mxu0 0
        %1333 = vmatpush1.bf16.msra.mxu0 0
        %1334 = vmatprep.subr.bf16.mxu0 0
        %1335 = vmatpush1.bf16.msra.mxu0 0
        %1336 = vmatprep.mubr.bf16.mxu0 0
        %1337 = vmatmul.mubr.bf16.gmra.mrb[0].mxu0 %v1087
        %v1338 = vpop.f32.mrb[0].mxu0
        %v1339 = vadd.f32 %v1127, %v1338
        %v1340 = vpop.f32.mrb[0].mxu0
        %v1341 = vadd.f32 %v1131, %v1340
        %v1342 = vpop.f32.mrb[0].mxu0
        %v1343 = vpop.f32.mrb[0].mxu0
        %1344 = vdwg.mxu0
        %1345 = vmatprep.subr.bf16.mxu0 %v1243
        %1346 = vmatpush1.bf16.msra.mxu0 %v1242
        %1347 = vmatprep.subr.bf16.mxu0 %v1247
        %1348 = vmatpush1.bf16.msra.mxu0 %v1246
        %1349 = vmatprep.subr.bf16.mxu0 %v1251
        %1350 = vmatpush1.bf16.msra.mxu0 %v1250
        %1351 = vmatprep.subr.bf16.mxu0 %v1255
        %1352 = vmatpush1.bf16.msra.mxu0 %v1254
        %1353 = vmatprep.subr.bf16.mxu0 %v1259
        %1354 = vmatpush1.bf16.msra.mxu0 %v1258
        %1355 = vmatprep.subr.bf16.mxu0 %v1263
        %1356 = vmatpush1.bf16.msra.mxu0 %v1262
        %1357 = vmatprep.subr.bf16.mxu0 %v1267
        %1358 = vmatpush1.bf16.msra.mxu0 %v1266
        %1359 = vmatprep.subr.bf16.mxu0 %v1271
        %1360 = vmatpush1.bf16.msra.mxu0 %v1270
        %1361 = vmatprep.subr.bf16.mxu0 0
        %1362 = vmatpush1.bf16.msra.mxu0 0
        %1363 = vmatprep.subr.bf16.mxu0 0
        %1364 = vmatpush1.bf16.msra.mxu0 0
        %1365 = vmatprep.subr.bf16.mxu0 0
        %1366 = vmatpush1.bf16.msra.mxu0 0
        %1367 = vmatprep.subr.bf16.mxu0 0
        %1368 = vmatpush1.bf16.msra.mxu0 0
        %1369 = vmatprep.subr.bf16.mxu0 0
        %1370 = vmatpush1.bf16.msra.mxu0 0
        %1371 = vmatprep.subr.bf16.mxu0 0
        %1372 = vmatpush1.bf16.msra.mxu0 0
        %1373 = vmatprep.subr.bf16.mxu0 0
        %1374 = vmatpush1.bf16.msra.mxu0 0
        %1375 = vmatprep.subr.bf16.mxu0 0
        %1376 = vmatpush1.bf16.msra.mxu0 0
        %1377 = vmatprep.mubr.bf16.mxu0 0
        %1378 = vmatmul.mubr.bf16.gmra.mrb[0].mxu0 %v1087
        %v1379 = vpop.f32.mrb[0].mxu0
        %v1380 = vadd.f32 %v1135, %v1379
        %v1381 = vpop.f32.mrb[0].mxu0
        %v1382 = vadd.f32 %v1139, %v1381
        %v1383 = vpop.f32.mrb[0].mxu0
        %v1384 = vpop.f32.mrb[0].mxu0
        %1385 = vdwg.mxu0
        %s1386 = smul.addr %s778, 8
        %s1387 = scalar_lea.vmem [#allocation5], %s1386
        %1388 = vst [vmem:[%s1387] sm:$0xff] %v1339
        %1389 = vst [vmem:[%s1387 + $0x8] sm:$0xff] %v1341
        %1390 = vst [vmem:[%s1387 + $0x10] sm:$0xff] %v1380
        %1391 = vst [vmem:[%s1387 + $0x18] sm:$0xff] %v1382
        %v1392 = vld [vmem:[#allocation2] sm:$0xf]
        %v1393 = vld [vmem:[#allocation3] sm:$0xff]
        %s1394 = smul.u32 1, 4
        %s1395 = smul.addr %s1394, 8
        %s1396 = scalar_lea.vmem [#allocation4], %s1395
        %v1397 = vld [vmem:[%s1396] sm:$0xff]
        %v1398 = vld [vmem:[%s1396 + $0x8] sm:$0xff]
        %v1399 = vld [vmem:[%s1396 + $0x10] sm:$0xff]
        %v1400 = vld [vmem:[%s1396 + $0x18] sm:$0xff]
        %v1401 = vld [vmem:[#allocation8] sm:$0xff]
        %v1402 = vld [vmem:[#allocation8 + $0x8] sm:$0xff]
        %v1403 = vld [vmem:[#allocation8 + $0x10] sm:$0xff]
        %v1404 = vld [vmem:[#allocation8 + $0x18] sm:$0xff]
        %v1405 = vld [vmem:[#allocation8 + $0x20] sm:$0xff]
        %v1406 = vld [vmem:[#allocation8 + $0x28] sm:$0xff]
        %v1407 = vld [vmem:[#allocation8 + $0x30] sm:$0xff]
        %v1408 = vld [vmem:[#allocation8 + $0x38] sm:$0xff]
        %v1409 = vld [vmem:[#allocation8 + $0x40] sm:$0xff]
        %v1410 = vld [vmem:[#allocation8 + $0x48] sm:$0xff]
        %v1411 = vld [vmem:[#allocation8 + $0x50] sm:$0xff]
        %v1412 = vld [vmem:[#allocation8 + $0x58] sm:$0xff]
        %v1413 = vld [vmem:[#allocation8 + $0x60] sm:$0xff]
        %v1414 = vld [vmem:[#allocation8 + $0x68] sm:$0xff]
        %v1415 = vld [vmem:[#allocation8 + $0x70] sm:$0xff]
        %v1416 = vld [vmem:[#allocation8 + $0x78] sm:$0xff]
        %v1417 = vld [vmem:[#allocation8 + $0x80] sm:$0xff]
        %v1418 = vld [vmem:[#allocation8 + $0x88] sm:$0xff]
        %v1419 = vld [vmem:[#allocation8 + $0x90] sm:$0xff]
        %v1420 = vld [vmem:[#allocation8 + $0x98] sm:$0xff]
        %v1421 = vld [vmem:[#allocation8 + $0xa0] sm:$0xff]
        %v1422 = vld [vmem:[#allocation8 + $0xa8] sm:$0xff]
        %v1423 = vld [vmem:[#allocation8 + $0xb0] sm:$0xff]
        %v1424 = vld [vmem:[#allocation8 + $0xb8] sm:$0xff]
        %v1425 = vld [vmem:[#allocation8 + $0xc0] sm:$0xff]
        %v1426 = vld [vmem:[#allocation8 + $0xc8] sm:$0xff]
        %v1427 = vld [vmem:[#allocation8 + $0xd0] sm:$0xff]
        %v1428 = vld [vmem:[#allocation8 + $0xd8] sm:$0xff]
        %v1429 = vld [vmem:[#allocation8 + $0xe0] sm:$0xff]
        %v1430 = vld [vmem:[#allocation8 + $0xe8] sm:$0xff]
        %v1431 = vld [vmem:[#allocation8 + $0xf0] sm:$0xff]
        %v1432 = vld [vmem:[#allocation8 + $0xf8] sm:$0xff]
        %v1465 = vunpack.c.l.b16 %v1401
        %v1466 = vunpack.c.h.b16 %v1401
        %v1467 = vunpack.c.l.b16 %v1402
        %v1468 = vunpack.c.h.b16 %v1402
        %v1469 = vunpack.c.l.b16 %v1403
        %v1470 = vunpack.c.h.b16 %v1403
        %v1471 = vunpack.c.l.b16 %v1404
        %v1472 = vunpack.c.h.b16 %v1404
        %v1473 = vunpack.c.l.b16 %v1405
        %v1474 = vunpack.c.h.b16 %v1405
        %v1475 = vunpack.c.l.b16 %v1406
        %v1476 = vunpack.c.h.b16 %v1406
        %v1477 = vunpack.c.l.b16 %v1407
        %v1478 = vunpack.c.h.b16 %v1407
        %v1479 = vunpack.c.l.b16 %v1408
        %v1480 = vunpack.c.h.b16 %v1408
        %v1481 = vunpack.c.l.b16 %v1409
        %v1482 = vunpack.c.h.b16 %v1409
        %v1483 = vunpack.c.l.b16 %v1410
        %v1484 = vunpack.c.h.b16 %v1410
        %v1485 = vunpack.c.l.b16 %v1411
        %v1486 = vunpack.c.h.b16 %v1411
        %v1487 = vunpack.c.l.b16 %v1412
        %v1488 = vunpack.c.h.b16 %v1412
        %v1489 = vunpack.c.l.b16 %v1413
        %v1490 = vunpack.c.h.b16 %v1413
        %v1491 = vunpack.c.l.b16 %v1414
        %v1492 = vunpack.c.h.b16 %v1414
        %v1493 = vunpack.c.l.b16 %v1415
        %v1494 = vunpack.c.h.b16 %v1415
        %v1495 = vunpack.c.l.b16 %v1416
        %v1496 = vunpack.c.h.b16 %v1416
        %v1497 = vunpack.c.l.b16 %v1417
        %v1498 = vunpack.c.h.b16 %v1417
        %v1499 = vunpack.c.l.b16 %v1418
        %v1500 = vunpack.c.h.b16 %v1418
        %v1501 = vunpack.c.l.b16 %v1419
        %v1502 = vunpack.c.h.b16 %v1419
        %v1503 = vunpack.c.l.b16 %v1420
        %v1504 = vunpack.c.h.b16 %v1420
        %v1505 = vunpack.c.l.b16 %v1421
        %v1506 = vunpack.c.h.b16 %v1421
        %v1507 = vunpack.c.l.b16 %v1422
        %v1508 = vunpack.c.h.b16 %v1422
        %v1509 = vunpack.c.l.b16 %v1423
        %v1510 = vunpack.c.h.b16 %v1423
        %v1511 = vunpack.c.l.b16 %v1424
        %v1512 = vunpack.c.h.b16 %v1424
        %v1513 = vunpack.c.l.b16 %v1425
        %v1514 = vunpack.c.h.b16 %v1425
        %v1515 = vunpack.c.l.b16 %v1426
        %v1516 = vunpack.c.h.b16 %v1426
        %v1517 = vunpack.c.l.b16 %v1427
        %v1518 = vunpack.c.h.b16 %v1427
        %v1519 = vunpack.c.l.b16 %v1428
        %v1520 = vunpack.c.h.b16 %v1428
        %v1521 = vunpack.c.l.b16 %v1429
        %v1522 = vunpack.c.h.b16 %v1429
        %v1523 = vunpack.c.l.b16 %v1430
        %v1524 = vunpack.c.h.b16 %v1430
        %v1525 = vunpack.c.l.b16 %v1431
        %v1526 = vunpack.c.h.b16 %v1431
        %v1527 = vunpack.c.l.b16 %v1432
        %v1528 = vunpack.c.h.b16 %v1432
        %v1529 = vpack.c.b16 %v1469, %v1465
        %v1530 = vpack.c.b16 %v1470, %v1466
        %v1531 = vpack.c.b16 %v1471, %v1467
        %v1532 = vpack.c.b16 %v1472, %v1468
        %v1533 = vpack.c.b16 %v1477, %v1473
        %v1534 = vpack.c.b16 %v1478, %v1474
        %v1535 = vpack.c.b16 %v1479, %v1475
        %v1536 = vpack.c.b16 %v1480, %v1476
        %v1537 = vpack.c.b16 %v1485, %v1481
        %v1538 = vpack.c.b16 %v1486, %v1482
        %v1539 = vpack.c.b16 %v1487, %v1483
        %v1540 = vpack.c.b16 %v1488, %v1484
        %v1541 = vpack.c.b16 %v1493, %v1489
        %v1542 = vpack.c.b16 %v1494, %v1490
        %v1543 = vpack.c.b16 %v1495, %v1491
        %v1544 = vpack.c.b16 %v1496, %v1492
        %v1545 = vpack.c.b16 %v1501, %v1497
        %v1546 = vpack.c.b16 %v1502, %v1498
        %v1547 = vpack.c.b16 %v1503, %v1499
        %v1548 = vpack.c.b16 %v1504, %v1500
        %v1549 = vpack.c.b16 %v1509, %v1505
        %v1550 = vpack.c.b16 %v1510, %v1506
        %v1551 = vpack.c.b16 %v1511, %v1507
        %v1552 = vpack.c.b16 %v1512, %v1508
        %v1553 = vpack.c.b16 %v1517, %v1513
        %v1554 = vpack.c.b16 %v1518, %v1514
        %v1555 = vpack.c.b16 %v1519, %v1515
        %v1556 = vpack.c.b16 %v1520, %v1516
        %v1557 = vpack.c.b16 %v1525, %v1521
        %v1558 = vpack.c.b16 %v1526, %v1522
        %v1559 = vpack.c.b16 %v1527, %v1523
        %v1560 = vpack.c.b16 %v1528, %v1524
        %1593 = vmatprep.subr.bf16.mxu0 %v1530
        %1594 = vmatpush1.bf16.msra.mxu0 %v1529
        %1595 = vmatprep.subr.bf16.mxu0 %v1534
        %1596 = vmatpush1.bf16.msra.mxu0 %v1533
        %1597 = vmatprep.subr.bf16.mxu0 %v1538
        %1598 = vmatpush1.bf16.msra.mxu0 %v1537
        %1599 = vmatprep.subr.bf16.mxu0 %v1542
        %1600 = vmatpush1.bf16.msra.mxu0 %v1541
        %1601 = vmatprep.subr.bf16.mxu0 %v1546
        %1602 = vmatpush1.bf16.msra.mxu0 %v1545
        %1603 = vmatprep.subr.bf16.mxu0 %v1550
        %1604 = vmatpush1.bf16.msra.mxu0 %v1549
        %1605 = vmatprep.subr.bf16.mxu0 %v1554
        %1606 = vmatpush1.bf16.msra.mxu0 %v1553
        %1607 = vmatprep.subr.bf16.mxu0 %v1558
        %1608 = vmatpush1.bf16.msra.mxu0 %v1557
        %1609 = vmatprep.subr.bf16.mxu0 0
        %1610 = vmatpush1.bf16.msra.mxu0 0
        %1611 = vmatprep.subr.bf16.mxu0 0
        %1612 = vmatpush1.bf16.msra.mxu0 0
        %1613 = vmatprep.subr.bf16.mxu0 0
        %1614 = vmatpush1.bf16.msra.mxu0 0
        %1615 = vmatprep.subr.bf16.mxu0 0
        %1616 = vmatpush1.bf16.msra.mxu0 0
        %1617 = vmatprep.subr.bf16.mxu0 0
        %1618 = vmatpush1.bf16.msra.mxu0 0
        %1619 = vmatprep.subr.bf16.mxu0 0
        %1620 = vmatpush1.bf16.msra.mxu0 0
        %1621 = vmatprep.subr.bf16.mxu0 0
        %1622 = vmatpush1.bf16.msra.mxu0 0
        %1623 = vmatprep.subr.bf16.mxu0 0
        %1624 = vmatpush1.bf16.msra.mxu0 0
        %1625 = vmatprep.mubr.bf16.mxu0 0
        %1626 = vmatmul.mubr.bf16.gmra.mrb[0].mxu0 %v1392
        %v1627 = vpop.f32.mrb[0].mxu0
        %v1628 = vadd.f32 0.0, %v1627
        %v1629 = vpop.f32.mrb[0].mxu0
        %v1630 = vadd.f32 0.0, %v1629
        %v1631 = vpop.f32.mrb[0].mxu0
        %v1632 = vpop.f32.mrb[0].mxu0
        %1633 = vdwg.mxu0
        %1634 = vmatprep.subr.bf16.mxu0 %v1532
        %1635 = vmatpush1.bf16.msra.mxu0 %v1531
        %1636 = vmatprep.subr.bf16.mxu0 %v1536
        %1637 = vmatpush1.bf16.msra.mxu0 %v1535
        %1638 = vmatprep.subr.bf16.mxu0 %v1540
        %1639 = vmatpush1.bf16.msra.mxu0 %v1539
        %1640 = vmatprep.subr.bf16.mxu0 %v1544
        %1641 = vmatpush1.bf16.msra.mxu0 %v1543
        %1642 = vmatprep.subr.bf16.mxu0 %v1548
        %1643 = vmatpush1.bf16.msra.mxu0 %v1547
        %1644 = vmatprep.subr.bf16.mxu0 %v1552
        %1645 = vmatpush1.bf16.msra.mxu0 %v1551
        %1646 = vmatprep.subr.bf16.mxu0 %v1556
        %1647 = vmatpush1.bf16.msra.mxu0 %v1555
        %1648 = vmatprep.subr.bf16.mxu0 %v1560
        %1649 = vmatpush1.bf16.msra.mxu0 %v1559
        %1650 = vmatprep.subr.bf16.mxu0 0
        %1651 = vmatpush1.bf16.msra.mxu0 0
        %1652 = vmatprep.subr.bf16.mxu0 0
        %1653 = vmatpush1.bf16.msra.mxu0 0
        %1654 = vmatprep.subr.bf16.mxu0 0
        %1655 = vmatpush1.bf16.msra.mxu0 0
        %1656 = vmatprep.subr.bf16.mxu0 0
        %1657 = vmatpush1.bf16.msra.mxu0 0
        %1658 = vmatprep.subr.bf16.mxu0 0
        %1659 = vmatpush1.bf16.msra.mxu0 0
        %1660 = vmatprep.subr.bf16.mxu0 0
        %1661 = vmatpush1.bf16.msra.mxu0 0
        %1662 = vmatprep.subr.bf16.mxu0 0
        %1663 = vmatpush1.bf16.msra.mxu0 0
        %1664 = vmatprep.subr.bf16.mxu0 0
        %1665 = vmatpush1.bf16.msra.mxu0 0
        %1666 = vmatprep.mubr.bf16.mxu0 0
        %1667 = vmatmul.mubr.bf16.gmra.mrb[0].mxu0 %v1392
        %v1668 = vpop.f32.mrb[0].mxu0
        %v1669 = vadd.f32 0.0, %v1668
        %v1670 = vpop.f32.mrb[0].mxu0
        %v1671 = vadd.f32 0.0, %v1670
        %v1672 = vpop.f32.mrb[0].mxu0
        %v1673 = vpop.f32.mrb[0].mxu0
        %1674 = vdwg.mxu0
        %v1675 = vadd.f32 %v1397, %v1628
        %v1676 = vadd.f32 %v1398, %v1630
        %v1677 = vadd.f32 %v1399, %v1669
        %v1678 = vadd.f32 %v1400, %v1671
        %v1679 = vxor.u32 %v1675, 2147483648
        %v1680 = vmul.f32 %v1679, 1.442695
        %v1681 = vpow.pop %v1680
        %v1682 = vadd.f32 %v1681, 1.0
        %v1683 = vrcp.pop %v1682
        %v1684 = vmul.f32 1.0, %v1683
        %v1685 = vxor.u32 %v1676, 2147483648
        %v1686 = vmul.f32 %v1685, 1.442695
        %v1687 = vpow.pop %v1686
        %v1688 = vadd.f32 %v1687, 1.0
        %v1689 = vrcp.pop %v1688
        %v1690 = vmul.f32 1.0, %v1689
        %v1691 = vtanh.pop %v1677
        %v1692 = vxor.u32 %v1678, 2147483648
        %v1693 = vmul.f32 %v1692, 1.442695
        %v1694 = vpow.pop %v1693
        %v1695 = vadd.f32 %v1694, 1.0
        %v1696 = vrcp.pop %v1695
        %v1697 = vmul.f32 1.0, %v1696
        %v1698 = vmul.f32 %v1690, %v1393
        %v1699 = vmul.f32 %v1684, %v1691
        %v1700 = vadd.f32 %v1698, %v1699
        %v1701 = vtanh.pop %v1700
        %v1702 = vmul.f32 %v1697, %v1701
        %v1703 = vpack.c.bf16 %v1702, %v1702
        %1704 = vst [vmem:[#allocation2] sm:$0xf] %v1703
        %1705 = vst [vmem:[#allocation3] sm:$0xff] %v1700
        %v1706 = vld [vmem:[#allocation10] sm:$0xff]
        %v1707 = vld [vmem:[#allocation10 + $0x8] sm:$0xff]
        %v1708 = vld [vmem:[#allocation10 + $0x10] sm:$0xff]
        %v1709 = vld [vmem:[#allocation10 + $0x18] sm:$0xff]
        %v1710 = vld [vmem:[#allocation10 + $0x20] sm:$0xff]
        %v1711 = vld [vmem:[#allocation10 + $0x28] sm:$0xff]
        %v1712 = vld [vmem:[#allocation10 + $0x30] sm:$0xff]
        %v1713 = vld [vmem:[#allocation10 + $0x38] sm:$0xff]
        %v1714 = vld [vmem:[#allocation10 + $0x40] sm:$0xff]
        %v1715 = vld [vmem:[#allocation10 + $0x48] sm:$0xff]
        %v1716 = vld [vmem:[#allocation10 + $0x50] sm:$0xff]
        %v1717 = vld [vmem:[#allocation10 + $0x58] sm:$0xff]
        %v1718 = vld [vmem:[#allocation10 + $0x60] sm:$0xff]
        %v1719 = vld [vmem:[#allocation10 + $0x68] sm:$0xff]
        %v1720 = vld [vmem:[#allocation10 + $0x70] sm:$0xff]
        %v1721 = vld [vmem:[#allocation10 + $0x78] sm:$0xff]
        %v1722 = vld [vmem:[#allocation10 + $0x80] sm:$0xff]
        %v1723 = vld [vmem:[#allocation10 + $0x88] sm:$0xff]
        %v1724 = vld [vmem:[#allocation10 + $0x90] sm:$0xff]
        %v1725 = vld [vmem:[#allocation10 + $0x98] sm:$0xff]
        %v1726 = vld [vmem:[#allocation10 + $0xa0] sm:$0xff]
        %v1727 = vld [vmem:[#allocation10 + $0xa8] sm:$0xff]
        %v1728 = vld [vmem:[#allocation10 + $0xb0] sm:$0xff]
        %v1729 = vld [vmem:[#allocation10 + $0xb8] sm:$0xff]
        %v1730 = vld [vmem:[#allocation10 + $0xc0] sm:$0xff]
        %v1731 = vld [vmem:[#allocation10 + $0xc8] sm:$0xff]
        %v1732 = vld [vmem:[#allocation10 + $0xd0] sm:$0xff]
        %v1733 = vld [vmem:[#allocation10 + $0xd8] sm:$0xff]
        %v1734 = vld [vmem:[#allocation10 + $0xe0] sm:$0xff]
        %v1735 = vld [vmem:[#allocation10 + $0xe8] sm:$0xff]
        %v1736 = vld [vmem:[#allocation10 + $0xf0] sm:$0xff]
        %v1737 = vld [vmem:[#allocation10 + $0xf8] sm:$0xff]
        %v1738 = vld [vmem:[%s6] sm:$0xf]
        %v1740 = vlaneseq
        %v1741 = vshrl.u32 %v1740, 7
        %v1742 = vsub.s32 0, %v1741
        %v1743 = vrot.slane %v1738, %v1742
        %v1744 = vlaneseq
        %v1745 = vshrl.u32 %v1744, 7
        %v1746 = vsub.s32 1, %v1745
        %v1747 = vrot.slane %v1738, %v1746
        %v1748 = vlaneseq
        %v1749 = vshrl.u32 %v1748, 7
        %v1750 = vsub.s32 2, %v1749
        %v1751 = vrot.slane %v1738, %v1750
        %v1752 = vlaneseq
        %v1753 = vshrl.u32 %v1752, 7
        %v1754 = vsub.s32 3, %v1753
        %v1755 = vrot.slane %v1738, %v1754
        %v1792 = vunpack.c.l.b16 %v1706
        %v1793 = vunpack.c.h.b16 %v1706
        %v1794 = vunpack.c.l.b16 %v1707
        %v1795 = vunpack.c.h.b16 %v1707
        %v1796 = vunpack.c.l.b16 %v1708
        %v1797 = vunpack.c.h.b16 %v1708
        %v1798 = vunpack.c.l.b16 %v1709
        %v1799 = vunpack.c.h.b16 %v1709
        %v1800 = vunpack.c.l.b16 %v1710
        %v1801 = vunpack.c.h.b16 %v1710
        %v1802 = vunpack.c.l.b16 %v1711
        %v1803 = vunpack.c.h.b16 %v1711
        %v1804 = vunpack.c.l.b16 %v1712
        %v1805 = vunpack.c.h.b16 %v1712
        %v1806 = vunpack.c.l.b16 %v1713
        %v1807 = vunpack.c.h.b16 %v1713
        %v1808 = vunpack.c.l.b16 %v1714
        %v1809 = vunpack.c.h.b16 %v1714
        %v1810 = vunpack.c.l.b16 %v1715
        %v1811 = vunpack.c.h.b16 %v1715
        %v1812 = vunpack.c.l.b16 %v1716
        %v1813 = vunpack.c.h.b16 %v1716
        %v1814 = vunpack.c.l.b16 %v1717
        %v1815 = vunpack.c.h.b16 %v1717
        %v1816 = vunpack.c.l.b16 %v1718
        %v1817 = vunpack.c.h.b16 %v1718
        %v1818 = vunpack.c.l.b16 %v1719
        %v1819 = vunpack.c.h.b16 %v1719
        %v1820 = vunpack.c.l.b16 %v1720
        %v1821 = vunpack.c.h.b16 %v1720
        %v1822 = vunpack.c.l.b16 %v1721
        %v1823 = vunpack.c.h.b16 %v1721
        %v1824 = vunpack.c.l.b16 %v1722
        %v1825 = vunpack.c.h.b16 %v1722
        %v1826 = vunpack.c.l.b16 %v1723
        %v1827 = vunpack.c.h.b16 %v1723
        %v1828 = vunpack.c.l.b16 %v1724
        %v1829 = vunpack.c.h.b16 %v1724
        %v1830 = vunpack.c.l.b16 %v1725
        %v1831 = vunpack.c.h.b16 %v1725
        %v1832 = vunpack.c.l.b16 %v1726
        %v1833 = vunpack.c.h.b16 %v1726
        %v1834 = vunpack.c.l.b16 %v1727
        %v1835 = vunpack.c.h.b16 %v1727
        %v1836 = vunpack.c.l.b16 %v1728
        %v1837 = vunpack.c.h.b16 %v1728
        %v1838 = vunpack.c.l.b16 %v1729
        %v1839 = vunpack.c.h.b16 %v1729
        %v1840 = vunpack.c.l.b16 %v1730
        %v1841 = vunpack.c.h.b16 %v1730
        %v1842 = vunpack.c.l.b16 %v1731
        %v1843 = vunpack.c.h.b16 %v1731
        %v1844 = vunpack.c.l.b16 %v1732
        %v1845 = vunpack.c.h.b16 %v1732
        %v1846 = vunpack.c.l.b16 %v1733
        %v1847 = vunpack.c.h.b16 %v1733
        %v1848 = vunpack.c.l.b16 %v1734
        %v1849 = vunpack.c.h.b16 %v1734
        %v1850 = vunpack.c.l.b16 %v1735
        %v1851 = vunpack.c.h.b16 %v1735
        %v1852 = vunpack.c.l.b16 %v1736
        %v1853 = vunpack.c.h.b16 %v1736
        %v1854 = vunpack.c.l.b16 %v1737
        %v1855 = vunpack.c.h.b16 %v1737
        %v1856 = vpack.c.b16 %v1796, %v1792
        %v1857 = vpack.c.b16 %v1797, %v1793
        %v1858 = vpack.c.b16 %v1798, %v1794
        %v1859 = vpack.c.b16 %v1799, %v1795
        %v1860 = vpack.c.b16 %v1804, %v1800
        %v1861 = vpack.c.b16 %v1805, %v1801
        %v1862 = vpack.c.b16 %v1806, %v1802
        %v1863 = vpack.c.b16 %v1807, %v1803
        %v1864 = vpack.c.b16 %v1812, %v1808
        %v1865 = vpack.c.b16 %v1813, %v1809
        %v1866 = vpack.c.b16 %v1814, %v1810
        %v1867 = vpack.c.b16 %v1815, %v1811
        %v1868 = vpack.c.b16 %v1820, %v1816
        %v1869 = vpack.c.b16 %v1821, %v1817
        %v1870 = vpack.c.b16 %v1822, %v1818
        %v1871 = vpack.c.b16 %v1823, %v1819
        %v1872 = vpack.c.b16 %v1828, %v1824
        %v1873 = vpack.c.b16 %v1829, %v1825
        %v1874 = vpack.c.b16 %v1830, %v1826
        %v1875 = vpack.c.b16 %v1831, %v1827
        %v1876 = vpack.c.b16 %v1836, %v1832
        %v1877 = vpack.c.b16 %v1837, %v1833
        %v1878 = vpack.c.b16 %v1838, %v1834
        %v1879 = vpack.c.b16 %v1839, %v1835
        %v1880 = vpack.c.b16 %v1844, %v1840
        %v1881 = vpack.c.b16 %v1845, %v1841
        %v1882 = vpack.c.b16 %v1846, %v1842
        %v1883 = vpack.c.b16 %v1847, %v1843
        %v1884 = vpack.c.b16 %v1852, %v1848
        %v1885 = vpack.c.b16 %v1853, %v1849
        %v1886 = vpack.c.b16 %v1854, %v1850
        %v1887 = vpack.c.b16 %v1855, %v1851
        %1920 = vmatprep.subr.bf16.mxu0 %v1857
        %1921 = vmatpush1.bf16.msra.mxu0 %v1856
        %1922 = vmatprep.subr.bf16.mxu0 %v1861
        %1923 = vmatpush1.bf16.msra.mxu0 %v1860
        %1924 = vmatprep.subr.bf16.mxu0 %v1865
        %1925 = vmatpush1.bf16.msra.mxu0 %v1864
        %1926 = vmatprep.subr.bf16.mxu0 %v1869
        %1927 = vmatpush1.bf16.msra.mxu0 %v1868
        %1928 = vmatprep.subr.bf16.mxu0 %v1873
        %1929 = vmatpush1.bf16.msra.mxu0 %v1872
        %1930 = vmatprep.subr.bf16.mxu0 %v1877
        %1931 = vmatpush1.bf16.msra.mxu0 %v1876
        %1932 = vmatprep.subr.bf16.mxu0 %v1881
        %1933 = vmatpush1.bf16.msra.mxu0 %v1880
        %1934 = vmatprep.subr.bf16.mxu0 %v1885
        %1935 = vmatpush1.bf16.msra.mxu0 %v1884
        %1936 = vmatprep.subr.bf16.mxu0 0
        %1937 = vmatpush1.bf16.msra.mxu0 0
        %1938 = vmatprep.subr.bf16.mxu0 0
        %1939 = vmatpush1.bf16.msra.mxu0 0
        %1940 = vmatprep.subr.bf16.mxu0 0
        %1941 = vmatpush1.bf16.msra.mxu0 0
        %1942 = vmatprep.subr.bf16.mxu0 0
        %1943 = vmatpush1.bf16.msra.mxu0 0
        %1944 = vmatprep.subr.bf16.mxu0 0
        %1945 = vmatpush1.bf16.msra.mxu0 0
        %1946 = vmatprep.subr.bf16.mxu0 0
        %1947 = vmatpush1.bf16.msra.mxu0 0
        %1948 = vmatprep.subr.bf16.mxu0 0
        %1949 = vmatpush1.bf16.msra.mxu0 0
        %1950 = vmatprep.subr.bf16.mxu0 0
        %1951 = vmatpush1.bf16.msra.mxu0 0
        %1952 = vmatprep.mubr.bf16.mxu0 0
        %1953 = vmatmul.mubr.bf16.gmra.mrb[0].mxu0 %v1703
        %v1954 = vpop.f32.mrb[0].mxu0
        %v1955 = vadd.f32 %v1743, %v1954
        %v1956 = vpop.f32.mrb[0].mxu0
        %v1957 = vadd.f32 %v1747, %v1956
        %v1958 = vpop.f32.mrb[0].mxu0
        %v1959 = vpop.f32.mrb[0].mxu0
        %1960 = vdwg.mxu0
        %1961 = vmatprep.subr.bf16.mxu0 %v1859
        %1962 = vmatpush1.bf16.msra.mxu0 %v1858
        %1963 = vmatprep.subr.bf16.mxu0 %v1863
        %1964 = vmatpush1.bf16.msra.mxu0 %v1862
        %1965 = vmatprep.subr.bf16.mxu0 %v1867
        %1966 = vmatpush1.bf16.msra.mxu0 %v1866
        %1967 = vmatprep.subr.bf16.mxu0 %v1871
        %1968 = vmatpush1.bf16.msra.mxu0 %v1870
        %1969 = vmatprep.subr.bf16.mxu0 %v1875
        %1970 = vmatpush1.bf16.msra.mxu0 %v1874
        %1971 = vmatprep.subr.bf16.mxu0 %v1879
        %1972 = vmatpush1.bf16.msra.mxu0 %v1878
        %1973 = vmatprep.subr.bf16.mxu0 %v1883
        %1974 = vmatpush1.bf16.msra.mxu0 %v1882
        %1975 = vmatprep.subr.bf16.mxu0 %v1887
        %1976 = vmatpush1.bf16.msra.mxu0 %v1886
        %1977 = vmatprep.subr.bf16.mxu0 0
        %1978 = vmatpush1.bf16.msra.mxu0 0
        %1979 = vmatprep.subr.bf16.mxu0 0
        %1980 = vmatpush1.bf16.msra.mxu0 0
        %1981 = vmatprep.subr.bf16.mxu0 0
        %1982 = vmatpush1.bf16.msra.mxu0 0
        %1983 = vmatprep.subr.bf16.mxu0 0
        %1984 = vmatpush1.bf16.msra.mxu0 0
        %1985 = vmatprep.subr.bf16.mxu0 0
        %1986 = vmatpush1.bf16.msra.mxu0 0
        %1987 = vmatprep.subr.bf16.mxu0 0
        %1988 = vmatpush1.bf16.msra.mxu0 0
        %1989 = vmatprep.subr.bf16.mxu0 0
        %1990 = vmatpush1.bf16.msra.mxu0 0
        %1991 = vmatprep.subr.bf16.mxu0 0
        %1992 = vmatpush1.bf16.msra.mxu0 0
        %1993 = vmatprep.mubr.bf16.mxu0 0
        %1994 = vmatmul.mubr.bf16.gmra.mrb[0].mxu0 %v1703
        %v1995 = vpop.f32.mrb[0].mxu0
        %v1996 = vadd.f32 %v1751, %v1995
        %v1997 = vpop.f32.mrb[0].mxu0
        %v1998 = vadd.f32 %v1755, %v1997
        %v1999 = vpop.f32.mrb[0].mxu0
        %v2000 = vpop.f32.mrb[0].mxu0
        %2001 = vdwg.mxu0
        %s2002 = smul.addr %s1394, 8
        %s2003 = scalar_lea.vmem [#allocation5], %s2002
        %2004 = vst [vmem:[%s2003] sm:$0xff] %v1955
        %2005 = vst [vmem:[%s2003 + $0x8] sm:$0xff] %v1957
        %2006 = vst [vmem:[%s2003 + $0x10] sm:$0xff] %v1996
        %2007 = vst [vmem:[%s2003 + $0x18] sm:$0xff] %v1998
        %v2008 = vld [vmem:[#allocation2] sm:$0xf]
        %v2009 = vld [vmem:[#allocation3] sm:$0xff]
        %s2010 = smul.u32 2, 4
        %s2011 = smul.addr %s2010, 8
        %s2012 = scalar_lea.vmem [#allocation4], %s2011
        %v2013 = vld [vmem:[%s2012] sm:$0xff]
        %v2014 = vld [vmem:[%s2012 + $0x8] sm:$0xff]
        %v2015 = vld [vmem:[%s2012 + $0x10] sm:$0xff]
        %v2016 = vld [vmem:[%s2012 + $0x18] sm:$0xff]
        %v2017 = vld [vmem:[#allocation8] sm:$0xff]
        %v2018 = vld [vmem:[#allocation8 + $0x8] sm:$0xff]
        %v2019 = vld [vmem:[#allocation8 + $0x10] sm:$0xff]
        %v2020 = vld [vmem:[#allocation8 + $0x18] sm:$0xff]
        %v2021 = vld [vmem:[#allocation8 + $0x20] sm:$0xff]
        %v2022 = vld [vmem:[#allocation8 + $0x28] sm:$0xff]
        %v2023 = vld [vmem:[#allocation8 + $0x30] sm:$0xff]
        %v2024 = vld [vmem:[#allocation8 + $0x38] sm:$0xff]
        %v2025 = vld [vmem:[#allocation8 + $0x40] sm:$0xff]
        %v2026 = vld [vmem:[#allocation8 + $0x48] sm:$0xff]
        %v2027 = vld [vmem:[#allocation8 + $0x50] sm:$0xff]
        %v2028 = vld [vmem:[#allocation8 + $0x58] sm:$0xff]
        %v2029 = vld [vmem:[#allocation8 + $0x60] sm:$0xff]
        %v2030 = vld [vmem:[#allocation8 + $0x68] sm:$0xff]
        %v2031 = vld [vmem:[#allocation8 + $0x70] sm:$0xff]
        %v2032 = vld [vmem:[#allocation8 + $0x78] sm:$0xff]
        %v2033 = vld [vmem:[#allocation8 + $0x80] sm:$0xff]
        %v2034 = vld [vmem:[#allocation8 + $0x88] sm:$0xff]
        %v2035 = vld [vmem:[#allocation8 + $0x90] sm:$0xff]
        %v2036 = vld [vmem:[#allocation8 + $0x98] sm:$0xff]
        %v2037 = vld [vmem:[#allocation8 + $0xa0] sm:$0xff]
        %v2038 = vld [vmem:[#allocation8 + $0xa8] sm:$0xff]
        %v2039 = vld [vmem:[#allocation8 + $0xb0] sm:$0xff]
        %v2040 = vld [vmem:[#allocation8 + $0xb8] sm:$0xff]
        %v2041 = vld [vmem:[#allocation8 + $0xc0] sm:$0xff]
        %v2042 = vld [vmem:[#allocation8 + $0xc8] sm:$0xff]
        %v2043 = vld [vmem:[#allocation8 + $0xd0] sm:$0xff]
        %v2044 = vld [vmem:[#allocation8 + $0xd8] sm:$0xff]
        %v2045 = vld [vmem:[#allocation8 + $0xe0] sm:$0xff]
        %v2046 = vld [vmem:[#allocation8 + $0xe8] sm:$0xff]
        %v2047 = vld [vmem:[#allocation8 + $0xf0] sm:$0xff]
        %v2048 = vld [vmem:[#allocation8 + $0xf8] sm:$0xff]
        %v2081 = vunpack.c.l.b16 %v2017
        %v2082 = vunpack.c.h.b16 %v2017
        %v2083 = vunpack.c.l.b16 %v2018
        %v2084 = vunpack.c.h.b16 %v2018
        %v2085 = vunpack.c.l.b16 %v2019
        %v2086 = vunpack.c.h.b16 %v2019
        %v2087 = vunpack.c.l.b16 %v2020
        %v2088 = vunpack.c.h.b16 %v2020
        %v2089 = vunpack.c.l.b16 %v2021
        %v2090 = vunpack.c.h.b16 %v2021
        %v2091 = vunpack.c.l.b16 %v2022
        %v2092 = vunpack.c.h.b16 %v2022
        %v2093 = vunpack.c.l.b16 %v2023
        %v2094 = vunpack.c.h.b16 %v2023
        %v2095 = vunpack.c.l.b16 %v2024
        %v2096 = vunpack.c.h.b16 %v2024
        %v2097 = vunpack.c.l.b16 %v2025
        %v2098 = vunpack.c.h.b16 %v2025
        %v2099 = vunpack.c.l.b16 %v2026
        %v2100 = vunpack.c.h.b16 %v2026
        %v2101 = vunpack.c.l.b16 %v2027
        %v2102 = vunpack.c.h.b16 %v2027
        %v2103 = vunpack.c.l.b16 %v2028
        %v2104 = vunpack.c.h.b16 %v2028
        %v2105 = vunpack.c.l.b16 %v2029
        %v2106 = vunpack.c.h.b16 %v2029
        %v2107 = vunpack.c.l.b16 %v2030
        %v2108 = vunpack.c.h.b16 %v2030
        %v2109 = vunpack.c.l.b16 %v2031
        %v2110 = vunpack.c.h.b16 %v2031
        %v2111 = vunpack.c.l.b16 %v2032
        %v2112 = vunpack.c.h.b16 %v2032
        %v2113 = vunpack.c.l.b16 %v2033
        %v2114 = vunpack.c.h.b16 %v2033
        %v2115 = vunpack.c.l.b16 %v2034
        %v2116 = vunpack.c.h.b16 %v2034
        %v2117 = vunpack.c.l.b16 %v2035
        %v2118 = vunpack.c.h.b16 %v2035
        %v2119 = vunpack.c.l.b16 %v2036
        %v2120 = vunpack.c.h.b16 %v2036
        %v2121 = vunpack.c.l.b16 %v2037
        %v2122 = vunpack.c.h.b16 %v2037
        %v2123 = vunpack.c.l.b16 %v2038
        %v2124 = vunpack.c.h.b16 %v2038
        %v2125 = vunpack.c.l.b16 %v2039
        %v2126 = vunpack.c.h.b16 %v2039
        %v2127 = vunpack.c.l.b16 %v2040
        %v2128 = vunpack.c.h.b16 %v2040
        %v2129 = vunpack.c.l.b16 %v2041
        %v2130 = vunpack.c.h.b16 %v2041
        %v2131 = vunpack.c.l.b16 %v2042
        %v2132 = vunpack.c.h.b16 %v2042
        %v2133 = vunpack.c.l.b16 %v2043
        %v2134 = vunpack.c.h.b16 %v2043
        %v2135 = vunpack.c.l.b16 %v2044
        %v2136 = vunpack.c.h.b16 %v2044
        %v2137 = vunpack.c.l.b16 %v2045
        %v2138 = vunpack.c.h.b16 %v2045
        %v2139 = vunpack.c.l.b16 %v2046
        %v2140 = vunpack.c.h.b16 %v2046
        %v2141 = vunpack.c.l.b16 %v2047
        %v2142 = vunpack.c.h.b16 %v2047
        %v2143 = vunpack.c.l.b16 %v2048
        %v2144 = vunpack.c.h.b16 %v2048
        %v2145 = vpack.c.b16 %v2085, %v2081
        %v2146 = vpack.c.b16 %v2086, %v2082
        %v2147 = vpack.c.b16 %v2087, %v2083
        %v2148 = vpack.c.b16 %v2088, %v2084
        %v2149 = vpack.c.b16 %v2093, %v2089
        %v2150 = vpack.c.b16 %v2094, %v2090
        %v2151 = vpack.c.b16 %v2095, %v2091
        %v2152 = vpack.c.b16 %v2096, %v2092
        %v2153 = vpack.c.b16 %v2101, %v2097
        %v2154 = vpack.c.b16 %v2102, %v2098
        %v2155 = vpack.c.b16 %v2103, %v2099
        %v2156 = vpack.c.b16 %v2104, %v2100
        %v2157 = vpack.c.b16 %v2109, %v2105
        %v2158 = vpack.c.b16 %v2110, %v2106
        %v2159 = vpack.c.b16 %v2111, %v2107
        %v2160 = vpack.c.b16 %v2112, %v2108
        %v2161 = vpack.c.b16 %v2117, %v2113
        %v2162 = vpack.c.b16 %v2118, %v2114
        %v2163 = vpack.c.b16 %v2119, %v2115
        %v2164 = vpack.c.b16 %v2120, %v2116
        %v2165 = vpack.c.b16 %v2125, %v2121
        %v2166 = vpack.c.b16 %v2126, %v2122
        %v2167 = vpack.c.b16 %v2127, %v2123
        %v2168 = vpack.c.b16 %v2128, %v2124
        %v2169 = vpack.c.b16 %v2133, %v2129
        %v2170 = vpack.c.b16 %v2134, %v2130
        %v2171 = vpack.c.b16 %v2135, %v2131
        %v2172 = vpack.c.b16 %v2136, %v2132
        %v2173 = vpack.c.b16 %v2141, %v2137
        %v2174 = vpack.c.b16 %v2142, %v2138
        %v2175 = vpack.c.b16 %v2143, %v2139
        %v2176 = vpack.c.b16 %v2144, %v2140
        %2209 = vmatprep.subr.bf16.mxu0 %v2146
        %2210 = vmatpush1.bf16.msra.mxu0 %v2145
        %2211 = vmatprep.subr.bf16.mxu0 %v2150
        %2212 = vmatpush1.bf16.msra.mxu0 %v2149
        %2213 = vmatprep.subr.bf16.mxu0 %v2154
        %2214 = vmatpush1.bf16.msra.mxu0 %v2153
        %2215 = vmatprep.subr.bf16.mxu0 %v2158
        %2216 = vmatpush1.bf16.msra.mxu0 %v2157
        %2217 = vmatprep.subr.bf16.mxu0 %v2162
        %2218 = vmatpush1.bf16.msra.mxu0 %v2161
        %2219 = vmatprep.subr.bf16.mxu0 %v2166
        %2220 = vmatpush1.bf16.msra.mxu0 %v2165
        %2221 = vmatprep.subr.bf16.mxu0 %v2170
        %2222 = vmatpush1.bf16.msra.mxu0 %v2169
        %2223 = vmatprep.subr.bf16.mxu0 %v2174
        %2224 = vmatpush1.bf16.msra.mxu0 %v2173
        %2225 = vmatprep.subr.bf16.mxu0 0
        %2226 = vmatpush1.bf16.msra.mxu0 0
        %2227 = vmatprep.subr.bf16.mxu0 0
        %2228 = vmatpush1.bf16.msra.mxu0 0
        %2229 = vmatprep.subr.bf16.mxu0 0
        %2230 = vmatpush1.bf16.msra.mxu0 0
        %2231 = vmatprep.subr.bf16.mxu0 0
        %2232 = vmatpush1.bf16.msra.mxu0 0
        %2233 = vmatprep.subr.bf16.mxu0 0
        %2234 = vmatpush1.bf16.msra.mxu0 0
        %2235 = vmatprep.subr.bf16.mxu0 0
        %2236 = vmatpush1.bf16.msra.mxu0 0
        %2237 = vmatprep.subr.bf16.mxu0 0
        %2238 = vmatpush1.bf16.msra.mxu0 0
        %2239 = vmatprep.subr.bf16.mxu0 0
        %2240 = vmatpush1.bf16.msra.mxu0 0
        %2241 = vmatprep.mubr.bf16.mxu0 0
        %2242 = vmatmul.mubr.bf16.gmra.mrb[0].mxu0 %v2008
        %v2243 = vpop.f32.mrb[0].mxu0
        %v2244 = vadd.f32 0.0, %v2243
        %v2245 = vpop.f32.mrb[0].mxu0
        %v2246 = vadd.f32 0.0, %v2245
        %v2247 = vpop.f32.mrb[0].mxu0
        %v2248 = vpop.f32.mrb[0].mxu0
        %2249 = vdwg.mxu0
        %2250 = vmatprep.subr.bf16.mxu0 %v2148
        %2251 = vmatpush1.bf16.msra.mxu0 %v2147
        %2252 = vmatprep.subr.bf16.mxu0 %v2152
        %2253 = vmatpush1.bf16.msra.mxu0 %v2151
        %2254 = vmatprep.subr.bf16.mxu0 %v2156
        %2255 = vmatpush1.bf16.msra.mxu0 %v2155
        %2256 = vmatprep.subr.bf16.mxu0 %v2160
        %2257 = vmatpush1.bf16.msra.mxu0 %v2159
        %2258 = vmatprep.subr.bf16.mxu0 %v2164
        %2259 = vmatpush1.bf16.msra.mxu0 %v2163
        %2260 = vmatprep.subr.bf16.mxu0 %v2168
        %2261 = vmatpush1.bf16.msra.mxu0 %v2167
        %2262 = vmatprep.subr.bf16.mxu0 %v2172
        %2263 = vmatpush1.bf16.msra.mxu0 %v2171
        %2264 = vmatprep.subr.bf16.mxu0 %v2176
        %2265 = vmatpush1.bf16.msra.mxu0 %v2175
        %2266 = vmatprep.subr.bf16.mxu0 0
        %2267 = vmatpush1.bf16.msra.mxu0 0
        %2268 = vmatprep.subr.bf16.mxu0 0
        %2269 = vmatpush1.bf16.msra.mxu0 0
        %2270 = vmatprep.subr.bf16.mxu0 0
        %2271 = vmatpush1.bf16.msra.mxu0 0
        %2272 = vmatprep.subr.bf16.mxu0 0
        %2273 = vmatpush1.bf16.msra.mxu0 0
        %2274 = vmatprep.subr.bf16.mxu0 0
        %2275 = vmatpush1.bf16.msra.mxu0 0
        %2276 = vmatprep.subr.bf16.mxu0 0
        %2277 = vmatpush1.bf16.msra.mxu0 0
        %2278 = vmatprep.subr.bf16.mxu0 0
        %2279 = vmatpush1.bf16.msra.mxu0 0
        %2280 = vmatprep.subr.bf16.mxu0 0
        %2281 = vmatpush1.bf16.msra.mxu0 0
        %2282 = vmatprep.mubr.bf16.mxu0 0
        %2283 = vmatmul.mubr.bf16.gmra.mrb[0].mxu0 %v2008
        %v2284 = vpop.f32.mrb[0].mxu0
        %v2285 = vadd.f32 0.0, %v2284
        %v2286 = vpop.f32.mrb[0].mxu0
        %v2287 = vadd.f32 0.0, %v2286
        %v2288 = vpop.f32.mrb[0].mxu0
        %v2289 = vpop.f32.mrb[0].mxu0
        %2290 = vdwg.mxu0
        %v2291 = vadd.f32 %v2013, %v2244
        %v2292 = vadd.f32 %v2014, %v2246
        %v2293 = vadd.f32 %v2015, %v2285
        %v2294 = vadd.f32 %v2016, %v2287
        %v2295 = vxor.u32 %v2291, 2147483648
        %v2296 = vmul.f32 %v2295, 1.442695
        %v2297 = vpow.pop %v2296
        %v2298 = vadd.f32 %v2297, 1.0
        %v2299 = vrcp.pop %v2298
        %v2300 = vmul.f32 1.0, %v2299
        %v2301 = vxor.u32 %v2292, 2147483648
        %v2302 = vmul.f32 %v2301, 1.442695
        %v2303 = vpow.pop %v2302
        %v2304 = vadd.f32 %v2303, 1.0
        %v2305 = vrcp.pop %v2304
        %v2306 = vmul.f32 1.0, %v2305
        %v2307 = vtanh.pop %v2293
        %v2308 = vxor.u32 %v2294, 2147483648
        %v2309 = vmul.f32 %v2308, 1.442695
        %v2310 = vpow.pop %v2309
        %v2311 = vadd.f32 %v2310, 1.0
        %v2312 = vrcp.pop %v2311
        %v2313 = vmul.f32 1.0, %v2312
        %v2314 = vmul.f32 %v2306, %v2009
        %v2315 = vmul.f32 %v2300, %v2307
        %v2316 = vadd.f32 %v2314, %v2315
        %v2317 = vtanh.pop %v2316
        %v2318 = vmul.f32 %v2313, %v2317
        %v2319 = vpack.c.bf16 %v2318, %v2318
        %2320 = vst [vmem:[#allocation2] sm:$0xf] %v2319
        %2321 = vst [vmem:[#allocation3] sm:$0xff] %v2316
        %v2322 = vld [vmem:[#allocation10] sm:$0xff]
        %v2323 = vld [vmem:[#allocation10 + $0x8] sm:$0xff]
        %v2324 = vld [vmem:[#allocation10 + $0x10] sm:$0xff]
        %v2325 = vld [vmem:[#allocation10 + $0x18] sm:$0xff]
        %v2326 = vld [vmem:[#allocation10 + $0x20] sm:$0xff]
        %v2327 = vld [vmem:[#allocation10 + $0x28] sm:$0xff]
        %v2328 = vld [vmem:[#allocation10 + $0x30] sm:$0xff]
        %v2329 = vld [vmem:[#allocation10 + $0x38] sm:$0xff]
        %v2330 = vld [vmem:[#allocation10 + $0x40] sm:$0xff]
        %v2331 = vld [vmem:[#allocation10 + $0x48] sm:$0xff]
        %v2332 = vld [vmem:[#allocation10 + $0x50] sm:$0xff]
        %v2333 = vld [vmem:[#allocation10 + $0x58] sm:$0xff]
        %v2334 = vld [vmem:[#allocation10 + $0x60] sm:$0xff]
        %v2335 = vld [vmem:[#allocation10 + $0x68] sm:$0xff]
        %v2336 = vld [vmem:[#allocation10 + $0x70] sm:$0xff]
        %v2337 = vld [vmem:[#allocation10 + $0x78] sm:$0xff]
        %v2338 = vld [vmem:[#allocation10 + $0x80] sm:$0xff]
        %v2339 = vld [vmem:[#allocation10 + $0x88] sm:$0xff]
        %v2340 = vld [vmem:[#allocation10 + $0x90] sm:$0xff]
        %v2341 = vld [vmem:[#allocation10 + $0x98] sm:$0xff]
        %v2342 = vld [vmem:[#allocation10 + $0xa0] sm:$0xff]
        %v2343 = vld [vmem:[#allocation10 + $0xa8] sm:$0xff]
        %v2344 = vld [vmem:[#allocation10 + $0xb0] sm:$0xff]
        %v2345 = vld [vmem:[#allocation10 + $0xb8] sm:$0xff]
        %v2346 = vld [vmem:[#allocation10 + $0xc0] sm:$0xff]
        %v2347 = vld [vmem:[#allocation10 + $0xc8] sm:$0xff]
        %v2348 = vld [vmem:[#allocation10 + $0xd0] sm:$0xff]
        %v2349 = vld [vmem:[#allocation10 + $0xd8] sm:$0xff]
        %v2350 = vld [vmem:[#allocation10 + $0xe0] sm:$0xff]
        %v2351 = vld [vmem:[#allocation10 + $0xe8] sm:$0xff]
        %v2352 = vld [vmem:[#allocation10 + $0xf0] sm:$0xff]
        %v2353 = vld [vmem:[#allocation10 + $0xf8] sm:$0xff]
        %v2354 = vld [vmem:[%s6] sm:$0xf]
        %v2356 = vlaneseq
        %v2357 = vshrl.u32 %v2356, 7
        %v2358 = vsub.s32 0, %v2357
        %v2359 = vrot.slane %v2354, %v2358
        %v2360 = vlaneseq
        %v2361 = vshrl.u32 %v2360, 7
        %v2362 = vsub.s32 1, %v2361
        %v2363 = vrot.slane %v2354, %v2362
        %v2364 = vlaneseq
        %v2365 = vshrl.u32 %v2364, 7
        %v2366 = vsub.s32 2, %v2365
        %v2367 = vrot.slane %v2354, %v2366
        %v2368 = vlaneseq
        %v2369 = vshrl.u32 %v2368, 7
        %v2370 = vsub.s32 3, %v2369
        %v2371 = vrot.slane %v2354, %v2370
        %v2408 = vunpack.c.l.b16 %v2322
        %v2409 = vunpack.c.h.b16 %v2322
        %v2410 = vunpack.c.l.b16 %v2323
        %v2411 = vunpack.c.h.b16 %v2323
        %v2412 = vunpack.c.l.b16 %v2324
        %v2413 = vunpack.c.h.b16 %v2324
        %v2414 = vunpack.c.l.b16 %v2325
        %v2415 = vunpack.c.h.b16 %v2325
        %v2416 = vunpack.c.l.b16 %v2326
        %v2417 = vunpack.c.h.b16 %v2326
        %v2418 = vunpack.c.l.b16 %v2327
        %v2419 = vunpack.c.h.b16 %v2327
        %v2420 = vunpack.c.l.b16 %v2328
        %v2421 = vunpack.c.h.b16 %v2328
        %v2422 = vunpack.c.l.b16 %v2329
        %v2423 = vunpack.c.h.b16 %v2329
        %v2424 = vunpack.c.l.b16 %v2330
        %v2425 = vunpack.c.h.b16 %v2330
        %v2426 = vunpack.c.l.b16 %v2331
        %v2427 = vunpack.c.h.b16 %v2331
        %v2428 = vunpack.c.l.b16 %v2332
        %v2429 = vunpack.c.h.b16 %v2332
        %v2430 = vunpack.c.l.b16 %v2333
        %v2431 = vunpack.c.h.b16 %v2333
        %v2432 = vunpack.c.l.b16 %v2334
        %v2433 = vunpack.c.h.b16 %v2334
        %v2434 = vunpack.c.l.b16 %v2335
        %v2435 = vunpack.c.h.b16 %v2335
        %v2436 = vunpack.c.l.b16 %v2336
        %v2437 = vunpack.c.h.b16 %v2336
        %v2438 = vunpack.c.l.b16 %v2337
        %v2439 = vunpack.c.h.b16 %v2337
        %v2440 = vunpack.c.l.b16 %v2338
        %v2441 = vunpack.c.h.b16 %v2338
        %v2442 = vunpack.c.l.b16 %v2339
        %v2443 = vunpack.c.h.b16 %v2339
        %v2444 = vunpack.c.l.b16 %v2340
        %v2445 = vunpack.c.h.b16 %v2340
        %v2446 = vunpack.c.l.b16 %v2341
        %v2447 = vunpack.c.h.b16 %v2341
        %v2448 = vunpack.c.l.b16 %v2342
        %v2449 = vunpack.c.h.b16 %v2342
        %v2450 = vunpack.c.l.b16 %v2343
        %v2451 = vunpack.c.h.b16 %v2343
        %v2452 = vunpack.c.l.b16 %v2344
        %v2453 = vunpack.c.h.b16 %v2344
        %v2454 = vunpack.c.l.b16 %v2345
        %v2455 = vunpack.c.h.b16 %v2345
        %v2456 = vunpack.c.l.b16 %v2346
        %v2457 = vunpack.c.h.b16 %v2346
        %v2458 = vunpack.c.l.b16 %v2347
        %v2459 = vunpack.c.h.b16 %v2347
        %v2460 = vunpack.c.l.b16 %v2348
        %v2461 = vunpack.c.h.b16 %v2348
        %v2462 = vunpack.c.l.b16 %v2349
        %v2463 = vunpack.c.h.b16 %v2349
        %v2464 = vunpack.c.l.b16 %v2350
        %v2465 = vunpack.c.h.b16 %v2350
        %v2466 = vunpack.c.l.b16 %v2351
        %v2467 = vunpack.c.h.b16 %v2351
        %v2468 = vunpack.c.l.b16 %v2352
        %v2469 = vunpack.c.h.b16 %v2352
        %v2470 = vunpack.c.l.b16 %v2353
        %v2471 = vunpack.c.h.b16 %v2353
        %v2472 = vpack.c.b16 %v2412, %v2408
        %v2473 = vpack.c.b16 %v2413, %v2409
        %v2474 = vpack.c.b16 %v2414, %v2410
        %v2475 = vpack.c.b16 %v2415, %v2411
        %v2476 = vpack.c.b16 %v2420, %v2416
        %v2477 = vpack.c.b16 %v2421, %v2417
        %v2478 = vpack.c.b16 %v2422, %v2418
        %v2479 = vpack.c.b16 %v2423, %v2419
        %v2480 = vpack.c.b16 %v2428, %v2424
        %v2481 = vpack.c.b16 %v2429, %v2425
        %v2482 = vpack.c.b16 %v2430, %v2426
        %v2483 = vpack.c.b16 %v2431, %v2427
        %v2484 = vpack.c.b16 %v2436, %v2432
        %v2485 = vpack.c.b16 %v2437, %v2433
        %v2486 = vpack.c.b16 %v2438, %v2434
        %v2487 = vpack.c.b16 %v2439, %v2435
        %v2488 = vpack.c.b16 %v2444, %v2440
        %v2489 = vpack.c.b16 %v2445, %v2441
        %v2490 = vpack.c.b16 %v2446, %v2442
        %v2491 = vpack.c.b16 %v2447, %v2443
        %v2492 = vpack.c.b16 %v2452, %v2448
        %v2493 = vpack.c.b16 %v2453, %v2449
        %v2494 = vpack.c.b16 %v2454, %v2450
        %v2495 = vpack.c.b16 %v2455, %v2451
        %v2496 = vpack.c.b16 %v2460, %v2456
        %v2497 = vpack.c.b16 %v2461, %v2457
        %v2498 = vpack.c.b16 %v2462, %v2458
        %v2499 = vpack.c.b16 %v2463, %v2459
        %v2500 = vpack.c.b16 %v2468, %v2464
        %v2501 = vpack.c.b16 %v2469, %v2465
        %v2502 = vpack.c.b16 %v2470, %v2466
        %v2503 = vpack.c.b16 %v2471, %v2467
        %2536 = vmatprep.subr.bf16.mxu0 %v2473
        %2537 = vmatpush1.bf16.msra.mxu0 %v2472
        %2538 = vmatprep.subr.bf16.mxu0 %v2477
        %2539 = vmatpush1.bf16.msra.mxu0 %v2476
        %2540 = vmatprep.subr.bf16.mxu0 %v2481
        %2541 = vmatpush1.bf16.msra.mxu0 %v2480
        %2542 = vmatprep.subr.bf16.mxu0 %v2485
        %2543 = vmatpush1.bf16.msra.mxu0 %v2484
        %2544 = vmatprep.subr.bf16.mxu0 %v2489
        %2545 = vmatpush1.bf16.msra.mxu0 %v2488
        %2546 = vmatprep.subr.bf16.mxu0 %v2493
        %2547 = vmatpush1.bf16.msra.mxu0 %v2492
        %2548 = vmatprep.subr.bf16.mxu0 %v2497
        %2549 = vmatpush1.bf16.msra.mxu0 %v2496
        %2550 = vmatprep.subr.bf16.mxu0 %v2501
        %2551 = vmatpush1.bf16.msra.mxu0 %v2500
        %2552 = vmatprep.subr.bf16.mxu0 0
        %2553 = vmatpush1.bf16.msra.mxu0 0
        %2554 = vmatprep.subr.bf16.mxu0 0
        %2555 = vmatpush1.bf16.msra.mxu0 0
        %2556 = vmatprep.subr.bf16.mxu0 0
        %2557 = vmatpush1.bf16.msra.mxu0 0
        %2558 = vmatprep.subr.bf16.mxu0 0
        %2559 = vmatpush1.bf16.msra.mxu0 0
        %2560 = vmatprep.subr.bf16.mxu0 0
        %2561 = vmatpush1.bf16.msra.mxu0 0
        %2562 = vmatprep.subr.bf16.mxu0 0
        %2563 = vmatpush1.bf16.msra.mxu0 0
        %2564 = vmatprep.subr.bf16.mxu0 0
        %2565 = vmatpush1.bf16.msra.mxu0 0
        %2566 = vmatprep.subr.bf16.mxu0 0
        %2567 = vmatpush1.bf16.msra.mxu0 0
        %2568 = vmatprep.mubr.bf16.mxu0 0
        %2569 = vmatmul.mubr.bf16.gmra.mrb[0].mxu0 %v2319
        %v2570 = vpop.f32.mrb[0].mxu0
        %v2571 = vadd.f32 %v2359, %v2570
        %v2572 = vpop.f32.mrb[0].mxu0
        %v2573 = vadd.f32 %v2363, %v2572
        %v2574 = vpop.f32.mrb[0].mxu0
        %v2575 = vpop.f32.mrb[0].mxu0
        %2576 = vdwg.mxu0
        %2577 = vmatprep.subr.bf16.mxu0 %v2475
        %2578 = vmatpush1.bf16.msra.mxu0 %v2474
        %2579 = vmatprep.subr.bf16.mxu0 %v2479
        %2580 = vmatpush1.bf16.msra.mxu0 %v2478
        %2581 = vmatprep.subr.bf16.mxu0 %v2483
        %2582 = vmatpush1.bf16.msra.mxu0 %v2482
        %2583 = vmatprep.subr.bf16.mxu0 %v2487
        %2584 = vmatpush1.bf16.msra.mxu0 %v2486
        %2585 = vmatprep.subr.bf16.mxu0 %v2491
        %2586 = vmatpush1.bf16.msra.mxu0 %v2490
        %2587 = vmatprep.subr.bf16.mxu0 %v2495
        %2588 = vmatpush1.bf16.msra.mxu0 %v2494
        %2589 = vmatprep.subr.bf16.mxu0 %v2499
        %2590 = vmatpush1.bf16.msra.mxu0 %v2498
        %2591 = vmatprep.subr.bf16.mxu0 %v2503
        %2592 = vmatpush1.bf16.msra.mxu0 %v2502
        %2593 = vmatprep.subr.bf16.mxu0 0
        %2594 = vmatpush1.bf16.msra.mxu0 0
        %2595 = vmatprep.subr.bf16.mxu0 0
        %2596 = vmatpush1.bf16.msra.mxu0 0
        %2597 = vmatprep.subr.bf16.mxu0 0
        %2598 = vmatpush1.bf16.msra.mxu0 0
        %2599 = vmatprep.subr.bf16.mxu0 0
        %2600 = vmatpush1.bf16.msra.mxu0 0
        %2601 = vmatprep.subr.bf16.mxu0 0
        %2602 = vmatpush1.bf16.msra.mxu0 0
        %2603 = vmatprep.subr.bf16.mxu0 0
        %2604 = vmatpush1.bf16.msra.mxu0 0
        %2605 = vmatprep.subr.bf16.mxu0 0
        %2606 = vmatpush1.bf16.msra.mxu0 0
        %2607 = vmatprep.subr.bf16.mxu0 0
        %2608 = vmatpush1.bf16.msra.mxu0 0
        %2609 = vmatprep.mubr.bf16.mxu0 0
        %2610 = vmatmul.mubr.bf16.gmra.mrb[0].mxu0 %v2319
        %v2611 = vpop.f32.mrb[0].mxu0
        %v2612 = vadd.f32 %v2367, %v2611
        %v2613 = vpop.f32.mrb[0].mxu0
        %v2614 = vadd.f32 %v2371, %v2613
        %v2615 = vpop.f32.mrb[0].mxu0
        %v2616 = vpop.f32.mrb[0].mxu0
        %2617 = vdwg.mxu0
        %s2618 = smul.addr %s2010, 8
        %s2619 = scalar_lea.vmem [#allocation5], %s2618
        %2620 = vst [vmem:[%s2619] sm:$0xff] %v2571
        %2621 = vst [vmem:[%s2619 + $0x8] sm:$0xff] %v2573
        %2622 = vst [vmem:[%s2619 + $0x10] sm:$0xff] %v2612
        %2623 = vst [vmem:[%s2619 + $0x18] sm:$0xff] %v2614
        %v2624 = vld [vmem:[#allocation2] sm:$0xf]
        %v2625 = vld [vmem:[#allocation3] sm:$0xff]
        %s2626 = smul.u32 3, 4
        %s2627 = smul.addr %s2626, 8
        %s2628 = scalar_lea.vmem [#allocation4], %s2627
        %v2629 = vld [vmem:[%s2628] sm:$0xff]
        %v2630 = vld [vmem:[%s2628 + $0x8] sm:$0xff]
        %v2631 = vld [vmem:[%s2628 + $0x10] sm:$0xff]
        %v2632 = vld [vmem:[%s2628 + $0x18] sm:$0xff]
        %v2633 = vld [vmem:[#allocation8] sm:$0xff]
        %v2634 = vld [vmem:[#allocation8 + $0x8] sm:$0xff]
        %v2635 = vld [vmem:[#allocation8 + $0x10] sm:$0xff]
        %v2636 = vld [vmem:[#allocation8 + $0x18] sm:$0xff]
        %v2637 = vld [vmem:[#allocation8 + $0x20] sm:$0xff]
        %v2638 = vld [vmem:[#allocation8 + $0x28] sm:$0xff]
        %v2639 = vld [vmem:[#allocation8 + $0x30] sm:$0xff]
        %v2640 = vld [vmem:[#allocation8 + $0x38] sm:$0xff]
        %v2641 = vld [vmem:[#allocation8 + $0x40] sm:$0xff]
        %v2642 = vld [vmem:[#allocation8 + $0x48] sm:$0xff]
        %v2643 = vld [vmem:[#allocation8 + $0x50] sm:$0xff]
        %v2644 = vld [vmem:[#allocation8 + $0x58] sm:$0xff]
        %v2645 = vld [vmem:[#allocation8 + $0x60] sm:$0xff]
        %v2646 = vld [vmem:[#allocation8 + $0x68] sm:$0xff]
        %v2647 = vld [vmem:[#allocation8 + $0x70] sm:$0xff]
        %v2648 = vld [vmem:[#allocation8 + $0x78] sm:$0xff]
        %v2649 = vld [vmem:[#allocation8 + $0x80] sm:$0xff]
        %v2650 = vld [vmem:[#allocation8 + $0x88] sm:$0xff]
        %v2651 = vld [vmem:[#allocation8 + $0x90] sm:$0xff]
        %v2652 = vld [vmem:[#allocation8 + $0x98] sm:$0xff]
        %v2653 = vld [vmem:[#allocation8 + $0xa0] sm:$0xff]
        %v2654 = vld [vmem:[#allocation8 + $0xa8] sm:$0xff]
        %v2655 = vld [vmem:[#allocation8 + $0xb0] sm:$0xff]
        %v2656 = vld [vmem:[#allocation8 + $0xb8] sm:$0xff]
        %v2657 = vld [vmem:[#allocation8 + $0xc0] sm:$0xff]
        %v2658 = vld [vmem:[#allocation8 + $0xc8] sm:$0xff]
        %v2659 = vld [vmem:[#allocation8 + $0xd0] sm:$0xff]
        %v2660 = vld [vmem:[#allocation8 + $0xd8] sm:$0xff]
        %v2661 = vld [vmem:[#allocation8 + $0xe0] sm:$0xff]
        %v2662 = vld [vmem:[#allocation8 + $0xe8] sm:$0xff]
        %v2663 = vld [vmem:[#allocation8 + $0xf0] sm:$0xff]
        %v2664 = vld [vmem:[#allocation8 + $0xf8] sm:$0xff]
        %v2697 = vunpack.c.l.b16 %v2633
        %v2698 = vunpack.c.h.b16 %v2633
        %v2699 = vunpack.c.l.b16 %v2634
        %v2700 = vunpack.c.h.b16 %v2634
        %v2701 = vunpack.c.l.b16 %v2635
        %v2702 = vunpack.c.h.b16 %v2635
        %v2703 = vunpack.c.l.b16 %v2636
        %v2704 = vunpack.c.h.b16 %v2636
        %v2705 = vunpack.c.l.b16 %v2637
        %v2706 = vunpack.c.h.b16 %v2637
        %v2707 = vunpack.c.l.b16 %v2638
        %v2708 = vunpack.c.h.b16 %v2638
        %v2709 = vunpack.c.l.b16 %v2639
        %v2710 = vunpack.c.h.b16 %v2639
        %v2711 = vunpack.c.l.b16 %v2640
        %v2712 = vunpack.c.h.b16 %v2640
        %v2713 = vunpack.c.l.b16 %v2641
        %v2714 = vunpack.c.h.b16 %v2641
        %v2715 = vunpack.c.l.b16 %v2642
        %v2716 = vunpack.c.h.b16 %v2642
        %v2717 = vunpack.c.l.b16 %v2643
        %v2718 = vunpack.c.h.b16 %v2643
        %v2719 = vunpack.c.l.b16 %v2644
        %v2720 = vunpack.c.h.b16 %v2644
        %v2721 = vunpack.c.l.b16 %v2645
        %v2722 = vunpack.c.h.b16 %v2645
        %v2723 = vunpack.c.l.b16 %v2646
        %v2724 = vunpack.c.h.b16 %v2646
        %v2725 = vunpack.c.l.b16 %v2647
        %v2726 = vunpack.c.h.b16 %v2647
        %v2727 = vunpack.c.l.b16 %v2648
        %v2728 = vunpack.c.h.b16 %v2648
        %v2729 = vunpack.c.l.b16 %v2649
        %v2730 = vunpack.c.h.b16 %v2649
        %v2731 = vunpack.c.l.b16 %v2650
        %v2732 = vunpack.c.h.b16 %v2650
        %v2733 = vunpack.c.l.b16 %v2651
        %v2734 = vunpack.c.h.b16 %v2651
        %v2735 = vunpack.c.l.b16 %v2652
        %v2736 = vunpack.c.h.b16 %v2652
        %v2737 = vunpack.c.l.b16 %v2653
        %v2738 = vunpack.c.h.b16 %v2653
        %v2739 = vunpack.c.l.b16 %v2654
        %v2740 = vunpack.c.h.b16 %v2654
        %v2741 = vunpack.c.l.b16 %v2655
        %v2742 = vunpack.c.h.b16 %v2655
        %v2743 = vunpack.c.l.b16 %v2656
        %v2744 = vunpack.c.h.b16 %v2656
        %v2745 = vunpack.c.l.b16 %v2657
        %v2746 = vunpack.c.h.b16 %v2657
        %v2747 = vunpack.c.l.b16 %v2658
        %v2748 = vunpack.c.h.b16 %v2658
        %v2749 = vunpack.c.l.b16 %v2659
        %v2750 = vunpack.c.h.b16 %v2659
        %v2751 = vunpack.c.l.b16 %v2660
        %v2752 = vunpack.c.h.b16 %v2660
        %v2753 = vunpack.c.l.b16 %v2661
        %v2754 = vunpack.c.h.b16 %v2661
        %v2755 = vunpack.c.l.b16 %v2662
        %v2756 = vunpack.c.h.b16 %v2662
        %v2757 = vunpack.c.l.b16 %v2663
        %v2758 = vunpack.c.h.b16 %v2663
        %v2759 = vunpack.c.l.b16 %v2664
        %v2760 = vunpack.c.h.b16 %v2664
        %v2761 = vpack.c.b16 %v2701, %v2697
        %v2762 = vpack.c.b16 %v2702, %v2698
        %v2763 = vpack.c.b16 %v2703, %v2699
        %v2764 = vpack.c.b16 %v2704, %v2700
        %v2765 = vpack.c.b16 %v2709, %v2705
        %v2766 = vpack.c.b16 %v2710, %v2706
        %v2767 = vpack.c.b16 %v2711, %v2707
        %v2768 = vpack.c.b16 %v2712, %v2708
        %v2769 = vpack.c.b16 %v2717, %v2713
        %v2770 = vpack.c.b16 %v2718, %v2714
        %v2771 = vpack.c.b16 %v2719, %v2715
        %v2772 = vpack.c.b16 %v2720, %v2716
        %v2773 = vpack.c.b16 %v2725, %v2721
        %v2774 = vpack.c.b16 %v2726, %v2722
        %v2775 = vpack.c.b16 %v2727, %v2723
        %v2776 = vpack.c.b16 %v2728, %v2724
        %v2777 = vpack.c.b16 %v2733, %v2729
        %v2778 = vpack.c.b16 %v2734, %v2730
        %v2779 = vpack.c.b16 %v2735, %v2731
        %v2780 = vpack.c.b16 %v2736, %v2732
        %v2781 = vpack.c.b16 %v2741, %v2737
        %v2782 = vpack.c.b16 %v2742, %v2738
        %v2783 = vpack.c.b16 %v2743, %v2739
        %v2784 = vpack.c.b16 %v2744, %v2740
        %v2785 = vpack.c.b16 %v2749, %v2745
        %v2786 = vpack.c.b16 %v2750, %v2746
        %v2787 = vpack.c.b16 %v2751, %v2747
        %v2788 = vpack.c.b16 %v2752, %v2748
        %v2789 = vpack.c.b16 %v2757, %v2753
        %v2790 = vpack.c.b16 %v2758, %v2754
        %v2791 = vpack.c.b16 %v2759, %v2755
        %v2792 = vpack.c.b16 %v2760, %v2756
        %2825 = vmatprep.subr.bf16.mxu0 %v2762
        %2826 = vmatpush1.bf16.msra.mxu0 %v2761
        %2827 = vmatprep.subr.bf16.mxu0 %v2766
        %2828 = vmatpush1.bf16.msra.mxu0 %v2765
        %2829 = vmatprep.subr.bf16.mxu0 %v2770
        %2830 = vmatpush1.bf16.msra.mxu0 %v2769
        %2831 = vmatprep.subr.bf16.mxu0 %v2774
        %2832 = vmatpush1.bf16.msra.mxu0 %v2773
        %2833 = vmatprep.subr.bf16.mxu0 %v2778
        %2834 = vmatpush1.bf16.msra.mxu0 %v2777
        %2835 = vmatprep.subr.bf16.mxu0 %v2782
        %2836 = vmatpush1.bf16.msra.mxu0 %v2781
        %2837 = vmatprep.subr.bf16.mxu0 %v2786
        %2838 = vmatpush1.bf16.msra.mxu0 %v2785
        %2839 = vmatprep.subr.bf16.mxu0 %v2790
        %2840 = vmatpush1.bf16.msra.mxu0 %v2789
        %2841 = vmatprep.subr.bf16.mxu0 0
        %2842 = vmatpush1.bf16.msra.mxu0 0
        %2843 = vmatprep.subr.bf16.mxu0 0
        %2844 = vmatpush1.bf16.msra.mxu0 0
        %2845 = vmatprep.subr.bf16.mxu0 0
        %2846 = vmatpush1.bf16.msra.mxu0 0
        %2847 = vmatprep.subr.bf16.mxu0 0
        %2848 = vmatpush1.bf16.msra.mxu0 0
        %2849 = vmatprep.subr.bf16.mxu0 0
        %2850 = vmatpush1.bf16.msra.mxu0 0
        %2851 = vmatprep.subr.bf16.mxu0 0
        %2852 = vmatpush1.bf16.msra.mxu0 0
        %2853 = vmatprep.subr.bf16.mxu0 0
        %2854 = vmatpush1.bf16.msra.mxu0 0
        %2855 = vmatprep.subr.bf16.mxu0 0
        %2856 = vmatpush1.bf16.msra.mxu0 0
        %2857 = vmatprep.mubr.bf16.mxu0 0
        %2858 = vmatmul.mubr.bf16.gmra.mrb[0].mxu0 %v2624
        %v2859 = vpop.f32.mrb[0].mxu0
        %v2860 = vadd.f32 0.0, %v2859
        %v2861 = vpop.f32.mrb[0].mxu0
        %v2862 = vadd.f32 0.0, %v2861
        %v2863 = vpop.f32.mrb[0].mxu0
        %v2864 = vpop.f32.mrb[0].mxu0
        %2865 = vdwg.mxu0
        %2866 = vmatprep.subr.bf16.mxu0 %v2764
        %2867 = vmatpush1.bf16.msra.mxu0 %v2763
        %2868 = vmatprep.subr.bf16.mxu0 %v2768
        %2869 = vmatpush1.bf16.msra.mxu0 %v2767
        %2870 = vmatprep.subr.bf16.mxu0 %v2772
        %2871 = vmatpush1.bf16.msra.mxu0 %v2771
        %2872 = vmatprep.subr.bf16.mxu0 %v2776
        %2873 = vmatpush1.bf16.msra.mxu0 %v2775
        %2874 = vmatprep.subr.bf16.mxu0 %v2780
        %2875 = vmatpush1.bf16.msra.mxu0 %v2779
        %2876 = vmatprep.subr.bf16.mxu0 %v2784
        %2877 = vmatpush1.bf16.msra.mxu0 %v2783
        %2878 = vmatprep.subr.bf16.mxu0 %v2788
        %2879 = vmatpush1.bf16.msra.mxu0 %v2787
        %2880 = vmatprep.subr.bf16.mxu0 %v2792
        %2881 = vmatpush1.bf16.msra.mxu0 %v2791
        %2882 = vmatprep.subr.bf16.mxu0 0
        %2883 = vmatpush1.bf16.msra.mxu0 0
        %2884 = vmatprep.subr.bf16.mxu0 0
        %2885 = vmatpush1.bf16.msra.mxu0 0
        %2886 = vmatprep.subr.bf16.mxu0 0
        %2887 = vmatpush1.bf16.msra.mxu0 0
        %2888 = vmatprep.subr.bf16.mxu0 0
        %2889 = vmatpush1.bf16.msra.mxu0 0
        %2890 = vmatprep.subr.bf16.mxu0 0
        %2891 = vmatpush1.bf16.msra.mxu0 0
        %2892 = vmatprep.subr.bf16.mxu0 0
        %2893 = vmatpush1.bf16.msra.mxu0 0
        %2894 = vmatprep.subr.bf16.mxu0 0
        %2895 = vmatpush1.bf16.msra.mxu0 0
        %2896 = vmatprep.subr.bf16.mxu0 0
        %2897 = vmatpush1.bf16.msra.mxu0 0
        %2898 = vmatprep.mubr.bf16.mxu0 0
        %2899 = vmatmul.mubr.bf16.gmra.mrb[0].mxu0 %v2624
        %v2900 = vpop.f32.mrb[0].mxu0
        %v2901 = vadd.f32 0.0, %v2900
        %v2902 = vpop.f32.mrb[0].mxu0
        %v2903 = vadd.f32 0.0, %v2902
        %v2904 = vpop.f32.mrb[0].mxu0
        %v2905 = vpop.f32.mrb[0].mxu0
        %2906 = vdwg.mxu0
        %v2907 = vadd.f32 %v2629, %v2860
        %v2908 = vadd.f32 %v2630, %v2862
        %v2909 = vadd.f32 %v2631, %v2901
        %v2910 = vadd.f32 %v2632, %v2903
        %v2911 = vxor.u32 %v2907, 2147483648
        %v2912 = vmul.f32 %v2911, 1.442695
        %v2913 = vpow.pop %v2912
        %v2914 = vadd.f32 %v2913, 1.0
        %v2915 = vrcp.pop %v2914
        %v2916 = vmul.f32 1.0, %v2915
        %v2917 = vxor.u32 %v2908, 2147483648
        %v2918 = vmul.f32 %v2917, 1.442695
        %v2919 = vpow.pop %v2918
        %v2920 = vadd.f32 %v2919, 1.0
        %v2921 = vrcp.pop %v2920
        %v2922 = vmul.f32 1.0, %v2921
        %v2923 = vtanh.pop %v2909
        %v2924 = vxor.u32 %v2910, 2147483648
        %v2925 = vmul.f32 %v2924, 1.442695
        %v2926 = vpow.pop %v2925
        %v2927 = vadd.f32 %v2926, 1.0
        %v2928 = vrcp.pop %v2927
        %v2929 = vmul.f32 1.0, %v2928
        %v2930 = vmul.f32 %v2922, %v2625
        %v2931 = vmul.f32 %v2916, %v2923
        %v2932 = vadd.f32 %v2930, %v2931
        %v2933 = vtanh.pop %v2932
        %v2934 = vmul.f32 %v2929, %v2933
        %v2935 = vpack.c.bf16 %v2934, %v2934
        %2936 = vst [vmem:[#allocation2] sm:$0xf] %v2935
        %2937 = vst [vmem:[#allocation3] sm:$0xff] %v2932
        %v2938 = vld [vmem:[#allocation10] sm:$0xff]
        %v2939 = vld [vmem:[#allocation10 + $0x8] sm:$0xff]
        %v2940 = vld [vmem:[#allocation10 + $0x10] sm:$0xff]
        %v2941 = vld [vmem:[#allocation10 + $0x18] sm:$0xff]
        %v2942 = vld [vmem:[#allocation10 + $0x20] sm:$0xff]
        %v2943 = vld [vmem:[#allocation10 + $0x28] sm:$0xff]
        %v2944 = vld [vmem:[#allocation10 + $0x30] sm:$0xff]
        %v2945 = vld [vmem:[#allocation10 + $0x38] sm:$0xff]
        %v2946 = vld [vmem:[#allocation10 + $0x40] sm:$0xff]
        %v2947 = vld [vmem:[#allocation10 + $0x48] sm:$0xff]
        %v2948 = vld [vmem:[#allocation10 + $0x50] sm:$0xff]
        %v2949 = vld [vmem:[#allocation10 + $0x58] sm:$0xff]
        %v2950 = vld [vmem:[#allocation10 + $0x60] sm:$0xff]
        %v2951 = vld [vmem:[#allocation10 + $0x68] sm:$0xff]
        %v2952 = vld [vmem:[#allocation10 + $0x70] sm:$0xff]
        %v2953 = vld [vmem:[#allocation10 + $0x78] sm:$0xff]
        %v2954 = vld [vmem:[#allocation10 + $0x80] sm:$0xff]
        %v2955 = vld [vmem:[#allocation10 + $0x88] sm:$0xff]
        %v2956 = vld [vmem:[#allocation10 + $0x90] sm:$0xff]
        %v2957 = vld [vmem:[#allocation10 + $0x98] sm:$0xff]
        %v2958 = vld [vmem:[#allocation10 + $0xa0] sm:$0xff]
        %v2959 = vld [vmem:[#allocation10 + $0xa8] sm:$0xff]
        %v2960 = vld [vmem:[#allocation10 + $0xb0] sm:$0xff]
        %v2961 = vld [vmem:[#allocation10 + $0xb8] sm:$0xff]
        %v2962 = vld [vmem:[#allocation10 + $0xc0] sm:$0xff]
        %v2963 = vld [vmem:[#allocation10 + $0xc8] sm:$0xff]
        %v2964 = vld [vmem:[#allocation10 + $0xd0] sm:$0xff]
        %v2965 = vld [vmem:[#allocation10 + $0xd8] sm:$0xff]
        %v2966 = vld [vmem:[#allocation10 + $0xe0] sm:$0xff]
        %v2967 = vld [vmem:[#allocation10 + $0xe8] sm:$0xff]
        %v2968 = vld [vmem:[#allocation10 + $0xf0] sm:$0xff]
        %v2969 = vld [vmem:[#allocation10 + $0xf8] sm:$0xff]
        %v2970 = vld [vmem:[%s6] sm:$0xf]
        %v2972 = vlaneseq
        %v2973 = vshrl.u32 %v2972, 7
        %v2974 = vsub.s32 0, %v2973
        %v2975 = vrot.slane %v2970, %v2974
        %v2976 = vlaneseq
        %v2977 = vshrl.u32 %v2976, 7
        %v2978 = vsub.s32 1, %v2977
        %v2979 = vrot.slane %v2970, %v2978
        %v2980 = vlaneseq
        %v2981 = vshrl.u32 %v2980, 7
        %v2982 = vsub.s32 2, %v2981
        %v2983 = vrot.slane %v2970, %v2982
        %v2984 = vlaneseq
        %v2985 = vshrl.u32 %v2984, 7
        %v2986 = vsub.s32 3, %v2985
        %v2987 = vrot.slane %v2970, %v2986
        %v3024 = vunpack.c.l.b16 %v2938
        %v3025 = vunpack.c.h.b16 %v2938
        %v3026 = vunpack.c.l.b16 %v2939
        %v3027 = vunpack.c.h.b16 %v2939
        %v3028 = vunpack.c.l.b16 %v2940
        %v3029 = vunpack.c.h.b16 %v2940
        %v3030 = vunpack.c.l.b16 %v2941
        %v3031 = vunpack.c.h.b16 %v2941
        %v3032 = vunpack.c.l.b16 %v2942
        %v3033 = vunpack.c.h.b16 %v2942
        %v3034 = vunpack.c.l.b16 %v2943
        %v3035 = vunpack.c.h.b16 %v2943
        %v3036 = vunpack.c.l.b16 %v2944
        %v3037 = vunpack.c.h.b16 %v2944
        %v3038 = vunpack.c.l.b16 %v2945
        %v3039 = vunpack.c.h.b16 %v2945
        %v3040 = vunpack.c.l.b16 %v2946
        %v3041 = vunpack.c.h.b16 %v2946
        %v3042 = vunpack.c.l.b16 %v2947
        %v3043 = vunpack.c.h.b16 %v2947
        %v3044 = vunpack.c.l.b16 %v2948
        %v3045 = vunpack.c.h.b16 %v2948
        %v3046 = vunpack.c.l.b16 %v2949
        %v3047 = vunpack.c.h.b16 %v2949
        %v3048 = vunpack.c.l.b16 %v2950
        %v3049 = vunpack.c.h.b16 %v2950
        %v3050 = vunpack.c.l.b16 %v2951
        %v3051 = vunpack.c.h.b16 %v2951
        %v3052 = vunpack.c.l.b16 %v2952
        %v3053 = vunpack.c.h.b16 %v2952
        %v3054 = vunpack.c.l.b16 %v2953
        %v3055 = vunpack.c.h.b16 %v2953
        %v3056 = vunpack.c.l.b16 %v2954
        %v3057 = vunpack.c.h.b16 %v2954
        %v3058 = vunpack.c.l.b16 %v2955
        %v3059 = vunpack.c.h.b16 %v2955
        %v3060 = vunpack.c.l.b16 %v2956
        %v3061 = vunpack.c.h.b16 %v2956
        %v3062 = vunpack.c.l.b16 %v2957
        %v3063 = vunpack.c.h.b16 %v2957
        %v3064 = vunpack.c.l.b16 %v2958
        %v3065 = vunpack.c.h.b16 %v2958
        %v3066 = vunpack.c.l.b16 %v2959
        %v3067 = vunpack.c.h.b16 %v2959
        %v3068 = vunpack.c.l.b16 %v2960
        %v3069 = vunpack.c.h.b16 %v2960
        %v3070 = vunpack.c.l.b16 %v2961
        %v3071 = vunpack.c.h.b16 %v2961
        %v3072 = vunpack.c.l.b16 %v2962
        %v3073 = vunpack.c.h.b16 %v2962
        %v3074 = vunpack.c.l.b16 %v2963
        %v3075 = vunpack.c.h.b16 %v2963
        %v3076 = vunpack.c.l.b16 %v2964
        %v3077 = vunpack.c.h.b16 %v2964
        %v3078 = vunpack.c.l.b16 %v2965
        %v3079 = vunpack.c.h.b16 %v2965
        %v3080 = vunpack.c.l.b16 %v2966
        %v3081 = vunpack.c.h.b16 %v2966
        %v3082 = vunpack.c.l.b16 %v2967
        %v3083 = vunpack.c.h.b16 %v2967
        %v3084 = vunpack.c.l.b16 %v2968
        %v3085 = vunpack.c.h.b16 %v2968
        %v3086 = vunpack.c.l.b16 %v2969
        %v3087 = vunpack.c.h.b16 %v2969
        %v3088 = vpack.c.b16 %v3028, %v3024
        %v3089 = vpack.c.b16 %v3029, %v3025
        %v3090 = vpack.c.b16 %v3030, %v3026
        %v3091 = vpack.c.b16 %v3031, %v3027
        %v3092 = vpack.c.b16 %v3036, %v3032
        %v3093 = vpack.c.b16 %v3037, %v3033
        %v3094 = vpack.c.b16 %v3038, %v3034
        %v3095 = vpack.c.b16 %v3039, %v3035
        %v3096 = vpack.c.b16 %v3044, %v3040
        %v3097 = vpack.c.b16 %v3045, %v3041
        %v3098 = vpack.c.b16 %v3046, %v3042
        %v3099 = vpack.c.b16 %v3047, %v3043
        %v3100 = vpack.c.b16 %v3052, %v3048
        %v3101 = vpack.c.b16 %v3053, %v3049
        %v3102 = vpack.c.b16 %v3054, %v3050
        %v3103 = vpack.c.b16 %v3055, %v3051
        %v3104 = vpack.c.b16 %v3060, %v3056
        %v3105 = vpack.c.b16 %v3061, %v3057
        %v3106 = vpack.c.b16 %v3062, %v3058
        %v3107 = vpack.c.b16 %v3063, %v3059
        %v3108 = vpack.c.b16 %v3068, %v3064
        %v3109 = vpack.c.b16 %v3069, %v3065
        %v3110 = vpack.c.b16 %v3070, %v3066
        %v3111 = vpack.c.b16 %v3071, %v3067
        %v3112 = vpack.c.b16 %v3076, %v3072
        %v3113 = vpack.c.b16 %v3077, %v3073
        %v3114 = vpack.c.b16 %v3078, %v3074
        %v3115 = vpack.c.b16 %v3079, %v3075
        %v3116 = vpack.c.b16 %v3084, %v3080
        %v3117 = vpack.c.b16 %v3085, %v3081
        %v3118 = vpack.c.b16 %v3086, %v3082
        %v3119 = vpack.c.b16 %v3087, %v3083
        %3152 = vmatprep.subr.bf16.mxu0 %v3089
        %3153 = vmatpush1.bf16.msra.mxu0 %v3088
        %3154 = vmatprep.subr.bf16.mxu0 %v3093
        %3155 = vmatpush1.bf16.msra.mxu0 %v3092
        %3156 = vmatprep.subr.bf16.mxu0 %v3097
        %3157 = vmatpush1.bf16.msra.mxu0 %v3096
        %3158 = vmatprep.subr.bf16.mxu0 %v3101
        %3159 = vmatpush1.bf16.msra.mxu0 %v3100
        %3160 = vmatprep.subr.bf16.mxu0 %v3105
        %3161 = vmatpush1.bf16.msra.mxu0 %v3104
        %3162 = vmatprep.subr.bf16.mxu0 %v3109
        %3163 = vmatpush1.bf16.msra.mxu0 %v3108
        %3164 = vmatprep.subr.bf16.mxu0 %v3113
        %3165 = vmatpush1.bf16.msra.mxu0 %v3112
        %3166 = vmatprep.subr.bf16.mxu0 %v3117
        %3167 = vmatpush1.bf16.msra.mxu0 %v3116
        %3168 = vmatprep.subr.bf16.mxu0 0
        %3169 = vmatpush1.bf16.msra.mxu0 0
        %3170 = vmatprep.subr.bf16.mxu0 0
        %3171 = vmatpush1.bf16.msra.mxu0 0
        %3172 = vmatprep.subr.bf16.mxu0 0
        %3173 = vmatpush1.bf16.msra.mxu0 0
        %3174 = vmatprep.subr.bf16.mxu0 0
        %3175 = vmatpush1.bf16.msra.mxu0 0
        %3176 = vmatprep.subr.bf16.mxu0 0
        %3177 = vmatpush1.bf16.msra.mxu0 0
        %3178 = vmatprep.subr.bf16.mxu0 0
        %3179 = vmatpush1.bf16.msra.mxu0 0
        %3180 = vmatprep.subr.bf16.mxu0 0
        %3181 = vmatpush1.bf16.msra.mxu0 0
        %3182 = vmatprep.subr.bf16.mxu0 0
        %3183 = vmatpush1.bf16.msra.mxu0 0
        %3184 = vmatprep.mubr.bf16.mxu0 0
        %3185 = vmatmul.mubr.bf16.gmra.mrb[0].mxu0 %v2935
        %v3186 = vpop.f32.mrb[0].mxu0
        %v3187 = vadd.f32 %v2975, %v3186
        %v3188 = vpop.f32.mrb[0].mxu0
        %v3189 = vadd.f32 %v2979, %v3188
        %v3190 = vpop.f32.mrb[0].mxu0
        %v3191 = vpop.f32.mrb[0].mxu0
        %3192 = vdwg.mxu0
        %3193 = vmatprep.subr.bf16.mxu0 %v3091
        %3194 = vmatpush1.bf16.msra.mxu0 %v3090
        %3195 = vmatprep.subr.bf16.mxu0 %v3095
        %3196 = vmatpush1.bf16.msra.mxu0 %v3094
        %3197 = vmatprep.subr.bf16.mxu0 %v3099
        %3198 = vmatpush1.bf16.msra.mxu0 %v3098
        %3199 = vmatprep.subr.bf16.mxu0 %v3103
        %3200 = vmatpush1.bf16.msra.mxu0 %v3102
        %3201 = vmatprep.subr.bf16.mxu0 %v3107
        %3202 = vmatpush1.bf16.msra.mxu0 %v3106
        %3203 = vmatprep.subr.bf16.mxu0 %v3111
        %3204 = vmatpush1.bf16.msra.mxu0 %v3110
        %3205 = vmatprep.subr.bf16.mxu0 %v3115
        %3206 = vmatpush1.bf16.msra.mxu0 %v3114
        %3207 = vmatprep.subr.bf16.mxu0 %v3119
        %3208 = vmatpush1.bf16.msra.mxu0 %v3118
        %3209 = vmatprep.subr.bf16.mxu0 0
        %3210 = vmatpush1.bf16.msra.mxu0 0
        %3211 = vmatprep.subr.bf16.mxu0 0
        %3212 = vmatpush1.bf16.msra.mxu0 0
        %3213 = vmatprep.subr.bf16.mxu0 0
        %3214 = vmatpush1.bf16.msra.mxu0 0
        %3215 = vmatprep.subr.bf16.mxu0 0
        %3216 = vmatpush1.bf16.msra.mxu0 0
        %3217 = vmatprep.subr.bf16.mxu0 0
        %3218 = vmatpush1.bf16.msra.mxu0 0
        %3219 = vmatprep.subr.bf16.mxu0 0
        %3220 = vmatpush1.bf16.msra.mxu0 0
        %3221 = vmatprep.subr.bf16.mxu0 0
        %3222 = vmatpush1.bf16.msra.mxu0 0
        %3223 = vmatprep.subr.bf16.mxu0 0
        %3224 = vmatpush1.bf16.msra.mxu0 0
        %3225 = vmatprep.mubr.bf16.mxu0 0
        %3226 = vmatmul.mubr.bf16.gmra.mrb[0].mxu0 %v2935
        %v3227 = vpop.f32.mrb[0].mxu0
        %v3228 = vadd.f32 %v2983, %v3227
        %v3229 = vpop.f32.mrb[0].mxu0
        %v3230 = vadd.f32 %v2987, %v3229
        %v3231 = vpop.f32.mrb[0].mxu0
        %v3232 = vpop.f32.mrb[0].mxu0
        %3233 = vdwg.mxu0
        %s3234 = smul.addr %s2626, 8
        %s3235 = scalar_lea.vmem [#allocation5], %s3234
        %3236 = vst [vmem:[%s3235] sm:$0xff] %v3187
        %3237 = vst [vmem:[%s3235 + $0x8] sm:$0xff] %v3189
        %3238 = vst [vmem:[%s3235 + $0x10] sm:$0xff] %v3228
        %3239 = vst [vmem:[%s3235 + $0x18] sm:$0xff] %v3230
        %s3240 = scalar_lea.vmem [#allocation2], 4
        %v3241 = vld [vmem:[%s3240] sm:$0xf]
        %s3242 = scalar_lea.vmem [#allocation3], 8
        %v3243 = vld [vmem:[%s3242] sm:$0xff]
        %v3244 = vld [vmem:[%s1387] sm:$0xff]
        %v3245 = vld [vmem:[%s1387 + $0x8] sm:$0xff]
        %v3246 = vld [vmem:[%s1387 + $0x10] sm:$0xff]
        %v3247 = vld [vmem:[%s1387 + $0x18] sm:$0xff]
        %v3248 = vld [vmem:[#allocation11] sm:$0xff]
        %v3249 = vld [vmem:[#allocation11 + $0x8] sm:$0xff]
        %v3250 = vld [vmem:[#allocation11 + $0x10] sm:$0xff]
        %v3251 = vld [vmem:[#allocation11 + $0x18] sm:$0xff]
        %v3252 = vld [vmem:[#allocation11 + $0x20] sm:$0xff]
        %v3253 = vld [vmem:[#allocation11 + $0x28] sm:$0xff]
        %v3254 = vld [vmem:[#allocation11 + $0x30] sm:$0xff]
        %v3255 = vld [vmem:[#allocation11 + $0x38] sm:$0xff]
        %v3256 = vld [vmem:[#allocation11 + $0x40] sm:$0xff]
        %v3257 = vld [vmem:[#allocation11 + $0x48] sm:$0xff]
        %v3258 = vld [vmem:[#allocation11 + $0x50] sm:$0xff]
        %v3259 = vld [vmem:[#allocation11 + $0x58] sm:$0xff]
        %v3260 = vld [vmem:[#allocation11 + $0x60] sm:$0xff]
        %v3261 = vld [vmem:[#allocation11 + $0x68] sm:$0xff]
        %v3262 = vld [vmem:[#allocation11 + $0x70] sm:$0xff]
        %v3263 = vld [vmem:[#allocation11 + $0x78] sm:$0xff]
        %v3264 = vld [vmem:[#allocation11 + $0x80] sm:$0xff]
        %v3265 = vld [vmem:[#allocation11 + $0x88] sm:$0xff]
        %v3266 = vld [vmem:[#allocation11 + $0x90] sm:$0xff]
        %v3267 = vld [vmem:[#allocation11 + $0x98] sm:$0xff]
        %v3268 = vld [vmem:[#allocation11 + $0xa0] sm:$0xff]
        %v3269 = vld [vmem:[#allocation11 + $0xa8] sm:$0xff]
        %v3270 = vld [vmem:[#allocation11 + $0xb0] sm:$0xff]
        %v3271 = vld [vmem:[#allocation11 + $0xb8] sm:$0xff]
        %v3272 = vld [vmem:[#allocation11 + $0xc0] sm:$0xff]
        %v3273 = vld [vmem:[#allocation11 + $0xc8] sm:$0xff]
        %v3274 = vld [vmem:[#allocation11 + $0xd0] sm:$0xff]
        %v3275 = vld [vmem:[#allocation11 + $0xd8] sm:$0xff]
        %v3276 = vld [vmem:[#allocation11 + $0xe0] sm:$0xff]
        %v3277 = vld [vmem:[#allocation11 + $0xe8] sm:$0xff]
        %v3278 = vld [vmem:[#allocation11 + $0xf0] sm:$0xff]
        %v3279 = vld [vmem:[#allocation11 + $0xf8] sm:$0xff]
        %v3312 = vunpack.c.l.b16 %v3248
        %v3313 = vunpack.c.h.b16 %v3248
        %v3314 = vunpack.c.l.b16 %v3249
        %v3315 = vunpack.c.h.b16 %v3249
        %v3316 = vunpack.c.l.b16 %v3250
        %v3317 = vunpack.c.h.b16 %v3250
        %v3318 = vunpack.c.l.b16 %v3251
        %v3319 = vunpack.c.h.b16 %v3251
        %v3320 = vunpack.c.l.b16 %v3252
        %v3321 = vunpack.c.h.b16 %v3252
        %v3322 = vunpack.c.l.b16 %v3253
        %v3323 = vunpack.c.h.b16 %v3253
        %v3324 = vunpack.c.l.b16 %v3254
        %v3325 = vunpack.c.h.b16 %v3254
        %v3326 = vunpack.c.l.b16 %v3255
        %v3327 = vunpack.c.h.b16 %v3255
        %v3328 = vunpack.c.l.b16 %v3256
        %v3329 = vunpack.c.h.b16 %v3256
        %v3330 = vunpack.c.l.b16 %v3257
        %v3331 = vunpack.c.h.b16 %v3257
        %v3332 = vunpack.c.l.b16 %v3258
        %v3333 = vunpack.c.h.b16 %v3258
        %v3334 = vunpack.c.l.b16 %v3259
        %v3335 = vunpack.c.h.b16 %v3259
        %v3336 = vunpack.c.l.b16 %v3260
        %v3337 = vunpack.c.h.b16 %v3260
        %v3338 = vunpack.c.l.b16 %v3261
        %v3339 = vunpack.c.h.b16 %v3261
        %v3340 = vunpack.c.l.b16 %v3262
        %v3341 = vunpack.c.h.b16 %v3262
        %v3342 = vunpack.c.l.b16 %v3263
        %v3343 = vunpack.c.h.b16 %v3263
        %v3344 = vunpack.c.l.b16 %v3264
        %v3345 = vunpack.c.h.b16 %v3264
        %v3346 = vunpack.c.l.b16 %v3265
        %v3347 = vunpack.c.h.b16 %v3265
        %v3348 = vunpack.c.l.b16 %v3266
        %v3349 = vunpack.c.h.b16 %v3266
        %v3350 = vunpack.c.l.b16 %v3267
        %v3351 = vunpack.c.h.b16 %v3267
        %v3352 = vunpack.c.l.b16 %v3268
        %v3353 = vunpack.c.h.b16 %v3268
        %v3354 = vunpack.c.l.b16 %v3269
        %v3355 = vunpack.c.h.b16 %v3269
        %v3356 = vunpack.c.l.b16 %v3270
        %v3357 = vunpack.c.h.b16 %v3270
        %v3358 = vunpack.c.l.b16 %v3271
        %v3359 = vunpack.c.h.b16 %v3271
        %v3360 = vunpack.c.l.b16 %v3272
        %v3361 = vunpack.c.h.b16 %v3272
        %v3362 = vunpack.c.l.b16 %v3273
        %v3363 = vunpack.c.h.b16 %v3273
        %v3364 = vunpack.c.l.b16 %v3274
        %v3365 = vunpack.c.h.b16 %v3274
        %v3366 = vunpack.c.l.b16 %v3275
        %v3367 = vunpack.c.h.b16 %v3275
        %v3368 = vunpack.c.l.b16 %v3276
        %v3369 = vunpack.c.h.b16 %v3276
        %v3370 = vunpack.c.l.b16 %v3277
        %v3371 = vunpack.c.h.b16 %v3277
        %v3372 = vunpack.c.l.b16 %v3278
        %v3373 = vunpack.c.h.b16 %v3278
        %v3374 = vunpack.c.l.b16 %v3279
        %v3375 = vunpack.c.h.b16 %v3279
        %v3376 = vpack.c.b16 %v3316, %v3312
        %v3377 = vpack.c.b16 %v3317, %v3313
        %v3378 = vpack.c.b16 %v3318, %v3314
        %v3379 = vpack.c.b16 %v3319, %v3315
        %v3380 = vpack.c.b16 %v3324, %v3320
        %v3381 = vpack.c.b16 %v3325, %v3321
        %v3382 = vpack.c.b16 %v3326, %v3322
        %v3383 = vpack.c.b16 %v3327, %v3323
        %v3384 = vpack.c.b16 %v3332, %v3328
        %v3385 = vpack.c.b16 %v3333, %v3329
        %v3386 = vpack.c.b16 %v3334, %v3330
        %v3387 = vpack.c.b16 %v3335, %v3331
        %v3388 = vpack.c.b16 %v3340, %v3336
        %v3389 = vpack.c.b16 %v3341, %v3337
        %v3390 = vpack.c.b16 %v3342, %v3338
        %v3391 = vpack.c.b16 %v3343, %v3339
        %v3392 = vpack.c.b16 %v3348, %v3344
        %v3393 = vpack.c.b16 %v3349, %v3345
        %v3394 = vpack.c.b16 %v3350, %v3346
        %v3395 = vpack.c.b16 %v3351, %v3347
        %v3396 = vpack.c.b16 %v3356, %v3352
        %v3397 = vpack.c.b16 %v3357, %v3353
        %v3398 = vpack.c.b16 %v3358, %v3354
        %v3399 = vpack.c.b16 %v3359, %v3355
        %v3400 = vpack.c.b16 %v3364, %v3360
        %v3401 = vpack.c.b16 %v3365, %v3361
        %v3402 = vpack.c.b16 %v3366, %v3362
        %v3403 = vpack.c.b16 %v3367, %v3363
        %v3404 = vpack.c.b16 %v3372, %v3368
        %v3405 = vpack.c.b16 %v3373, %v3369
        %v3406 = vpack.c.b16 %v3374, %v3370
        %v3407 = vpack.c.b16 %v3375, %v3371
        %3440 = vmatprep.subr.bf16.mxu0 %v3377
        %3441 = vmatpush1.bf16.msra.mxu0 %v3376
        %3442 = vmatprep.subr.bf16.mxu0 %v3381
        %3443 = vmatpush1.bf16.msra.mxu0 %v3380
        %3444 = vmatprep.subr.bf16.mxu0 %v3385
        %3445 = vmatpush1.bf16.msra.mxu0 %v3384
        %3446 = vmatprep.subr.bf16.mxu0 %v3389
        %3447 = vmatpush1.bf16.msra.mxu0 %v3388
        %3448 = vmatprep.subr.bf16.mxu0 %v3393
        %3449 = vmatpush1.bf16.msra.mxu0 %v3392
        %3450 = vmatprep.subr.bf16.mxu0 %v3397
        %3451 = vmatpush1.bf16.msra.mxu0 %v3396
        %3452 = vmatprep.subr.bf16.mxu0 %v3401
        %3453 = vmatpush1.bf16.msra.mxu0 %v3400
        %3454 = vmatprep.subr.bf16.mxu0 %v3405
        %3455 = vmatpush1.bf16.msra.mxu0 %v3404
        %3456 = vmatprep.subr.bf16.mxu0 0
        %3457 = vmatpush1.bf16.msra.mxu0 0
        %3458 = vmatprep.subr.bf16.mxu0 0
        %3459 = vmatpush1.bf16.msra.mxu0 0
        %3460 = vmatprep.subr.bf16.mxu0 0
        %3461 = vmatpush1.bf16.msra.mxu0 0
        %3462 = vmatprep.subr.bf16.mxu0 0
        %3463 = vmatpush1.bf16.msra.mxu0 0
        %3464 = vmatprep.subr.bf16.mxu0 0
        %3465 = vmatpush1.bf16.msra.mxu0 0
        %3466 = vmatprep.subr.bf16.mxu0 0
        %3467 = vmatpush1.bf16.msra.mxu0 0
        %3468 = vmatprep.subr.bf16.mxu0 0
        %3469 = vmatpush1.bf16.msra.mxu0 0
        %3470 = vmatprep.subr.bf16.mxu0 0
        %3471 = vmatpush1.bf16.msra.mxu0 0
        %3472 = vmatprep.mubr.bf16.mxu0 0
        %3473 = vmatmul.mubr.bf16.gmra.mrb[0].mxu0 %v3241
        %v3474 = vpop.f32.mrb[0].mxu0
        %v3475 = vadd.f32 0.0, %v3474
        %v3476 = vpop.f32.mrb[0].mxu0
        %v3477 = vadd.f32 0.0, %v3476
        %v3478 = vpop.f32.mrb[0].mxu0
        %v3479 = vpop.f32.mrb[0].mxu0
        %3480 = vdwg.mxu0
        %3481 = vmatprep.subr.bf16.mxu0 %v3379
        %3482 = vmatpush1.bf16.msra.mxu0 %v3378
        %3483 = vmatprep.subr.bf16.mxu0 %v3383
        %3484 = vmatpush1.bf16.msra.mxu0 %v3382
        %3485 = vmatprep.subr.bf16.mxu0 %v3387
        %3486 = vmatpush1.bf16.msra.mxu0 %v3386
        %3487 = vmatprep.subr.bf16.mxu0 %v3391
        %3488 = vmatpush1.bf16.msra.mxu0 %v3390
        %3489 = vmatprep.subr.bf16.mxu0 %v3395
        %3490 = vmatpush1.bf16.msra.mxu0 %v3394
        %3491 = vmatprep.subr.bf16.mxu0 %v3399
        %3492 = vmatpush1.bf16.msra.mxu0 %v3398
        %3493 = vmatprep.subr.bf16.mxu0 %v3403
        %3494 = vmatpush1.bf16.msra.mxu0 %v3402
        %3495 = vmatprep.subr.bf16.mxu0 %v3407
        %3496 = vmatpush1.bf16.msra.mxu0 %v3406
        %3497 = vmatprep.subr.bf16.mxu0 0
        %3498 = vmatpush1.bf16.msra.mxu0 0
        %3499 = vmatprep.subr.bf16.mxu0 0
        %3500 = vmatpush1.bf16.msra.mxu0 0
        %3501 = vmatprep.subr.bf16.mxu0 0
        %3502 = vmatpush1.bf16.msra.mxu0 0
        %3503 = vmatprep.subr.bf16.mxu0 0
        %3504 = vmatpush1.bf16.msra.mxu0 0
        %3505 = vmatprep.subr.bf16.mxu0 0
        %3506 = vmatpush1.bf16.msra.mxu0 0
        %3507 = vmatprep.subr.bf16.mxu0 0
        %3508 = vmatpush1.bf16.msra.mxu0 0
        %3509 = vmatprep.subr.bf16.mxu0 0
        %3510 = vmatpush1.bf16.msra.mxu0 0
        %3511 = vmatprep.subr.bf16.mxu0 0
        %3512 = vmatpush1.bf16.msra.mxu0 0
        %3513 = vmatprep.mubr.bf16.mxu0 0
        %3514 = vmatmul.mubr.bf16.gmra.mrb[0].mxu0 %v3241
        %v3515 = vpop.f32.mrb[0].mxu0
        %v3516 = vadd.f32 0.0, %v3515
        %v3517 = vpop.f32.mrb[0].mxu0
        %v3518 = vadd.f32 0.0, %v3517
        %v3519 = vpop.f32.mrb[0].mxu0
        %v3520 = vpop.f32.mrb[0].mxu0
        %3521 = vdwg.mxu0
        %v3522 = vadd.f32 %v3244, %v3475
        %v3523 = vadd.f32 %v3245, %v3477
        %v3524 = vadd.f32 %v3246, %v3516
        %v3525 = vadd.f32 %v3247, %v3518
        %v3526 = vxor.u32 %v3522, 2147483648
        %v3527 = vmul.f32 %v3526, 1.442695
        %v3528 = vpow.pop %v3527
        %v3529 = vadd.f32 %v3528, 1.0
        %v3530 = vrcp.pop %v3529
        %v3531 = vmul.f32 1.0, %v3530
        %v3532 = vxor.u32 %v3523, 2147483648
        %v3533 = vmul.f32 %v3532, 1.442695
        %v3534 = vpow.pop %v3533
        %v3535 = vadd.f32 %v3534, 1.0
        %v3536 = vrcp.pop %v3535
        %v3537 = vmul.f32 1.0, %v3536
        %v3538 = vtanh.pop %v3524
        %v3539 = vxor.u32 %v3525, 2147483648
        %v3540 = vmul.f32 %v3539, 1.442695
        %v3541 = vpow.pop %v3540
        %v3542 = vadd.f32 %v3541, 1.0
        %v3543 = vrcp.pop %v3542
        %v3544 = vmul.f32 1.0, %v3543
        %v3545 = vmul.f32 %v3537, %v3243
        %v3546 = vmul.f32 %v3531, %v3538
        %v3547 = vadd.f32 %v3545, %v3546
        %v3548 = vtanh.pop %v3547
        %v3549 = vmul.f32 %v3544, %v3548
        %v3550 = vpack.c.bf16 %v3549, %v3549
        %3551 = vst [vmem:[%s3240] sm:$0xf] %v3550
        %3552 = vst [vmem:[%s3242] sm:$0xff] %v3547
        %v3553 = vld [vmem:[%s3240] sm:$0xf]
        %v3554 = vld [vmem:[%s3242] sm:$0xff]
        %v3555 = vld [vmem:[%s2003] sm:$0xff]
        %v3556 = vld [vmem:[%s2003 + $0x8] sm:$0xff]
        %v3557 = vld [vmem:[%s2003 + $0x10] sm:$0xff]
        %v3558 = vld [vmem:[%s2003 + $0x18] sm:$0xff]
        %v3559 = vld [vmem:[#allocation11] sm:$0xff]
        %v3560 = vld [vmem:[#allocation11 + $0x8] sm:$0xff]
        %v3561 = vld [vmem:[#allocation11 + $0x10] sm:$0xff]
        %v3562 = vld [vmem:[#allocation11 + $0x18] sm:$0xff]
        %v3563 = vld [vmem:[#allocation11 + $0x20] sm:$0xff]
        %v3564 = vld [vmem:[#allocation11 + $0x28] sm:$0xff]
        %v3565 = vld [vmem:[#allocation11 + $0x30] sm:$0xff]
        %v3566 = vld [vmem:[#allocation11 + $0x38] sm:$0xff]
        %v3567 = vld [vmem:[#allocation11 + $0x40] sm:$0xff]
        %v3568 = vld [vmem:[#allocation11 + $0x48] sm:$0xff]
        %v3569 = vld [vmem:[#allocation11 + $0x50] sm:$0xff]
        %v3570 = vld [vmem:[#allocation11 + $0x58] sm:$0xff]
        %v3571 = vld [vmem:[#allocation11 + $0x60] sm:$0xff]
        %v3572 = vld [vmem:[#allocation11 + $0x68] sm:$0xff]
        %v3573 = vld [vmem:[#allocation11 + $0x70] sm:$0xff]
        %v3574 = vld [vmem:[#allocation11 + $0x78] sm:$0xff]
        %v3575 = vld [vmem:[#allocation11 + $0x80] sm:$0xff]
        %v3576 = vld [vmem:[#allocation11 + $0x88] sm:$0xff]
        %v3577 = vld [vmem:[#allocation11 + $0x90] sm:$0xff]
        %v3578 = vld [vmem:[#allocation11 + $0x98] sm:$0xff]
        %v3579 = vld [vmem:[#allocation11 + $0xa0] sm:$0xff]
        %v3580 = vld [vmem:[#allocation11 + $0xa8] sm:$0xff]
        %v3581 = vld [vmem:[#allocation11 + $0xb0] sm:$0xff]
        %v3582 = vld [vmem:[#allocation11 + $0xb8] sm:$0xff]
        %v3583 = vld [vmem:[#allocation11 + $0xc0] sm:$0xff]
        %v3584 = vld [vmem:[#allocation11 + $0xc8] sm:$0xff]
        %v3585 = vld [vmem:[#allocation11 + $0xd0] sm:$0xff]
        %v3586 = vld [vmem:[#allocation11 + $0xd8] sm:$0xff]
        %v3587 = vld [vmem:[#allocation11 + $0xe0] sm:$0xff]
        %v3588 = vld [vmem:[#allocation11 + $0xe8] sm:$0xff]
        %v3589 = vld [vmem:[#allocation11 + $0xf0] sm:$0xff]
        %v3590 = vld [vmem:[#allocation11 + $0xf8] sm:$0xff]
        %v3623 = vunpack.c.l.b16 %v3559
        %v3624 = vunpack.c.h.b16 %v3559
        %v3625 = vunpack.c.l.b16 %v3560
        %v3626 = vunpack.c.h.b16 %v3560
        %v3627 = vunpack.c.l.b16 %v3561
        %v3628 = vunpack.c.h.b16 %v3561
        %v3629 = vunpack.c.l.b16 %v3562
        %v3630 = vunpack.c.h.b16 %v3562
        %v3631 = vunpack.c.l.b16 %v3563
        %v3632 = vunpack.c.h.b16 %v3563
        %v3633 = vunpack.c.l.b16 %v3564
        %v3634 = vunpack.c.h.b16 %v3564
        %v3635 = vunpack.c.l.b16 %v3565
        %v3636 = vunpack.c.h.b16 %v3565
        %v3637 = vunpack.c.l.b16 %v3566
        %v3638 = vunpack.c.h.b16 %v3566
        %v3639 = vunpack.c.l.b16 %v3567
        %v3640 = vunpack.c.h.b16 %v3567
        %v3641 = vunpack.c.l.b16 %v3568
        %v3642 = vunpack.c.h.b16 %v3568
        %v3643 = vunpack.c.l.b16 %v3569
        %v3644 = vunpack.c.h.b16 %v3569
        %v3645 = vunpack.c.l.b16 %v3570
        %v3646 = vunpack.c.h.b16 %v3570
        %v3647 = vunpack.c.l.b16 %v3571
        %v3648 = vunpack.c.h.b16 %v3571
        %v3649 = vunpack.c.l.b16 %v3572
        %v3650 = vunpack.c.h.b16 %v3572
        %v3651 = vunpack.c.l.b16 %v3573
        %v3652 = vunpack.c.h.b16 %v3573
        %v3653 = vunpack.c.l.b16 %v3574
        %v3654 = vunpack.c.h.b16 %v3574
        %v3655 = vunpack.c.l.b16 %v3575
        %v3656 = vunpack.c.h.b16 %v3575
        %v3657 = vunpack.c.l.b16 %v3576
        %v3658 = vunpack.c.h.b16 %v3576
        %v3659 = vunpack.c.l.b16 %v3577
        %v3660 = vunpack.c.h.b16 %v3577
        %v3661 = vunpack.c.l.b16 %v3578
        %v3662 = vunpack.c.h.b16 %v3578
        %v3663 = vunpack.c.l.b16 %v3579
        %v3664 = vunpack.c.h.b16 %v3579
        %v3665 = vunpack.c.l.b16 %v3580
        %v3666 = vunpack.c.h.b16 %v3580
        %v3667 = vunpack.c.l.b16 %v3581
        %v3668 = vunpack.c.h.b16 %v3581
        %v3669 = vunpack.c.l.b16 %v3582
        %v3670 = vunpack.c.h.b16 %v3582
        %v3671 = vunpack.c.l.b16 %v3583
        %v3672 = vunpack.c.h.b16 %v3583
        %v3673 = vunpack.c.l.b16 %v3584
        %v3674 = vunpack.c.h.b16 %v3584
        %v3675 = vunpack.c.l.b16 %v3585
        %v3676 = vunpack.c.h.b16 %v3585
        %v3677 = vunpack.c.l.b16 %v3586
        %v3678 = vunpack.c.h.b16 %v3586
        %v3679 = vunpack.c.l.b16 %v3587
        %v3680 = vunpack.c.h.b16 %v3587
        %v3681 = vunpack.c.l.b16 %v3588
        %v3682 = vunpack.c.h.b16 %v3588
        %v3683 = vunpack.c.l.b16 %v3589
        %v3684 = vunpack.c.h.b16 %v3589
        %v3685 = vunpack.c.l.b16 %v3590
        %v3686 = vunpack.c.h.b16 %v3590
        %v3687 = vpack.c.b16 %v3627, %v3623
        %v3688 = vpack.c.b16 %v3628, %v3624
        %v3689 = vpack.c.b16 %v3629, %v3625
        %v3690 = vpack.c.b16 %v3630, %v3626
        %v3691 = vpack.c.b16 %v3635, %v3631
        %v3692 = vpack.c.b16 %v3636, %v3632
        %v3693 = vpack.c.b16 %v3637, %v3633
        %v3694 = vpack.c.b16 %v3638, %v3634
        %v3695 = vpack.c.b16 %v3643, %v3639
        %v3696 = vpack.c.b16 %v3644, %v3640
        %v3697 = vpack.c.b16 %v3645, %v3641
        %v3698 = vpack.c.b16 %v3646, %v3642
        %v3699 = vpack.c.b16 %v3651, %v3647
        %v3700 = vpack.c.b16 %v3652, %v3648
        %v3701 = vpack.c.b16 %v3653, %v3649
        %v3702 = vpack.c.b16 %v3654, %v3650
        %v3703 = vpack.c.b16 %v3659, %v3655
        %v3704 = vpack.c.b16 %v3660, %v3656
        %v3705 = vpack.c.b16 %v3661, %v3657
        %v3706 = vpack.c.b16 %v3662, %v3658
        %v3707 = vpack.c.b16 %v3667, %v3663
        %v3708 = vpack.c.b16 %v3668, %v3664
        %v3709 = vpack.c.b16 %v3669, %v3665
        %v3710 = vpack.c.b16 %v3670, %v3666
        %v3711 = vpack.c.b16 %v3675, %v3671
        %v3712 = vpack.c.b16 %v3676, %v3672
        %v3713 = vpack.c.b16 %v3677, %v3673
        %v3714 = vpack.c.b16 %v3678, %v3674
        %v3715 = vpack.c.b16 %v3683, %v3679
        %v3716 = vpack.c.b16 %v3684, %v3680
        %v3717 = vpack.c.b16 %v3685, %v3681
        %v3718 = vpack.c.b16 %v3686, %v3682
        %3751 = vmatprep.subr.bf16.mxu0 %v3688
        %3752 = vmatpush1.bf16.msra.mxu0 %v3687
        %3753 = vmatprep.subr.bf16.mxu0 %v3692
        %3754 = vmatpush1.bf16.msra.mxu0 %v3691
        %3755 = vmatprep.subr.bf16.mxu0 %v3696
        %3756 = vmatpush1.bf16.msra.mxu0 %v3695
        %3757 = vmatprep.subr.bf16.mxu0 %v3700
        %3758 = vmatpush1.bf16.msra.mxu0 %v3699
        %3759 = vmatprep.subr.bf16.mxu0 %v3704
        %3760 = vmatpush1.bf16.msra.mxu0 %v3703
        %3761 = vmatprep.subr.bf16.mxu0 %v3708
        %3762 = vmatpush1.bf16.msra.mxu0 %v3707
        %3763 = vmatprep.subr.bf16.mxu0 %v3712
        %3764 = vmatpush1.bf16.msra.mxu0 %v3711
        %3765 = vmatprep.subr.bf16.mxu0 %v3716
        %3766 = vmatpush1.bf16.msra.mxu0 %v3715
        %3767 = vmatprep.subr.bf16.mxu0 0
        %3768 = vmatpush1.bf16.msra.mxu0 0
        %3769 = vmatprep.subr.bf16.mxu0 0
        %3770 = vmatpush1.bf16.msra.mxu0 0
        %3771 = vmatprep.subr.bf16.mxu0 0
        %3772 = vmatpush1.bf16.msra.mxu0 0
        %3773 = vmatprep.subr.bf16.mxu0 0
        %3774 = vmatpush1.bf16.msra.mxu0 0
        %3775 = vmatprep.subr.bf16.mxu0 0
        %3776 = vmatpush1.bf16.msra.mxu0 0
        %3777 = vmatprep.subr.bf16.mxu0 0
        %3778 = vmatpush1.bf16.msra.mxu0 0
        %3779 = vmatprep.subr.bf16.mxu0 0
        %3780 = vmatpush1.bf16.msra.mxu0 0
        %3781 = vmatprep.subr.bf16.mxu0 0
        %3782 = vmatpush1.bf16.msra.mxu0 0
        %3783 = vmatprep.mubr.bf16.mxu0 0
        %3784 = vmatmul.mubr.bf16.gmra.mrb[0].mxu0 %v3553
        %v3785 = vpop.f32.mrb[0].mxu0
        %v3786 = vadd.f32 0.0, %v3785
        %v3787 = vpop.f32.mrb[0].mxu0
        %v3788 = vadd.f32 0.0, %v3787
        %v3789 = vpop.f32.mrb[0].mxu0
        %v3790 = vpop.f32.mrb[0].mxu0
        %3791 = vdwg.mxu0
        %3792 = vmatprep.subr.bf16.mxu0 %v3690
        %3793 = vmatpush1.bf16.msra.mxu0 %v3689
        %3794 = vmatprep.subr.bf16.mxu0 %v3694
        %3795 = vmatpush1.bf16.msra.mxu0 %v3693
        %3796 = vmatprep.subr.bf16.mxu0 %v3698
        %3797 = vmatpush1.bf16.msra.mxu0 %v3697
        %3798 = vmatprep.subr.bf16.mxu0 %v3702
        %3799 = vmatpush1.bf16.msra.mxu0 %v3701
        %3800 = vmatprep.subr.bf16.mxu0 %v3706
        %3801 = vmatpush1.bf16.msra.mxu0 %v3705
        %3802 = vmatprep.subr.bf16.mxu0 %v3710
        %3803 = vmatpush1.bf16.msra.mxu0 %v3709
        %3804 = vmatprep.subr.bf16.mxu0 %v3714
        %3805 = vmatpush1.bf16.msra.mxu0 %v3713
        %3806 = vmatprep.subr.bf16.mxu0 %v3718
        %3807 = vmatpush1.bf16.msra.mxu0 %v3717
        %3808 = vmatprep.subr.bf16.mxu0 0
        %3809 = vmatpush1.bf16.msra.mxu0 0
        %3810 = vmatprep.subr.bf16.mxu0 0
        %3811 = vmatpush1.bf16.msra.mxu0 0
        %3812 = vmatprep.subr.bf16.mxu0 0
        %3813 = vmatpush1.bf16.msra.mxu0 0
        %3814 = vmatprep.subr.bf16.mxu0 0
        %3815 = vmatpush1.bf16.msra.mxu0 0
        %3816 = vmatprep.subr.bf16.mxu0 0
        %3817 = vmatpush1.bf16.msra.mxu0 0
        %3818 = vmatprep.subr.bf16.mxu0 0
        %3819 = vmatpush1.bf16.msra.mxu0 0
        %3820 = vmatprep.subr.bf16.mxu0 0
        %3821 = vmatpush1.bf16.msra.mxu0 0
        %3822 = vmatprep.subr.bf16.mxu0 0
        %3823 = vmatpush1.bf16.msra.mxu0 0
        %3824 = vmatprep.mubr.bf16.mxu0 0
        %3825 = vmatmul.mubr.bf16.gmra.mrb[0].mxu0 %v3553
        %v3826 = vpop.f32.mrb[0].mxu0
        %v3827 = vadd.f32 0.0, %v3826
        %v3828 = vpop.f32.mrb[0].mxu0
        %v3829 = vadd.f32 0.0, %v3828
        %v3830 = vpop.f32.mrb[0].mxu0
        %v3831 = vpop.f32.mrb[0].mxu0
        %3832 = vdwg.mxu0
        %v3833 = vadd.f32 %v3555, %v3786
        %v3834 = vadd.f32 %v3556, %v3788
        %v3835 = vadd.f32 %v3557, %v3827
        %v3836 = vadd.f32 %v3558, %v3829
        %v3837 = vxor.u32 %v3833, 2147483648
        %v3838 = vmul.f32 %v3837, 1.442695
        %v3839 = vpow.pop %v3838
        %v3840 = vadd.f32 %v3839, 1.0
        %v3841 = vrcp.pop %v3840
        %v3842 = vmul.f32 1.0, %v3841
        %v3843 = vxor.u32 %v3834, 2147483648
        %v3844 = vmul.f32 %v3843, 1.442695
        %v3845 = vpow.pop %v3844
        %v3846 = vadd.f32 %v3845, 1.0
        %v3847 = vrcp.pop %v3846
        %v3848 = vmul.f32 1.0, %v3847
        %v3849 = vtanh.pop %v3835
        %v3850 = vxor.u32 %v3836, 2147483648
        %v3851 = vmul.f32 %v3850, 1.442695
        %v3852 = vpow.pop %v3851
        %v3853 = vadd.f32 %v3852, 1.0
        %v3854 = vrcp.pop %v3853
        %v3855 = vmul.f32 1.0, %v3854
        %v3856 = vmul.f32 %v3848, %v3554
        %v3857 = vmul.f32 %v3842, %v3849
        %v3858 = vadd.f32 %v3856, %v3857
        %v3859 = vtanh.pop %v3858
        %v3860 = vmul.f32 %v3855, %v3859
        %v3861 = vpack.c.bf16 %v3860, %v3860
        %3862 = vst [vmem:[%s3240] sm:$0xf] %v3861
        %3863 = vst [vmem:[%s3242] sm:$0xff] %v3858
        %v3864 = vld [vmem:[%s3240] sm:$0xf]
        %v3865 = vld [vmem:[%s3242] sm:$0xff]
        %v3866 = vld [vmem:[%s2619] sm:$0xff]
        %v3867 = vld [vmem:[%s2619 + $0x8] sm:$0xff]
        %v3868 = vld [vmem:[%s2619 + $0x10] sm:$0xff]
        %v3869 = vld [vmem:[%s2619 + $0x18] sm:$0xff]
        %v3870 = vld [vmem:[#allocation11] sm:$0xff]
        %v3871 = vld [vmem:[#allocation11 + $0x8] sm:$0xff]
        %v3872 = vld [vmem:[#allocation11 + $0x10] sm:$0xff]
        %v3873 = vld [vmem:[#allocation11 + $0x18] sm:$0xff]
        %v3874 = vld [vmem:[#allocation11 + $0x20] sm:$0xff]
        %v3875 = vld [vmem:[#allocation11 + $0x28] sm:$0xff]
        %v3876 = vld [vmem:[#allocation11 + $0x30] sm:$0xff]
        %v3877 = vld [vmem:[#allocation11 + $0x38] sm:$0xff]
        %v3878 = vld [vmem:[#allocation11 + $0x40] sm:$0xff]
        %v3879 = vld [vmem:[#allocation11 + $0x48] sm:$0xff]
        %v3880 = vld [vmem:[#allocation11 + $0x50] sm:$0xff]
        %v3881 = vld [vmem:[#allocation11 + $0x58] sm:$0xff]
        %v3882 = vld [vmem:[#allocation11 + $0x60] sm:$0xff]
        %v3883 = vld [vmem:[#allocation11 + $0x68] sm:$0xff]
        %v3884 = vld [vmem:[#allocation11 + $0x70] sm:$0xff]
        %v3885 = vld [vmem:[#allocation11 + $0x78] sm:$0xff]
        %v3886 = vld [vmem:[#allocation11 + $0x80] sm:$0xff]
        %v3887 = vld [vmem:[#allocation11 + $0x88] sm:$0xff]
        %v3888 = vld [vmem:[#allocation11 + $0x90] sm:$0xff]
        %v3889 = vld [vmem:[#allocation11 + $0x98] sm:$0xff]
        %v3890 = vld [vmem:[#allocation11 + $0xa0] sm:$0xff]
        %v3891 = vld [vmem:[#allocation11 + $0xa8] sm:$0xff]
        %v3892 = vld [vmem:[#allocation11 + $0xb0] sm:$0xff]
        %v3893 = vld [vmem:[#allocation11 + $0xb8] sm:$0xff]
        %v3894 = vld [vmem:[#allocation11 + $0xc0] sm:$0xff]
        %v3895 = vld [vmem:[#allocation11 + $0xc8] sm:$0xff]
        %v3896 = vld [vmem:[#allocation11 + $0xd0] sm:$0xff]
        %v3897 = vld [vmem:[#allocation11 + $0xd8] sm:$0xff]
        %v3898 = vld [vmem:[#allocation11 + $0xe0] sm:$0xff]
        %v3899 = vld [vmem:[#allocation11 + $0xe8] sm:$0xff]
        %v3900 = vld [vmem:[#allocation11 + $0xf0] sm:$0xff]
        %v3901 = vld [vmem:[#allocation11 + $0xf8] sm:$0xff]
        %v3934 = vunpack.c.l.b16 %v3870
        %v3935 = vunpack.c.h.b16 %v3870
        %v3936 = vunpack.c.l.b16 %v3871
        %v3937 = vunpack.c.h.b16 %v3871
        %v3938 = vunpack.c.l.b16 %v3872
        %v3939 = vunpack.c.h.b16 %v3872
        %v3940 = vunpack.c.l.b16 %v3873
        %v3941 = vunpack.c.h.b16 %v3873
        %v3942 = vunpack.c.l.b16 %v3874
        %v3943 = vunpack.c.h.b16 %v3874
        %v3944 = vunpack.c.l.b16 %v3875
        %v3945 = vunpack.c.h.b16 %v3875
        %v3946 = vunpack.c.l.b16 %v3876
        %v3947 = vunpack.c.h.b16 %v3876
        %v3948 = vunpack.c.l.b16 %v3877
        %v3949 = vunpack.c.h.b16 %v3877
        %v3950 = vunpack.c.l.b16 %v3878
        %v3951 = vunpack.c.h.b16 %v3878
        %v3952 = vunpack.c.l.b16 %v3879
        %v3953 = vunpack.c.h.b16 %v3879
        %v3954 = vunpack.c.l.b16 %v3880
        %v3955 = vunpack.c.h.b16 %v3880
        %v3956 = vunpack.c.l.b16 %v3881
        %v3957 = vunpack.c.h.b16 %v3881
        %v3958 = vunpack.c.l.b16 %v3882
        %v3959 = vunpack.c.h.b16 %v3882
        %v3960 = vunpack.c.l.b16 %v3883
        %v3961 = vunpack.c.h.b16 %v3883
        %v3962 = vunpack.c.l.b16 %v3884
        %v3963 = vunpack.c.h.b16 %v3884
        %v3964 = vunpack.c.l.b16 %v3885
        %v3965 = vunpack.c.h.b16 %v3885
        %v3966 = vunpack.c.l.b16 %v3886
        %v3967 = vunpack.c.h.b16 %v3886
        %v3968 = vunpack.c.l.b16 %v3887
        %v3969 = vunpack.c.h.b16 %v3887
        %v3970 = vunpack.c.l.b16 %v3888
        %v3971 = vunpack.c.h.b16 %v3888
        %v3972 = vunpack.c.l.b16 %v3889
        %v3973 = vunpack.c.h.b16 %v3889
        %v3974 = vunpack.c.l.b16 %v3890
        %v3975 = vunpack.c.h.b16 %v3890
        %v3976 = vunpack.c.l.b16 %v3891
        %v3977 = vunpack.c.h.b16 %v3891
        %v3978 = vunpack.c.l.b16 %v3892
        %v3979 = vunpack.c.h.b16 %v3892
        %v3980 = vunpack.c.l.b16 %v3893
        %v3981 = vunpack.c.h.b16 %v3893
        %v3982 = vunpack.c.l.b16 %v3894
        %v3983 = vunpack.c.h.b16 %v3894
        %v3984 = vunpack.c.l.b16 %v3895
        %v3985 = vunpack.c.h.b16 %v3895
        %v3986 = vunpack.c.l.b16 %v3896
        %v3987 = vunpack.c.h.b16 %v3896
        %v3988 = vunpack.c.l.b16 %v3897
        %v3989 = vunpack.c.h.b16 %v3897
        %v3990 = vunpack.c.l.b16 %v3898
        %v3991 = vunpack.c.h.b16 %v3898
        %v3992 = vunpack.c.l.b16 %v3899
        %v3993 = vunpack.c.h.b16 %v3899
        %v3994 = vunpack.c.l.b16 %v3900
        %v3995 = vunpack.c.h.b16 %v3900
        %v3996 = vunpack.c.l.b16 %v3901
        %v3997 = vunpack.c.h.b16 %v3901
        %v3998 = vpack.c.b16 %v3938, %v3934
        %v3999 = vpack.c.b16 %v3939, %v3935
        %v4000 = vpack.c.b16 %v3940, %v3936
        %v4001 = vpack.c.b16 %v3941, %v3937
        %v4002 = vpack.c.b16 %v3946, %v3942
        %v4003 = vpack.c.b16 %v3947, %v3943
        %v4004 = vpack.c.b16 %v3948, %v3944
        %v4005 = vpack.c.b16 %v3949, %v3945
        %v4006 = vpack.c.b16 %v3954, %v3950
        %v4007 = vpack.c.b16 %v3955, %v3951
        %v4008 = vpack.c.b16 %v3956, %v3952
        %v4009 = vpack.c.b16 %v3957, %v3953
        %v4010 = vpack.c.b16 %v3962, %v3958
        %v4011 = vpack.c.b16 %v3963, %v3959
        %v4012 = vpack.c.b16 %v3964, %v3960
        %v4013 = vpack.c.b16 %v3965, %v3961
        %v4014 = vpack.c.b16 %v3970, %v3966
        %v4015 = vpack.c.b16 %v3971, %v3967
        %v4016 = vpack.c.b16 %v3972, %v3968
        %v4017 = vpack.c.b16 %v3973, %v3969
        %v4018 = vpack.c.b16 %v3978, %v3974
        %v4019 = vpack.c.b16 %v3979, %v3975
        %v4020 = vpack.c.b16 %v3980, %v3976
        %v4021 = vpack.c.b16 %v3981, %v3977
        %v4022 = vpack.c.b16 %v3986, %v3982
        %v4023 = vpack.c.b16 %v3987, %v3983
        %v4024 = vpack.c.b16 %v3988, %v3984
        %v4025 = vpack.c.b16 %v3989, %v3985
        %v4026 = vpack.c.b16 %v3994, %v3990
        %v4027 = vpack.c.b16 %v3995, %v3991
        %v4028 = vpack.c.b16 %v3996, %v3992
        %v4029 = vpack.c.b16 %v3997, %v3993
        %4062 = vmatprep.subr.bf16.mxu0 %v3999
        %4063 = vmatpush1.bf16.msra.mxu0 %v3998
        %4064 = vmatprep.subr.bf16.mxu0 %v4003
        %4065 = vmatpush1.bf16.msra.mxu0 %v4002
        %4066 = vmatprep.subr.bf16.mxu0 %v4007
        %4067 = vmatpush1.bf16.msra.mxu0 %v4006
        %4068 = vmatprep.subr.bf16.mxu0 %v4011
        %4069 = vmatpush1.bf16.msra.mxu0 %v4010
        %4070 = vmatprep.subr.bf16.mxu0 %v4015
        %4071 = vmatpush1.bf16.msra.mxu0 %v4014
        %4072 = vmatprep.subr.bf16.mxu0 %v4019
        %4073 = vmatpush1.bf16.msra.mxu0 %v4018
        %4074 = vmatprep.subr.bf16.mxu0 %v4023
        %4075 = vmatpush1.bf16.msra.mxu0 %v4022
        %4076 = vmatprep.subr.bf16.mxu0 %v4027
        %4077 = vmatpush1.bf16.msra.mxu0 %v4026
        %4078 = vmatprep.subr.bf16.mxu0 0
        %4079 = vmatpush1.bf16.msra.mxu0 0
        %4080 = vmatprep.subr.bf16.mxu0 0
        %4081 = vmatpush1.bf16.msra.mxu0 0
        %4082 = vmatprep.subr.bf16.mxu0 0
        %4083 = vmatpush1.bf16.msra.mxu0 0
        %4084 = vmatprep.subr.bf16.mxu0 0
        %4085 = vmatpush1.bf16.msra.mxu0 0
        %4086 = vmatprep.subr.bf16.mxu0 0
        %4087 = vmatpush1.bf16.msra.mxu0 0
        %4088 = vmatprep.subr.bf16.mxu0 0
        %4089 = vmatpush1.bf16.msra.mxu0 0
        %4090 = vmatprep.subr.bf16.mxu0 0
        %4091 = vmatpush1.bf16.msra.mxu0 0
        %4092 = vmatprep.subr.bf16.mxu0 0
        %4093 = vmatpush1.bf16.msra.mxu0 0
        %4094 = vmatprep.mubr.bf16.mxu0 0
        %4095 = vmatmul.mubr.bf16.gmra.mrb[0].mxu0 %v3864
        %v4096 = vpop.f32.mrb[0].mxu0
        %v4097 = vadd.f32 0.0, %v4096
        %v4098 = vpop.f32.mrb[0].mxu0
        %v4099 = vadd.f32 0.0, %v4098
        %v4100 = vpop.f32.mrb[0].mxu0
        %v4101 = vpop.f32.mrb[0].mxu0
        %4102 = vdwg.mxu0
        %4103 = vmatprep.subr.bf16.mxu0 %v4001
        %4104 = vmatpush1.bf16.msra.mxu0 %v4000
        %4105 = vmatprep.subr.bf16.mxu0 %v4005
        %4106 = vmatpush1.bf16.msra.mxu0 %v4004
        %4107 = vmatprep.subr.bf16.mxu0 %v4009
        %4108 = vmatpush1.bf16.msra.mxu0 %v4008
        %4109 = vmatprep.subr.bf16.mxu0 %v4013
        %4110 = vmatpush1.bf16.msra.mxu0 %v4012
        %4111 = vmatprep.subr.bf16.mxu0 %v4017
        %4112 = vmatpush1.bf16.msra.mxu0 %v4016
        %4113 = vmatprep.subr.bf16.mxu0 %v4021
        %4114 = vmatpush1.bf16.msra.mxu0 %v4020
        %4115 = vmatprep.subr.bf16.mxu0 %v4025
        %4116 = vmatpush1.bf16.msra.mxu0 %v4024
        %4117 = vmatprep.subr.bf16.mxu0 %v4029
        %4118 = vmatpush1.bf16.msra.mxu0 %v4028
        %4119 = vmatprep.subr.bf16.mxu0 0
        %4120 = vmatpush1.bf16.msra.mxu0 0
        %4121 = vmatprep.subr.bf16.mxu0 0
        %4122 = vmatpush1.bf16.msra.mxu0 0
        %4123 = vmatprep.subr.bf16.mxu0 0
        %4124 = vmatpush1.bf16.msra.mxu0 0
        %4125 = vmatprep.subr.bf16.mxu0 0
        %4126 = vmatpush1.bf16.msra.mxu0 0
        %4127 = vmatprep.subr.bf16.mxu0 0
        %4128 = vmatpush1.bf16.msra.mxu0 0
        %4129 = vmatprep.subr.bf16.mxu0 0
        %4130 = vmatpush1.bf16.msra.mxu0 0
        %4131 = vmatprep.subr.bf16.mxu0 0
        %4132 = vmatpush1.bf16.msra.mxu0 0
        %4133 = vmatprep.subr.bf16.mxu0 0
        %4134 = vmatpush1.bf16.msra.mxu0 0
        %4135 = vmatprep.mubr.bf16.mxu0 0
        %4136 = vmatmul.mubr.bf16.gmra.mrb[0].mxu0 %v3864
        %v4137 = vpop.f32.mrb[0].mxu0
        %v4138 = vadd.f32 0.0, %v4137
        %v4139 = vpop.f32.mrb[0].mxu0
        %v4140 = vadd.f32 0.0, %v4139
        %v4141 = vpop.f32.mrb[0].mxu0
        %v4142 = vpop.f32.mrb[0].mxu0
        %4143 = vdwg.mxu0
        %v4144 = vadd.f32 %v3866, %v4097
        %v4145 = vadd.f32 %v3867, %v4099
        %v4146 = vadd.f32 %v3868, %v4138
        %v4147 = vadd.f32 %v3869, %v4140
        %v4148 = vxor.u32 %v4144, 2147483648
        %v4149 = vmul.f32 %v4148, 1.442695
        %v4150 = vpow.pop %v4149
        %v4151 = vadd.f32 %v4150, 1.0
        %v4152 = vrcp.pop %v4151
        %v4153 = vmul.f32 1.0, %v4152
        %v4154 = vxor.u32 %v4145, 2147483648
        %v4155 = vmul.f32 %v4154, 1.442695
        %v4156 = vpow.pop %v4155
        %v4157 = vadd.f32 %v4156, 1.0
        %v4158 = vrcp.pop %v4157
        %v4159 = vmul.f32 1.0, %v4158
        %v4160 = vtanh.pop %v4146
        %v4161 = vxor.u32 %v4147, 2147483648
        %v4162 = vmul.f32 %v4161, 1.442695
        %v4163 = vpow.pop %v4162
        %v4164 = vadd.f32 %v4163, 1.0
        %v4165 = vrcp.pop %v4164
        %v4166 = vmul.f32 1.0, %v4165
        %v4167 = vmul.f32 %v4159, %v3865
        %v4168 = vmul.f32 %v4153, %v4160
        %v4169 = vadd.f32 %v4167, %v4168
        %v4170 = vtanh.pop %v4169
        %v4171 = vmul.f32 %v4166, %v4170
        %v4172 = vpack.c.bf16 %v4171, %v4171
        %4173 = vst [vmem:[%s3240] sm:$0xf] %v4172
        %4174 = vst [vmem:[%s3242] sm:$0xff] %v4169
        %v4175 = vld [vmem:[%s3240] sm:$0xf]
        %v4176 = vld [vmem:[%s3242] sm:$0xff]
        %v4177 = vld [vmem:[%s3235] sm:$0xff]
        %v4178 = vld [vmem:[%s3235 + $0x8] sm:$0xff]
        %v4179 = vld [vmem:[%s3235 + $0x10] sm:$0xff]
        %v4180 = vld [vmem:[%s3235 + $0x18] sm:$0xff]
        %v4181 = vld [vmem:[#allocation11] sm:$0xff]
        %v4182 = vld [vmem:[#allocation11 + $0x8] sm:$0xff]
        %v4183 = vld [vmem:[#allocation11 + $0x10] sm:$0xff]
        %v4184 = vld [vmem:[#allocation11 + $0x18] sm:$0xff]
        %v4185 = vld [vmem:[#allocation11 + $0x20] sm:$0xff]
        %v4186 = vld [vmem:[#allocation11 + $0x28] sm:$0xff]
        %v4187 = vld [vmem:[#allocation11 + $0x30] sm:$0xff]
        %v4188 = vld [vmem:[#allocation11 + $0x38] sm:$0xff]
        %v4189 = vld [vmem:[#allocation11 + $0x40] sm:$0xff]
        %v4190 = vld [vmem:[#allocation11 + $0x48] sm:$0xff]
        %v4191 = vld [vmem:[#allocation11 + $0x50] sm:$0xff]
        %v4192 = vld [vmem:[#allocation11 + $0x58] sm:$0xff]
        %v4193 = vld [vmem:[#allocation11 + $0x60] sm:$0xff]
        %v4194 = vld [vmem:[#allocation11 + $0x68] sm:$0xff]
        %v4195 = vld [vmem:[#allocation11 + $0x70] sm:$0xff]
        %v4196 = vld [vmem:[#allocation11 + $0x78] sm:$0xff]
        %v4197 = vld [vmem:[#allocation11 + $0x80] sm:$0xff]
        %v4198 = vld [vmem:[#allocation11 + $0x88] sm:$0xff]
        %v4199 = vld [vmem:[#allocation11 + $0x90] sm:$0xff]
        %v4200 = vld [vmem:[#allocation11 + $0x98] sm:$0xff]
        %v4201 = vld [vmem:[#allocation11 + $0xa0] sm:$0xff]
        %v4202 = vld [vmem:[#allocation11 + $0xa8] sm:$0xff]
        %v4203 = vld [vmem:[#allocation11 + $0xb0] sm:$0xff]
        %v4204 = vld [vmem:[#allocation11 + $0xb8] sm:$0xff]
        %v4205 = vld [vmem:[#allocation11 + $0xc0] sm:$0xff]
        %v4206 = vld [vmem:[#allocation11 + $0xc8] sm:$0xff]
        %v4207 = vld [vmem:[#allocation11 + $0xd0] sm:$0xff]
        %v4208 = vld [vmem:[#allocation11 + $0xd8] sm:$0xff]
        %v4209 = vld [vmem:[#allocation11 + $0xe0] sm:$0xff]
        %v4210 = vld [vmem:[#allocation11 + $0xe8] sm:$0xff]
        %v4211 = vld [vmem:[#allocation11 + $0xf0] sm:$0xff]
        %v4212 = vld [vmem:[#allocation11 + $0xf8] sm:$0xff]
        %v4245 = vunpack.c.l.b16 %v4181
        %v4246 = vunpack.c.h.b16 %v4181
        %v4247 = vunpack.c.l.b16 %v4182
        %v4248 = vunpack.c.h.b16 %v4182
        %v4249 = vunpack.c.l.b16 %v4183
        %v4250 = vunpack.c.h.b16 %v4183
        %v4251 = vunpack.c.l.b16 %v4184
        %v4252 = vunpack.c.h.b16 %v4184
        %v4253 = vunpack.c.l.b16 %v4185
        %v4254 = vunpack.c.h.b16 %v4185
        %v4255 = vunpack.c.l.b16 %v4186
        %v4256 = vunpack.c.h.b16 %v4186
        %v4257 = vunpack.c.l.b16 %v4187
        %v4258 = vunpack.c.h.b16 %v4187
        %v4259 = vunpack.c.l.b16 %v4188
        %v4260 = vunpack.c.h.b16 %v4188
        %v4261 = vunpack.c.l.b16 %v4189
        %v4262 = vunpack.c.h.b16 %v4189
        %v4263 = vunpack.c.l.b16 %v4190
        %v4264 = vunpack.c.h.b16 %v4190
        %v4265 = vunpack.c.l.b16 %v4191
        %v4266 = vunpack.c.h.b16 %v4191
        %v4267 = vunpack.c.l.b16 %v4192
        %v4268 = vunpack.c.h.b16 %v4192
        %v4269 = vunpack.c.l.b16 %v4193
        %v4270 = vunpack.c.h.b16 %v4193
        %v4271 = vunpack.c.l.b16 %v4194
        %v4272 = vunpack.c.h.b16 %v4194
        %v4273 = vunpack.c.l.b16 %v4195
        %v4274 = vunpack.c.h.b16 %v4195
        %v4275 = vunpack.c.l.b16 %v4196
        %v4276 = vunpack.c.h.b16 %v4196
        %v4277 = vunpack.c.l.b16 %v4197
        %v4278 = vunpack.c.h.b16 %v4197
        %v4279 = vunpack.c.l.b16 %v4198
        %v4280 = vunpack.c.h.b16 %v4198
        %v4281 = vunpack.c.l.b16 %v4199
        %v4282 = vunpack.c.h.b16 %v4199
        %v4283 = vunpack.c.l.b16 %v4200
        %v4284 = vunpack.c.h.b16 %v4200
        %v4285 = vunpack.c.l.b16 %v4201
        %v4286 = vunpack.c.h.b16 %v4201
        %v4287 = vunpack.c.l.b16 %v4202
        %v4288 = vunpack.c.h.b16 %v4202
        %v4289 = vunpack.c.l.b16 %v4203
        %v4290 = vunpack.c.h.b16 %v4203
        %v4291 = vunpack.c.l.b16 %v4204
        %v4292 = vunpack.c.h.b16 %v4204
        %v4293 = vunpack.c.l.b16 %v4205
        %v4294 = vunpack.c.h.b16 %v4205
        %v4295 = vunpack.c.l.b16 %v4206
        %v4296 = vunpack.c.h.b16 %v4206
        %v4297 = vunpack.c.l.b16 %v4207
        %v4298 = vunpack.c.h.b16 %v4207
        %v4299 = vunpack.c.l.b16 %v4208
        %v4300 = vunpack.c.h.b16 %v4208
        %v4301 = vunpack.c.l.b16 %v4209
        %v4302 = vunpack.c.h.b16 %v4209
        %v4303 = vunpack.c.l.b16 %v4210
        %v4304 = vunpack.c.h.b16 %v4210
        %v4305 = vunpack.c.l.b16 %v4211
        %v4306 = vunpack.c.h.b16 %v4211
        %v4307 = vunpack.c.l.b16 %v4212
        %v4308 = vunpack.c.h.b16 %v4212
        %v4309 = vpack.c.b16 %v4249, %v4245
        %v4310 = vpack.c.b16 %v4250, %v4246
        %v4311 = vpack.c.b16 %v4251, %v4247
        %v4312 = vpack.c.b16 %v4252, %v4248
        %v4313 = vpack.c.b16 %v4257, %v4253
        %v4314 = vpack.c.b16 %v4258, %v4254
        %v4315 = vpack.c.b16 %v4259, %v4255
        %v4316 = vpack.c.b16 %v4260, %v4256
        %v4317 = vpack.c.b16 %v4265, %v4261
        %v4318 = vpack.c.b16 %v4266, %v4262
        %v4319 = vpack.c.b16 %v4267, %v4263
        %v4320 = vpack.c.b16 %v4268, %v4264
        %v4321 = vpack.c.b16 %v4273, %v4269
        %v4322 = vpack.c.b16 %v4274, %v4270
        %v4323 = vpack.c.b16 %v4275, %v4271
        %v4324 = vpack.c.b16 %v4276, %v4272
        %v4325 = vpack.c.b16 %v4281, %v4277
        %v4326 = vpack.c.b16 %v4282, %v4278
        %v4327 = vpack.c.b16 %v4283, %v4279
        %v4328 = vpack.c.b16 %v4284, %v4280
        %v4329 = vpack.c.b16 %v4289, %v4285
        %v4330 = vpack.c.b16 %v4290, %v4286
        %v4331 = vpack.c.b16 %v4291, %v4287
        %v4332 = vpack.c.b16 %v4292, %v4288
        %v4333 = vpack.c.b16 %v4297, %v4293
        %v4334 = vpack.c.b16 %v4298, %v4294
        %v4335 = vpack.c.b16 %v4299, %v4295
        %v4336 = vpack.c.b16 %v4300, %v4296
        %v4337 = vpack.c.b16 %v4305, %v4301
        %v4338 = vpack.c.b16 %v4306, %v4302
        %v4339 = vpack.c.b16 %v4307, %v4303
        %v4340 = vpack.c.b16 %v4308, %v4304
        %4373 = vmatprep.subr.bf16.mxu0 %v4310
        %4374 = vmatpush1.bf16.msra.mxu0 %v4309
        %4375 = vmatprep.subr.bf16.mxu0 %v4314
        %4376 = vmatpush1.bf16.msra.mxu0 %v4313
        %4377 = vmatprep.subr.bf16.mxu0 %v4318
        %4378 = vmatpush1.bf16.msra.mxu0 %v4317
        %4379 = vmatprep.subr.bf16.mxu0 %v4322
        %4380 = vmatpush1.bf16.msra.mxu0 %v4321
        %4381 = vmatprep.subr.bf16.mxu0 %v4326
        %4382 = vmatpush1.bf16.msra.mxu0 %v4325
        %4383 = vmatprep.subr.bf16.mxu0 %v4330
        %4384 = vmatpush1.bf16.msra.mxu0 %v4329
        %4385 = vmatprep.subr.bf16.mxu0 %v4334
        %4386 = vmatpush1.bf16.msra.mxu0 %v4333
        %4387 = vmatprep.subr.bf16.mxu0 %v4338
        %4388 = vmatpush1.bf16.msra.mxu0 %v4337
        %4389 = vmatprep.subr.bf16.mxu0 0
        %4390 = vmatpush1.bf16.msra.mxu0 0
        %4391 = vmatprep.subr.bf16.mxu0 0
        %4392 = vmatpush1.bf16.msra.mxu0 0
        %4393 = vmatprep.subr.bf16.mxu0 0
        %4394 = vmatpush1.bf16.msra.mxu0 0
        %4395 = vmatprep.subr.bf16.mxu0 0
        %4396 = vmatpush1.bf16.msra.mxu0 0
        %4397 = vmatprep.subr.bf16.mxu0 0
        %4398 = vmatpush1.bf16.msra.mxu0 0
        %4399 = vmatprep.subr.bf16.mxu0 0
        %4400 = vmatpush1.bf16.msra.mxu0 0
        %4401 = vmatprep.subr.bf16.mxu0 0
        %4402 = vmatpush1.bf16.msra.mxu0 0
        %4403 = vmatprep.subr.bf16.mxu0 0
        %4404 = vmatpush1.bf16.msra.mxu0 0
        %4405 = vmatprep.mubr.bf16.mxu0 0
        %4406 = vmatmul.mubr.bf16.gmra.mrb[0].mxu0 %v4175
        %v4407 = vpop.f32.mrb[0].mxu0
        %v4408 = vadd.f32 0.0, %v4407
        %v4409 = vpop.f32.mrb[0].mxu0
        %v4410 = vadd.f32 0.0, %v4409
        %v4411 = vpop.f32.mrb[0].mxu0
        %v4412 = vpop.f32.mrb[0].mxu0
        %4413 = vdwg.mxu0
        %4414 = vmatprep.subr.bf16.mxu0 %v4312
        %4415 = vmatpush1.bf16.msra.mxu0 %v4311
        %4416 = vmatprep.subr.bf16.mxu0 %v4316
        %4417 = vmatpush1.bf16.msra.mxu0 %v4315
        %4418 = vmatprep.subr.bf16.mxu0 %v4320
        %4419 = vmatpush1.bf16.msra.mxu0 %v4319
        %4420 = vmatprep.subr.bf16.mxu0 %v4324
        %4421 = vmatpush1.bf16.msra.mxu0 %v4323
        %4422 = vmatprep.subr.bf16.mxu0 %v4328
        %4423 = vmatpush1.bf16.msra.mxu0 %v4327
        %4424 = vmatprep.subr.bf16.mxu0 %v4332
        %4425 = vmatpush1.bf16.msra.mxu0 %v4331
        %4426 = vmatprep.subr.bf16.mxu0 %v4336
        %4427 = vmatpush1.bf16.msra.mxu0 %v4335
        %4428 = vmatprep.subr.bf16.mxu0 %v4340
        %4429 = vmatpush1.bf16.msra.mxu0 %v4339
        %4430 = vmatprep.subr.bf16.mxu0 0
        %4431 = vmatpush1.bf16.msra.mxu0 0
        %4432 = vmatprep.subr.bf16.mxu0 0
        %4433 = vmatpush1.bf16.msra.mxu0 0
        %4434 = vmatprep.subr.bf16.mxu0 0
        %4435 = vmatpush1.bf16.msra.mxu0 0
        %4436 = vmatprep.subr.bf16.mxu0 0
        %4437 = vmatpush1.bf16.msra.mxu0 0
        %4438 = vmatprep.subr.bf16.mxu0 0
        %4439 = vmatpush1.bf16.msra.mxu0 0
        %4440 = vmatprep.subr.bf16.mxu0 0
        %4441 = vmatpush1.bf16.msra.mxu0 0
        %4442 = vmatprep.subr.bf16.mxu0 0
        %4443 = vmatpush1.bf16.msra.mxu0 0
        %4444 = vmatprep.subr.bf16.mxu0 0
        %4445 = vmatpush1.bf16.msra.mxu0 0
        %4446 = vmatprep.mubr.bf16.mxu0 0
        %4447 = vmatmul.mubr.bf16.gmra.mrb[0].mxu0 %v4175
        %v4448 = vpop.f32.mrb[0].mxu0
        %v4449 = vadd.f32 0.0, %v4448
        %v4450 = vpop.f32.mrb[0].mxu0
        %v4451 = vadd.f32 0.0, %v4450
        %v4452 = vpop.f32.mrb[0].mxu0
        %v4453 = vpop.f32.mrb[0].mxu0
        %4454 = vdwg.mxu0
        %v4455 = vadd.f32 %v4177, %v4408
        %v4456 = vadd.f32 %v4178, %v4410
        %v4457 = vadd.f32 %v4179, %v4449
        %v4458 = vadd.f32 %v4180, %v4451
        %v4459 = vxor.u32 %v4455, 2147483648
        %v4460 = vmul.f32 %v4459, 1.442695
        %v4461 = vpow.pop %v4460
        %v4462 = vadd.f32 %v4461, 1.0
        %v4463 = vrcp.pop %v4462
        %v4464 = vmul.f32 1.0, %v4463
        %v4465 = vxor.u32 %v4456, 2147483648
        %v4466 = vmul.f32 %v4465, 1.442695
        %v4467 = vpow.pop %v4466
        %v4468 = vadd.f32 %v4467, 1.0
        %v4469 = vrcp.pop %v4468
        %v4470 = vmul.f32 1.0, %v4469
        %v4471 = vtanh.pop %v4457
        %v4472 = vxor.u32 %v4458, 2147483648
        %v4473 = vmul.f32 %v4472, 1.442695
        %v4474 = vpow.pop %v4473
        %v4475 = vadd.f32 %v4474, 1.0
        %v4476 = vrcp.pop %v4475
        %v4477 = vmul.f32 1.0, %v4476
        %v4478 = vmul.f32 %v4470, %v4176
        %v4479 = vmul.f32 %v4464, %v4471
        %v4480 = vadd.f32 %v4478, %v4479
        %v4481 = vtanh.pop %v4480
        %v4482 = vmul.f32 %v4477, %v4481
        %v4483 = vpack.c.bf16 %v4482, %v4482
        %4484 = vst [vmem:[%s3240] sm:$0xf] %v4483
        %4485 = vst [vmem:[%s3242] sm:$0xff] %v4480
        %p4486 = scmp.eq.s32.totalorder %s28, 1
        // Predicated region
        $region77: #{lstm_model_forward.1} parent=55 // pred_check
          %p4487 = pneg %p4486
        $region78: #{lstm_model_forward.1} parent=55 // pred_check_branch
          %4489 = sbr.rel (%p4487) target = $region80
        $region79: #{lstm_model_forward.1} parent=55 // pred_region
          %v4490 = vld [vmem:[%s3240] sm:$0xf]
          %v4491 = vld [vmem:[%s7] sm:$0xf]
          %v4492 = vld [vmem:[%s7 + $0x4] sm:$0xf]
          %v4493 = vld [vmem:[%s7 + $0x8] sm:$0xf]
          %v4494 = vld [vmem:[%s7 + $0xc] sm:$0xf]
          %v4495 = vld [vmem:[%s7 + $0x10] sm:$0xf]
          %v4496 = vld [vmem:[%s7 + $0x14] sm:$0xf]
          %v4497 = vld [vmem:[%s7 + $0x18] sm:$0xf]
          %v4498 = vld [vmem:[%s7 + $0x1c] sm:$0xf]
          %v4499 = vld [vmem:[%s7 + $0x20] sm:$0xf]
          %v4500 = vld [vmem:[%s7 + $0x24] sm:$0xf]
          %v4501 = vld [vmem:[%s7 + $0x28] sm:$0xf]
          %v4502 = vld [vmem:[%s7 + $0x2c] sm:$0xf]
          %v4503 = vld [vmem:[%s7 + $0x30] sm:$0xf]
          %v4504 = vld [vmem:[%s7 + $0x34] sm:$0xf]
          %v4505 = vld [vmem:[%s7 + $0x38] sm:$0xf]
          %v4506 = vld [vmem:[%s7 + $0x3c] sm:$0xf]
          %v4507 = vld [vmem:[%s8] sm:$0x1]
          %v4509 = vlaneseq
          %v4510 = vshrl.u32 %v4509, 7
          %v4511 = vsub.s32 0, %v4510
          %v4512 = vrot.slane %v4507, %v4511
          %v4530 = vunpack.c.l.b16 %v4491
          %v4531 = vunpack.c.l.b16 %v4492
          %v4532 = vunpack.c.l.b16 %v4493
          %v4533 = vunpack.c.l.b16 %v4494
          %v4534 = vunpack.c.l.b16 %v4495
          %v4535 = vunpack.c.l.b16 %v4496
          %v4536 = vunpack.c.l.b16 %v4497
          %v4537 = vunpack.c.l.b16 %v4498
          %v4538 = vunpack.c.l.b16 %v4499
          %v4539 = vunpack.c.l.b16 %v4500
          %v4540 = vunpack.c.l.b16 %v4501
          %v4541 = vunpack.c.l.b16 %v4502
          %v4542 = vunpack.c.l.b16 %v4503
          %v4543 = vunpack.c.l.b16 %v4504
          %v4544 = vunpack.c.l.b16 %v4505
          %v4545 = vunpack.c.l.b16 %v4506
          %v4546 = vpack.c.b16 %v4531, %v4530
          %v4547 = vpack.c.b16 %v4533, %v4532
          %v4548 = vpack.c.b16 %v4535, %v4534
          %v4549 = vpack.c.b16 %v4537, %v4536
          %v4550 = vpack.c.b16 %v4539, %v4538
          %v4551 = vpack.c.b16 %v4541, %v4540
          %v4552 = vpack.c.b16 %v4543, %v4542
          %v4553 = vpack.c.b16 %v4545, %v4544
          %4562 = vmatprep.subr.bf16.mxu0 0
          %4563 = vmatpush1.bf16.msra.mxu0 %v4546
          %4564 = vmatprep.subr.bf16.mxu0 0
          %4565 = vmatpush1.bf16.msra.mxu0 %v4547
          %4566 = vmatprep.subr.bf16.mxu0 0
          %4567 = vmatpush1.bf16.msra.mxu0 %v4548
          %4568 = vmatprep.subr.bf16.mxu0 0
          %4569 = vmatpush1.bf16.msra.mxu0 %v4549
          %4570 = vmatprep.subr.bf16.mxu0 0
          %4571 = vmatpush1.bf16.msra.mxu0 %v4550
          %4572 = vmatprep.subr.bf16.mxu0 0
          %4573 = vmatpush1.bf16.msra.mxu0 %v4551
          %4574 = vmatprep.subr.bf16.mxu0 0
          %4575 = vmatpush1.bf16.msra.mxu0 %v4552
          %4576 = vmatprep.subr.bf16.mxu0 0
          %4577 = vmatpush1.bf16.msra.mxu0 %v4553
          %4578 = vmatprep.subr.bf16.mxu0 0
          %4579 = vmatpush1.bf16.msra.mxu0 0
          %4580 = vmatprep.subr.bf16.mxu0 0
          %4581 = vmatpush1.bf16.msra.mxu0 0
          %4582 = vmatprep.subr.bf16.mxu0 0
          %4583 = vmatpush1.bf16.msra.mxu0 0
          %4584 = vmatprep.subr.bf16.mxu0 0
          %4585 = vmatpush1.bf16.msra.mxu0 0
          %4586 = vmatprep.subr.bf16.mxu0 0
          %4587 = vmatpush1.bf16.msra.mxu0 0
          %4588 = vmatprep.subr.bf16.mxu0 0
          %4589 = vmatpush1.bf16.msra.mxu0 0
          %4590 = vmatprep.subr.bf16.mxu0 0
          %4591 = vmatpush1.bf16.msra.mxu0 0
          %4592 = vmatprep.subr.bf16.mxu0 0
          %4593 = vmatpush1.bf16.msra.mxu0 0
          %4594 = vmatprep.mubr.bf16.mxu0 0
          %4595 = vmatmul.mubr.bf16.gmra.mrb[0].mxu0 %v4490
          %v4596 = vpop.f32.mrb[0].mxu0
          %v4597 = vadd.f32 %v4512, %v4596
          %v4598 = vpop.f32.mrb[0].mxu0
          %v4599 = vpop.f32.mrb[0].mxu0
          %v4600 = vpop.f32.mrb[0].mxu0
          %4601 = vdwg.mxu0
          %4602 = vst [vmem:[%s414] sm:$0xff] %v4597
        $region80: #{lstm_model_forward.1} parent=55 // pred_fallthru
          _
        %p4603 = scmp.lt.s32.totalorder %s27, 0
        %s4604 = scalar_select %p4603, %s27, 0
        %s4605 = smul.addr %s4604, 8
        %s4606 = scalar_lea.vmem %s9, %s4605
        // Predicated region
        $region81: #{lstm_model_forward.1} parent=55 // pred_check
          %p4607 = pneg %p249
        $region82: #{lstm_model_forward.1} parent=55 // pred_check_branch
          %4609 = sbr.rel (%p4607) target = $region84
        $region83: #{lstm_model_forward.1} parent=55 // pred_region
          _
        $region84: #{lstm_model_forward.1} parent=55 // pred_fallthru
          _
        // Predicated region
        $region85: #{lstm_model_forward.1} parent=55 // pred_check
          %p4610 = pneg %p249
        $region86: #{lstm_model_forward.1} parent=55 // pred_check_branch
          %4612 = sbr.rel (%p4610) target = $region88
        $region87: #{lstm_model_forward.1} parent=55 // pred_region
          %p4613 = scmp.lt.s32.totalorder %s27, 0
          %s4614 = scalar_select %p4613, %s27, 0
          %s4615 = smul.addr %s4614, 8
          %s4616 = scalar_lea.vmem %s9, %s4615
        $region88: #{lstm_model_forward.1} parent=55 // pred_fallthru
          _
      $region56: #{lstm_model_forward.1} parent=5 // pred_fallthru
        _
      %p4617 = scmp.le.s32.totalorder 2, %s18
      // Predicated region
      $region89: #{lstm_model_forward.1} parent=5 // pred_check
        %p4618 = pneg %p4617
      $region90: #{lstm_model_forward.1} parent=5 // pred_check_branch
        %4620 = sbr.rel (%p4618) target = $region92
      $region91: #{lstm_model_forward.1} parent=5 // pred_region
        %s4621 = ssub.s32 %s18, 2
      $region92: #{lstm_model_forward.1} parent=5 // pred_fallthru
        _
    $region6: #{lstm_model_forward.1} parent=1 // loop_footer
      %s22 = sadd.s32 1, %s18
    $region7: #{lstm_model_forward.1} parent=1 // loop_footer_branch
      %17 = sbr.rel target = $region3
    $region8: #{lstm_model_forward.1} parent=1 // loop_exit
      _
    %4622 = vsyncpa [#allocation7], 1
    %s4623 = scalar_lea.sflag [#allocation7], 1
    %4624 = vsyncpa %s4623, 1
    %4625 = vsyncpa [#allocation9], 1
    %4626 = vsyncpa [#allocation12], 1

</llo_original>
